<compile_context>
chip_gen: v7x
topology: tpu7x:2x2x1
jax: 0.10.0
libtpu: 0.0.40
codegen_flags: <defaults>
</compile_context>

<pallas_src>
import math

import jax
import jax.numpy as jnp
from jax.experimental import pallas as pl
from jax.experimental.pallas import tpu as pltpu

BN_EPS = 1e-5


# ------------------------------ fused ECG kernel ------------------------------
def _make_ecg_kernel(B, K, block_dims):
    """block_dims: tuple of (Lin, Cin, H) for each ConvNormPool block."""
    nb = len(block_dims)
    KM1 = K - 1

    def kernel(*refs):
        # refs layout:
        #   inputs : x(1), nb blocks x 12 params, fc_w, fc_b
        #   outputs: out
        #   scratch: per block (cols, pad), then avg
        x_ref = refs[0]
        blk_params = [refs[1 + 12 * i: 1 + 12 * (i + 1)] for i in range(nb)]
        fcw_ref = refs[1 + 12 * nb]
        fcb_ref = refs[2 + 12 * nb]
        out_ref = refs[3 + 12 * nb]
        scratch = refs[4 + 12 * nb:]
        cols_refs = [scratch[2 * i] for i in range(nb)]
        pad_refs = [scratch[2 * i + 1] for i in range(nb)]
        avg_ref = scratch[2 * nb]

        def run_block(src, dims, cols_ref, pad_ref, prm):
            Lin, Cin, H = dims
            L1 = Lin - K + 1
            (w1, b1, g1, be1, w2, b2, g2, be2, w3, b3, g3, be3) = prm

            def conv(s, csrc, w_ref, b_ref):
                # im2col: gather the K shifted tap slices along the channel
                # (lane) axis per batch, then ONE MXU matmul with M = B*L1
                # rows and contraction depth K*csrc (default precision).
                width = K * csrc
                for bb in range(B):
                    taps = [s[bb * Lin + t: bb * Lin + t + L1, :]
                            for t in range(K)]
                    cols_ref[bb * L1:(bb + 1) * L1, 0:width] = \
                        jnp.concatenate(taps, axis=1)
                return (jnp.dot(cols_ref[:, 0:width], w_ref[...],
                                preferred_element_type=jnp.float32)
                        + b_ref[...])

            def bn_swish(y, g_ref, be_ref):
                # BatchNorm1d training-mode batch stats over (B, L) per channel.
                mean = jnp.mean(y, axis=0, keepdims=True)
                var = jnp.mean(jnp.square(y - mean), axis=0, keepdims=True)
                z = (y - mean) * jax.lax.rsqrt(var + BN_EPS) * g_ref[...] \
                    + be_ref[...]
                return z * jax.nn.sigmoid(z)

            def pad_into(act):
                # F.pad(..., (K-1, 0)): data strips only; zero strips are
                # already in place (written once per block below).
                for bb in range(B):
                    pad_ref[bb * Lin + KM1:(bb + 1) * Lin, :] = \
                        act[bb * L1:(bb + 1) * L1, :]

            # Zero the K-1 leading pad rows once per block (never overwritten).
            for bb in range(B):
                pad_ref[bb * Lin: bb * Lin + KM1, :] = \
                    jnp.zeros((KM1, H), jnp.float32)

            c1 = conv(src, Cin, w1, b1)
            pad_into(bn_swish(c1, g1, be1))
            c2 = conv(pad_ref, H, w2, b2)
            pad_into(bn_swish(c2, g2, be2))
            c3 = conv(pad_ref, H, w3, b3)
            pad_into(bn_swish(c1 + c3, g3, be3))

            # MaxPool1d(kernel_size=2): stride-2 even/odd row reads + VPU max.
            half = (B * Lin) // 2
            even = pad_ref[pl.ds(0, half, stride=2), :]
            odd = pad_ref[pl.ds(1, half, stride=2), :]
            return jnp.maximum(even, odd)            # (B*Lin//2, H)

        h = x_ref
        for i in range(nb):
            h = run_block(h, block_dims[i], cols_refs[i], pad_refs[i],
                          blk_params[i])

        # Head: AdaptiveAvgPool1d(1) -> Linear -> Swish, batched in one matmul.
        Lf = block_dims[-1][0] // 2
        for bb in range(B):
            avg_ref[bb:bb + 1, :] = jnp.mean(h[bb * Lf:(bb + 1) * Lf, :],
                                             axis=0, keepdims=True)
        z = jnp.dot(avg_ref[...], fcw_ref[...],
                    preferred_element_type=jnp.float32) + fcb_ref[...]
        out_ref[...] = (z * jax.nn.sigmoid(z)).astype(out_ref.dtype)

    return kernel


# ---------------------------------- wrapper ----------------------------------
def _flatten_block_params(p):
    def flat_w(w):
        k, cin, h = w.shape
        return w.reshape(k * cin, h)      # row index = tap*Cin + channel
    return [flat_w(p['w1']), p['b1'], p['g1'], p['be1'],
            flat_w(p['w2']), p['b2'], p['g2'], p['be2'],
            flat_w(p['w3']), p['b3'], p['g3'], p['be3']]


def ecg_cnn_forward(x_ncl, params):
    # x_ncl: (B, C_in, L) -- PyTorch Conv1d layout.
    B, Cin, L = x_ncl.shape
    blocks = [params['block1'], params['block2'], params['block3']]
    K = blocks[0]['w1'].shape[0]

    block_dims = []
    flat_params = []
    Lin = L
    for p in blocks:
        _, cin_b, h_b = p['w1'].shape
        # MaxPool1d(2) floor semantics only exercised with even lengths here.
        assert Lin % 2 == 0 and Lin > K - 1, "length must stay even and > K-1"
        block_dims.append((Lin, cin_b, h_b))
        flat_params += _flatten_block_params(p)
        Lin //= 2
    h_last = block_dims[-1][2]
    out_f = params['fc_w'].shape[1]

    # channels-last, batch folded into rows: (B*L, C_in)
    x_flat = jnp.transpose(x_ncl, (0, 2, 1)).reshape(B * L, Cin)

    scratch = []
    for (li, ci, hi) in block_dims:
        l1 = li - K + 1
        scratch.append(pltpu.VMEM((B * l1, K * max(ci, hi)), jnp.float32))  # im2col
        scratch.append(pltpu.VMEM((B * li, hi), jnp.float32))               # padded act
    scratch.append(pltpu.VMEM((B, h_last), jnp.float32))                    # pooled means

    kernel = _make_ecg_kernel(B, K, tuple(block_dims))
    # TODO(synk): if B grows, add a batch grid axis with
    # dimension_semantics=("parallel",) so v7x's two TensorCores split the
    # batch, and lane-pack activations (H<128) for denser stores.
    return pl.pallas_call(
        kernel,
        out_shape=jax.ShapeDtypeStruct((B, out_f), jnp.float32),
        scratch_shapes=scratch,
    )(x_flat, *flat_params, params['fc_w'], params['fc_b'])


# ------------------------------- parameter init -------------------------------
def _init_block(key, cin, h, k):
    ks = jax.random.split(key, 6)

    def conv_w(kk, ci):
        return jax.random.normal(kk, (k, ci, h), jnp.float32) / math.sqrt(ci * k)

    def bias(kk):
        return jax.random.normal(kk, (1, h), jnp.float32) * 0.05

    ones = jnp.ones((1, h), jnp.float32)
    zeros = jnp.zeros((1, h), jnp.float32)
    return dict(
        w1=conv_w(ks[0], cin), b1=bias(ks[1]), g1=ones, be1=zeros,
        w2=conv_w(ks[2], h), b2=bias(ks[3]), g2=ones, be2=zeros,
        w3=conv_w(ks[4], h), b3=bias(ks[5]), g3=ones, be3=zeros,
    )


def init_params(key, input_size, hid, k, out_features=8):
    k1, k2, k3, k4, k5 = jax.random.split(key, 5)
    return dict(
        block1=_init_block(k1, input_size, hid, k),
        block2=_init_block(k2, hid, hid // 2, k),
        block3=_init_block(k3, hid // 2, hid // 4, k),
        fc_w=jax.random.normal(k4, (hid // 4, out_features), jnp.float32)
        / math.sqrt(hid // 4),
        fc_b=jax.random.normal(k5, (1, out_features), jnp.float32) * 0.05,
    )


# ------------------------------ pure-JAX reference ------------------------------
def _ref_conv1d(x, w, b):
    _, L, _ = x.shape
    K = w.shape[0]
    L1 = L - K + 1
    out = b
    for t in range(K):
        out = out + jnp.einsum('blc,co->blo', x[:, t:t + L1, :], w[t])
    return out


def _ref_bn_swish(y, g, be):
    mean = y.mean(axis=(0, 1), keepdims=True)
    var = ((y - mean) ** 2).mean(axis=(0, 1), keepdims=True)
    z = (y - mean) / jnp.sqrt(var + BN_EPS) * g + be
    return z * jax.nn.sigmoid(z)


def _ref_block(x, p):
    K = p['w1'].shape[0]

    def pad(y):
        B, _, C = y.shape
        return jnp.concatenate([jnp.zeros((B, K - 1, C), y.dtype), y], axis=1)

    c1 = _ref_conv1d(x, p['w1'], p['b1'])
    a = pad(_ref_bn_swish(c1, p['g1'], p['be1']))
    c2 = _ref_conv1d(a, p['w2'], p['b2'])
    a = pad(_ref_bn_swish(c2, p['g2'], p['be2']))
    c3 = _ref_conv1d(a, p['w3'], p['b3'])
    a = pad(_ref_bn_swish(c1 + c3, p['g3'], p['be3']))
    B, L, C = a.shape
    Lp = L // 2
    return a[:, :2 * Lp, :].reshape(B, Lp, 2, C).max(axis=2)


def _ref_forward(x_ncl, params):
    h = jnp.transpose(x_ncl, (0, 2, 1))
    h = _ref_block(h, params['block1'])
    h = _ref_block(h, params['block2'])
    h = _ref_block(h, params['block3'])
    avg = h.mean(axis=1)
    z = avg @ params['fc_w'] + params['fc_b']
    return z * jax.nn.sigmoid(z)


# ------------------------------------ main ------------------------------------
if __name__ == "__main__":
    key = jax.random.PRNGKey(0)
    k_x, k_p = jax.random.split(key)

    # ECGCNN(input_size=1, hid_size=32, kernel_size=5) at small shapes.
    B, C_IN, L = 2, 1, 64
    HID, K = 32, 5

    x = jax.random.normal(k_x, (B, C_IN, L), jnp.float32)
    params = init_params(k_p, C_IN, HID, K)

    out = jax.jit(ecg_cnn_forward)(x, params)
    out = jax.block_until_ready(out)

    ref = _ref_forward(x, params)
    assert out.shape == (B, 8), out.shape
    assert bool(jnp.all(jnp.isfinite(out)))
    assert bool(jnp.allclose(out, ref, rtol=1e-2, atol=1e-2)), (out, ref)

    print("KERNEL_OK")
</pallas_src>

<mosaic_0001>
module attributes {stable_mosaic.version = 11 : i64} {
  func.func @kernel(%arg0: memref<128x1xf32, #tpu.memory_space<vmem>>, %arg1: memref<5x32xf32, #tpu.memory_space<vmem>>, %arg2: memref<1x32xf32, #tpu.memory_space<vmem>>, %arg3: memref<1x32xf32, #tpu.memory_space<vmem>>, %arg4: memref<1x32xf32, #tpu.memory_space<vmem>>, %arg5: memref<160x32xf32, #tpu.memory_space<vmem>>, %arg6: memref<1x32xf32, #tpu.memory_space<vmem>>, %arg7: memref<1x32xf32, #tpu.memory_space<vmem>>, %arg8: memref<1x32xf32, #tpu.memory_space<vmem>>, %arg9: memref<160x32xf32, #tpu.memory_space<vmem>>, %arg10: memref<1x32xf32, #tpu.memory_space<vmem>>, %arg11: memref<1x32xf32, #tpu.memory_space<vmem>>, %arg12: memref<1x32xf32, #tpu.memory_space<vmem>>, %arg13: memref<160x16xf32, #tpu.memory_space<vmem>>, %arg14: memref<1x16xf32, #tpu.memory_space<vmem>>, %arg15: memref<1x16xf32, #tpu.memory_space<vmem>>, %arg16: memref<1x16xf32, #tpu.memory_space<vmem>>, %arg17: memref<80x16xf32, #tpu.memory_space<vmem>>, %arg18: memref<1x16xf32, #tpu.memory_space<vmem>>, %arg19: memref<1x16xf32, #tpu.memory_space<vmem>>, %arg20: memref<1x16xf32, #tpu.memory_space<vmem>>, %arg21: memref<80x16xf32, #tpu.memory_space<vmem>>, %arg22: memref<1x16xf32, #tpu.memory_space<vmem>>, %arg23: memref<1x16xf32, #tpu.memory_space<vmem>>, %arg24: memref<1x16xf32, #tpu.memory_space<vmem>>, %arg25: memref<80x8xf32, #tpu.memory_space<vmem>>, %arg26: memref<1x8xf32, #tpu.memory_space<vmem>>, %arg27: memref<1x8xf32, #tpu.memory_space<vmem>>, %arg28: memref<1x8xf32, #tpu.memory_space<vmem>>, %arg29: memref<40x8xf32, #tpu.memory_space<vmem>>, %arg30: memref<1x8xf32, #tpu.memory_space<vmem>>, %arg31: memref<1x8xf32, #tpu.memory_space<vmem>>, %arg32: memref<1x8xf32, #tpu.memory_space<vmem>>, %arg33: memref<40x8xf32, #tpu.memory_space<vmem>>, %arg34: memref<1x8xf32, #tpu.memory_space<vmem>>, %arg35: memref<1x8xf32, #tpu.memory_space<vmem>>, %arg36: memref<1x8xf32, #tpu.memory_space<vmem>>, %arg37: memref<8x8xf32, #tpu.memory_space<vmem>>, %arg38: memref<1x8xf32, #tpu.memory_space<vmem>>, %arg39: memref<2x8xf32, #tpu.memory_space<vmem>>, %arg40: memref<120x160xf32, #tpu.memory_space<vmem>>, %arg41: memref<128x32xf32, #tpu.memory_space<vmem>>, %arg42: memref<56x160xf32, #tpu.memory_space<vmem>>, %arg43: memref<64x16xf32, #tpu.memory_space<vmem>>, %arg44: memref<24x80xf32, #tpu.memory_space<vmem>>, %arg45: memref<32x8xf32, #tpu.memory_space<vmem>>, %arg46: memref<2x8xf32, #tpu.memory_space<vmem>>) attributes {dimension_semantics = [], scalar_prefetch = 0 : i64, scratch_operands = 7 : i64, tpu.core_type = #tpu.core_type<tc>} {
    %cst = arith.constant 0.000000e+00 : f32
    %0 = vector.broadcast %cst : f32 to vector<4x32xf32>
    %c0 = arith.constant 0 : index
    %c0_0 = arith.constant 0 : index
    %1 = vector.load %arg41[%c0, %c0_0] : memref<128x32xf32, #tpu.memory_space<vmem>>, vector<4x32xf32>
    tpu.vector_store %arg41[%c0, %c0_0], %0 {strides = array<i32>} : memref<128x32xf32, #tpu.memory_space<vmem>>, vector<4x32xf32>,
    %cst_1 = arith.constant 0.000000e+00 : f32
    %2 = vector.broadcast %cst_1 : f32 to vector<4x32xf32>
    %c64 = arith.constant 64 : index
    %c0_2 = arith.constant 0 : index
    %3 = vector.load %arg41[%c64, %c0_2] : memref<128x32xf32, #tpu.memory_space<vmem>>, vector<4x32xf32>
    tpu.vector_store %arg41[%c64, %c0_2], %2 {strides = array<i32>} : memref<128x32xf32, #tpu.memory_space<vmem>>, vector<4x32xf32>,
    %c0_3 = arith.constant 0 : index
    %c0_4 = arith.constant 0 : index
    %4 = vector.load %arg0[%c0_3, %c0_4] : memref<128x1xf32, #tpu.memory_space<vmem>>, vector<60x1xf32>
    %c1 = arith.constant 1 : index
    %c0_5 = arith.constant 0 : index
    %5 = vector.load %arg0[%c1, %c0_5] : memref<128x1xf32, #tpu.memory_space<vmem>>, vector<60x1xf32>
    %c2 = arith.constant 2 : index
    %c0_6 = arith.constant 0 : index
    %6 = vector.load %arg0[%c2, %c0_6] : memref<128x1xf32, #tpu.memory_space<vmem>>, vector<60x1xf32>
    %c3 = arith.constant 3 : index
    %c0_7 = arith.constant 0 : index
    %7 = vector.load %arg0[%c3, %c0_7] : memref<128x1xf32, #tpu.memory_space<vmem>>, vector<60x1xf32>
    %c4 = arith.constant 4 : index
    %c0_8 = arith.constant 0 : index
    %8 = vector.load %arg0[%c4, %c0_8] : memref<128x1xf32, #tpu.memory_space<vmem>>, vector<60x1xf32>
    %9 = tpu.concatenate %4, %5, %6, %7, %8 in 1 : vector<60x1xf32>, vector<60x1xf32>, vector<60x1xf32>, vector<60x1xf32>, vector<60x1xf32> -> vector<60x5xf32>
    %c0_9 = arith.constant 0 : index
    %c0_10 = arith.constant 0 : index
    %10 = vector.load %arg40[%c0_9, %c0_10] : memref<120x160xf32, #tpu.memory_space<vmem>>, vector<60x5xf32>
    tpu.vector_store %arg40[%c0_9, %c0_10], %9 {strides = array<i32>} : memref<120x160xf32, #tpu.memory_space<vmem>>, vector<60x5xf32>,
    %c64_11 = arith.constant 64 : index
    %c0_12 = arith.constant 0 : index
    %11 = vector.load %arg0[%c64_11, %c0_12] : memref<128x1xf32, #tpu.memory_space<vmem>>, vector<60x1xf32>
    %c65 = arith.constant 65 : index
    %c0_13 = arith.constant 0 : index
    %12 = vector.load %arg0[%c65, %c0_13] : memref<128x1xf32, #tpu.memory_space<vmem>>, vector<60x1xf32>
    %c66 = arith.constant 66 : index
    %c0_14 = arith.constant 0 : index
    %13 = vector.load %arg0[%c66, %c0_14] : memref<128x1xf32, #tpu.memory_space<vmem>>, vector<60x1xf32>
    %c67 = arith.constant 67 : index
    %c0_15 = arith.constant 0 : index
    %14 = vector.load %arg0[%c67, %c0_15] : memref<128x1xf32, #tpu.memory_space<vmem>>, vector<60x1xf32>
    %c68 = arith.constant 68 : index
    %c0_16 = arith.constant 0 : index
    %15 = vector.load %arg0[%c68, %c0_16] : memref<128x1xf32, #tpu.memory_space<vmem>>, vector<60x1xf32>
    %16 = tpu.concatenate %11, %12, %13, %14, %15 in 1 : vector<60x1xf32>, vector<60x1xf32>, vector<60x1xf32>, vector<60x1xf32>, vector<60x1xf32> -> vector<60x5xf32>
    %c60 = arith.constant 60 : index
    %c0_17 = arith.constant 0 : index
    %17 = vector.load %arg40[%c60, %c0_17] : memref<120x160xf32, #tpu.memory_space<vmem>>, vector<60x5xf32>
    tpu.vector_store %arg40[%c60, %c0_17], %16 {strides = array<i32>} : memref<120x160xf32, #tpu.memory_space<vmem>>, vector<60x5xf32>,
    %c0_18 = arith.constant 0 : index
    %c0_19 = arith.constant 0 : index
    %18 = vector.load %arg40[%c0_18, %c0_19] : memref<120x160xf32, #tpu.memory_space<vmem>>, vector<120x5xf32>
    %c0_20 = arith.constant 0 : index
    %c0_21 = arith.constant 0 : index
    %19 = vector.load %arg1[%c0_20, %c0_21] : memref<5x32xf32, #tpu.memory_space<vmem>>, vector<5x32xf32>
    %cst_22 = arith.constant dense<0.000000e+00> : vector<120x32xf32>
    %20 = tpu.matmul %18, %19, %cst_22 {dimension_numbers = #tpu.dot_dimension_numbers<[1], [0], [0], [1], [0, 0, 1, 1], [], []>} : vector<120x5xf32>, vector<5x32xf32>, vector<120x32xf32> -> vector<120x32xf32>
    %c0_23 = arith.constant 0 : index
    %c0_24 = arith.constant 0 : index
    %21 = vector.load %arg2[%c0_23, %c0_24] : memref<1x32xf32, #tpu.memory_space<vmem>>, vector<1x32xf32>
    %22 = vector.broadcast %21 : vector<1x32xf32> to vector<120x32xf32>
    %23 = arith.addf %20, %22 : vector<120x32xf32>
    %cst_25 = arith.constant dense<0.000000e+00> : vector<32xf32>
    %24 = vector.multi_reduction <add>, %23, %cst_25 [0] : vector<120x32xf32> to vector<32xf32>
    %25 = vector.shape_cast %24 : vector<32xf32> to vector<1x32xf32>
    %cst_26 = arith.constant 1.200000e+02 : f32
    %26 = vector.broadcast %cst_26 : f32 to vector<1x32xf32>
    %27 = arith.divf %25, %26 : vector<1x32xf32>
    %28 = vector.broadcast %27 : vector<1x32xf32> to vector<120x32xf32>
    %29 = arith.subf %23, %28 : vector<120x32xf32>
    %30 = arith.mulf %29, %29 : vector<120x32xf32>
    %cst_27 = arith.constant dense<0.000000e+00> : vector<32xf32>
    %31 = vector.multi_reduction <add>, %30, %cst_27 [0] : vector<120x32xf32> to vector<32xf32>
    %32 = vector.shape_cast %31 : vector<32xf32> to vector<1x32xf32>
    %cst_28 = arith.constant 1.200000e+02 : f32
    %33 = vector.broadcast %cst_28 : f32 to vector<1x32xf32>
    %34 = arith.divf %32, %33 : vector<1x32xf32>
    %35 = vector.broadcast %27 : vector<1x32xf32> to vector<120x32xf32>
    %36 = arith.subf %23, %35 : vector<120x32xf32>
    %cst_29 = arith.constant 9.99999974E-6 : f32
    %37 = vector.broadcast %cst_29 : f32 to vector<1x32xf32>
    %38 = arith.addf %34, %37 : vector<1x32xf32>
    %39 = math.rsqrt %38 : vector<1x32xf32>
    %40 = vector.broadcast %39 : vector<1x32xf32> to vector<120x32xf32>
    %41 = arith.mulf %36, %40 : vector<120x32xf32>
    %c0_30 = arith.constant 0 : index
    %c0_31 = arith.constant 0 : index
    %42 = vector.load %arg3[%c0_30, %c0_31] : memref<1x32xf32, #tpu.memory_space<vmem>>, vector<1x32xf32>
    %43 = vector.broadcast %42 : vector<1x32xf32> to vector<120x32xf32>
    %44 = arith.mulf %41, %43 : vector<120x32xf32>
    %c0_32 = arith.constant 0 : index
    %c0_33 = arith.constant 0 : index
    %45 = vector.load %arg4[%c0_32, %c0_33] : memref<1x32xf32, #tpu.memory_space<vmem>>, vector<1x32xf32>
    %46 = vector.broadcast %45 : vector<1x32xf32> to vector<120x32xf32>
    %47 = arith.addf %44, %46 : vector<120x32xf32>
    %48 = arith.negf %47 : vector<120x32xf32>
    %49 = math.exp %48 : vector<120x32xf32>
    %cst_34 = arith.constant 1.000000e+00 : f32
    %50 = vector.broadcast %cst_34 : f32 to vector<120x32xf32>
    %51 = arith.addf %50, %49 : vector<120x32xf32>
    %52 = arith.divf %50, %51 : vector<120x32xf32>
    %53 = arith.mulf %47, %52 : vector<120x32xf32>
    %54 = vector.extract_strided_slice %53 {offsets = [0, 0], sizes = [60, 32], strides = [1, 1]} : vector<120x32xf32> to vector<60x32xf32>
    %c4_35 = arith.constant 4 : index
    %c0_36 = arith.constant 0 : index
    %55 = vector.load %arg41[%c4_35, %c0_36] : memref<128x32xf32, #tpu.memory_space<vmem>>, vector<60x32xf32>
    tpu.vector_store %arg41[%c4_35, %c0_36], %54 {strides = array<i32>} : memref<128x32xf32, #tpu.memory_space<vmem>>, vector<60x32xf32>,
    %56 = vector.extract_strided_slice %53 {offsets = [60, 0], sizes = [60, 32], strides = [1, 1]} : vector<120x32xf32> to vector<60x32xf32>
    %c68_37 = arith.constant 68 : index
    %c0_38 = arith.constant 0 : index
    %57 = vector.load %arg41[%c68_37, %c0_38] : memref<128x32xf32, #tpu.memory_space<vmem>>, vector<60x32xf32>
    tpu.vector_store %arg41[%c68_37, %c0_38], %56 {strides = array<i32>} : memref<128x32xf32, #tpu.memory_space<vmem>>, vector<60x32xf32>,
    %c0_39 = arith.constant 0 : index
    %c0_40 = arith.constant 0 : index
    %58 = vector.load %arg41[%c0_39, %c0_40] : memref<128x32xf32, #tpu.memory_space<vmem>>, vector<60x32xf32>
    %c1_41 = arith.constant 1 : index
    %c0_42 = arith.constant 0 : index
    %59 = vector.load %arg41[%c1_41, %c0_42] : memref<128x32xf32, #tpu.memory_space<vmem>>, vector<60x32xf32>
    %c2_43 = arith.constant 2 : index
    %c0_44 = arith.constant 0 : index
    %60 = vector.load %arg41[%c2_43, %c0_44] : memref<128x32xf32, #tpu.memory_space<vmem>>, vector<60x32xf32>
    %c3_45 = arith.constant 3 : index
    %c0_46 = arith.constant 0 : index
    %61 = vector.load %arg41[%c3_45, %c0_46] : memref<128x32xf32, #tpu.memory_space<vmem>>, vector<60x32xf32>
    %c4_47 = arith.constant 4 : index
    %c0_48 = arith.constant 0 : index
    %62 = vector.load %arg41[%c4_47, %c0_48] : memref<128x32xf32, #tpu.memory_space<vmem>>, vector<60x32xf32>
    %63 = tpu.concatenate %58, %59, %60, %61, %62 in 1 : vector<60x32xf32>, vector<60x32xf32>, vector<60x32xf32>, vector<60x32xf32>, vector<60x32xf32> -> vector<60x160xf32>
    %c0_49 = arith.constant 0 : index
    %c0_50 = arith.constant 0 : index
    %64 = vector.load %arg40[%c0_49, %c0_50] : memref<120x160xf32, #tpu.memory_space<vmem>>, vector<60x160xf32>
    tpu.vector_store %arg40[%c0_49, %c0_50], %63 {strides = array<i32>} : memref<120x160xf32, #tpu.memory_space<vmem>>, vector<60x160xf32>,
    %c64_51 = arith.constant 64 : index
    %c0_52 = arith.constant 0 : index
    %65 = vector.load %arg41[%c64_51, %c0_52] : memref<128x32xf32, #tpu.memory_space<vmem>>, vector<60x32xf32>
    %c65_53 = arith.constant 65 : index
    %c0_54 = arith.constant 0 : index
    %66 = vector.load %arg41[%c65_53, %c0_54] : memref<128x32xf32, #tpu.memory_space<vmem>>, vector<60x32xf32>
    %c66_55 = arith.constant 66 : index
    %c0_56 = arith.constant 0 : index
    %67 = vector.load %arg41[%c66_55, %c0_56] : memref<128x32xf32, #tpu.memory_space<vmem>>, vector<60x32xf32>
    %c67_57 = arith.constant 67 : index
    %c0_58 = arith.constant 0 : index
    %68 = vector.load %arg41[%c67_57, %c0_58] : memref<128x32xf32, #tpu.memory_space<vmem>>, vector<60x32xf32>
    %c68_59 = arith.constant 68 : index
    %c0_60 = arith.constant 0 : index
    %69 = vector.load %arg41[%c68_59, %c0_60] : memref<128x32xf32, #tpu.memory_space<vmem>>, vector<60x32xf32>
    %70 = tpu.concatenate %65, %66, %67, %68, %69 in 1 : vector<60x32xf32>, vector<60x32xf32>, vector<60x32xf32>, vector<60x32xf32>, vector<60x32xf32> -> vector<60x160xf32>
    %c60_61 = arith.constant 60 : index
    %c0_62 = arith.constant 0 : index
    %71 = vector.load %arg40[%c60_61, %c0_62] : memref<120x160xf32, #tpu.memory_space<vmem>>, vector<60x160xf32>
    tpu.vector_store %arg40[%c60_61, %c0_62], %70 {strides = array<i32>} : memref<120x160xf32, #tpu.memory_space<vmem>>, vector<60x160xf32>,
    %c0_63 = arith.constant 0 : index
    %c0_64 = arith.constant 0 : index
    %72 = vector.load %arg40[%c0_63, %c0_64] : memref<120x160xf32, #tpu.memory_space<vmem>>, vector<120x160xf32>
    %c0_65 = arith.constant 0 : index
    %c0_66 = arith.constant 0 : index
    %73 = vector.load %arg5[%c0_65, %c0_66] : memref<160x32xf32, #tpu.memory_space<vmem>>, vector<160x32xf32>
    %cst_67 = arith.constant dense<0.000000e+00> : vector<120x32xf32>
    %74 = tpu.matmul %72, %73, %cst_67 {dimension_numbers = #tpu.dot_dimension_numbers<[1], [0], [0], [1], [0, 0, 1, 1], [], []>} : vector<120x160xf32>, vector<160x32xf32>, vector<120x32xf32> -> vector<120x32xf32>
    %c0_68 = arith.constant 0 : index
    %c0_69 = arith.constant 0 : index
    %75 = vector.load %arg6[%c0_68, %c0_69] : memref<1x32xf32, #tpu.memory_space<vmem>>, vector<1x32xf32>
    %76 = vector.broadcast %75 : vector<1x32xf32> to vector<120x32xf32>
    %77 = arith.addf %74, %76 : vector<120x32xf32>
    %cst_70 = arith.constant dense<0.000000e+00> : vector<32xf32>
    %78 = vector.multi_reduction <add>, %77, %cst_70 [0] : vector<120x32xf32> to vector<32xf32>
    %79 = vector.shape_cast %78 : vector<32xf32> to vector<1x32xf32>
    %cst_71 = arith.constant 1.200000e+02 : f32
    %80 = vector.broadcast %cst_71 : f32 to vector<1x32xf32>
    %81 = arith.divf %79, %80 : vector<1x32xf32>
    %82 = vector.broadcast %81 : vector<1x32xf32> to vector<120x32xf32>
    %83 = arith.subf %77, %82 : vector<120x32xf32>
    %84 = arith.mulf %83, %83 : vector<120x32xf32>
    %cst_72 = arith.constant dense<0.000000e+00> : vector<32xf32>
    %85 = vector.multi_reduction <add>, %84, %cst_72 [0] : vector<120x32xf32> to vector<32xf32>
    %86 = vector.shape_cast %85 : vector<32xf32> to vector<1x32xf32>
    %cst_73 = arith.constant 1.200000e+02 : f32
    %87 = vector.broadcast %cst_73 : f32 to vector<1x32xf32>
    %88 = arith.divf %86, %87 : vector<1x32xf32>
    %89 = vector.broadcast %81 : vector<1x32xf32> to vector<120x32xf32>
    %90 = arith.subf %77, %89 : vector<120x32xf32>
    %cst_74 = arith.constant 9.99999974E-6 : f32
    %91 = vector.broadcast %cst_74 : f32 to vector<1x32xf32>
    %92 = arith.addf %88, %91 : vector<1x32xf32>
    %93 = math.rsqrt %92 : vector<1x32xf32>
    %94 = vector.broadcast %93 : vector<1x32xf32> to vector<120x32xf32>
    %95 = arith.mulf %90, %94 : vector<120x32xf32>
    %c0_75 = arith.constant 0 : index
    %c0_76 = arith.constant 0 : index
    %96 = vector.load %arg7[%c0_75, %c0_76] : memref<1x32xf32, #tpu.memory_space<vmem>>, vector<1x32xf32>
    %97 = vector.broadcast %96 : vector<1x32xf32> to vector<120x32xf32>
    %98 = arith.mulf %95, %97 : vector<120x32xf32>
    %c0_77 = arith.constant 0 : index
    %c0_78 = arith.constant 0 : index
    %99 = vector.load %arg8[%c0_77, %c0_78] : memref<1x32xf32, #tpu.memory_space<vmem>>, vector<1x32xf32>
    %100 = vector.broadcast %99 : vector<1x32xf32> to vector<120x32xf32>
    %101 = arith.addf %98, %100 : vector<120x32xf32>
    %102 = arith.negf %101 : vector<120x32xf32>
    %103 = math.exp %102 : vector<120x32xf32>
    %cst_79 = arith.constant 1.000000e+00 : f32
    %104 = vector.broadcast %cst_79 : f32 to vector<120x32xf32>
    %105 = arith.addf %104, %103 : vector<120x32xf32>
    %106 = arith.divf %104, %105 : vector<120x32xf32>
    %107 = arith.mulf %101, %106 : vector<120x32xf32>
    %108 = vector.extract_strided_slice %107 {offsets = [0, 0], sizes = [60, 32], strides = [1, 1]} : vector<120x32xf32> to vector<60x32xf32>
    %c4_80 = arith.constant 4 : index
    %c0_81 = arith.constant 0 : index
    %109 = vector.load %arg41[%c4_80, %c0_81] : memref<128x32xf32, #tpu.memory_space<vmem>>, vector<60x32xf32>
    tpu.vector_store %arg41[%c4_80, %c0_81], %108 {strides = array<i32>} : memref<128x32xf32, #tpu.memory_space<vmem>>, vector<60x32xf32>,
    %110 = vector.extract_strided_slice %107 {offsets = [60, 0], sizes = [60, 32], strides = [1, 1]} : vector<120x32xf32> to vector<60x32xf32>
    %c68_82 = arith.constant 68 : index
    %c0_83 = arith.constant 0 : index
    %111 = vector.load %arg41[%c68_82, %c0_83] : memref<128x32xf32, #tpu.memory_space<vmem>>, vector<60x32xf32>
    tpu.vector_store %arg41[%c68_82, %c0_83], %110 {strides = array<i32>} : memref<128x32xf32, #tpu.memory_space<vmem>>, vector<60x32xf32>,
    %c0_84 = arith.constant 0 : index
    %c0_85 = arith.constant 0 : index
    %112 = vector.load %arg41[%c0_84, %c0_85] : memref<128x32xf32, #tpu.memory_space<vmem>>, vector<60x32xf32>
    %c1_86 = arith.constant 1 : index
    %c0_87 = arith.constant 0 : index
    %113 = vector.load %arg41[%c1_86, %c0_87] : memref<128x32xf32, #tpu.memory_space<vmem>>, vector<60x32xf32>
    %c2_88 = arith.constant 2 : index
    %c0_89 = arith.constant 0 : index
    %114 = vector.load %arg41[%c2_88, %c0_89] : memref<128x32xf32, #tpu.memory_space<vmem>>, vector<60x32xf32>
    %c3_90 = arith.constant 3 : index
    %c0_91 = arith.constant 0 : index
    %115 = vector.load %arg41[%c3_90, %c0_91] : memref<128x32xf32, #tpu.memory_space<vmem>>, vector<60x32xf32>
    %c4_92 = arith.constant 4 : index
    %c0_93 = arith.constant 0 : index
    %116 = vector.load %arg41[%c4_92, %c0_93] : memref<128x32xf32, #tpu.memory_space<vmem>>, vector<60x32xf32>
    %117 = tpu.concatenate %112, %113, %114, %115, %116 in 1 : vector<60x32xf32>, vector<60x32xf32>, vector<60x32xf32>, vector<60x32xf32>, vector<60x32xf32> -> vector<60x160xf32>
    %c0_94 = arith.constant 0 : index
    %c0_95 = arith.constant 0 : index
    %118 = vector.load %arg40[%c0_94, %c0_95] : memref<120x160xf32, #tpu.memory_space<vmem>>, vector<60x160xf32>
    tpu.vector_store %arg40[%c0_94, %c0_95], %117 {strides = array<i32>} : memref<120x160xf32, #tpu.memory_space<vmem>>, vector<60x160xf32>,
    %c64_96 = arith.constant 64 : index
    %c0_97 = arith.constant 0 : index
    %119 = vector.load %arg41[%c64_96, %c0_97] : memref<128x32xf32, #tpu.memory_space<vmem>>, vector<60x32xf32>
    %c65_98 = arith.constant 65 : index
    %c0_99 = arith.constant 0 : index
    %120 = vector.load %arg41[%c65_98, %c0_99] : memref<128x32xf32, #tpu.memory_space<vmem>>, vector<60x32xf32>
    %c66_100 = arith.constant 66 : index
    %c0_101 = arith.constant 0 : index
    %121 = vector.load %arg41[%c66_100, %c0_101] : memref<128x32xf32, #tpu.memory_space<vmem>>, vector<60x32xf32>
    %c67_102 = arith.constant 67 : index
    %c0_103 = arith.constant 0 : index
    %122 = vector.load %arg41[%c67_102, %c0_103] : memref<128x32xf32, #tpu.memory_space<vmem>>, vector<60x32xf32>
    %c68_104 = arith.constant 68 : index
    %c0_105 = arith.constant 0 : index
    %123 = vector.load %arg41[%c68_104, %c0_105] : memref<128x32xf32, #tpu.memory_space<vmem>>, vector<60x32xf32>
    %124 = tpu.concatenate %119, %120, %121, %122, %123 in 1 : vector<60x32xf32>, vector<60x32xf32>, vector<60x32xf32>, vector<60x32xf32>, vector<60x32xf32> -> vector<60x160xf32>
    %c60_106 = arith.constant 60 : index
    %c0_107 = arith.constant 0 : index
    %125 = vector.load %arg40[%c60_106, %c0_107] : memref<120x160xf32, #tpu.memory_space<vmem>>, vector<60x160xf32>
    tpu.vector_store %arg40[%c60_106, %c0_107], %124 {strides = array<i32>} : memref<120x160xf32, #tpu.memory_space<vmem>>, vector<60x160xf32>,
    %c0_108 = arith.constant 0 : index
    %c0_109 = arith.constant 0 : index
    %126 = vector.load %arg40[%c0_108, %c0_109] : memref<120x160xf32, #tpu.memory_space<vmem>>, vector<120x160xf32>
    %c0_110 = arith.constant 0 : index
    %c0_111 = arith.constant 0 : index
    %127 = vector.load %arg9[%c0_110, %c0_111] : memref<160x32xf32, #tpu.memory_space<vmem>>, vector<160x32xf32>
    %cst_112 = arith.constant dense<0.000000e+00> : vector<120x32xf32>
    %128 = tpu.matmul %126, %127, %cst_112 {dimension_numbers = #tpu.dot_dimension_numbers<[1], [0], [0], [1], [0, 0, 1, 1], [], []>} : vector<120x160xf32>, vector<160x32xf32>, vector<120x32xf32> -> vector<120x32xf32>
    %c0_113 = arith.constant 0 : index
    %c0_114 = arith.constant 0 : index
    %129 = vector.load %arg10[%c0_113, %c0_114] : memref<1x32xf32, #tpu.memory_space<vmem>>, vector<1x32xf32>
    %130 = vector.broadcast %129 : vector<1x32xf32> to vector<120x32xf32>
    %131 = arith.addf %128, %130 : vector<120x32xf32>
    %132 = arith.addf %23, %131 : vector<120x32xf32>
    %cst_115 = arith.constant dense<0.000000e+00> : vector<32xf32>
    %133 = vector.multi_reduction <add>, %132, %cst_115 [0] : vector<120x32xf32> to vector<32xf32>
    %134 = vector.shape_cast %133 : vector<32xf32> to vector<1x32xf32>
    %cst_116 = arith.constant 1.200000e+02 : f32
    %135 = vector.broadcast %cst_116 : f32 to vector<1x32xf32>
    %136 = arith.divf %134, %135 : vector<1x32xf32>
    %137 = vector.broadcast %136 : vector<1x32xf32> to vector<120x32xf32>
    %138 = arith.subf %132, %137 : vector<120x32xf32>
    %139 = arith.mulf %138, %138 : vector<120x32xf32>
    %cst_117 = arith.constant dense<0.000000e+00> : vector<32xf32>
    %140 = vector.multi_reduction <add>, %139, %cst_117 [0] : vector<120x32xf32> to vector<32xf32>
    %141 = vector.shape_cast %140 : vector<32xf32> to vector<1x32xf32>
    %cst_118 = arith.constant 1.200000e+02 : f32
    %142 = vector.broadcast %cst_118 : f32 to vector<1x32xf32>
    %143 = arith.divf %141, %142 : vector<1x32xf32>
    %144 = vector.broadcast %136 : vector<1x32xf32> to vector<120x32xf32>
    %145 = arith.subf %132, %144 : vector<120x32xf32>
    %cst_119 = arith.constant 9.99999974E-6 : f32
    %146 = vector.broadcast %cst_119 : f32 to vector<1x32xf32>
    %147 = arith.addf %143, %146 : vector<1x32xf32>
    %148 = math.rsqrt %147 : vector<1x32xf32>
    %149 = vector.broadcast %148 : vector<1x32xf32> to vector<120x32xf32>
    %150 = arith.mulf %145, %149 : vector<120x32xf32>
    %c0_120 = arith.constant 0 : index
    %c0_121 = arith.constant 0 : index
    %151 = vector.load %arg11[%c0_120, %c0_121] : memref<1x32xf32, #tpu.memory_space<vmem>>, vector<1x32xf32>
    %152 = vector.broadcast %151 : vector<1x32xf32> to vector<120x32xf32>
    %153 = arith.mulf %150, %152 : vector<120x32xf32>
    %c0_122 = arith.constant 0 : index
    %c0_123 = arith.constant 0 : index
    %154 = vector.load %arg12[%c0_122, %c0_123] : memref<1x32xf32, #tpu.memory_space<vmem>>, vector<1x32xf32>
    %155 = vector.broadcast %154 : vector<1x32xf32> to vector<120x32xf32>
    %156 = arith.addf %153, %155 : vector<120x32xf32>
    %157 = arith.negf %156 : vector<120x32xf32>
    %158 = math.exp %157 : vector<120x32xf32>
    %cst_124 = arith.constant 1.000000e+00 : f32
    %159 = vector.broadcast %cst_124 : f32 to vector<120x32xf32>
    %160 = arith.addf %159, %158 : vector<120x32xf32>
    %161 = arith.divf %159, %160 : vector<120x32xf32>
    %162 = arith.mulf %156, %161 : vector<120x32xf32>
    %163 = vector.extract_strided_slice %162 {offsets = [0, 0], sizes = [60, 32], strides = [1, 1]} : vector<120x32xf32> to vector<60x32xf32>
    %c4_125 = arith.constant 4 : index
    %c0_126 = arith.constant 0 : index
    %164 = vector.load %arg41[%c4_125, %c0_126] : memref<128x32xf32, #tpu.memory_space<vmem>>, vector<60x32xf32>
    tpu.vector_store %arg41[%c4_125, %c0_126], %163 {strides = array<i32>} : memref<128x32xf32, #tpu.memory_space<vmem>>, vector<60x32xf32>,
    %165 = vector.extract_strided_slice %162 {offsets = [60, 0], sizes = [60, 32], strides = [1, 1]} : vector<120x32xf32> to vector<60x32xf32>
    %c68_127 = arith.constant 68 : index
    %c0_128 = arith.constant 0 : index
    %166 = vector.load %arg41[%c68_127, %c0_128] : memref<128x32xf32, #tpu.memory_space<vmem>>, vector<60x32xf32>
    tpu.vector_store %arg41[%c68_127, %c0_128], %165 {strides = array<i32>} : memref<128x32xf32, #tpu.memory_space<vmem>>, vector<60x32xf32>,
    %c0_129 = arith.constant 0 : index
    %c0_130 = arith.constant 0 : index
    %167 = tpu.strided_load %arg41[%c0_129, %c0_130] {strides = array<i32: 2, 1>} : memref<128x32xf32, #tpu.memory_space<vmem>>, vector<64x32xf32>
    %c1_131 = arith.constant 1 : index
    %c0_132 = arith.constant 0 : index
    %168 = tpu.strided_load %arg41[%c1_131, %c0_132] {strides = array<i32: 2, 1>} : memref<128x32xf32, #tpu.memory_space<vmem>>, vector<64x32xf32>
    %169 = arith.maximumf %167, %168 : vector<64x32xf32>
    %cst_133 = arith.constant 0.000000e+00 : f32
    %170 = vector.broadcast %cst_133 : f32 to vector<4x16xf32>
    %c0_134 = arith.constant 0 : index
    %c0_135 = arith.constant 0 : index
    %171 = vector.load %arg43[%c0_134, %c0_135] : memref<64x16xf32, #tpu.memory_space<vmem>>, vector<4x16xf32>
    tpu.vector_store %arg43[%c0_134, %c0_135], %170 {strides = array<i32>} : memref<64x16xf32, #tpu.memory_space<vmem>>, vector<4x16xf32>,
    %cst_136 = arith.constant 0.000000e+00 : f32
    %172 = vector.broadcast %cst_136 : f32 to vector<4x16xf32>
    %c32 = arith.constant 32 : index
    %c0_137 = arith.constant 0 : index
    %173 = vector.load %arg43[%c32, %c0_137] : memref<64x16xf32, #tpu.memory_space<vmem>>, vector<4x16xf32>
    tpu.vector_store %arg43[%c32, %c0_137], %172 {strides = array<i32>} : memref<64x16xf32, #tpu.memory_space<vmem>>, vector<4x16xf32>,
    %174 = vector.extract_strided_slice %169 {offsets = [0, 0], sizes = [28, 32], strides = [1, 1]} : vector<64x32xf32> to vector<28x32xf32>
    %175 = vector.extract_strided_slice %169 {offsets = [1, 0], sizes = [28, 32], strides = [1, 1]} : vector<64x32xf32> to vector<28x32xf32>
    %176 = vector.extract_strided_slice %169 {offsets = [2, 0], sizes = [28, 32], strides = [1, 1]} : vector<64x32xf32> to vector<28x32xf32>
    %177 = vector.extract_strided_slice %169 {offsets = [3, 0], sizes = [28, 32], strides = [1, 1]} : vector<64x32xf32> to vector<28x32xf32>
    %178 = vector.extract_strided_slice %169 {offsets = [4, 0], sizes = [28, 32], strides = [1, 1]} : vector<64x32xf32> to vector<28x32xf32>
    %179 = tpu.concatenate %174, %175, %176, %177, %178 in 1 : vector<28x32xf32>, vector<28x32xf32>, vector<28x32xf32>, vector<28x32xf32>, vector<28x32xf32> -> vector<28x160xf32>
    %c0_138 = arith.constant 0 : index
    %c0_139 = arith.constant 0 : index
    %180 = vector.load %arg42[%c0_138, %c0_139] : memref<56x160xf32, #tpu.memory_space<vmem>>, vector<28x160xf32>
    tpu.vector_store %arg42[%c0_138, %c0_139], %179 {strides = array<i32>} : memref<56x160xf32, #tpu.memory_space<vmem>>, vector<28x160xf32>,
    %181 = vector.extract_strided_slice %169 {offsets = [32, 0], sizes = [28, 32], strides = [1, 1]} : vector<64x32xf32> to vector<28x32xf32>
    %182 = vector.extract_strided_slice %169 {offsets = [33, 0], sizes = [28, 32], strides = [1, 1]} : vector<64x32xf32> to vector<28x32xf32>
    %183 = vector.extract_strided_slice %169 {offsets = [34, 0], sizes = [28, 32], strides = [1, 1]} : vector<64x32xf32> to vector<28x32xf32>
    %184 = vector.extract_strided_slice %169 {offsets = [35, 0], sizes = [28, 32], strides = [1, 1]} : vector<64x32xf32> to vector<28x32xf32>
    %185 = vector.extract_strided_slice %169 {offsets = [36, 0], sizes = [28, 32], strides = [1, 1]} : vector<64x32xf32> to vector<28x32xf32>
    %186 = tpu.concatenate %181, %182, %183, %184, %185 in 1 : vector<28x32xf32>, vector<28x32xf32>, vector<28x32xf32>, vector<28x32xf32>, vector<28x32xf32> -> vector<28x160xf32>
    %c28 = arith.constant 28 : index
    %c0_140 = arith.constant 0 : index
    %187 = vector.load %arg42[%c28, %c0_140] : memref<56x160xf32, #tpu.memory_space<vmem>>, vector<28x160xf32>
    tpu.vector_store %arg42[%c28, %c0_140], %186 {strides = array<i32>} : memref<56x160xf32, #tpu.memory_space<vmem>>, vector<28x160xf32>,
    %c0_141 = arith.constant 0 : index
    %c0_142 = arith.constant 0 : index
    %188 = vector.load %arg42[%c0_141, %c0_142] : memref<56x160xf32, #tpu.memory_space<vmem>>, vector<56x160xf32>
    %c0_143 = arith.constant 0 : index
    %c0_144 = arith.constant 0 : index
    %189 = vector.load %arg13[%c0_143, %c0_144] : memref<160x16xf32, #tpu.memory_space<vmem>>, vector<160x16xf32>
    %cst_145 = arith.constant dense<0.000000e+00> : vector<56x16xf32>
    %190 = tpu.matmul %188, %189, %cst_145 {dimension_numbers = #tpu.dot_dimension_numbers<[1], [0], [0], [1], [0, 0, 1, 1], [], []>} : vector<56x160xf32>, vector<160x16xf32>, vector<56x16xf32> -> vector<56x16xf32>
    %c0_146 = arith.constant 0 : index
    %c0_147 = arith.constant 0 : index
    %191 = vector.load %arg14[%c0_146, %c0_147] : memref<1x16xf32, #tpu.memory_space<vmem>>, vector<1x16xf32>
    %192 = vector.broadcast %191 : vector<1x16xf32> to vector<56x16xf32>
    %193 = arith.addf %190, %192 : vector<56x16xf32>
    %cst_148 = arith.constant dense<0.000000e+00> : vector<16xf32>
    %194 = vector.multi_reduction <add>, %193, %cst_148 [0] : vector<56x16xf32> to vector<16xf32>
    %195 = vector.shape_cast %194 : vector<16xf32> to vector<1x16xf32>
    %cst_149 = arith.constant 5.600000e+01 : f32
    %196 = vector.broadcast %cst_149 : f32 to vector<1x16xf32>
    %197 = arith.divf %195, %196 : vector<1x16xf32>
    %198 = vector.broadcast %197 : vector<1x16xf32> to vector<56x16xf32>
    %199 = arith.subf %193, %198 : vector<56x16xf32>
    %200 = arith.mulf %199, %199 : vector<56x16xf32>
    %cst_150 = arith.constant dense<0.000000e+00> : vector<16xf32>
    %201 = vector.multi_reduction <add>, %200, %cst_150 [0] : vector<56x16xf32> to vector<16xf32>
    %202 = vector.shape_cast %201 : vector<16xf32> to vector<1x16xf32>
    %cst_151 = arith.constant 5.600000e+01 : f32
    %203 = vector.broadcast %cst_151 : f32 to vector<1x16xf32>
    %204 = arith.divf %202, %203 : vector<1x16xf32>
    %205 = vector.broadcast %197 : vector<1x16xf32> to vector<56x16xf32>
    %206 = arith.subf %193, %205 : vector<56x16xf32>
    %cst_152 = arith.constant 9.99999974E-6 : f32
    %207 = vector.broadcast %cst_152 : f32 to vector<1x16xf32>
    %208 = arith.addf %204, %207 : vector<1x16xf32>
    %209 = math.rsqrt %208 : vector<1x16xf32>
    %210 = vector.broadcast %209 : vector<1x16xf32> to vector<56x16xf32>
    %211 = arith.mulf %206, %210 : vector<56x16xf32>
    %c0_153 = arith.constant 0 : index
    %c0_154 = arith.constant 0 : index
    %212 = vector.load %arg15[%c0_153, %c0_154] : memref<1x16xf32, #tpu.memory_space<vmem>>, vector<1x16xf32>
    %213 = vector.broadcast %212 : vector<1x16xf32> to vector<56x16xf32>
    %214 = arith.mulf %211, %213 : vector<56x16xf32>
    %c0_155 = arith.constant 0 : index
    %c0_156 = arith.constant 0 : index
    %215 = vector.load %arg16[%c0_155, %c0_156] : memref<1x16xf32, #tpu.memory_space<vmem>>, vector<1x16xf32>
    %216 = vector.broadcast %215 : vector<1x16xf32> to vector<56x16xf32>
    %217 = arith.addf %214, %216 : vector<56x16xf32>
    %218 = arith.negf %217 : vector<56x16xf32>
    %219 = math.exp %218 : vector<56x16xf32>
    %cst_157 = arith.constant 1.000000e+00 : f32
    %220 = vector.broadcast %cst_157 : f32 to vector<56x16xf32>
    %221 = arith.addf %220, %219 : vector<56x16xf32>
    %222 = arith.divf %220, %221 : vector<56x16xf32>
    %223 = arith.mulf %217, %222 : vector<56x16xf32>
    %224 = vector.extract_strided_slice %223 {offsets = [0, 0], sizes = [28, 16], strides = [1, 1]} : vector<56x16xf32> to vector<28x16xf32>
    %c4_158 = arith.constant 4 : index
    %c0_159 = arith.constant 0 : index
    %225 = vector.load %arg43[%c4_158, %c0_159] : memref<64x16xf32, #tpu.memory_space<vmem>>, vector<28x16xf32>
    tpu.vector_store %arg43[%c4_158, %c0_159], %224 {strides = array<i32>} : memref<64x16xf32, #tpu.memory_space<vmem>>, vector<28x16xf32>,
    %226 = vector.extract_strided_slice %223 {offsets = [28, 0], sizes = [28, 16], strides = [1, 1]} : vector<56x16xf32> to vector<28x16xf32>
    %c36 = arith.constant 36 : index
    %c0_160 = arith.constant 0 : index
    %227 = vector.load %arg43[%c36, %c0_160] : memref<64x16xf32, #tpu.memory_space<vmem>>, vector<28x16xf32>
    tpu.vector_store %arg43[%c36, %c0_160], %226 {strides = array<i32>} : memref<64x16xf32, #tpu.memory_space<vmem>>, vector<28x16xf32>,
    %c0_161 = arith.constant 0 : index
    %c0_162 = arith.constant 0 : index
    %228 = vector.load %arg43[%c0_161, %c0_162] : memref<64x16xf32, #tpu.memory_space<vmem>>, vector<28x16xf32>
    %c1_163 = arith.constant 1 : index
    %c0_164 = arith.constant 0 : index
    %229 = vector.load %arg43[%c1_163, %c0_164] : memref<64x16xf32, #tpu.memory_space<vmem>>, vector<28x16xf32>
    %c2_165 = arith.constant 2 : index
    %c0_166 = arith.constant 0 : index
    %230 = vector.load %arg43[%c2_165, %c0_166] : memref<64x16xf32, #tpu.memory_space<vmem>>, vector<28x16xf32>
    %c3_167 = arith.constant 3 : index
    %c0_168 = arith.constant 0 : index
    %231 = vector.load %arg43[%c3_167, %c0_168] : memref<64x16xf32, #tpu.memory_space<vmem>>, vector<28x16xf32>
    %c4_169 = arith.constant 4 : index
    %c0_170 = arith.constant 0 : index
    %232 = vector.load %arg43[%c4_169, %c0_170] : memref<64x16xf32, #tpu.memory_space<vmem>>, vector<28x16xf32>
    %233 = tpu.concatenate %228, %229, %230, %231, %232 in 1 : vector<28x16xf32>, vector<28x16xf32>, vector<28x16xf32>, vector<28x16xf32>, vector<28x16xf32> -> vector<28x80xf32>
    %c0_171 = arith.constant 0 : index
    %c0_172 = arith.constant 0 : index
    %234 = vector.load %arg42[%c0_171, %c0_172] : memref<56x160xf32, #tpu.memory_space<vmem>>, vector<28x80xf32>
    tpu.vector_store %arg42[%c0_171, %c0_172], %233 {strides = array<i32>} : memref<56x160xf32, #tpu.memory_space<vmem>>, vector<28x80xf32>,
    %c32_173 = arith.constant 32 : index
    %c0_174 = arith.constant 0 : index
    %235 = vector.load %arg43[%c32_173, %c0_174] : memref<64x16xf32, #tpu.memory_space<vmem>>, vector<28x16xf32>
    %c33 = arith.constant 33 : index
    %c0_175 = arith.constant 0 : index
    %236 = vector.load %arg43[%c33, %c0_175] : memref<64x16xf32, #tpu.memory_space<vmem>>, vector<28x16xf32>
    %c34 = arith.constant 34 : index
    %c0_176 = arith.constant 0 : index
    %237 = vector.load %arg43[%c34, %c0_176] : memref<64x16xf32, #tpu.memory_space<vmem>>, vector<28x16xf32>
    %c35 = arith.constant 35 : index
    %c0_177 = arith.constant 0 : index
    %238 = vector.load %arg43[%c35, %c0_177] : memref<64x16xf32, #tpu.memory_space<vmem>>, vector<28x16xf32>
    %c36_178 = arith.constant 36 : index
    %c0_179 = arith.constant 0 : index
    %239 = vector.load %arg43[%c36_178, %c0_179] : memref<64x16xf32, #tpu.memory_space<vmem>>, vector<28x16xf32>
    %240 = tpu.concatenate %235, %236, %237, %238, %239 in 1 : vector<28x16xf32>, vector<28x16xf32>, vector<28x16xf32>, vector<28x16xf32>, vector<28x16xf32> -> vector<28x80xf32>
    %c28_180 = arith.constant 28 : index
    %c0_181 = arith.constant 0 : index
    %241 = vector.load %arg42[%c28_180, %c0_181] : memref<56x160xf32, #tpu.memory_space<vmem>>, vector<28x80xf32>
    tpu.vector_store %arg42[%c28_180, %c0_181], %240 {strides = array<i32>} : memref<56x160xf32, #tpu.memory_space<vmem>>, vector<28x80xf32>,
    %c0_182 = arith.constant 0 : index
    %c0_183 = arith.constant 0 : index
    %242 = vector.load %arg42[%c0_182, %c0_183] : memref<56x160xf32, #tpu.memory_space<vmem>>, vector<56x80xf32>
    %c0_184 = arith.constant 0 : index
    %c0_185 = arith.constant 0 : index
    %243 = vector.load %arg17[%c0_184, %c0_185] : memref<80x16xf32, #tpu.memory_space<vmem>>, vector<80x16xf32>
    %cst_186 = arith.constant dense<0.000000e+00> : vector<56x16xf32>
    %244 = tpu.matmul %242, %243, %cst_186 {dimension_numbers = #tpu.dot_dimension_numbers<[1], [0], [0], [1], [0, 0, 1, 1], [], []>} : vector<56x80xf32>, vector<80x16xf32>, vector<56x16xf32> -> vector<56x16xf32>
    %c0_187 = arith.constant 0 : index
    %c0_188 = arith.constant 0 : index
    %245 = vector.load %arg18[%c0_187, %c0_188] : memref<1x16xf32, #tpu.memory_space<vmem>>, vector<1x16xf32>
    %246 = vector.broadcast %245 : vector<1x16xf32> to vector<56x16xf32>
    %247 = arith.addf %244, %246 : vector<56x16xf32>
    %cst_189 = arith.constant dense<0.000000e+00> : vector<16xf32>
    %248 = vector.multi_reduction <add>, %247, %cst_189 [0] : vector<56x16xf32> to vector<16xf32>
    %249 = vector.shape_cast %248 : vector<16xf32> to vector<1x16xf32>
    %cst_190 = arith.constant 5.600000e+01 : f32
    %250 = vector.broadcast %cst_190 : f32 to vector<1x16xf32>
    %251 = arith.divf %249, %250 : vector<1x16xf32>
    %252 = vector.broadcast %251 : vector<1x16xf32> to vector<56x16xf32>
    %253 = arith.subf %247, %252 : vector<56x16xf32>
    %254 = arith.mulf %253, %253 : vector<56x16xf32>
    %cst_191 = arith.constant dense<0.000000e+00> : vector<16xf32>
    %255 = vector.multi_reduction <add>, %254, %cst_191 [0] : vector<56x16xf32> to vector<16xf32>
    %256 = vector.shape_cast %255 : vector<16xf32> to vector<1x16xf32>
    %cst_192 = arith.constant 5.600000e+01 : f32
    %257 = vector.broadcast %cst_192 : f32 to vector<1x16xf32>
    %258 = arith.divf %256, %257 : vector<1x16xf32>
    %259 = vector.broadcast %251 : vector<1x16xf32> to vector<56x16xf32>
    %260 = arith.subf %247, %259 : vector<56x16xf32>
    %cst_193 = arith.constant 9.99999974E-6 : f32
    %261 = vector.broadcast %cst_193 : f32 to vector<1x16xf32>
    %262 = arith.addf %258, %261 : vector<1x16xf32>
    %263 = math.rsqrt %262 : vector<1x16xf32>
    %264 = vector.broadcast %263 : vector<1x16xf32> to vector<56x16xf32>
    %265 = arith.mulf %260, %264 : vector<56x16xf32>
    %c0_194 = arith.constant 0 : index
    %c0_195 = arith.constant 0 : index
    %266 = vector.load %arg19[%c0_194, %c0_195] : memref<1x16xf32, #tpu.memory_space<vmem>>, vector<1x16xf32>
    %267 = vector.broadcast %266 : vector<1x16xf32> to vector<56x16xf32>
    %268 = arith.mulf %265, %267 : vector<56x16xf32>
    %c0_196 = arith.constant 0 : index
    %c0_197 = arith.constant 0 : index
    %269 = vector.load %arg20[%c0_196, %c0_197] : memref<1x16xf32, #tpu.memory_space<vmem>>, vector<1x16xf32>
    %270 = vector.broadcast %269 : vector<1x16xf32> to vector<56x16xf32>
    %271 = arith.addf %268, %270 : vector<56x16xf32>
    %272 = arith.negf %271 : vector<56x16xf32>
    %273 = math.exp %272 : vector<56x16xf32>
    %cst_198 = arith.constant 1.000000e+00 : f32
    %274 = vector.broadcast %cst_198 : f32 to vector<56x16xf32>
    %275 = arith.addf %274, %273 : vector<56x16xf32>
    %276 = arith.divf %274, %275 : vector<56x16xf32>
    %277 = arith.mulf %271, %276 : vector<56x16xf32>
    %278 = vector.extract_strided_slice %277 {offsets = [0, 0], sizes = [28, 16], strides = [1, 1]} : vector<56x16xf32> to vector<28x16xf32>
    %c4_199 = arith.constant 4 : index
    %c0_200 = arith.constant 0 : index
    %279 = vector.load %arg43[%c4_199, %c0_200] : memref<64x16xf32, #tpu.memory_space<vmem>>, vector<28x16xf32>
    tpu.vector_store %arg43[%c4_199, %c0_200], %278 {strides = array<i32>} : memref<64x16xf32, #tpu.memory_space<vmem>>, vector<28x16xf32>,
    %280 = vector.extract_strided_slice %277 {offsets = [28, 0], sizes = [28, 16], strides = [1, 1]} : vector<56x16xf32> to vector<28x16xf32>
    %c36_201 = arith.constant 36 : index
    %c0_202 = arith.constant 0 : index
    %281 = vector.load %arg43[%c36_201, %c0_202] : memref<64x16xf32, #tpu.memory_space<vmem>>, vector<28x16xf32>
    tpu.vector_store %arg43[%c36_201, %c0_202], %280 {strides = array<i32>} : memref<64x16xf32, #tpu.memory_space<vmem>>, vector<28x16xf32>,
    %c0_203 = arith.constant 0 : index
    %c0_204 = arith.constant 0 : index
    %282 = vector.load %arg43[%c0_203, %c0_204] : memref<64x16xf32, #tpu.memory_space<vmem>>, vector<28x16xf32>
    %c1_205 = arith.constant 1 : index
    %c0_206 = arith.constant 0 : index
    %283 = vector.load %arg43[%c1_205, %c0_206] : memref<64x16xf32, #tpu.memory_space<vmem>>, vector<28x16xf32>
    %c2_207 = arith.constant 2 : index
    %c0_208 = arith.constant 0 : index
    %284 = vector.load %arg43[%c2_207, %c0_208] : memref<64x16xf32, #tpu.memory_space<vmem>>, vector<28x16xf32>
    %c3_209 = arith.constant 3 : index
    %c0_210 = arith.constant 0 : index
    %285 = vector.load %arg43[%c3_209, %c0_210] : memref<64x16xf32, #tpu.memory_space<vmem>>, vector<28x16xf32>
    %c4_211 = arith.constant 4 : index
    %c0_212 = arith.constant 0 : index
    %286 = vector.load %arg43[%c4_211, %c0_212] : memref<64x16xf32, #tpu.memory_space<vmem>>, vector<28x16xf32>
    %287 = tpu.concatenate %282, %283, %284, %285, %286 in 1 : vector<28x16xf32>, vector<28x16xf32>, vector<28x16xf32>, vector<28x16xf32>, vector<28x16xf32> -> vector<28x80xf32>
    %c0_213 = arith.constant 0 : index
    %c0_214 = arith.constant 0 : index
    %288 = vector.load %arg42[%c0_213, %c0_214] : memref<56x160xf32, #tpu.memory_space<vmem>>, vector<28x80xf32>
    tpu.vector_store %arg42[%c0_213, %c0_214], %287 {strides = array<i32>} : memref<56x160xf32, #tpu.memory_space<vmem>>, vector<28x80xf32>,
    %c32_215 = arith.constant 32 : index
    %c0_216 = arith.constant 0 : index
    %289 = vector.load %arg43[%c32_215, %c0_216] : memref<64x16xf32, #tpu.memory_space<vmem>>, vector<28x16xf32>
    %c33_217 = arith.constant 33 : index
    %c0_218 = arith.constant 0 : index
    %290 = vector.load %arg43[%c33_217, %c0_218] : memref<64x16xf32, #tpu.memory_space<vmem>>, vector<28x16xf32>
    %c34_219 = arith.constant 34 : index
    %c0_220 = arith.constant 0 : index
    %291 = vector.load %arg43[%c34_219, %c0_220] : memref<64x16xf32, #tpu.memory_space<vmem>>, vector<28x16xf32>
    %c35_221 = arith.constant 35 : index
    %c0_222 = arith.constant 0 : index
    %292 = vector.load %arg43[%c35_221, %c0_222] : memref<64x16xf32, #tpu.memory_space<vmem>>, vector<28x16xf32>
    %c36_223 = arith.constant 36 : index
    %c0_224 = arith.constant 0 : index
    %293 = vector.load %arg43[%c36_223, %c0_224] : memref<64x16xf32, #tpu.memory_space<vmem>>, vector<28x16xf32>
    %294 = tpu.concatenate %289, %290, %291, %292, %293 in 1 : vector<28x16xf32>, vector<28x16xf32>, vector<28x16xf32>, vector<28x16xf32>, vector<28x16xf32> -> vector<28x80xf32>
    %c28_225 = arith.constant 28 : index
    %c0_226 = arith.constant 0 : index
    %295 = vector.load %arg42[%c28_225, %c0_226] : memref<56x160xf32, #tpu.memory_space<vmem>>, vector<28x80xf32>
    tpu.vector_store %arg42[%c28_225, %c0_226], %294 {strides = array<i32>} : memref<56x160xf32, #tpu.memory_space<vmem>>, vector<28x80xf32>,
    %c0_227 = arith.constant 0 : index
    %c0_228 = arith.constant 0 : index
    %296 = vector.load %arg42[%c0_227, %c0_228] : memref<56x160xf32, #tpu.memory_space<vmem>>, vector<56x80xf32>
    %c0_229 = arith.constant 0 : index
    %c0_230 = arith.constant 0 : index
    %297 = vector.load %arg21[%c0_229, %c0_230] : memref<80x16xf32, #tpu.memory_space<vmem>>, vector<80x16xf32>
    %cst_231 = arith.constant dense<0.000000e+00> : vector<56x16xf32>
    %298 = tpu.matmul %296, %297, %cst_231 {dimension_numbers = #tpu.dot_dimension_numbers<[1], [0], [0], [1], [0, 0, 1, 1], [], []>} : vector<56x80xf32>, vector<80x16xf32>, vector<56x16xf32> -> vector<56x16xf32>
    %c0_232 = arith.constant 0 : index
    %c0_233 = arith.constant 0 : index
    %299 = vector.load %arg22[%c0_232, %c0_233] : memref<1x16xf32, #tpu.memory_space<vmem>>, vector<1x16xf32>
    %300 = vector.broadcast %299 : vector<1x16xf32> to vector<56x16xf32>
    %301 = arith.addf %298, %300 : vector<56x16xf32>
    %302 = arith.addf %193, %301 : vector<56x16xf32>
    %cst_234 = arith.constant dense<0.000000e+00> : vector<16xf32>
    %303 = vector.multi_reduction <add>, %302, %cst_234 [0] : vector<56x16xf32> to vector<16xf32>
    %304 = vector.shape_cast %303 : vector<16xf32> to vector<1x16xf32>
    %cst_235 = arith.constant 5.600000e+01 : f32
    %305 = vector.broadcast %cst_235 : f32 to vector<1x16xf32>
    %306 = arith.divf %304, %305 : vector<1x16xf32>
    %307 = vector.broadcast %306 : vector<1x16xf32> to vector<56x16xf32>
    %308 = arith.subf %302, %307 : vector<56x16xf32>
    %309 = arith.mulf %308, %308 : vector<56x16xf32>
    %cst_236 = arith.constant dense<0.000000e+00> : vector<16xf32>
    %310 = vector.multi_reduction <add>, %309, %cst_236 [0] : vector<56x16xf32> to vector<16xf32>
    %311 = vector.shape_cast %310 : vector<16xf32> to vector<1x16xf32>
    %cst_237 = arith.constant 5.600000e+01 : f32
    %312 = vector.broadcast %cst_237 : f32 to vector<1x16xf32>
    %313 = arith.divf %311, %312 : vector<1x16xf32>
    %314 = vector.broadcast %306 : vector<1x16xf32> to vector<56x16xf32>
    %315 = arith.subf %302, %314 : vector<56x16xf32>
    %cst_238 = arith.constant 9.99999974E-6 : f32
    %316 = vector.broadcast %cst_238 : f32 to vector<1x16xf32>
    %317 = arith.addf %313, %316 : vector<1x16xf32>
    %318 = math.rsqrt %317 : vector<1x16xf32>
    %319 = vector.broadcast %318 : vector<1x16xf32> to vector<56x16xf32>
    %320 = arith.mulf %315, %319 : vector<56x16xf32>
    %c0_239 = arith.constant 0 : index
    %c0_240 = arith.constant 0 : index
    %321 = vector.load %arg23[%c0_239, %c0_240] : memref<1x16xf32, #tpu.memory_space<vmem>>, vector<1x16xf32>
    %322 = vector.broadcast %321 : vector<1x16xf32> to vector<56x16xf32>
    %323 = arith.mulf %320, %322 : vector<56x16xf32>
    %c0_241 = arith.constant 0 : index
    %c0_242 = arith.constant 0 : index
    %324 = vector.load %arg24[%c0_241, %c0_242] : memref<1x16xf32, #tpu.memory_space<vmem>>, vector<1x16xf32>
    %325 = vector.broadcast %324 : vector<1x16xf32> to vector<56x16xf32>
    %326 = arith.addf %323, %325 : vector<56x16xf32>
    %327 = arith.negf %326 : vector<56x16xf32>
    %328 = math.exp %327 : vector<56x16xf32>
    %cst_243 = arith.constant 1.000000e+00 : f32
    %329 = vector.broadcast %cst_243 : f32 to vector<56x16xf32>
    %330 = arith.addf %329, %328 : vector<56x16xf32>
    %331 = arith.divf %329, %330 : vector<56x16xf32>
    %332 = arith.mulf %326, %331 : vector<56x16xf32>
    %333 = vector.extract_strided_slice %332 {offsets = [0, 0], sizes = [28, 16], strides = [1, 1]} : vector<56x16xf32> to vector<28x16xf32>
    %c4_244 = arith.constant 4 : index
    %c0_245 = arith.constant 0 : index
    %334 = vector.load %arg43[%c4_244, %c0_245] : memref<64x16xf32, #tpu.memory_space<vmem>>, vector<28x16xf32>
    tpu.vector_store %arg43[%c4_244, %c0_245], %333 {strides = array<i32>} : memref<64x16xf32, #tpu.memory_space<vmem>>, vector<28x16xf32>,
    %335 = vector.extract_strided_slice %332 {offsets = [28, 0], sizes = [28, 16], strides = [1, 1]} : vector<56x16xf32> to vector<28x16xf32>
    %c36_246 = arith.constant 36 : index
    %c0_247 = arith.constant 0 : index
    %336 = vector.load %arg43[%c36_246, %c0_247] : memref<64x16xf32, #tpu.memory_space<vmem>>, vector<28x16xf32>
    tpu.vector_store %arg43[%c36_246, %c0_247], %335 {strides = array<i32>} : memref<64x16xf32, #tpu.memory_space<vmem>>, vector<28x16xf32>,
    %c0_248 = arith.constant 0 : index
    %c0_249 = arith.constant 0 : index
    %337 = tpu.strided_load %arg43[%c0_248, %c0_249] {strides = array<i32: 2, 1>} : memref<64x16xf32, #tpu.memory_space<vmem>>, vector<32x16xf32>
    %c1_250 = arith.constant 1 : index
    %c0_251 = arith.constant 0 : index
    %338 = tpu.strided_load %arg43[%c1_250, %c0_251] {strides = array<i32: 2, 1>} : memref<64x16xf32, #tpu.memory_space<vmem>>, vector<32x16xf32>
    %339 = arith.maximumf %337, %338 : vector<32x16xf32>
    %cst_252 = arith.constant 0.000000e+00 : f32
    %340 = vector.broadcast %cst_252 : f32 to vector<4x8xf32>
    %c0_253 = arith.constant 0 : index
    %c0_254 = arith.constant 0 : index
    %341 = vector.load %arg45[%c0_253, %c0_254] : memref<32x8xf32, #tpu.memory_space<vmem>>, vector<4x8xf32>
    tpu.vector_store %arg45[%c0_253, %c0_254], %340 {strides = array<i32>} : memref<32x8xf32, #tpu.memory_space<vmem>>, vector<4x8xf32>,
    %cst_255 = arith.constant 0.000000e+00 : f32
    %342 = vector.broadcast %cst_255 : f32 to vector<4x8xf32>
    %c16 = arith.constant 16 : index
    %c0_256 = arith.constant 0 : index
    %343 = vector.load %arg45[%c16, %c0_256] : memref<32x8xf32, #tpu.memory_space<vmem>>, vector<4x8xf32>
    tpu.vector_store %arg45[%c16, %c0_256], %342 {strides = array<i32>} : memref<32x8xf32, #tpu.memory_space<vmem>>, vector<4x8xf32>,
    %344 = vector.extract_strided_slice %339 {offsets = [0, 0], sizes = [12, 16], strides = [1, 1]} : vector<32x16xf32> to vector<12x16xf32>
    %345 = vector.extract_strided_slice %339 {offsets = [1, 0], sizes = [12, 16], strides = [1, 1]} : vector<32x16xf32> to vector<12x16xf32>
    %346 = vector.extract_strided_slice %339 {offsets = [2, 0], sizes = [12, 16], strides = [1, 1]} : vector<32x16xf32> to vector<12x16xf32>
    %347 = vector.extract_strided_slice %339 {offsets = [3, 0], sizes = [12, 16], strides = [1, 1]} : vector<32x16xf32> to vector<12x16xf32>
    %348 = vector.extract_strided_slice %339 {offsets = [4, 0], sizes = [12, 16], strides = [1, 1]} : vector<32x16xf32> to vector<12x16xf32>
    %349 = tpu.concatenate %344, %345, %346, %347, %348 in 1 : vector<12x16xf32>, vector<12x16xf32>, vector<12x16xf32>, vector<12x16xf32>, vector<12x16xf32> -> vector<12x80xf32>
    %c0_257 = arith.constant 0 : index
    %c0_258 = arith.constant 0 : index
    %350 = vector.load %arg44[%c0_257, %c0_258] : memref<24x80xf32, #tpu.memory_space<vmem>>, vector<12x80xf32>
    tpu.vector_store %arg44[%c0_257, %c0_258], %349 {strides = array<i32>} : memref<24x80xf32, #tpu.memory_space<vmem>>, vector<12x80xf32>,
    %351 = vector.extract_strided_slice %339 {offsets = [16, 0], sizes = [12, 16], strides = [1, 1]} : vector<32x16xf32> to vector<12x16xf32>
    %352 = vector.extract_strided_slice %339 {offsets = [17, 0], sizes = [12, 16], strides = [1, 1]} : vector<32x16xf32> to vector<12x16xf32>
    %353 = vector.extract_strided_slice %339 {offsets = [18, 0], sizes = [12, 16], strides = [1, 1]} : vector<32x16xf32> to vector<12x16xf32>
    %354 = vector.extract_strided_slice %339 {offsets = [19, 0], sizes = [12, 16], strides = [1, 1]} : vector<32x16xf32> to vector<12x16xf32>
    %355 = vector.extract_strided_slice %339 {offsets = [20, 0], sizes = [12, 16], strides = [1, 1]} : vector<32x16xf32> to vector<12x16xf32>
    %356 = tpu.concatenate %351, %352, %353, %354, %355 in 1 : vector<12x16xf32>, vector<12x16xf32>, vector<12x16xf32>, vector<12x16xf32>, vector<12x16xf32> -> vector<12x80xf32>
    %c12 = arith.constant 12 : index
    %c0_259 = arith.constant 0 : index
    %357 = vector.load %arg44[%c12, %c0_259] : memref<24x80xf32, #tpu.memory_space<vmem>>, vector<12x80xf32>
    tpu.vector_store %arg44[%c12, %c0_259], %356 {strides = array<i32>} : memref<24x80xf32, #tpu.memory_space<vmem>>, vector<12x80xf32>,
    %c0_260 = arith.constant 0 : index
    %c0_261 = arith.constant 0 : index
    %358 = vector.load %arg44[%c0_260, %c0_261] : memref<24x80xf32, #tpu.memory_space<vmem>>, vector<24x80xf32>
    %c0_262 = arith.constant 0 : index
    %c0_263 = arith.constant 0 : index
    %359 = vector.load %arg25[%c0_262, %c0_263] : memref<80x8xf32, #tpu.memory_space<vmem>>, vector<80x8xf32>
    %cst_264 = arith.constant dense<0.000000e+00> : vector<24x8xf32>
    %360 = tpu.matmul %358, %359, %cst_264 {dimension_numbers = #tpu.dot_dimension_numbers<[1], [0], [0], [1], [0, 0, 1, 1], [], []>} : vector<24x80xf32>, vector<80x8xf32>, vector<24x8xf32> -> vector<24x8xf32>
    %c0_265 = arith.constant 0 : index
    %c0_266 = arith.constant 0 : index
    %361 = vector.load %arg26[%c0_265, %c0_266] : memref<1x8xf32, #tpu.memory_space<vmem>>, vector<1x8xf32>
    %362 = vector.broadcast %361 : vector<1x8xf32> to vector<24x8xf32>
    %363 = arith.addf %360, %362 : vector<24x8xf32>
    %cst_267 = arith.constant dense<0.000000e+00> : vector<8xf32>
    %364 = vector.multi_reduction <add>, %363, %cst_267 [0] : vector<24x8xf32> to vector<8xf32>
    %365 = vector.shape_cast %364 : vector<8xf32> to vector<1x8xf32>
    %cst_268 = arith.constant 2.400000e+01 : f32
    %366 = vector.broadcast %cst_268 : f32 to vector<1x8xf32>
    %367 = arith.divf %365, %366 : vector<1x8xf32>
    %368 = vector.broadcast %367 : vector<1x8xf32> to vector<24x8xf32>
    %369 = arith.subf %363, %368 : vector<24x8xf32>
    %370 = arith.mulf %369, %369 : vector<24x8xf32>
    %cst_269 = arith.constant dense<0.000000e+00> : vector<8xf32>
    %371 = vector.multi_reduction <add>, %370, %cst_269 [0] : vector<24x8xf32> to vector<8xf32>
    %372 = vector.shape_cast %371 : vector<8xf32> to vector<1x8xf32>
    %cst_270 = arith.constant 2.400000e+01 : f32
    %373 = vector.broadcast %cst_270 : f32 to vector<1x8xf32>
    %374 = arith.divf %372, %373 : vector<1x8xf32>
    %375 = vector.broadcast %367 : vector<1x8xf32> to vector<24x8xf32>
    %376 = arith.subf %363, %375 : vector<24x8xf32>
    %cst_271 = arith.constant 9.99999974E-6 : f32
    %377 = vector.broadcast %cst_271 : f32 to vector<1x8xf32>
    %378 = arith.addf %374, %377 : vector<1x8xf32>
    %379 = math.rsqrt %378 : vector<1x8xf32>
    %380 = vector.broadcast %379 : vector<1x8xf32> to vector<24x8xf32>
    %381 = arith.mulf %376, %380 : vector<24x8xf32>
    %c0_272 = arith.constant 0 : index
    %c0_273 = arith.constant 0 : index
    %382 = vector.load %arg27[%c0_272, %c0_273] : memref<1x8xf32, #tpu.memory_space<vmem>>, vector<1x8xf32>
    %383 = vector.broadcast %382 : vector<1x8xf32> to vector<24x8xf32>
    %384 = arith.mulf %381, %383 : vector<24x8xf32>
    %c0_274 = arith.constant 0 : index
    %c0_275 = arith.constant 0 : index
    %385 = vector.load %arg28[%c0_274, %c0_275] : memref<1x8xf32, #tpu.memory_space<vmem>>, vector<1x8xf32>
    %386 = vector.broadcast %385 : vector<1x8xf32> to vector<24x8xf32>
    %387 = arith.addf %384, %386 : vector<24x8xf32>
    %388 = arith.negf %387 : vector<24x8xf32>
    %389 = math.exp %388 : vector<24x8xf32>
    %cst_276 = arith.constant 1.000000e+00 : f32
    %390 = vector.broadcast %cst_276 : f32 to vector<24x8xf32>
    %391 = arith.addf %390, %389 : vector<24x8xf32>
    %392 = arith.divf %390, %391 : vector<24x8xf32>
    %393 = arith.mulf %387, %392 : vector<24x8xf32>
    %394 = vector.extract_strided_slice %393 {offsets = [0, 0], sizes = [12, 8], strides = [1, 1]} : vector<24x8xf32> to vector<12x8xf32>
    %c4_277 = arith.constant 4 : index
    %c0_278 = arith.constant 0 : index
    %395 = vector.load %arg45[%c4_277, %c0_278] : memref<32x8xf32, #tpu.memory_space<vmem>>, vector<12x8xf32>
    tpu.vector_store %arg45[%c4_277, %c0_278], %394 {strides = array<i32>} : memref<32x8xf32, #tpu.memory_space<vmem>>, vector<12x8xf32>,
    %396 = vector.extract_strided_slice %393 {offsets = [12, 0], sizes = [12, 8], strides = [1, 1]} : vector<24x8xf32> to vector<12x8xf32>
    %c20 = arith.constant 20 : index
    %c0_279 = arith.constant 0 : index
    %397 = vector.load %arg45[%c20, %c0_279] : memref<32x8xf32, #tpu.memory_space<vmem>>, vector<12x8xf32>
    tpu.vector_store %arg45[%c20, %c0_279], %396 {strides = array<i32>} : memref<32x8xf32, #tpu.memory_space<vmem>>, vector<12x8xf32>,
    %c0_280 = arith.constant 0 : index
    %c0_281 = arith.constant 0 : index
    %398 = vector.load %arg45[%c0_280, %c0_281] : memref<32x8xf32, #tpu.memory_space<vmem>>, vector<12x8xf32>
    %c1_282 = arith.constant 1 : index
    %c0_283 = arith.constant 0 : index
    %399 = vector.load %arg45[%c1_282, %c0_283] : memref<32x8xf32, #tpu.memory_space<vmem>>, vector<12x8xf32>
    %c2_284 = arith.constant 2 : index
    %c0_285 = arith.constant 0 : index
    %400 = vector.load %arg45[%c2_284, %c0_285] : memref<32x8xf32, #tpu.memory_space<vmem>>, vector<12x8xf32>
    %c3_286 = arith.constant 3 : index
    %c0_287 = arith.constant 0 : index
    %401 = vector.load %arg45[%c3_286, %c0_287] : memref<32x8xf32, #tpu.memory_space<vmem>>, vector<12x8xf32>
    %c4_288 = arith.constant 4 : index
    %c0_289 = arith.constant 0 : index
    %402 = vector.load %arg45[%c4_288, %c0_289] : memref<32x8xf32, #tpu.memory_space<vmem>>, vector<12x8xf32>
    %403 = tpu.concatenate %398, %399, %400, %401, %402 in 1 : vector<12x8xf32>, vector<12x8xf32>, vector<12x8xf32>, vector<12x8xf32>, vector<12x8xf32> -> vector<12x40xf32>
    %c0_290 = arith.constant 0 : index
    %c0_291 = arith.constant 0 : index
    %404 = vector.load %arg44[%c0_290, %c0_291] : memref<24x80xf32, #tpu.memory_space<vmem>>, vector<12x40xf32>
    tpu.vector_store %arg44[%c0_290, %c0_291], %403 {strides = array<i32>} : memref<24x80xf32, #tpu.memory_space<vmem>>, vector<12x40xf32>,
    %c16_292 = arith.constant 16 : index
    %c0_293 = arith.constant 0 : index
    %405 = vector.load %arg45[%c16_292, %c0_293] : memref<32x8xf32, #tpu.memory_space<vmem>>, vector<12x8xf32>
    %c17 = arith.constant 17 : index
    %c0_294 = arith.constant 0 : index
    %406 = vector.load %arg45[%c17, %c0_294] : memref<32x8xf32, #tpu.memory_space<vmem>>, vector<12x8xf32>
    %c18 = arith.constant 18 : index
    %c0_295 = arith.constant 0 : index
    %407 = vector.load %arg45[%c18, %c0_295] : memref<32x8xf32, #tpu.memory_space<vmem>>, vector<12x8xf32>
    %c19 = arith.constant 19 : index
    %c0_296 = arith.constant 0 : index
    %408 = vector.load %arg45[%c19, %c0_296] : memref<32x8xf32, #tpu.memory_space<vmem>>, vector<12x8xf32>
    %c20_297 = arith.constant 20 : index
    %c0_298 = arith.constant 0 : index
    %409 = vector.load %arg45[%c20_297, %c0_298] : memref<32x8xf32, #tpu.memory_space<vmem>>, vector<12x8xf32>
    %410 = tpu.concatenate %405, %406, %407, %408, %409 in 1 : vector<12x8xf32>, vector<12x8xf32>, vector<12x8xf32>, vector<12x8xf32>, vector<12x8xf32> -> vector<12x40xf32>
    %c12_299 = arith.constant 12 : index
    %c0_300 = arith.constant 0 : index
    %411 = vector.load %arg44[%c12_299, %c0_300] : memref<24x80xf32, #tpu.memory_space<vmem>>, vector<12x40xf32>
    tpu.vector_store %arg44[%c12_299, %c0_300], %410 {strides = array<i32>} : memref<24x80xf32, #tpu.memory_space<vmem>>, vector<12x40xf32>,
    %c0_301 = arith.constant 0 : index
    %c0_302 = arith.constant 0 : index
    %412 = vector.load %arg44[%c0_301, %c0_302] : memref<24x80xf32, #tpu.memory_space<vmem>>, vector<24x40xf32>
    %c0_303 = arith.constant 0 : index
    %c0_304 = arith.constant 0 : index
    %413 = vector.load %arg29[%c0_303, %c0_304] : memref<40x8xf32, #tpu.memory_space<vmem>>, vector<40x8xf32>
    %cst_305 = arith.constant dense<0.000000e+00> : vector<24x8xf32>
    %414 = tpu.matmul %412, %413, %cst_305 {dimension_numbers = #tpu.dot_dimension_numbers<[1], [0], [0], [1], [0, 0, 1, 1], [], []>} : vector<24x40xf32>, vector<40x8xf32>, vector<24x8xf32> -> vector<24x8xf32>
    %c0_306 = arith.constant 0 : index
    %c0_307 = arith.constant 0 : index
    %415 = vector.load %arg30[%c0_306, %c0_307] : memref<1x8xf32, #tpu.memory_space<vmem>>, vector<1x8xf32>
    %416 = vector.broadcast %415 : vector<1x8xf32> to vector<24x8xf32>
    %417 = arith.addf %414, %416 : vector<24x8xf32>
    %cst_308 = arith.constant dense<0.000000e+00> : vector<8xf32>
    %418 = vector.multi_reduction <add>, %417, %cst_308 [0] : vector<24x8xf32> to vector<8xf32>
    %419 = vector.shape_cast %418 : vector<8xf32> to vector<1x8xf32>
    %cst_309 = arith.constant 2.400000e+01 : f32
    %420 = vector.broadcast %cst_309 : f32 to vector<1x8xf32>
    %421 = arith.divf %419, %420 : vector<1x8xf32>
    %422 = vector.broadcast %421 : vector<1x8xf32> to vector<24x8xf32>
    %423 = arith.subf %417, %422 : vector<24x8xf32>
    %424 = arith.mulf %423, %423 : vector<24x8xf32>
    %cst_310 = arith.constant dense<0.000000e+00> : vector<8xf32>
    %425 = vector.multi_reduction <add>, %424, %cst_310 [0] : vector<24x8xf32> to vector<8xf32>
    %426 = vector.shape_cast %425 : vector<8xf32> to vector<1x8xf32>
    %cst_311 = arith.constant 2.400000e+01 : f32
    %427 = vector.broadcast %cst_311 : f32 to vector<1x8xf32>
    %428 = arith.divf %426, %427 : vector<1x8xf32>
    %429 = vector.broadcast %421 : vector<1x8xf32> to vector<24x8xf32>
    %430 = arith.subf %417, %429 : vector<24x8xf32>
    %cst_312 = arith.constant 9.99999974E-6 : f32
    %431 = vector.broadcast %cst_312 : f32 to vector<1x8xf32>
    %432 = arith.addf %428, %431 : vector<1x8xf32>
    %433 = math.rsqrt %432 : vector<1x8xf32>
    %434 = vector.broadcast %433 : vector<1x8xf32> to vector<24x8xf32>
    %435 = arith.mulf %430, %434 : vector<24x8xf32>
    %c0_313 = arith.constant 0 : index
    %c0_314 = arith.constant 0 : index
    %436 = vector.load %arg31[%c0_313, %c0_314] : memref<1x8xf32, #tpu.memory_space<vmem>>, vector<1x8xf32>
    %437 = vector.broadcast %436 : vector<1x8xf32> to vector<24x8xf32>
    %438 = arith.mulf %435, %437 : vector<24x8xf32>
    %c0_315 = arith.constant 0 : index
    %c0_316 = arith.constant 0 : index
    %439 = vector.load %arg32[%c0_315, %c0_316] : memref<1x8xf32, #tpu.memory_space<vmem>>, vector<1x8xf32>
    %440 = vector.broadcast %439 : vector<1x8xf32> to vector<24x8xf32>
    %441 = arith.addf %438, %440 : vector<24x8xf32>
    %442 = arith.negf %441 : vector<24x8xf32>
    %443 = math.exp %442 : vector<24x8xf32>
    %cst_317 = arith.constant 1.000000e+00 : f32
    %444 = vector.broadcast %cst_317 : f32 to vector<24x8xf32>
    %445 = arith.addf %444, %443 : vector<24x8xf32>
    %446 = arith.divf %444, %445 : vector<24x8xf32>
    %447 = arith.mulf %441, %446 : vector<24x8xf32>
    %448 = vector.extract_strided_slice %447 {offsets = [0, 0], sizes = [12, 8], strides = [1, 1]} : vector<24x8xf32> to vector<12x8xf32>
    %c4_318 = arith.constant 4 : index
    %c0_319 = arith.constant 0 : index
    %449 = vector.load %arg45[%c4_318, %c0_319] : memref<32x8xf32, #tpu.memory_space<vmem>>, vector<12x8xf32>
    tpu.vector_store %arg45[%c4_318, %c0_319], %448 {strides = array<i32>} : memref<32x8xf32, #tpu.memory_space<vmem>>, vector<12x8xf32>,
    %450 = vector.extract_strided_slice %447 {offsets = [12, 0], sizes = [12, 8], strides = [1, 1]} : vector<24x8xf32> to vector<12x8xf32>
    %c20_320 = arith.constant 20 : index
    %c0_321 = arith.constant 0 : index
    %451 = vector.load %arg45[%c20_320, %c0_321] : memref<32x8xf32, #tpu.memory_space<vmem>>, vector<12x8xf32>
    tpu.vector_store %arg45[%c20_320, %c0_321], %450 {strides = array<i32>} : memref<32x8xf32, #tpu.memory_space<vmem>>, vector<12x8xf32>,
    %c0_322 = arith.constant 0 : index
    %c0_323 = arith.constant 0 : index
    %452 = vector.load %arg45[%c0_322, %c0_323] : memref<32x8xf32, #tpu.memory_space<vmem>>, vector<12x8xf32>
    %c1_324 = arith.constant 1 : index
    %c0_325 = arith.constant 0 : index
    %453 = vector.load %arg45[%c1_324, %c0_325] : memref<32x8xf32, #tpu.memory_space<vmem>>, vector<12x8xf32>
    %c2_326 = arith.constant 2 : index
    %c0_327 = arith.constant 0 : index
    %454 = vector.load %arg45[%c2_326, %c0_327] : memref<32x8xf32, #tpu.memory_space<vmem>>, vector<12x8xf32>
    %c3_328 = arith.constant 3 : index
    %c0_329 = arith.constant 0 : index
    %455 = vector.load %arg45[%c3_328, %c0_329] : memref<32x8xf32, #tpu.memory_space<vmem>>, vector<12x8xf32>
    %c4_330 = arith.constant 4 : index
    %c0_331 = arith.constant 0 : index
    %456 = vector.load %arg45[%c4_330, %c0_331] : memref<32x8xf32, #tpu.memory_space<vmem>>, vector<12x8xf32>
    %457 = tpu.concatenate %452, %453, %454, %455, %456 in 1 : vector<12x8xf32>, vector<12x8xf32>, vector<12x8xf32>, vector<12x8xf32>, vector<12x8xf32> -> vector<12x40xf32>
    %c0_332 = arith.constant 0 : index
    %c0_333 = arith.constant 0 : index
    %458 = vector.load %arg44[%c0_332, %c0_333] : memref<24x80xf32, #tpu.memory_space<vmem>>, vector<12x40xf32>
    tpu.vector_store %arg44[%c0_332, %c0_333], %457 {strides = array<i32>} : memref<24x80xf32, #tpu.memory_space<vmem>>, vector<12x40xf32>,
    %c16_334 = arith.constant 16 : index
    %c0_335 = arith.constant 0 : index
    %459 = vector.load %arg45[%c16_334, %c0_335] : memref<32x8xf32, #tpu.memory_space<vmem>>, vector<12x8xf32>
    %c17_336 = arith.constant 17 : index
    %c0_337 = arith.constant 0 : index
    %460 = vector.load %arg45[%c17_336, %c0_337] : memref<32x8xf32, #tpu.memory_space<vmem>>, vector<12x8xf32>
    %c18_338 = arith.constant 18 : index
    %c0_339 = arith.constant 0 : index
    %461 = vector.load %arg45[%c18_338, %c0_339] : memref<32x8xf32, #tpu.memory_space<vmem>>, vector<12x8xf32>
    %c19_340 = arith.constant 19 : index
    %c0_341 = arith.constant 0 : index
    %462 = vector.load %arg45[%c19_340, %c0_341] : memref<32x8xf32, #tpu.memory_space<vmem>>, vector<12x8xf32>
    %c20_342 = arith.constant 20 : index
    %c0_343 = arith.constant 0 : index
    %463 = vector.load %arg45[%c20_342, %c0_343] : memref<32x8xf32, #tpu.memory_space<vmem>>, vector<12x8xf32>
    %464 = tpu.concatenate %459, %460, %461, %462, %463 in 1 : vector<12x8xf32>, vector<12x8xf32>, vector<12x8xf32>, vector<12x8xf32>, vector<12x8xf32> -> vector<12x40xf32>
    %c12_344 = arith.constant 12 : index
    %c0_345 = arith.constant 0 : index
    %465 = vector.load %arg44[%c12_344, %c0_345] : memref<24x80xf32, #tpu.memory_space<vmem>>, vector<12x40xf32>
    tpu.vector_store %arg44[%c12_344, %c0_345], %464 {strides = array<i32>} : memref<24x80xf32, #tpu.memory_space<vmem>>, vector<12x40xf32>,
    %c0_346 = arith.constant 0 : index
    %c0_347 = arith.constant 0 : index
    %466 = vector.load %arg44[%c0_346, %c0_347] : memref<24x80xf32, #tpu.memory_space<vmem>>, vector<24x40xf32>
    %c0_348 = arith.constant 0 : index
    %c0_349 = arith.constant 0 : index
    %467 = vector.load %arg33[%c0_348, %c0_349] : memref<40x8xf32, #tpu.memory_space<vmem>>, vector<40x8xf32>
    %cst_350 = arith.constant dense<0.000000e+00> : vector<24x8xf32>
    %468 = tpu.matmul %466, %467, %cst_350 {dimension_numbers = #tpu.dot_dimension_numbers<[1], [0], [0], [1], [0, 0, 1, 1], [], []>} : vector<24x40xf32>, vector<40x8xf32>, vector<24x8xf32> -> vector<24x8xf32>
    %c0_351 = arith.constant 0 : index
    %c0_352 = arith.constant 0 : index
    %469 = vector.load %arg34[%c0_351, %c0_352] : memref<1x8xf32, #tpu.memory_space<vmem>>, vector<1x8xf32>
    %470 = vector.broadcast %469 : vector<1x8xf32> to vector<24x8xf32>
    %471 = arith.addf %468, %470 : vector<24x8xf32>
    %472 = arith.addf %363, %471 : vector<24x8xf32>
    %cst_353 = arith.constant dense<0.000000e+00> : vector<8xf32>
    %473 = vector.multi_reduction <add>, %472, %cst_353 [0] : vector<24x8xf32> to vector<8xf32>
    %474 = vector.shape_cast %473 : vector<8xf32> to vector<1x8xf32>
    %cst_354 = arith.constant 2.400000e+01 : f32
    %475 = vector.broadcast %cst_354 : f32 to vector<1x8xf32>
    %476 = arith.divf %474, %475 : vector<1x8xf32>
    %477 = vector.broadcast %476 : vector<1x8xf32> to vector<24x8xf32>
    %478 = arith.subf %472, %477 : vector<24x8xf32>
    %479 = arith.mulf %478, %478 : vector<24x8xf32>
    %cst_355 = arith.constant dense<0.000000e+00> : vector<8xf32>
    %480 = vector.multi_reduction <add>, %479, %cst_355 [0] : vector<24x8xf32> to vector<8xf32>
    %481 = vector.shape_cast %480 : vector<8xf32> to vector<1x8xf32>
    %cst_356 = arith.constant 2.400000e+01 : f32
    %482 = vector.broadcast %cst_356 : f32 to vector<1x8xf32>
    %483 = arith.divf %481, %482 : vector<1x8xf32>
    %484 = vector.broadcast %476 : vector<1x8xf32> to vector<24x8xf32>
    %485 = arith.subf %472, %484 : vector<24x8xf32>
    %cst_357 = arith.constant 9.99999974E-6 : f32
    %486 = vector.broadcast %cst_357 : f32 to vector<1x8xf32>
    %487 = arith.addf %483, %486 : vector<1x8xf32>
    %488 = math.rsqrt %487 : vector<1x8xf32>
    %489 = vector.broadcast %488 : vector<1x8xf32> to vector<24x8xf32>
    %490 = arith.mulf %485, %489 : vector<24x8xf32>
    %c0_358 = arith.constant 0 : index
    %c0_359 = arith.constant 0 : index
    %491 = vector.load %arg35[%c0_358, %c0_359] : memref<1x8xf32, #tpu.memory_space<vmem>>, vector<1x8xf32>
    %492 = vector.broadcast %491 : vector<1x8xf32> to vector<24x8xf32>
    %493 = arith.mulf %490, %492 : vector<24x8xf32>
    %c0_360 = arith.constant 0 : index
    %c0_361 = arith.constant 0 : index
    %494 = vector.load %arg36[%c0_360, %c0_361] : memref<1x8xf32, #tpu.memory_space<vmem>>, vector<1x8xf32>
    %495 = vector.broadcast %494 : vector<1x8xf32> to vector<24x8xf32>
    %496 = arith.addf %493, %495 : vector<24x8xf32>
    %497 = arith.negf %496 : vector<24x8xf32>
    %498 = math.exp %497 : vector<24x8xf32>
    %cst_362 = arith.constant 1.000000e+00 : f32
    %499 = vector.broadcast %cst_362 : f32 to vector<24x8xf32>
    %500 = arith.addf %499, %498 : vector<24x8xf32>
    %501 = arith.divf %499, %500 : vector<24x8xf32>
    %502 = arith.mulf %496, %501 : vector<24x8xf32>
    %503 = vector.extract_strided_slice %502 {offsets = [0, 0], sizes = [12, 8], strides = [1, 1]} : vector<24x8xf32> to vector<12x8xf32>
    %c4_363 = arith.constant 4 : index
    %c0_364 = arith.constant 0 : index
    %504 = vector.load %arg45[%c4_363, %c0_364] : memref<32x8xf32, #tpu.memory_space<vmem>>, vector<12x8xf32>
    tpu.vector_store %arg45[%c4_363, %c0_364], %503 {strides = array<i32>} : memref<32x8xf32, #tpu.memory_space<vmem>>, vector<12x8xf32>,
    %505 = vector.extract_strided_slice %502 {offsets = [12, 0], sizes = [12, 8], strides = [1, 1]} : vector<24x8xf32> to vector<12x8xf32>
    %c20_365 = arith.constant 20 : index
    %c0_366 = arith.constant 0 : index
    %506 = vector.load %arg45[%c20_365, %c0_366] : memref<32x8xf32, #tpu.memory_space<vmem>>, vector<12x8xf32>
    tpu.vector_store %arg45[%c20_365, %c0_366], %505 {strides = array<i32>} : memref<32x8xf32, #tpu.memory_space<vmem>>, vector<12x8xf32>,
    %c0_367 = arith.constant 0 : index
    %c0_368 = arith.constant 0 : index
    %507 = tpu.strided_load %arg45[%c0_367, %c0_368] {strides = array<i32: 2, 1>} : memref<32x8xf32, #tpu.memory_space<vmem>>, vector<16x8xf32>
    %c1_369 = arith.constant 1 : index
    %c0_370 = arith.constant 0 : index
    %508 = tpu.strided_load %arg45[%c1_369, %c0_370] {strides = array<i32: 2, 1>} : memref<32x8xf32, #tpu.memory_space<vmem>>, vector<16x8xf32>
    %509 = arith.maximumf %507, %508 : vector<16x8xf32>
    %510 = vector.extract_strided_slice %509 {offsets = [0, 0], sizes = [8, 8], strides = [1, 1]} : vector<16x8xf32> to vector<8x8xf32>
    %cst_371 = arith.constant dense<0.000000e+00> : vector<8xf32>
    %511 = vector.multi_reduction <add>, %510, %cst_371 [0] : vector<8x8xf32> to vector<8xf32>
    %512 = vector.shape_cast %511 : vector<8xf32> to vector<1x8xf32>
    %cst_372 = arith.constant 8.000000e+00 : f32
    %513 = vector.broadcast %cst_372 : f32 to vector<1x8xf32>
    %514 = arith.divf %512, %513 : vector<1x8xf32>
    %c0_373 = arith.constant 0 : index
    %c0_374 = arith.constant 0 : index
    %515 = vector.load %arg46[%c0_373, %c0_374] : memref<2x8xf32, #tpu.memory_space<vmem>>, vector<1x8xf32>
    tpu.vector_store %arg46[%c0_373, %c0_374], %514 {strides = array<i32>} : memref<2x8xf32, #tpu.memory_space<vmem>>, vector<1x8xf32>,
    %516 = vector.extract_strided_slice %509 {offsets = [8, 0], sizes = [8, 8], strides = [1, 1]} : vector<16x8xf32> to vector<8x8xf32>
    %cst_375 = arith.constant dense<0.000000e+00> : vector<8xf32>
    %517 = vector.multi_reduction <add>, %516, %cst_375 [0] : vector<8x8xf32> to vector<8xf32>
    %518 = vector.shape_cast %517 : vector<8xf32> to vector<1x8xf32>
    %cst_376 = arith.constant 8.000000e+00 : f32
    %519 = vector.broadcast %cst_376 : f32 to vector<1x8xf32>
    %520 = arith.divf %518, %519 : vector<1x8xf32>
    %c1_377 = arith.constant 1 : index
    %c0_378 = arith.constant 0 : index
    %521 = vector.load %arg46[%c1_377, %c0_378] : memref<2x8xf32, #tpu.memory_space<vmem>>, vector<1x8xf32>
    tpu.vector_store %arg46[%c1_377, %c0_378], %520 {strides = array<i32>} : memref<2x8xf32, #tpu.memory_space<vmem>>, vector<1x8xf32>,
    %c0_379 = arith.constant 0 : index
    %c0_380 = arith.constant 0 : index
    %522 = vector.load %arg46[%c0_379, %c0_380] : memref<2x8xf32, #tpu.memory_space<vmem>>, vector<2x8xf32>
    %c0_381 = arith.constant 0 : index
    %c0_382 = arith.constant 0 : index
    %523 = vector.load %arg37[%c0_381, %c0_382] : memref<8x8xf32, #tpu.memory_space<vmem>>, vector<8x8xf32>
    %cst_383 = arith.constant dense<0.000000e+00> : vector<2x8xf32>
    %524 = tpu.matmul %522, %523, %cst_383 {dimension_numbers = #tpu.dot_dimension_numbers<[1], [0], [0], [1], [0, 0, 1, 1], [], []>} : vector<2x8xf32>, vector<8x8xf32>, vector<2x8xf32> -> vector<2x8xf32>
    %c0_384 = arith.constant 0 : index
    %c0_385 = arith.constant 0 : index
    %525 = vector.load %arg38[%c0_384, %c0_385] : memref<1x8xf32, #tpu.memory_space<vmem>>, vector<1x8xf32>
    %526 = vector.broadcast %525 : vector<1x8xf32> to vector<2x8xf32>
    %527 = arith.addf %524, %526 : vector<2x8xf32>
    %528 = arith.negf %527 : vector<2x8xf32>
    %529 = math.exp %528 : vector<2x8xf32>
    %cst_386 = arith.constant 1.000000e+00 : f32
    %530 = vector.broadcast %cst_386 : f32 to vector<2x8xf32>
    %531 = arith.addf %530, %529 : vector<2x8xf32>
    %532 = arith.divf %530, %531 : vector<2x8xf32>
    %533 = arith.mulf %527, %532 : vector<2x8xf32>
    %c0_387 = arith.constant 0 : index
    %c0_388 = arith.constant 0 : index
    %534 = vector.load %arg39[%c0_387, %c0_388] : memref<2x8xf32, #tpu.memory_space<vmem>>, vector<2x8xf32>
    tpu.vector_store %arg39[%c0_387, %c0_388], %533 {strides = array<i32>} : memref<2x8xf32, #tpu.memory_space<vmem>>, vector<2x8xf32>,
    return
  }
}

</mosaic_0001>

<llo_original>
// kernel: ecg_cnn_forward.1
$region0: #{ecg_cnn_forward.1}
  #allocation0 [shape = 'u32[]', space=smem, size = 0x4, offset = 0x4, fixed_abs, tag = 'smem constant byte address 0x4 - core index']
  #allocation1 [shape = 'u32[144,128]{1,0:T(1,128)}', space=vmem, size = 0x12000, scoped, tag = 'internal scratch']
  #allocation2 [shape = 'f32[120,160]{1,0:T(8,128)}', space=vmem, size = 0x1e000, scoped, tag = 'scratch operand']
  #allocation3 [shape = 'f32[128,32]{1,0:T(8,128)}', space=vmem, size = 0x10000, scoped, tag = 'scratch operand']
  #allocation4 [shape = 'f32[56,160]{1,0:T(8,128)}', space=vmem, size = 0xe000, scoped, tag = 'scratch operand']
  #allocation5 [shape = 'f32[64,16]{1,0:T(8,128)}', space=vmem, size = 0x8000, scoped, tag = 'scratch operand']
  #allocation6 [shape = 'f32[24,80]{1,0:T(8,128)}', space=vmem, size = 0x3000, scoped, tag = 'scratch operand']
  #allocation7 [shape = 'f32[32,8]{1,0:T(8,128)}', space=vmem, size = 0x4000, scoped, tag = 'scratch operand']
  #allocation8 [shape = 'f32[2,8]{1,0:T(2,128)}', space=vmem, size = 0x400, scoped, tag = 'scratch operand']
  %s0 = inlined_call_operand.smem [shape: u32[40], index: -1, kind: input, shape index: {}]
  %s1 = sld [smem:[%s0]]
  %s2 = scalar_lea.smem %s0, 1
  %s3 = sld [smem:[%s2]]
  %s4 = scalar_lea.smem %s0, 2
  %s5 = sld [smem:[%s4]]
  %s6 = scalar_lea.smem %s0, 3
  %s7 = sld [smem:[%s6]]
  %s8 = scalar_lea.smem %s0, 4
  %s9 = sld [smem:[%s8]]
  %s10 = scalar_lea.smem %s0, 5
  %s11 = sld [smem:[%s10]]
  %s12 = scalar_lea.smem %s0, 6
  %s13 = sld [smem:[%s12]]
  %s14 = scalar_lea.smem %s0, 7
  %s15 = sld [smem:[%s14]]
  %s16 = scalar_lea.smem %s0, 8
  %s17 = sld [smem:[%s16]]
  %s18 = scalar_lea.smem %s0, 9
  %s19 = sld [smem:[%s18]]
  %s20 = scalar_lea.smem %s0, 10
  %s21 = sld [smem:[%s20]]
  %s22 = scalar_lea.smem %s0, 11
  %s23 = sld [smem:[%s22]]
  %s24 = scalar_lea.smem %s0, 12
  %s25 = sld [smem:[%s24]]
  %s26 = scalar_lea.smem %s0, 13
  %s27 = sld [smem:[%s26]]
  %s28 = scalar_lea.smem %s0, 14
  %s29 = sld [smem:[%s28]]
  %s30 = scalar_lea.smem %s0, 15
  %s31 = sld [smem:[%s30]]
  %s32 = scalar_lea.smem %s0, 16
  %s33 = sld [smem:[%s32]]
  %s34 = scalar_lea.smem %s0, 17
  %s35 = sld [smem:[%s34]]
  %s36 = scalar_lea.smem %s0, 18
  %s37 = sld [smem:[%s36]]
  %s38 = scalar_lea.smem %s0, 19
  %s39 = sld [smem:[%s38]]
  %s40 = scalar_lea.smem %s0, 20
  %s41 = sld [smem:[%s40]]
  %s42 = scalar_lea.smem %s0, 21
  %s43 = sld [smem:[%s42]]
  %s44 = scalar_lea.smem %s0, 22
  %s45 = sld [smem:[%s44]]
  %s46 = scalar_lea.smem %s0, 23
  %s47 = sld [smem:[%s46]]
  %s48 = scalar_lea.smem %s0, 24
  %s49 = sld [smem:[%s48]]
  %s50 = scalar_lea.smem %s0, 25
  %s51 = sld [smem:[%s50]]
  %s52 = scalar_lea.smem %s0, 26
  %s53 = sld [smem:[%s52]]
  %s54 = scalar_lea.smem %s0, 27
  %s55 = sld [smem:[%s54]]
  %s56 = scalar_lea.smem %s0, 28
  %s57 = sld [smem:[%s56]]
  %s58 = scalar_lea.smem %s0, 29
  %s59 = sld [smem:[%s58]]
  %s60 = scalar_lea.smem %s0, 30
  %s61 = sld [smem:[%s60]]
  %s62 = scalar_lea.smem %s0, 31
  %s63 = sld [smem:[%s62]]
  %s64 = scalar_lea.smem %s0, 32
  %s65 = sld [smem:[%s64]]
  %s66 = scalar_lea.smem %s0, 33
  %s67 = sld [smem:[%s66]]
  %s68 = scalar_lea.smem %s0, 34
  %s69 = sld [smem:[%s68]]
  %s70 = scalar_lea.smem %s0, 35
  %s71 = sld [smem:[%s70]]
  %s72 = scalar_lea.smem %s0, 36
  %s73 = sld [smem:[%s72]]
  %s74 = scalar_lea.smem %s0, 37
  %s75 = sld [smem:[%s74]]
  %s76 = scalar_lea.smem %s0, 38
  %s77 = sld [smem:[%s76]]
  %s78 = scalar_lea.smem %s0, 39
  %s79 = sld [smem:[%s78]]
  %s80 = sld [smem:[#allocation0]]
  $region258: #{ecg_cnn_forward.1} parent=0
    _
  %s82 = ssub.s32 1, %s80
  %s83 = scalar_select 0, %s82, %s80
  $region1: #{ecg_cnn_forward.1} parent=0
    #allocation9 [shape = 'u8[512]{0}', space=vmem, size = 0x400, scoped, tag = 'input window, operand 2, single buffered']
    #allocation10 [shape = 's32[1]{0}', space=sflag, size = 0x4, scoped, tag = 'scoped memory for ecg_cnn_forward.1']
    #allocation11 [shape = 's32[1]{0}', space=sflag, size = 0x4, scoped, tag = 'scoped memory for ecg_cnn_forward.1']
    #allocation12 [shape = 'u8[512]{0}', space=vmem, size = 0x400, scoped, tag = 'input window, operand 3, single buffered']
    #allocation13 [shape = 's32[1]{0}', space=sflag, size = 0x4, scoped, tag = 'scoped memory for ecg_cnn_forward.1']
    #allocation14 [shape = 'u8[512]{0}', space=vmem, size = 0x400, scoped, tag = 'input window, operand 4, single buffered']
    #allocation15 [shape = 'u8[512]{0}', space=vmem, size = 0x400, scoped, tag = 'input window, operand 6, single buffered']
    #allocation16 [shape = 's32[1]{0}', space=sflag, size = 0x4, scoped, tag = 'scoped memory for ecg_cnn_forward.1']
    #allocation17 [shape = 'u8[512]{0}', space=vmem, size = 0x400, scoped, tag = 'input window, operand 7, single buffered']
    #allocation18 [shape = 'u8[512]{0}', space=vmem, size = 0x400, scoped, tag = 'input window, operand 8, single buffered']
    #allocation19 [shape = 's32[1]{0}', space=sflag, size = 0x4, scoped, tag = 'scoped memory for ecg_cnn_forward.1']
    #allocation20 [shape = 'u8[512]{0}', space=vmem, size = 0x400, scoped, tag = 'input window, operand 10, single buffered']
    #allocation21 [shape = 'u8[512]{0}', space=vmem, size = 0x400, scoped, tag = 'input window, operand 11, single buffered']
    #allocation22 [shape = 's32[1]{0}', space=sflag, size = 0x4, scoped, tag = 'scoped memory for ecg_cnn_forward.1']
    #allocation23 [shape = 'u8[512]{0}', space=vmem, size = 0x400, scoped, tag = 'input window, operand 12, single buffered']
    #allocation24 [shape = 'u8[512]{0}', space=vmem, size = 0x400, scoped, tag = 'input window, operand 14, single buffered']
    #allocation25 [shape = 's32[1]{0}', space=sflag, size = 0x4, scoped, tag = 'scoped memory for ecg_cnn_forward.1']
    #allocation26 [shape = 'u8[512]{0}', space=vmem, size = 0x400, scoped, tag = 'input window, operand 15, single buffered']
    #allocation27 [shape = 'u8[512]{0}', space=vmem, size = 0x400, scoped, tag = 'input window, operand 16, single buffered']
    #allocation28 [shape = 's32[1]{0}', space=sflag, size = 0x4, scoped, tag = 'scoped memory for ecg_cnn_forward.1']
    #allocation29 [shape = 'u8[512]{0}', space=vmem, size = 0x400, scoped, tag = 'input window, operand 18, single buffered']
    #allocation30 [shape = 'u8[512]{0}', space=vmem, size = 0x400, scoped, tag = 'input window, operand 19, single buffered']
    #allocation31 [shape = 's32[1]{0}', space=sflag, size = 0x4, scoped, tag = 'scoped memory for ecg_cnn_forward.1']
    #allocation32 [shape = 'u8[512]{0}', space=vmem, size = 0x400, scoped, tag = 'input window, operand 20, single buffered']
    #allocation33 [shape = 'u8[512]{0}', space=vmem, size = 0x400, scoped, tag = 'input window, operand 22, single buffered']
    #allocation34 [shape = 's32[1]{0}', space=sflag, size = 0x4, scoped, tag = 'scoped memory for ecg_cnn_forward.1']
    #allocation35 [shape = 'u8[512]{0}', space=vmem, size = 0x400, scoped, tag = 'input window, operand 23, single buffered']
    #allocation36 [shape = 'u8[512]{0}', space=vmem, size = 0x400, scoped, tag = 'input window, operand 24, single buffered']
    #allocation37 [shape = 's32[1]{0}', space=sflag, size = 0x4, scoped, tag = 'scoped memory for ecg_cnn_forward.1']
    #allocation38 [shape = 'u8[512]{0}', space=vmem, size = 0x400, scoped, tag = 'input window, operand 26, single buffered']
    #allocation39 [shape = 'u8[512]{0}', space=vmem, size = 0x400, scoped, tag = 'input window, operand 28, single buffered']
    #allocation40 [shape = 's32[1]{0}', space=sflag, size = 0x4, scoped, tag = 'scoped memory for ecg_cnn_forward.1']
    #allocation41 [shape = 'u8[512]{0}', space=vmem, size = 0x400, scoped, tag = 'input window, operand 30, single buffered']
    #allocation42 [shape = 'u8[512]{0}', space=vmem, size = 0x400, scoped, tag = 'input window, operand 32, single buffered']
    #allocation43 [shape = 's32[1]{0}', space=sflag, size = 0x4, scoped, tag = 'scoped memory for ecg_cnn_forward.1']
    #allocation44 [shape = 'u8[512]{0}', space=vmem, size = 0x400, scoped, tag = 'input window, operand 34, single buffered']
    #allocation45 [shape = 'u8[1024]{0}', space=vmem, size = 0x400, scoped, tag = 'output window, operand 0, single buffered']
    %84 = vsyncpa [#allocation10], 0
    %85 = vsyncpa [#allocation13], 0
    %86 = vsyncpa [#allocation16], 0
    %87 = vsyncpa [#allocation19], 0
    %88 = vsyncpa [#allocation22], 0
    %89 = vsyncpa [#allocation25], 0
    %90 = vsyncpa [#allocation28], 0
    %91 = vsyncpa [#allocation31], 0
    %92 = vsyncpa [#allocation34], 0
    %93 = vsyncpa [#allocation37], 0
    %94 = vsyncpa [#allocation40], 0
    %95 = vsyncpa [#allocation43], 0
    %96 = vsyncpa [#allocation11], 0
    // Predicated region
    $region2: #{ecg_cnn_forward.1} parent=1 // pred_check
      _
    $region3: #{ecg_cnn_forward.1} parent=1 // pred_check_branch
      %98 = sbr.rel (0) target = $region5
    $region4: #{ecg_cnn_forward.1} parent=1 // pred_region
      _
    $region5: #{ecg_cnn_forward.1} parent=1 // pred_fallthru
      _
    // Predicated region
    $region6: #{ecg_cnn_forward.1} parent=1 // pred_check
      _
    $region7: #{ecg_cnn_forward.1} parent=1 // pred_check_branch
      %100 = sbr.rel (0) target = $region9
    $region8: #{ecg_cnn_forward.1} parent=1 // pred_region
      _
    $region9: #{ecg_cnn_forward.1} parent=1 // pred_fallthru
      _
    // Predicated region
    $region10: #{ecg_cnn_forward.1} parent=1 // pred_check
      _
    $region11: #{ecg_cnn_forward.1} parent=1 // pred_check_branch
      %102 = sbr.rel (0) target = $region13
    $region12: #{ecg_cnn_forward.1} parent=1 // pred_region
      %s104 = ssub.s32 16, 16
      %105 = vsyncadd [#allocation10], %s104
      %s107 = sshll.u32 [#allocation9], 4
      %s108 = int_to_ptr.vmem [resolvable:$true] %s107
      %110 = dma.hbm_to_vmem [thread:$0]  %s5, 16, %s108, [#allocation10]
    $region13: #{ecg_cnn_forward.1} parent=1 // pred_fallthru
      _
    // Predicated region
    $region14: #{ecg_cnn_forward.1} parent=1 // pred_check
      _
    $region15: #{ecg_cnn_forward.1} parent=1 // pred_check_branch
      %112 = sbr.rel (0) target = $region17
    $region16: #{ecg_cnn_forward.1} parent=1 // pred_region
      %s114 = ssub.s32 16, 16
      %115 = vsyncadd [#allocation13], %s114
      %s117 = sshll.u32 [#allocation12], 4
      %s118 = int_to_ptr.vmem [resolvable:$true] %s117
      %120 = dma.hbm_to_vmem [thread:$0]  %s7, 16, %s118, [#allocation13]
    $region17: #{ecg_cnn_forward.1} parent=1 // pred_fallthru
      _
    // Predicated region
    $region18: #{ecg_cnn_forward.1} parent=1 // pred_check
      _
    $region19: #{ecg_cnn_forward.1} parent=1 // pred_check_branch
      %122 = sbr.rel (0) target = $region21
    $region20: #{ecg_cnn_forward.1} parent=1 // pred_region
      %s124 = ssub.s32 16, 16
      %125 = vsyncadd [#allocation13], %s124
      %s127 = sshll.u32 [#allocation14], 4
      %s128 = int_to_ptr.vmem [resolvable:$true] %s127
      %130 = dma.hbm_to_vmem [thread:$0]  %s9, 16, %s128, [#allocation13]
    $region21: #{ecg_cnn_forward.1} parent=1 // pred_fallthru
      _
    // Predicated region
    $region22: #{ecg_cnn_forward.1} parent=1 // pred_check
      _
    $region23: #{ecg_cnn_forward.1} parent=1 // pred_check_branch
      %132 = sbr.rel (0) target = $region25
    $region24: #{ecg_cnn_forward.1} parent=1 // pred_region
      _
    $region25: #{ecg_cnn_forward.1} parent=1 // pred_fallthru
      _
    // Predicated region
    $region26: #{ecg_cnn_forward.1} parent=1 // pred_check
      _
    $region27: #{ecg_cnn_forward.1} parent=1 // pred_check_branch
      %134 = sbr.rel (0) target = $region29
    $region28: #{ecg_cnn_forward.1} parent=1 // pred_region
      %s136 = ssub.s32 16, 16
      %137 = vsyncadd [#allocation16], %s136
      %s139 = sshll.u32 [#allocation15], 4
      %s140 = int_to_ptr.vmem [resolvable:$true] %s139
      %142 = dma.hbm_to_vmem [thread:$0]  %s13, 16, %s140, [#allocation16]
    $region29: #{ecg_cnn_forward.1} parent=1 // pred_fallthru
      _
    // Predicated region
    $region30: #{ecg_cnn_forward.1} parent=1 // pred_check
      _
    $region31: #{ecg_cnn_forward.1} parent=1 // pred_check_branch
      %144 = sbr.rel (0) target = $region33
    $region32: #{ecg_cnn_forward.1} parent=1 // pred_region
      %s146 = ssub.s32 16, 16
      %147 = vsyncadd [#allocation16], %s146
      %s149 = sshll.u32 [#allocation17], 4
      %s150 = int_to_ptr.vmem [resolvable:$true] %s149
      %152 = dma.hbm_to_vmem [thread:$0]  %s15, 16, %s150, [#allocation16]
    $region33: #{ecg_cnn_forward.1} parent=1 // pred_fallthru
      _
    // Predicated region
    $region34: #{ecg_cnn_forward.1} parent=1 // pred_check
      _
    $region35: #{ecg_cnn_forward.1} parent=1 // pred_check_branch
      %154 = sbr.rel (0) target = $region37
    $region36: #{ecg_cnn_forward.1} parent=1 // pred_region
      %s156 = ssub.s32 16, 16
      %157 = vsyncadd [#allocation19], %s156
      %s159 = sshll.u32 [#allocation18], 4
      %s160 = int_to_ptr.vmem [resolvable:$true] %s159
      %162 = dma.hbm_to_vmem [thread:$0]  %s17, 16, %s160, [#allocation19]
    $region37: #{ecg_cnn_forward.1} parent=1 // pred_fallthru
      _
    // Predicated region
    $region38: #{ecg_cnn_forward.1} parent=1 // pred_check
      _
    $region39: #{ecg_cnn_forward.1} parent=1 // pred_check_branch
      %164 = sbr.rel (0) target = $region41
    $region40: #{ecg_cnn_forward.1} parent=1 // pred_region
      _
    $region41: #{ecg_cnn_forward.1} parent=1 // pred_fallthru
      _
    // Predicated region
    $region42: #{ecg_cnn_forward.1} parent=1 // pred_check
      _
    $region43: #{ecg_cnn_forward.1} parent=1 // pred_check_branch
      %166 = sbr.rel (0) target = $region45
    $region44: #{ecg_cnn_forward.1} parent=1 // pred_region
      %s168 = ssub.s32 16, 16
      %169 = vsyncadd [#allocation19], %s168
      %s171 = sshll.u32 [#allocation20], 4
      %s172 = int_to_ptr.vmem [resolvable:$true] %s171
      %174 = dma.hbm_to_vmem [thread:$0]  %s21, 16, %s172, [#allocation19]
    $region45: #{ecg_cnn_forward.1} parent=1 // pred_fallthru
      _
    // Predicated region
    $region46: #{ecg_cnn_forward.1} parent=1 // pred_check
      _
    $region47: #{ecg_cnn_forward.1} parent=1 // pred_check_branch
      %176 = sbr.rel (0) target = $region49
    $region48: #{ecg_cnn_forward.1} parent=1 // pred_region
      %s178 = ssub.s32 16, 16
      %179 = vsyncadd [#allocation22], %s178
      %s181 = sshll.u32 [#allocation21], 4
      %s182 = int_to_ptr.vmem [resolvable:$true] %s181
      %184 = dma.hbm_to_vmem [thread:$0]  %s23, 16, %s182, [#allocation22]
    $region49: #{ecg_cnn_forward.1} parent=1 // pred_fallthru
      _
    // Predicated region
    $region50: #{ecg_cnn_forward.1} parent=1 // pred_check
      _
    $region51: #{ecg_cnn_forward.1} parent=1 // pred_check_branch
      %186 = sbr.rel (0) target = $region53
    $region52: #{ecg_cnn_forward.1} parent=1 // pred_region
      %s188 = ssub.s32 16, 16
      %189 = vsyncadd [#allocation22], %s188
      %s191 = sshll.u32 [#allocation23], 4
      %s192 = int_to_ptr.vmem [resolvable:$true] %s191
      %194 = dma.hbm_to_vmem [thread:$0]  %s25, 16, %s192, [#allocation22]
    $region53: #{ecg_cnn_forward.1} parent=1 // pred_fallthru
      _
    // Predicated region
    $region54: #{ecg_cnn_forward.1} parent=1 // pred_check
      _
    $region55: #{ecg_cnn_forward.1} parent=1 // pred_check_branch
      %196 = sbr.rel (0) target = $region57
    $region56: #{ecg_cnn_forward.1} parent=1 // pred_region
      _
    $region57: #{ecg_cnn_forward.1} parent=1 // pred_fallthru
      _
    // Predicated region
    $region58: #{ecg_cnn_forward.1} parent=1 // pred_check
      _
    $region59: #{ecg_cnn_forward.1} parent=1 // pred_check_branch
      %198 = sbr.rel (0) target = $region61
    $region60: #{ecg_cnn_forward.1} parent=1 // pred_region
      %s200 = ssub.s32 16, 16
      %201 = vsyncadd [#allocation25], %s200
      %s203 = sshll.u32 [#allocation24], 4
      %s204 = int_to_ptr.vmem [resolvable:$true] %s203
      %206 = dma.hbm_to_vmem [thread:$0]  %s29, 16, %s204, [#allocation25]
    $region61: #{ecg_cnn_forward.1} parent=1 // pred_fallthru
      _
    // Predicated region
    $region62: #{ecg_cnn_forward.1} parent=1 // pred_check
      _
    $region63: #{ecg_cnn_forward.1} parent=1 // pred_check_branch
      %208 = sbr.rel (0) target = $region65
    $region64: #{ecg_cnn_forward.1} parent=1 // pred_region
      %s210 = ssub.s32 16, 16
      %211 = vsyncadd [#allocation25], %s210
      %s213 = sshll.u32 [#allocation26], 4
      %s214 = int_to_ptr.vmem [resolvable:$true] %s213
      %216 = dma.hbm_to_vmem [thread:$0]  %s31, 16, %s214, [#allocation25]
    $region65: #{ecg_cnn_forward.1} parent=1 // pred_fallthru
      _
    // Predicated region
    $region66: #{ecg_cnn_forward.1} parent=1 // pred_check
      _
    $region67: #{ecg_cnn_forward.1} parent=1 // pred_check_branch
      %218 = sbr.rel (0) target = $region69
    $region68: #{ecg_cnn_forward.1} parent=1 // pred_region
      %s220 = ssub.s32 16, 16
      %221 = vsyncadd [#allocation28], %s220
      %s223 = sshll.u32 [#allocation27], 4
      %s224 = int_to_ptr.vmem [resolvable:$true] %s223
      %226 = dma.hbm_to_vmem [thread:$0]  %s33, 16, %s224, [#allocation28]
    $region69: #{ecg_cnn_forward.1} parent=1 // pred_fallthru
      _
    // Predicated region
    $region70: #{ecg_cnn_forward.1} parent=1 // pred_check
      _
    $region71: #{ecg_cnn_forward.1} parent=1 // pred_check_branch
      %228 = sbr.rel (0) target = $region73
    $region72: #{ecg_cnn_forward.1} parent=1 // pred_region
      _
    $region73: #{ecg_cnn_forward.1} parent=1 // pred_fallthru
      _
    // Predicated region
    $region74: #{ecg_cnn_forward.1} parent=1 // pred_check
      _
    $region75: #{ecg_cnn_forward.1} parent=1 // pred_check_branch
      %230 = sbr.rel (0) target = $region77
    $region76: #{ecg_cnn_forward.1} parent=1 // pred_region
      %s232 = ssub.s32 16, 16
      %233 = vsyncadd [#allocation28], %s232
      %s235 = sshll.u32 [#allocation29], 4
      %s236 = int_to_ptr.vmem [resolvable:$true] %s235
      %238 = dma.hbm_to_vmem [thread:$0]  %s37, 16, %s236, [#allocation28]
    $region77: #{ecg_cnn_forward.1} parent=1 // pred_fallthru
      _
    // Predicated region
    $region78: #{ecg_cnn_forward.1} parent=1 // pred_check
      _
    $region79: #{ecg_cnn_forward.1} parent=1 // pred_check_branch
      %240 = sbr.rel (0) target = $region81
    $region80: #{ecg_cnn_forward.1} parent=1 // pred_region
      %s242 = ssub.s32 16, 16
      %243 = vsyncadd [#allocation31], %s242
      %s245 = sshll.u32 [#allocation30], 4
      %s246 = int_to_ptr.vmem [resolvable:$true] %s245
      %248 = dma.hbm_to_vmem [thread:$0]  %s39, 16, %s246, [#allocation31]
    $region81: #{ecg_cnn_forward.1} parent=1 // pred_fallthru
      _
    // Predicated region
    $region82: #{ecg_cnn_forward.1} parent=1 // pred_check
      _
    $region83: #{ecg_cnn_forward.1} parent=1 // pred_check_branch
      %250 = sbr.rel (0) target = $region85
    $region84: #{ecg_cnn_forward.1} parent=1 // pred_region
      %s252 = ssub.s32 16, 16
      %253 = vsyncadd [#allocation31], %s252
      %s255 = sshll.u32 [#allocation32], 4
      %s256 = int_to_ptr.vmem [resolvable:$true] %s255
      %258 = dma.hbm_to_vmem [thread:$0]  %s41, 16, %s256, [#allocation31]
    $region85: #{ecg_cnn_forward.1} parent=1 // pred_fallthru
      _
    // Predicated region
    $region86: #{ecg_cnn_forward.1} parent=1 // pred_check
      _
    $region87: #{ecg_cnn_forward.1} parent=1 // pred_check_branch
      %260 = sbr.rel (0) target = $region89
    $region88: #{ecg_cnn_forward.1} parent=1 // pred_region
      _
    $region89: #{ecg_cnn_forward.1} parent=1 // pred_fallthru
      _
    // Predicated region
    $region90: #{ecg_cnn_forward.1} parent=1 // pred_check
      _
    $region91: #{ecg_cnn_forward.1} parent=1 // pred_check_branch
      %262 = sbr.rel (0) target = $region93
    $region92: #{ecg_cnn_forward.1} parent=1 // pred_region
      %s264 = ssub.s32 16, 16
      %265 = vsyncadd [#allocation34], %s264
      %s267 = sshll.u32 [#allocation33], 4
      %s268 = int_to_ptr.vmem [resolvable:$true] %s267
      %270 = dma.hbm_to_vmem [thread:$0]  %s45, 16, %s268, [#allocation34]
    $region93: #{ecg_cnn_forward.1} parent=1 // pred_fallthru
      _
    // Predicated region
    $region94: #{ecg_cnn_forward.1} parent=1 // pred_check
      _
    $region95: #{ecg_cnn_forward.1} parent=1 // pred_check_branch
      %272 = sbr.rel (0) target = $region97
    $region96: #{ecg_cnn_forward.1} parent=1 // pred_region
      %s274 = ssub.s32 16, 16
      %275 = vsyncadd [#allocation34], %s274
      %s277 = sshll.u32 [#allocation35], 4
      %s278 = int_to_ptr.vmem [resolvable:$true] %s277
      %280 = dma.hbm_to_vmem [thread:$0]  %s47, 16, %s278, [#allocation34]
    $region97: #{ecg_cnn_forward.1} parent=1 // pred_fallthru
      _
    // Predicated region
    $region98: #{ecg_cnn_forward.1} parent=1 // pred_check
      _
    $region99: #{ecg_cnn_forward.1} parent=1 // pred_check_branch
      %282 = sbr.rel (0) target = $region101
    $region100: #{ecg_cnn_forward.1} parent=1 // pred_region
      %s284 = ssub.s32 16, 16
      %285 = vsyncadd [#allocation37], %s284
      %s287 = sshll.u32 [#allocation36], 4
      %s288 = int_to_ptr.vmem [resolvable:$true] %s287
      %290 = dma.hbm_to_vmem [thread:$0]  %s49, 16, %s288, [#allocation37]
    $region101: #{ecg_cnn_forward.1} parent=1 // pred_fallthru
      _
    // Predicated region
    $region102: #{ecg_cnn_forward.1} parent=1 // pred_check
      _
    $region103: #{ecg_cnn_forward.1} parent=1 // pred_check_branch
      %292 = sbr.rel (0) target = $region105
    $region104: #{ecg_cnn_forward.1} parent=1 // pred_region
      _
    $region105: #{ecg_cnn_forward.1} parent=1 // pred_fallthru
      _
    // Predicated region
    $region106: #{ecg_cnn_forward.1} parent=1 // pred_check
      _
    $region107: #{ecg_cnn_forward.1} parent=1 // pred_check_branch
      %294 = sbr.rel (0) target = $region109
    $region108: #{ecg_cnn_forward.1} parent=1 // pred_region
      %s296 = ssub.s32 16, 16
      %297 = vsyncadd [#allocation37], %s296
      %s299 = sshll.u32 [#allocation38], 4
      %s300 = int_to_ptr.vmem [resolvable:$true] %s299
      %302 = dma.hbm_to_vmem [thread:$0]  %s53, 16, %s300, [#allocation37]
    $region109: #{ecg_cnn_forward.1} parent=1 // pred_fallthru
      _
    // Predicated region
    $region110: #{ecg_cnn_forward.1} parent=1 // pred_check
      _
    $region111: #{ecg_cnn_forward.1} parent=1 // pred_check_branch
      %304 = sbr.rel (0) target = $region113
    $region112: #{ecg_cnn_forward.1} parent=1 // pred_region
      _
    $region113: #{ecg_cnn_forward.1} parent=1 // pred_fallthru
      _
    // Predicated region
    $region114: #{ecg_cnn_forward.1} parent=1 // pred_check
      _
    $region115: #{ecg_cnn_forward.1} parent=1 // pred_check_branch
      %306 = sbr.rel (0) target = $region117
    $region116: #{ecg_cnn_forward.1} parent=1 // pred_region
      %s308 = ssub.s32 16, 16
      %309 = vsyncadd [#allocation40], %s308
      %s311 = sshll.u32 [#allocation39], 4
      %s312 = int_to_ptr.vmem [resolvable:$true] %s311
      %314 = dma.hbm_to_vmem [thread:$0]  %s57, 16, %s312, [#allocation40]
    $region117: #{ecg_cnn_forward.1} parent=1 // pred_fallthru
      _
    // Predicated region
    $region118: #{ecg_cnn_forward.1} parent=1 // pred_check
      _
    $region119: #{ecg_cnn_forward.1} parent=1 // pred_check_branch
      %316 = sbr.rel (0) target = $region121
    $region120: #{ecg_cnn_forward.1} parent=1 // pred_region
      _
    $region121: #{ecg_cnn_forward.1} parent=1 // pred_fallthru
      _
    // Predicated region
    $region122: #{ecg_cnn_forward.1} parent=1 // pred_check
      _
    $region123: #{ecg_cnn_forward.1} parent=1 // pred_check_branch
      %318 = sbr.rel (0) target = $region125
    $region124: #{ecg_cnn_forward.1} parent=1 // pred_region
      %s320 = ssub.s32 16, 16
      %321 = vsyncadd [#allocation40], %s320
      %s323 = sshll.u32 [#allocation41], 4
      %s324 = int_to_ptr.vmem [resolvable:$true] %s323
      %326 = dma.hbm_to_vmem [thread:$0]  %s61, 16, %s324, [#allocation40]
    $region125: #{ecg_cnn_forward.1} parent=1 // pred_fallthru
      _
    // Predicated region
    $region126: #{ecg_cnn_forward.1} parent=1 // pred_check
      _
    $region127: #{ecg_cnn_forward.1} parent=1 // pred_check_branch
      %328 = sbr.rel (0) target = $region129
    $region128: #{ecg_cnn_forward.1} parent=1 // pred_region
      _
    $region129: #{ecg_cnn_forward.1} parent=1 // pred_fallthru
      _
    // Predicated region
    $region130: #{ecg_cnn_forward.1} parent=1 // pred_check
      _
    $region131: #{ecg_cnn_forward.1} parent=1 // pred_check_branch
      %330 = sbr.rel (0) target = $region133
    $region132: #{ecg_cnn_forward.1} parent=1 // pred_region
      %s332 = ssub.s32 16, 16
      %333 = vsyncadd [#allocation43], %s332
      %s335 = sshll.u32 [#allocation42], 4
      %s336 = int_to_ptr.vmem [resolvable:$true] %s335
      %338 = dma.hbm_to_vmem [thread:$0]  %s65, 16, %s336, [#allocation43]
    $region133: #{ecg_cnn_forward.1} parent=1 // pred_fallthru
      _
    // Predicated region
    $region134: #{ecg_cnn_forward.1} parent=1 // pred_check
      _
    $region135: #{ecg_cnn_forward.1} parent=1 // pred_check_branch
      %340 = sbr.rel (0) target = $region137
    $region136: #{ecg_cnn_forward.1} parent=1 // pred_region
      _
    $region137: #{ecg_cnn_forward.1} parent=1 // pred_fallthru
      _
    // Predicated region
    $region138: #{ecg_cnn_forward.1} parent=1 // pred_check
      _
    $region139: #{ecg_cnn_forward.1} parent=1 // pred_check_branch
      %342 = sbr.rel (0) target = $region141
    $region140: #{ecg_cnn_forward.1} parent=1 // pred_region
      %s344 = ssub.s32 16, 16
      %345 = vsyncadd [#allocation43], %s344
      %s347 = sshll.u32 [#allocation44], 4
      %s348 = int_to_ptr.vmem [resolvable:$true] %s347
      %350 = dma.hbm_to_vmem [thread:$0]  %s69, 16, %s348, [#allocation43]
    $region141: #{ecg_cnn_forward.1} parent=1 // pred_fallthru
      _
    // Predicated region
    $region142: #{ecg_cnn_forward.1} parent=1 // pred_check
      _
    $region143: #{ecg_cnn_forward.1} parent=1 // pred_check_branch
      %352 = sbr.rel (0) target = $region145
    $region144: #{ecg_cnn_forward.1} parent=1 // pred_region
      _
    $region145: #{ecg_cnn_forward.1} parent=1 // pred_fallthru
      _
    // Predicated region
    $region146: #{ecg_cnn_forward.1} parent=1 // pred_check
      _
    $region147: #{ecg_cnn_forward.1} parent=1 // pred_check_branch
      %354 = sbr.rel (0) target = $region149
    $region148: #{ecg_cnn_forward.1} parent=1 // pred_region
      _
    $region149: #{ecg_cnn_forward.1} parent=1 // pred_fallthru
      _
    // Predicated region
    $region150: #{ecg_cnn_forward.1} parent=1 // pred_check
      _
    $region151: #{ecg_cnn_forward.1} parent=1 // pred_check_branch
      %356 = sbr.rel (0) target = $region153
    $region152: #{ecg_cnn_forward.1} parent=1 // pred_region
      _
    $region153: #{ecg_cnn_forward.1} parent=1 // pred_fallthru
      _
    // Predicated region
    $region154: #{ecg_cnn_forward.1} parent=1 // pred_check
      _
    $region155: #{ecg_cnn_forward.1} parent=1 // pred_check_branch
      %358 = sbr.rel (0) target = $region157
    $region156: #{ecg_cnn_forward.1} parent=1 // pred_region
      _
    $region157: #{ecg_cnn_forward.1} parent=1 // pred_fallthru
      _
    // Predicated region
    $region158: #{ecg_cnn_forward.1} parent=1 // pred_check
      _
    $region159: #{ecg_cnn_forward.1} parent=1 // pred_check_branch
      %360 = sbr.rel (0) target = $region161
    $region160: #{ecg_cnn_forward.1} parent=1 // pred_region
      %361 = dma.done [#allocation10], 16
    $region161: #{ecg_cnn_forward.1} parent=1 // pred_fallthru
      _
    // Predicated region
    $region162: #{ecg_cnn_forward.1} parent=1 // pred_check
      _
    $region163: #{ecg_cnn_forward.1} parent=1 // pred_check_branch
      %363 = sbr.rel (0) target = $region165
    $region164: #{ecg_cnn_forward.1} parent=1 // pred_region
      %364 = dma.done [#allocation13], 16
    $region165: #{ecg_cnn_forward.1} parent=1 // pred_fallthru
      _
    // Predicated region
    $region166: #{ecg_cnn_forward.1} parent=1 // pred_check
      _
    $region167: #{ecg_cnn_forward.1} parent=1 // pred_check_branch
      %366 = sbr.rel (0) target = $region169
    $region168: #{ecg_cnn_forward.1} parent=1 // pred_region
      %367 = dma.done [#allocation13], 16
    $region169: #{ecg_cnn_forward.1} parent=1 // pred_fallthru
      _
    // Predicated region
    $region170: #{ecg_cnn_forward.1} parent=1 // pred_check
      _
    $region171: #{ecg_cnn_forward.1} parent=1 // pred_check_branch
      %369 = sbr.rel (0) target = $region173
    $region172: #{ecg_cnn_forward.1} parent=1 // pred_region
      %370 = dma.done [#allocation16], 16
    $region173: #{ecg_cnn_forward.1} parent=1 // pred_fallthru
      _
    // Predicated region
    $region174: #{ecg_cnn_forward.1} parent=1 // pred_check
      _
    $region175: #{ecg_cnn_forward.1} parent=1 // pred_check_branch
      %372 = sbr.rel (0) target = $region177
    $region176: #{ecg_cnn_forward.1} parent=1 // pred_region
      %373 = dma.done [#allocation16], 16
    $region177: #{ecg_cnn_forward.1} parent=1 // pred_fallthru
      _
    // Predicated region
    $region178: #{ecg_cnn_forward.1} parent=1 // pred_check
      _
    $region179: #{ecg_cnn_forward.1} parent=1 // pred_check_branch
      %375 = sbr.rel (0) target = $region181
    $region180: #{ecg_cnn_forward.1} parent=1 // pred_region
      %376 = dma.done [#allocation19], 16
    $region181: #{ecg_cnn_forward.1} parent=1 // pred_fallthru
      _
    // Predicated region
    $region182: #{ecg_cnn_forward.1} parent=1 // pred_check
      _
    $region183: #{ecg_cnn_forward.1} parent=1 // pred_check_branch
      %378 = sbr.rel (0) target = $region185
    $region184: #{ecg_cnn_forward.1} parent=1 // pred_region
      %379 = dma.done [#allocation19], 16
    $region185: #{ecg_cnn_forward.1} parent=1 // pred_fallthru
      _
    // Predicated region
    $region186: #{ecg_cnn_forward.1} parent=1 // pred_check
      _
    $region187: #{ecg_cnn_forward.1} parent=1 // pred_check_branch
      %381 = sbr.rel (0) target = $region189
    $region188: #{ecg_cnn_forward.1} parent=1 // pred_region
      %382 = dma.done [#allocation22], 16
    $region189: #{ecg_cnn_forward.1} parent=1 // pred_fallthru
      _
    // Predicated region
    $region190: #{ecg_cnn_forward.1} parent=1 // pred_check
      _
    $region191: #{ecg_cnn_forward.1} parent=1 // pred_check_branch
      %384 = sbr.rel (0) target = $region193
    $region192: #{ecg_cnn_forward.1} parent=1 // pred_region
      %385 = dma.done [#allocation22], 16
    $region193: #{ecg_cnn_forward.1} parent=1 // pred_fallthru
      _
    // Predicated region
    $region194: #{ecg_cnn_forward.1} parent=1 // pred_check
      _
    $region195: #{ecg_cnn_forward.1} parent=1 // pred_check_branch
      %387 = sbr.rel (0) target = $region197
    $region196: #{ecg_cnn_forward.1} parent=1 // pred_region
      %388 = dma.done [#allocation25], 16
    $region197: #{ecg_cnn_forward.1} parent=1 // pred_fallthru
      _
    // Predicated region
    $region198: #{ecg_cnn_forward.1} parent=1 // pred_check
      _
    $region199: #{ecg_cnn_forward.1} parent=1 // pred_check_branch
      %390 = sbr.rel (0) target = $region201
    $region200: #{ecg_cnn_forward.1} parent=1 // pred_region
      %391 = dma.done [#allocation25], 16
    $region201: #{ecg_cnn_forward.1} parent=1 // pred_fallthru
      _
    // Predicated region
    $region202: #{ecg_cnn_forward.1} parent=1 // pred_check
      _
    $region203: #{ecg_cnn_forward.1} parent=1 // pred_check_branch
      %393 = sbr.rel (0) target = $region205
    $region204: #{ecg_cnn_forward.1} parent=1 // pred_region
      %394 = dma.done [#allocation28], 16
    $region205: #{ecg_cnn_forward.1} parent=1 // pred_fallthru
      _
    // Predicated region
    $region206: #{ecg_cnn_forward.1} parent=1 // pred_check
      _
    $region207: #{ecg_cnn_forward.1} parent=1 // pred_check_branch
      %396 = sbr.rel (0) target = $region209
    $region208: #{ecg_cnn_forward.1} parent=1 // pred_region
      %397 = dma.done [#allocation28], 16
    $region209: #{ecg_cnn_forward.1} parent=1 // pred_fallthru
      _
    // Predicated region
    $region210: #{ecg_cnn_forward.1} parent=1 // pred_check
      _
    $region211: #{ecg_cnn_forward.1} parent=1 // pred_check_branch
      %399 = sbr.rel (0) target = $region213
    $region212: #{ecg_cnn_forward.1} parent=1 // pred_region
      %400 = dma.done [#allocation31], 16
    $region213: #{ecg_cnn_forward.1} parent=1 // pred_fallthru
      _
    // Predicated region
    $region214: #{ecg_cnn_forward.1} parent=1 // pred_check
      _
    $region215: #{ecg_cnn_forward.1} parent=1 // pred_check_branch
      %402 = sbr.rel (0) target = $region217
    $region216: #{ecg_cnn_forward.1} parent=1 // pred_region
      %403 = dma.done [#allocation31], 16
    $region217: #{ecg_cnn_forward.1} parent=1 // pred_fallthru
      _
    // Predicated region
    $region218: #{ecg_cnn_forward.1} parent=1 // pred_check
      _
    $region219: #{ecg_cnn_forward.1} parent=1 // pred_check_branch
      %405 = sbr.rel (0) target = $region221
    $region220: #{ecg_cnn_forward.1} parent=1 // pred_region
      %406 = dma.done [#allocation34], 16
    $region221: #{ecg_cnn_forward.1} parent=1 // pred_fallthru
      _
    // Predicated region
    $region222: #{ecg_cnn_forward.1} parent=1 // pred_check
      _
    $region223: #{ecg_cnn_forward.1} parent=1 // pred_check_branch
      %408 = sbr.rel (0) target = $region225
    $region224: #{ecg_cnn_forward.1} parent=1 // pred_region
      %409 = dma.done [#allocation34], 16
    $region225: #{ecg_cnn_forward.1} parent=1 // pred_fallthru
      _
    // Predicated region
    $region226: #{ecg_cnn_forward.1} parent=1 // pred_check
      _
    $region227: #{ecg_cnn_forward.1} parent=1 // pred_check_branch
      %411 = sbr.rel (0) target = $region229
    $region228: #{ecg_cnn_forward.1} parent=1 // pred_region
      %412 = dma.done [#allocation37], 16
    $region229: #{ecg_cnn_forward.1} parent=1 // pred_fallthru
      _
    // Predicated region
    $region230: #{ecg_cnn_forward.1} parent=1 // pred_check
      _
    $region231: #{ecg_cnn_forward.1} parent=1 // pred_check_branch
      %414 = sbr.rel (0) target = $region233
    $region232: #{ecg_cnn_forward.1} parent=1 // pred_region
      %415 = dma.done [#allocation37], 16
    $region233: #{ecg_cnn_forward.1} parent=1 // pred_fallthru
      _
    // Predicated region
    $region234: #{ecg_cnn_forward.1} parent=1 // pred_check
      _
    $region235: #{ecg_cnn_forward.1} parent=1 // pred_check_branch
      %417 = sbr.rel (0) target = $region237
    $region236: #{ecg_cnn_forward.1} parent=1 // pred_region
      %418 = dma.done [#allocation40], 16
    $region237: #{ecg_cnn_forward.1} parent=1 // pred_fallthru
      _
    // Predicated region
    $region238: #{ecg_cnn_forward.1} parent=1 // pred_check
      _
    $region239: #{ecg_cnn_forward.1} parent=1 // pred_check_branch
      %420 = sbr.rel (0) target = $region241
    $region240: #{ecg_cnn_forward.1} parent=1 // pred_region
      %421 = dma.done [#allocation40], 16
    $region241: #{ecg_cnn_forward.1} parent=1 // pred_fallthru
      _
    // Predicated region
    $region242: #{ecg_cnn_forward.1} parent=1 // pred_check
      _
    $region243: #{ecg_cnn_forward.1} parent=1 // pred_check_branch
      %423 = sbr.rel (0) target = $region245
    $region244: #{ecg_cnn_forward.1} parent=1 // pred_region
      %424 = dma.done [#allocation43], 16
    $region245: #{ecg_cnn_forward.1} parent=1 // pred_fallthru
      _
    // Predicated region
    $region246: #{ecg_cnn_forward.1} parent=1 // pred_check
      _
    $region247: #{ecg_cnn_forward.1} parent=1 // pred_check_branch
      %426 = sbr.rel (0) target = $region249
    $region248: #{ecg_cnn_forward.1} parent=1 // pred_region
      %427 = dma.done [#allocation43], 16
    $region249: #{ecg_cnn_forward.1} parent=1 // pred_fallthru
      _
    %vm428 = vcmask 257024
    %429 = vst.msk [vmem:[#allocation3] sm:$0xf] %vm428, 0.0
    %430 = vst.msk [vmem:[#allocation3 + $0x40] sm:$0xf] %vm428, 0.0
    %v431 = vld [vmem:[%s1] sm:$0xff]
    %v432 = vld [vmem:[%s1 + $0x8] sm:$0xff]
    %v433 = vld [vmem:[%s1 + $0x10] sm:$0xff]
    %v434 = vld [vmem:[%s1 + $0x18] sm:$0xff]
    %v435 = vld [vmem:[%s1 + $0x20] sm:$0xff]
    %v436 = vld [vmem:[%s1 + $0x28] sm:$0xff]
    %v437 = vld [vmem:[%s1 + $0x30] sm:$0xff]
    %v438 = vld [vmem:[%s1 + $0x38] sm:$0xf]
    %v439 = vld [vmem:[%s1 + $0x1] sm:$0xff]
    %v440 = vld [vmem:[%s1 + $0x9] sm:$0xff]
    %v441 = vld [vmem:[%s1 + $0x11] sm:$0xff]
    %v442 = vld [vmem:[%s1 + $0x19] sm:$0xff]
    %v443 = vld [vmem:[%s1 + $0x21] sm:$0xff]
    %v444 = vld [vmem:[%s1 + $0x29] sm:$0xff]
    %v445 = vld [vmem:[%s1 + $0x31] sm:$0xff]
    %v446 = vld [vmem:[%s1 + $0x39] sm:$0xf]
    %v447 = vld [vmem:[%s1 + $0x2] sm:$0xff]
    %v448 = vld [vmem:[%s1 + $0xa] sm:$0xff]
    %v449 = vld [vmem:[%s1 + $0x12] sm:$0xff]
    %v450 = vld [vmem:[%s1 + $0x1a] sm:$0xff]
    %v451 = vld [vmem:[%s1 + $0x22] sm:$0xff]
    %v452 = vld [vmem:[%s1 + $0x2a] sm:$0xff]
    %v453 = vld [vmem:[%s1 + $0x32] sm:$0xff]
    %v454 = vld [vmem:[%s1 + $0x3a] sm:$0xf]
    %v455 = vld [vmem:[%s1 + $0x3] sm:$0xff]
    %v456 = vld [vmem:[%s1 + $0xb] sm:$0xff]
    %v457 = vld [vmem:[%s1 + $0x13] sm:$0xff]
    %v458 = vld [vmem:[%s1 + $0x1b] sm:$0xff]
    %v459 = vld [vmem:[%s1 + $0x23] sm:$0xff]
    %v460 = vld [vmem:[%s1 + $0x2b] sm:$0xff]
    %v461 = vld [vmem:[%s1 + $0x33] sm:$0xff]
    %v462 = vld [vmem:[%s1 + $0x3b] sm:$0xf]
    %v463 = vld [vmem:[%s1 + $0x4] sm:$0xff]
    %v464 = vld [vmem:[%s1 + $0xc] sm:$0xff]
    %v465 = vld [vmem:[%s1 + $0x14] sm:$0xff]
    %v466 = vld [vmem:[%s1 + $0x1c] sm:$0xff]
    %v467 = vld [vmem:[%s1 + $0x24] sm:$0xff]
    %v468 = vld [vmem:[%s1 + $0x2c] sm:$0xff]
    %v469 = vld [vmem:[%s1 + $0x34] sm:$0xff]
    %v470 = vld [vmem:[%s1 + $0x3c] sm:$0xf]
    %479 = vrot.lane.b32.xlu0 %v439, 1
    %v480 = vpop.permute.xlu0 %479
    %481 = vrot.lane.b32.xlu0 %v440, 1
    %v482 = vpop.permute.xlu0 %481
    %483 = vrot.lane.b32.xlu0 %v441, 1
    %v484 = vpop.permute.xlu0 %483
    %485 = vrot.lane.b32.xlu0 %v442, 1
    %v486 = vpop.permute.xlu0 %485
    %487 = vrot.lane.b32.xlu0 %v443, 1
    %v488 = vpop.permute.xlu0 %487
    %489 = vrot.lane.b32.xlu0 %v444, 1
    %v490 = vpop.permute.xlu0 %489
    %491 = vrot.lane.b32.xlu0 %v445, 1
    %v492 = vpop.permute.xlu0 %491
    %493 = vrot.lane.b32.xlu0 %v446, 1
    %v494 = vpop.permute.xlu0 %493
    %511 = vrot.lane.b32.xlu0 %v447, 2
    %v512 = vpop.permute.xlu0 %511
    %513 = vrot.lane.b32.xlu0 %v448, 2
    %v514 = vpop.permute.xlu0 %513
    %515 = vrot.lane.b32.xlu0 %v449, 2
    %v516 = vpop.permute.xlu0 %515
    %517 = vrot.lane.b32.xlu0 %v450, 2
    %v518 = vpop.permute.xlu0 %517
    %519 = vrot.lane.b32.xlu0 %v451, 2
    %v520 = vpop.permute.xlu0 %519
    %521 = vrot.lane.b32.xlu0 %v452, 2
    %v522 = vpop.permute.xlu0 %521
    %523 = vrot.lane.b32.xlu0 %v453, 2
    %v524 = vpop.permute.xlu0 %523
    %525 = vrot.lane.b32.xlu0 %v454, 2
    %v526 = vpop.permute.xlu0 %525
    %543 = vrot.lane.b32.xlu0 %v455, 3
    %v544 = vpop.permute.xlu0 %543
    %545 = vrot.lane.b32.xlu0 %v456, 3
    %v546 = vpop.permute.xlu0 %545
    %547 = vrot.lane.b32.xlu0 %v457, 3
    %v548 = vpop.permute.xlu0 %547
    %549 = vrot.lane.b32.xlu0 %v458, 3
    %v550 = vpop.permute.xlu0 %549
    %551 = vrot.lane.b32.xlu0 %v459, 3
    %v552 = vpop.permute.xlu0 %551
    %553 = vrot.lane.b32.xlu0 %v460, 3
    %v554 = vpop.permute.xlu0 %553
    %555 = vrot.lane.b32.xlu0 %v461, 3
    %v556 = vpop.permute.xlu0 %555
    %557 = vrot.lane.b32.xlu0 %v462, 3
    %v558 = vpop.permute.xlu0 %557
    %575 = vrot.lane.b32.xlu0 %v463, 4
    %v576 = vpop.permute.xlu0 %575
    %577 = vrot.lane.b32.xlu0 %v464, 4
    %v578 = vpop.permute.xlu0 %577
    %579 = vrot.lane.b32.xlu0 %v465, 4
    %v580 = vpop.permute.xlu0 %579
    %581 = vrot.lane.b32.xlu0 %v466, 4
    %v582 = vpop.permute.xlu0 %581
    %583 = vrot.lane.b32.xlu0 %v467, 4
    %v584 = vpop.permute.xlu0 %583
    %585 = vrot.lane.b32.xlu0 %v468, 4
    %v586 = vpop.permute.xlu0 %585
    %587 = vrot.lane.b32.xlu0 %v469, 4
    %v588 = vpop.permute.xlu0 %587
    %589 = vrot.lane.b32.xlu0 %v470, 4
    %v590 = vpop.permute.xlu0 %589
    %vm599 = vcmask 7168
    %v600 = vsel %vm599, %v431, %v480
    %v601 = vsel %vm599, %v432, %v482
    %v602 = vsel %vm599, %v433, %v484
    %v603 = vsel %vm599, %v434, %v486
    %v604 = vsel %vm599, %v435, %v488
    %v605 = vsel %vm599, %v436, %v490
    %v606 = vsel %vm599, %v437, %v492
    %v607 = vsel %vm599, %v438, %v494
    %vm608 = vcmask 15360
    %v609 = vsel %vm608, %v600, %v512
    %v610 = vsel %vm608, %v601, %v514
    %v611 = vsel %vm608, %v602, %v516
    %v612 = vsel %vm608, %v603, %v518
    %v613 = vsel %vm608, %v604, %v520
    %v614 = vsel %vm608, %v605, %v522
    %v615 = vsel %vm608, %v606, %v524
    %v616 = vsel %vm608, %v607, %v526
    %vm617 = vcmask 23552
    %v618 = vsel %vm617, %v609, %v544
    %v619 = vsel %vm617, %v610, %v546
    %v620 = vsel %vm617, %v611, %v548
    %v621 = vsel %vm617, %v612, %v550
    %v622 = vsel %vm617, %v613, %v552
    %v623 = vsel %vm617, %v614, %v554
    %v624 = vsel %vm617, %v615, %v556
    %v625 = vsel %vm617, %v616, %v558
    %vm626 = vcmask 31744
    %v627 = vsel %vm626, %v618, %v576
    %v628 = vsel %vm626, %v619, %v578
    %v629 = vsel %vm626, %v620, %v580
    %v630 = vsel %vm626, %v621, %v582
    %v631 = vsel %vm626, %v622, %v584
    %v632 = vsel %vm626, %v623, %v586
    %v633 = vsel %vm626, %v624, %v588
    %v634 = vsel %vm626, %v625, %v590
    %vm635 = vcmask 39936
    %636 = vst.msk [vmem:[#allocation2] sm:$0xff] %vm635, %v627
    %637 = vst.msk [vmem:[#allocation2 + $0x10] sm:$0xff] %vm635, %v628
    %638 = vst.msk [vmem:[#allocation2 + $0x20] sm:$0xff] %vm635, %v629
    %639 = vst.msk [vmem:[#allocation2 + $0x30] sm:$0xff] %vm635, %v630
    %640 = vst.msk [vmem:[#allocation2 + $0x40] sm:$0xff] %vm635, %v631
    %641 = vst.msk [vmem:[#allocation2 + $0x50] sm:$0xff] %vm635, %v632
    %642 = vst.msk [vmem:[#allocation2 + $0x60] sm:$0xff] %vm635, %v633
    %vm643 = vcmask 35840
    %644 = vst.msk [vmem:[#allocation2 + $0x70] sm:$0xf] %vm643, %v634
    %v645 = vld [vmem:[%s1 + $0x40] sm:$0xff]
    %v646 = vld [vmem:[%s1 + $0x48] sm:$0xff]
    %v647 = vld [vmem:[%s1 + $0x50] sm:$0xff]
    %v648 = vld [vmem:[%s1 + $0x58] sm:$0xff]
    %v649 = vld [vmem:[%s1 + $0x60] sm:$0xff]
    %v650 = vld [vmem:[%s1 + $0x68] sm:$0xff]
    %v651 = vld [vmem:[%s1 + $0x70] sm:$0xff]
    %v652 = vld [vmem:[%s1 + $0x78] sm:$0xf]
    %v653 = vld [vmem:[%s1 + $0x41] sm:$0xff]
    %v654 = vld [vmem:[%s1 + $0x49] sm:$0xff]
    %v655 = vld [vmem:[%s1 + $0x51] sm:$0xff]
    %v656 = vld [vmem:[%s1 + $0x59] sm:$0xff]
    %v657 = vld [vmem:[%s1 + $0x61] sm:$0xff]
    %v658 = vld [vmem:[%s1 + $0x69] sm:$0xff]
    %v659 = vld [vmem:[%s1 + $0x71] sm:$0xff]
    %v660 = vld [vmem:[%s1 + $0x79] sm:$0xf]
    %v661 = vld [vmem:[%s1 + $0x42] sm:$0xff]
    %v662 = vld [vmem:[%s1 + $0x4a] sm:$0xff]
    %v663 = vld [vmem:[%s1 + $0x52] sm:$0xff]
    %v664 = vld [vmem:[%s1 + $0x5a] sm:$0xff]
    %v665 = vld [vmem:[%s1 + $0x62] sm:$0xff]
    %v666 = vld [vmem:[%s1 + $0x6a] sm:$0xff]
    %v667 = vld [vmem:[%s1 + $0x72] sm:$0xff]
    %v668 = vld [vmem:[%s1 + $0x7a] sm:$0xf]
    %v669 = vld [vmem:[%s1 + $0x43] sm:$0xff]
    %v670 = vld [vmem:[%s1 + $0x4b] sm:$0xff]
    %v671 = vld [vmem:[%s1 + $0x53] sm:$0xff]
    %v672 = vld [vmem:[%s1 + $0x5b] sm:$0xff]
    %v673 = vld [vmem:[%s1 + $0x63] sm:$0xff]
    %v674 = vld [vmem:[%s1 + $0x6b] sm:$0xff]
    %v675 = vld [vmem:[%s1 + $0x73] sm:$0xff]
    %v676 = vld [vmem:[%s1 + $0x7b] sm:$0xf]
    %v677 = vld [vmem:[%s1 + $0x44] sm:$0xff]
    %v678 = vld [vmem:[%s1 + $0x4c] sm:$0xff]
    %v679 = vld [vmem:[%s1 + $0x54] sm:$0xff]
    %v680 = vld [vmem:[%s1 + $0x5c] sm:$0xff]
    %v681 = vld [vmem:[%s1 + $0x64] sm:$0xff]
    %v682 = vld [vmem:[%s1 + $0x6c] sm:$0xff]
    %v683 = vld [vmem:[%s1 + $0x74] sm:$0xff]
    %v684 = vld [vmem:[%s1 + $0x7c] sm:$0xf]
    %693 = vrot.lane.b32.xlu0 %v653, 1
    %v694 = vpop.permute.xlu0 %693
    %695 = vrot.lane.b32.xlu0 %v654, 1
    %v696 = vpop.permute.xlu0 %695
    %697 = vrot.lane.b32.xlu0 %v655, 1
    %v698 = vpop.permute.xlu0 %697
    %699 = vrot.lane.b32.xlu0 %v656, 1
    %v700 = vpop.permute.xlu0 %699
    %701 = vrot.lane.b32.xlu0 %v657, 1
    %v702 = vpop.permute.xlu0 %701
    %703 = vrot.lane.b32.xlu0 %v658, 1
    %v704 = vpop.permute.xlu0 %703
    %705 = vrot.lane.b32.xlu0 %v659, 1
    %v706 = vpop.permute.xlu0 %705
    %707 = vrot.lane.b32.xlu0 %v660, 1
    %v708 = vpop.permute.xlu0 %707
    %725 = vrot.lane.b32.xlu0 %v661, 2
    %v726 = vpop.permute.xlu0 %725
    %727 = vrot.lane.b32.xlu0 %v662, 2
    %v728 = vpop.permute.xlu0 %727
    %729 = vrot.lane.b32.xlu0 %v663, 2
    %v730 = vpop.permute.xlu0 %729
    %731 = vrot.lane.b32.xlu0 %v664, 2
    %v732 = vpop.permute.xlu0 %731
    %733 = vrot.lane.b32.xlu0 %v665, 2
    %v734 = vpop.permute.xlu0 %733
    %735 = vrot.lane.b32.xlu0 %v666, 2
    %v736 = vpop.permute.xlu0 %735
    %737 = vrot.lane.b32.xlu0 %v667, 2
    %v738 = vpop.permute.xlu0 %737
    %739 = vrot.lane.b32.xlu0 %v668, 2
    %v740 = vpop.permute.xlu0 %739
    %757 = vrot.lane.b32.xlu0 %v669, 3
    %v758 = vpop.permute.xlu0 %757
    %759 = vrot.lane.b32.xlu0 %v670, 3
    %v760 = vpop.permute.xlu0 %759
    %761 = vrot.lane.b32.xlu0 %v671, 3
    %v762 = vpop.permute.xlu0 %761
    %763 = vrot.lane.b32.xlu0 %v672, 3
    %v764 = vpop.permute.xlu0 %763
    %765 = vrot.lane.b32.xlu0 %v673, 3
    %v766 = vpop.permute.xlu0 %765
    %767 = vrot.lane.b32.xlu0 %v674, 3
    %v768 = vpop.permute.xlu0 %767
    %769 = vrot.lane.b32.xlu0 %v675, 3
    %v770 = vpop.permute.xlu0 %769
    %771 = vrot.lane.b32.xlu0 %v676, 3
    %v772 = vpop.permute.xlu0 %771
    %789 = vrot.lane.b32.xlu0 %v677, 4
    %v790 = vpop.permute.xlu0 %789
    %791 = vrot.lane.b32.xlu0 %v678, 4
    %v792 = vpop.permute.xlu0 %791
    %793 = vrot.lane.b32.xlu0 %v679, 4
    %v794 = vpop.permute.xlu0 %793
    %795 = vrot.lane.b32.xlu0 %v680, 4
    %v796 = vpop.permute.xlu0 %795
    %797 = vrot.lane.b32.xlu0 %v681, 4
    %v798 = vpop.permute.xlu0 %797
    %799 = vrot.lane.b32.xlu0 %v682, 4
    %v800 = vpop.permute.xlu0 %799
    %801 = vrot.lane.b32.xlu0 %v683, 4
    %v802 = vpop.permute.xlu0 %801
    %803 = vrot.lane.b32.xlu0 %v684, 4
    %v804 = vpop.permute.xlu0 %803
    %v813 = vsel %vm599, %v645, %v694
    %v814 = vsel %vm599, %v646, %v696
    %v815 = vsel %vm599, %v647, %v698
    %v816 = vsel %vm599, %v648, %v700
    %v817 = vsel %vm599, %v649, %v702
    %v818 = vsel %vm599, %v650, %v704
    %v819 = vsel %vm599, %v651, %v706
    %v820 = vsel %vm599, %v652, %v708
    %v821 = vsel %vm608, %v813, %v726
    %v822 = vsel %vm608, %v814, %v728
    %v823 = vsel %vm608, %v815, %v730
    %v824 = vsel %vm608, %v816, %v732
    %v825 = vsel %vm608, %v817, %v734
    %v826 = vsel %vm608, %v818, %v736
    %v827 = vsel %vm608, %v819, %v738
    %v828 = vsel %vm608, %v820, %v740
    %v829 = vsel %vm617, %v821, %v758
    %v830 = vsel %vm617, %v822, %v760
    %v831 = vsel %vm617, %v823, %v762
    %v832 = vsel %vm617, %v824, %v764
    %v833 = vsel %vm617, %v825, %v766
    %v834 = vsel %vm617, %v826, %v768
    %v835 = vsel %vm617, %v827, %v770
    %v836 = vsel %vm617, %v828, %v772
    %v837 = vsel %vm626, %v829, %v790
    %v838 = vsel %vm626, %v830, %v792
    %v839 = vsel %vm626, %v831, %v794
    %v840 = vsel %vm626, %v832, %v796
    %v841 = vsel %vm626, %v833, %v798
    %v842 = vsel %vm626, %v834, %v800
    %v843 = vsel %vm626, %v835, %v802
    %v844 = vsel %vm626, %v836, %v804
    %vm853 = vcmask 1043456
    %v854 = vrot.slane %v837, 4
    %v855 = vrot.slane %v838, 4
    %v856 = vsel %vm853, %v854, %v855
    %v857 = vrot.slane %v839, 4
    %v858 = vsel %vm853, %v855, %v857
    %v859 = vrot.slane %v840, 4
    %v860 = vsel %vm853, %v857, %v859
    %v861 = vrot.slane %v841, 4
    %v862 = vsel %vm853, %v859, %v861
    %v863 = vrot.slane %v842, 4
    %v864 = vsel %vm853, %v861, %v863
    %v865 = vrot.slane %v843, 4
    %v866 = vsel %vm853, %v863, %v865
    %v867 = vrot.slane %v844, 4
    %v868 = vsel %vm853, %v865, %v867
    %vm877 = vcmask 39940
    %878 = vst.msk [vmem:[#allocation2 + $0x70] sm:$0xf0] %vm877, %v854
    %879 = vst.msk [vmem:[#allocation2 + $0x80] sm:$0xff] %vm635, %v856
    %880 = vst.msk [vmem:[#allocation2 + $0x90] sm:$0xff] %vm635, %v858
    %881 = vst.msk [vmem:[#allocation2 + $0xa0] sm:$0xff] %vm635, %v860
    %882 = vst.msk [vmem:[#allocation2 + $0xb0] sm:$0xff] %vm635, %v862
    %883 = vst.msk [vmem:[#allocation2 + $0xc0] sm:$0xff] %vm635, %v864
    %884 = vst.msk [vmem:[#allocation2 + $0xd0] sm:$0xff] %vm635, %v866
    %885 = vst.msk [vmem:[#allocation2 + $0xe0] sm:$0xff] %vm635, %v868
    %v886 = vld [vmem:[#allocation2] sm:$0xff]
    %v887 = vld [vmem:[#allocation2 + $0x10] sm:$0xff]
    %v888 = vld [vmem:[#allocation2 + $0x20] sm:$0xff]
    %v889 = vld [vmem:[#allocation2 + $0x30] sm:$0xff]
    %v890 = vld [vmem:[#allocation2 + $0x40] sm:$0xff]
    %v891 = vld [vmem:[#allocation2 + $0x50] sm:$0xff]
    %v892 = vld [vmem:[#allocation2 + $0x60] sm:$0xff]
    %v893 = vld [vmem:[#allocation2 + $0x70] sm:$0xff]
    %v894 = vld [vmem:[#allocation2 + $0x80] sm:$0xff]
    %v895 = vld [vmem:[#allocation2 + $0x90] sm:$0xff]
    %v896 = vld [vmem:[#allocation2 + $0xa0] sm:$0xff]
    %v897 = vld [vmem:[#allocation2 + $0xb0] sm:$0xff]
    %v898 = vld [vmem:[#allocation2 + $0xc0] sm:$0xff]
    %v899 = vld [vmem:[#allocation2 + $0xd0] sm:$0xff]
    %v900 = vld [vmem:[#allocation2 + $0xe0] sm:$0xff]
    %v901 = vld [vmem:[%s3] sm:$0x1f]
    %v902 = vld [vmem:[#allocation9] sm:$0x1]
    %v904 = vlaneseq
    %v905 = vshrl.u32 %v904, 7
    %v906 = vsub.s32 0, %v905
    %v907 = vrot.slane %v902, %v906
    %v910 = vsel %vm635, %v886, 0
    %v913 = vsel %vm635, %v887, 0
    %v916 = vsel %vm635, %v888, 0
    %v919 = vsel %vm635, %v889, 0
    %v922 = vsel %vm635, %v890, 0
    %v925 = vsel %vm635, %v891, 0
    %v928 = vsel %vm635, %v892, 0
    %v931 = vsel %vm635, %v893, 0
    %v934 = vsel %vm635, %v894, 0
    %v937 = vsel %vm635, %v895, 0
    %v940 = vsel %vm635, %v896, 0
    %v943 = vsel %vm635, %v897, 0
    %v946 = vsel %vm635, %v898, 0
    %v949 = vsel %vm635, %v899, 0
    %v952 = vsel %vm635, %v900, 0
    %vm954 = vcmask 1044480
    %v956 = vsel %vm954, %v901, 0
    %958 = vmatprep.subr.mxu0 0.0
    %959 = vmatpush1.msra.mxu0 %v956
    %960 = vmatprep.subr.mxu0 0.0
    %961 = vmatpush1.msra.mxu0 0.0
    %962 = vmatprep.subr.mxu0 0.0
    %963 = vmatpush1.msra.mxu0 0.0
    %964 = vmatprep.subr.mxu0 0.0
    %965 = vmatpush1.msra.mxu0 0.0
    %966 = vmatprep.subr.mxu0 0.0
    %967 = vmatpush1.msra.mxu0 0.0
    %968 = vmatprep.subr.mxu0 0.0
    %969 = vmatpush1.msra.mxu0 0.0
    %970 = vmatprep.subr.mxu0 0.0
    %971 = vmatpush1.msra.mxu0 0.0
    %972 = vmatprep.subr.mxu0 0.0
    %973 = vmatpush1.msra.mxu0 0.0
    %974 = vmatprep.subr.mxu0 0.0
    %975 = vmatpush1.msra.mxu0 0.0
    %976 = vmatprep.subr.mxu0 0.0
    %977 = vmatpush1.msra.mxu0 0.0
    %978 = vmatprep.subr.mxu0 0.0
    %979 = vmatpush1.msra.mxu0 0.0
    %980 = vmatprep.subr.mxu0 0.0
    %981 = vmatpush1.msra.mxu0 0.0
    %982 = vmatprep.subr.mxu0 0.0
    %983 = vmatpush1.msra.mxu0 0.0
    %984 = vmatprep.subr.mxu0 0.0
    %985 = vmatpush1.msra.mxu0 0.0
    %986 = vmatprep.subr.mxu0 0.0
    %987 = vmatpush1.msra.mxu0 0.0
    %988 = vmatprep.subr.mxu0 0.0
    %989 = vmatpush1.msra.mxu0 0.0
    %990 = vmatprep.subr.mxu0 0.0
    %991 = vmatpush1.msra.mxu0 0.0
    %992 = vmatprep.subr.mxu0 0.0
    %993 = vmatpush1.msra.mxu0 0.0
    %994 = vmatprep.subr.mxu0 0.0
    %995 = vmatpush1.msra.mxu0 0.0
    %996 = vmatprep.subr.mxu0 0.0
    %997 = vmatpush1.msra.mxu0 0.0
    %998 = vmatprep.subr.mxu0 0.0
    %999 = vmatpush1.msra.mxu0 0.0
    %1000 = vmatprep.subr.mxu0 0.0
    %1001 = vmatpush1.msra.mxu0 0.0
    %1002 = vmatprep.subr.mxu0 0.0
    %1003 = vmatpush1.msra.mxu0 0.0
    %1004 = vmatprep.subr.mxu0 0.0
    %1005 = vmatpush1.msra.mxu0 0.0
    %1006 = vmatprep.subr.mxu0 0.0
    %1007 = vmatpush1.msra.mxu0 0.0
    %1008 = vmatprep.subr.mxu0 0.0
    %1009 = vmatpush1.msra.mxu0 0.0
    %1010 = vmatprep.subr.mxu0 0.0
    %1011 = vmatpush1.msra.mxu0 0.0
    %1012 = vmatprep.subr.mxu0 0.0
    %1013 = vmatpush1.msra.mxu0 0.0
    %1014 = vmatprep.subr.mxu0 0.0
    %1015 = vmatpush1.msra.mxu0 0.0
    %1016 = vmatprep.subr.mxu0 0.0
    %1017 = vmatpush1.msra.mxu0 0.0
    %1018 = vmatprep.subr.mxu0 0.0
    %1019 = vmatpush1.msra.mxu0 0.0
    %1020 = vmatprep.subr.mxu0 0.0
    %1021 = vmatpush1.msra.mxu0 0.0
    %1022 = vmatprep.mubr.f32.mxu0 0.0
    %1023 = vmatmul.mubr.f32.gmra.mrb[0].mxu0 %v910
    %v1024 = vpop.f32.mrb[0].mxu0
    %v1025 = vadd.f32 %v907, %v1024
    %v1026 = vpop.f32.mrb[0].mxu0
    %1027 = vmatprep.mubr.f32.mxu0 0.0
    %1028 = vmatmul.mubr.f32.gmra.mrb[0].mxu0 %v913
    %v1029 = vpop.f32.mrb[0].mxu0
    %v1030 = vadd.f32 %v907, %v1029
    %v1031 = vpop.f32.mrb[0].mxu0
    %1032 = vmatprep.mubr.f32.mxu0 0.0
    %1033 = vmatmul.mubr.f32.gmra.mrb[0].mxu0 %v916
    %v1034 = vpop.f32.mrb[0].mxu0
    %v1035 = vadd.f32 %v907, %v1034
    %v1036 = vpop.f32.mrb[0].mxu0
    %1037 = vmatprep.mubr.f32.mxu0 0.0
    %1038 = vmatmul.mubr.f32.gmra.mrb[0].mxu0 %v919
    %v1039 = vpop.f32.mrb[0].mxu0
    %v1040 = vadd.f32 %v907, %v1039
    %v1041 = vpop.f32.mrb[0].mxu0
    %1042 = vmatprep.mubr.f32.mxu0 0.0
    %1043 = vmatmul.mubr.f32.gmra.mrb[0].mxu0 %v922
    %v1044 = vpop.f32.mrb[0].mxu0
    %v1045 = vadd.f32 %v907, %v1044
    %v1046 = vpop.f32.mrb[0].mxu0
    %1047 = vmatprep.mubr.f32.mxu0 0.0
    %1048 = vmatmul.mubr.f32.gmra.mrb[0].mxu0 %v925
    %v1049 = vpop.f32.mrb[0].mxu0
    %v1050 = vadd.f32 %v907, %v1049
    %v1051 = vpop.f32.mrb[0].mxu0
    %1052 = vmatprep.mubr.f32.mxu0 0.0
    %1053 = vmatmul.mubr.f32.gmra.mrb[0].mxu0 %v928
    %v1054 = vpop.f32.mrb[0].mxu0
    %v1055 = vadd.f32 %v907, %v1054
    %v1056 = vpop.f32.mrb[0].mxu0
    %1057 = vmatprep.mubr.f32.mxu0 0.0
    %1058 = vmatmul.mubr.f32.gmra.mrb[0].mxu0 %v931
    %v1059 = vpop.f32.mrb[0].mxu0
    %v1060 = vadd.f32 %v907, %v1059
    %v1061 = vpop.f32.mrb[0].mxu0
    %1062 = vmatprep.mubr.f32.mxu0 0.0
    %1063 = vmatmul.mubr.f32.gmra.mrb[0].mxu0 %v934
    %v1064 = vpop.f32.mrb[0].mxu0
    %v1065 = vadd.f32 %v907, %v1064
    %v1066 = vpop.f32.mrb[0].mxu0
    %1067 = vmatprep.mubr.f32.mxu0 0.0
    %1068 = vmatmul.mubr.f32.gmra.mrb[0].mxu0 %v937
    %v1069 = vpop.f32.mrb[0].mxu0
    %v1070 = vadd.f32 %v907, %v1069
    %v1071 = vpop.f32.mrb[0].mxu0
    %1072 = vmatprep.mubr.f32.mxu0 0.0
    %1073 = vmatmul.mubr.f32.gmra.mrb[0].mxu0 %v940
    %v1074 = vpop.f32.mrb[0].mxu0
    %v1075 = vadd.f32 %v907, %v1074
    %v1076 = vpop.f32.mrb[0].mxu0
    %1077 = vmatprep.mubr.f32.mxu0 0.0
    %1078 = vmatmul.mubr.f32.gmra.mrb[0].mxu0 %v943
    %v1079 = vpop.f32.mrb[0].mxu0
    %v1080 = vadd.f32 %v907, %v1079
    %v1081 = vpop.f32.mrb[0].mxu0
    %1082 = vmatprep.mubr.f32.mxu0 0.0
    %1083 = vmatmul.mubr.f32.gmra.mrb[0].mxu0 %v946
    %v1084 = vpop.f32.mrb[0].mxu0
    %v1085 = vadd.f32 %v907, %v1084
    %v1086 = vpop.f32.mrb[0].mxu0
    %1087 = vmatprep.mubr.f32.mxu0 0.0
    %1088 = vmatmul.mubr.f32.gmra.mrb[0].mxu0 %v949
    %v1089 = vpop.f32.mrb[0].mxu0
    %v1090 = vadd.f32 %v907, %v1089
    %v1091 = vpop.f32.mrb[0].mxu0
    %1092 = vmatprep.mubr.f32.mxu0 0.0
    %1093 = vmatmul.mubr.f32.gmra.mrb[0].mxu0 %v952
    %v1094 = vpop.f32.mrb[0].mxu0
    %v1095 = vadd.f32 %v907, %v1094
    %v1096 = vpop.f32.mrb[0].mxu0
    %1097 = vdwg.mxu0
    %vm1098 = vcmask 261120
    %v1099 = vsel %vm1098, %v1025, 0.0
    %v1100 = vsel %vm1098, %v1030, 0.0
    %v1101 = vadd.f32 %v1099, %v1100
    %v1102 = vsel %vm1098, %v1035, 0.0
    %v1103 = vadd.f32 %v1101, %v1102
    %v1104 = vsel %vm1098, %v1040, 0.0
    %v1105 = vadd.f32 %v1103, %v1104
    %v1106 = vsel %vm1098, %v1045, 0.0
    %v1107 = vadd.f32 %v1105, %v1106
    %v1108 = vsel %vm1098, %v1050, 0.0
    %v1109 = vadd.f32 %v1107, %v1108
    %v1110 = vsel %vm1098, %v1055, 0.0
    %v1111 = vadd.f32 %v1109, %v1110
    %v1112 = vsel %vm1098, %v1060, 0.0
    %v1113 = vadd.f32 %v1111, %v1112
    %v1114 = vsel %vm1098, %v1065, 0.0
    %v1115 = vadd.f32 %v1113, %v1114
    %v1116 = vsel %vm1098, %v1070, 0.0
    %v1117 = vadd.f32 %v1115, %v1116
    %v1118 = vsel %vm1098, %v1075, 0.0
    %v1119 = vadd.f32 %v1117, %v1118
    %v1120 = vsel %vm1098, %v1080, 0.0
    %v1121 = vadd.f32 %v1119, %v1120
    %v1122 = vsel %vm1098, %v1085, 0.0
    %v1123 = vadd.f32 %v1121, %v1122
    %v1124 = vsel %vm1098, %v1090, 0.0
    %v1125 = vadd.f32 %v1123, %v1124
    %v1126 = vsel %vm1098, %v1095, 0.0
    %v1127 = vadd.f32 %v1125, %v1126
    %v1128 = vrot.slane %v1127, 4
    %v1129 = vadd.f32 %v1127, %v1128
    %v1130 = vrot.slane %v1129, 2
    %v1131 = vadd.f32 %v1129, %v1130
    %v1132 = vrot.slane %v1131, 1
    %v1133 = vadd.f32 %v1131, %v1132
    %v1134 = vrcp.pop 120.0
    %v1135 = vmul.f32 %v1133, %v1134
    %v1136 = vsub.f32 %v1025, %v1135
    %v1137 = vsub.f32 %v1030, %v1135
    %v1138 = vsub.f32 %v1035, %v1135
    %v1139 = vsub.f32 %v1040, %v1135
    %v1140 = vsub.f32 %v1045, %v1135
    %v1141 = vsub.f32 %v1050, %v1135
    %v1142 = vsub.f32 %v1055, %v1135
    %v1143 = vsub.f32 %v1060, %v1135
    %v1144 = vsub.f32 %v1065, %v1135
    %v1145 = vsub.f32 %v1070, %v1135
    %v1146 = vsub.f32 %v1075, %v1135
    %v1147 = vsub.f32 %v1080, %v1135
    %v1148 = vsub.f32 %v1085, %v1135
    %v1149 = vsub.f32 %v1090, %v1135
    %v1150 = vsub.f32 %v1095, %v1135
    %v1151 = vmul.f32 %v1136, %v1136
    %v1152 = vmul.f32 %v1137, %v1137
    %v1153 = vmul.f32 %v1138, %v1138
    %v1154 = vmul.f32 %v1139, %v1139
    %v1155 = vmul.f32 %v1140, %v1140
    %v1156 = vmul.f32 %v1141, %v1141
    %v1157 = vmul.f32 %v1142, %v1142
    %v1158 = vmul.f32 %v1143, %v1143
    %v1159 = vmul.f32 %v1144, %v1144
    %v1160 = vmul.f32 %v1145, %v1145
    %v1161 = vmul.f32 %v1146, %v1146
    %v1162 = vmul.f32 %v1147, %v1147
    %v1163 = vmul.f32 %v1148, %v1148
    %v1164 = vmul.f32 %v1149, %v1149
    %v1165 = vmul.f32 %v1150, %v1150
    %v1166 = vsel %vm1098, %v1151, 0.0
    %v1167 = vsel %vm1098, %v1152, 0.0
    %v1168 = vadd.f32 %v1166, %v1167
    %v1169 = vsel %vm1098, %v1153, 0.0
    %v1170 = vadd.f32 %v1168, %v1169
    %v1171 = vsel %vm1098, %v1154, 0.0
    %v1172 = vadd.f32 %v1170, %v1171
    %v1173 = vsel %vm1098, %v1155, 0.0
    %v1174 = vadd.f32 %v1172, %v1173
    %v1175 = vsel %vm1098, %v1156, 0.0
    %v1176 = vadd.f32 %v1174, %v1175
    %v1177 = vsel %vm1098, %v1157, 0.0
    %v1178 = vadd.f32 %v1176, %v1177
    %v1179 = vsel %vm1098, %v1158, 0.0
    %v1180 = vadd.f32 %v1178, %v1179
    %v1181 = vsel %vm1098, %v1159, 0.0
    %v1182 = vadd.f32 %v1180, %v1181
    %v1183 = vsel %vm1098, %v1160, 0.0
    %v1184 = vadd.f32 %v1182, %v1183
    %v1185 = vsel %vm1098, %v1161, 0.0
    %v1186 = vadd.f32 %v1184, %v1185
    %v1187 = vsel %vm1098, %v1162, 0.0
    %v1188 = vadd.f32 %v1186, %v1187
    %v1189 = vsel %vm1098, %v1163, 0.0
    %v1190 = vadd.f32 %v1188, %v1189
    %v1191 = vsel %vm1098, %v1164, 0.0
    %v1192 = vadd.f32 %v1190, %v1191
    %v1193 = vsel %vm1098, %v1165, 0.0
    %v1194 = vadd.f32 %v1192, %v1193
    %v1195 = vrot.slane %v1194, 4
    %v1196 = vadd.f32 %v1194, %v1195
    %v1197 = vrot.slane %v1196, 2
    %v1198 = vadd.f32 %v1196, %v1197
    %v1199 = vrot.slane %v1198, 1
    %v1200 = vadd.f32 %v1198, %v1199
    %v1201 = vmul.f32 %v1200, %v1134
    %v1202 = vadd.f32 %v1201, 1e-05
    %v1203 = vrsqrt.pop %v1202
    %v1204 = vmul.f32 %v1136, %v1203
    %v1205 = vmul.f32 %v1137, %v1203
    %v1206 = vmul.f32 %v1138, %v1203
    %v1207 = vmul.f32 %v1139, %v1203
    %v1208 = vmul.f32 %v1140, %v1203
    %v1209 = vmul.f32 %v1141, %v1203
    %v1210 = vmul.f32 %v1142, %v1203
    %v1211 = vmul.f32 %v1143, %v1203
    %v1212 = vmul.f32 %v1144, %v1203
    %v1213 = vmul.f32 %v1145, %v1203
    %v1214 = vmul.f32 %v1146, %v1203
    %v1215 = vmul.f32 %v1147, %v1203
    %v1216 = vmul.f32 %v1148, %v1203
    %v1217 = vmul.f32 %v1149, %v1203
    %v1218 = vmul.f32 %v1150, %v1203
    %v1219 = vld [vmem:[#allocation12] sm:$0x1]
    %v1221 = vlaneseq
    %v1222 = vshrl.u32 %v1221, 7
    %v1223 = vsub.s32 0, %v1222
    %v1224 = vrot.slane %v1219, %v1223
    %v1226 = vmul.f32 %v1204, %v1224
    %v1227 = vmul.f32 %v1205, %v1224
    %v1228 = vmul.f32 %v1206, %v1224
    %v1229 = vmul.f32 %v1207, %v1224
    %v1230 = vmul.f32 %v1208, %v1224
    %v1231 = vmul.f32 %v1209, %v1224
    %v1232 = vmul.f32 %v1210, %v1224
    %v1233 = vmul.f32 %v1211, %v1224
    %v1234 = vmul.f32 %v1212, %v1224
    %v1235 = vmul.f32 %v1213, %v1224
    %v1236 = vmul.f32 %v1214, %v1224
    %v1237 = vmul.f32 %v1215, %v1224
    %v1238 = vmul.f32 %v1216, %v1224
    %v1239 = vmul.f32 %v1217, %v1224
    %v1240 = vmul.f32 %v1218, %v1224
    %v1241 = vld [vmem:[#allocation14] sm:$0x1]
    %v1243 = vlaneseq
    %v1244 = vshrl.u32 %v1243, 7
    %v1245 = vsub.s32 0, %v1244
    %v1246 = vrot.slane %v1241, %v1245
    %v1248 = vadd.f32 %v1226, %v1246
    %v1249 = vadd.f32 %v1227, %v1246
    %v1250 = vadd.f32 %v1228, %v1246
    %v1251 = vadd.f32 %v1229, %v1246
    %v1252 = vadd.f32 %v1230, %v1246
    %v1253 = vadd.f32 %v1231, %v1246
    %v1254 = vadd.f32 %v1232, %v1246
    %v1255 = vadd.f32 %v1233, %v1246
    %v1256 = vadd.f32 %v1234, %v1246
    %v1257 = vadd.f32 %v1235, %v1246
    %v1258 = vadd.f32 %v1236, %v1246
    %v1259 = vadd.f32 %v1237, %v1246
    %v1260 = vadd.f32 %v1238, %v1246
    %v1261 = vadd.f32 %v1239, %v1246
    %v1262 = vadd.f32 %v1240, %v1246
    %v1263 = vxor.u32 %v1248, 2147483648
    %v1264 = vxor.u32 %v1249, 2147483648
    %v1265 = vxor.u32 %v1250, 2147483648
    %v1266 = vxor.u32 %v1251, 2147483648
    %v1267 = vxor.u32 %v1252, 2147483648
    %v1268 = vxor.u32 %v1253, 2147483648
    %v1269 = vxor.u32 %v1254, 2147483648
    %v1270 = vxor.u32 %v1255, 2147483648
    %v1271 = vxor.u32 %v1256, 2147483648
    %v1272 = vxor.u32 %v1257, 2147483648
    %v1273 = vxor.u32 %v1258, 2147483648
    %v1274 = vxor.u32 %v1259, 2147483648
    %v1275 = vxor.u32 %v1260, 2147483648
    %v1276 = vxor.u32 %v1261, 2147483648
    %v1277 = vxor.u32 %v1262, 2147483648
    %v1278 = vmul.f32 %v1263, 1.442695
    %v1279 = vpow.pop %v1278
    %v1280 = vmul.f32 %v1264, 1.442695
    %v1281 = vpow.pop %v1280
    %v1282 = vmul.f32 %v1265, 1.442695
    %v1283 = vpow.pop %v1282
    %v1284 = vmul.f32 %v1266, 1.442695
    %v1285 = vpow.pop %v1284
    %v1286 = vmul.f32 %v1267, 1.442695
    %v1287 = vpow.pop %v1286
    %v1288 = vmul.f32 %v1268, 1.442695
    %v1289 = vpow.pop %v1288
    %v1290 = vmul.f32 %v1269, 1.442695
    %v1291 = vpow.pop %v1290
    %v1292 = vmul.f32 %v1270, 1.442695
    %v1293 = vpow.pop %v1292
    %v1294 = vmul.f32 %v1271, 1.442695
    %v1295 = vpow.pop %v1294
    %v1296 = vmul.f32 %v1272, 1.442695
    %v1297 = vpow.pop %v1296
    %v1298 = vmul.f32 %v1273, 1.442695
    %v1299 = vpow.pop %v1298
    %v1300 = vmul.f32 %v1274, 1.442695
    %v1301 = vpow.pop %v1300
    %v1302 = vmul.f32 %v1275, 1.442695
    %v1303 = vpow.pop %v1302
    %v1304 = vmul.f32 %v1276, 1.442695
    %v1305 = vpow.pop %v1304
    %v1306 = vmul.f32 %v1277, 1.442695
    %v1307 = vpow.pop %v1306
    %v1308 = vadd.f32 %v1279, 1.0
    %v1309 = vadd.f32 %v1281, 1.0
    %v1310 = vadd.f32 %v1283, 1.0
    %v1311 = vadd.f32 %v1285, 1.0
    %v1312 = vadd.f32 %v1287, 1.0
    %v1313 = vadd.f32 %v1289, 1.0
    %v1314 = vadd.f32 %v1291, 1.0
    %v1315 = vadd.f32 %v1293, 1.0
    %v1316 = vadd.f32 %v1295, 1.0
    %v1317 = vadd.f32 %v1297, 1.0
    %v1318 = vadd.f32 %v1299, 1.0
    %v1319 = vadd.f32 %v1301, 1.0
    %v1320 = vadd.f32 %v1303, 1.0
    %v1321 = vadd.f32 %v1305, 1.0
    %v1322 = vadd.f32 %v1307, 1.0
    %v1323 = vrcp.pop %v1308
    %v1324 = vmul.f32 1.0, %v1323
    %v1325 = vrcp.pop %v1309
    %v1326 = vmul.f32 1.0, %v1325
    %v1327 = vrcp.pop %v1310
    %v1328 = vmul.f32 1.0, %v1327
    %v1329 = vrcp.pop %v1311
    %v1330 = vmul.f32 1.0, %v1329
    %v1331 = vrcp.pop %v1312
    %v1332 = vmul.f32 1.0, %v1331
    %v1333 = vrcp.pop %v1313
    %v1334 = vmul.f32 1.0, %v1333
    %v1335 = vrcp.pop %v1314
    %v1336 = vmul.f32 1.0, %v1335
    %v1337 = vrcp.pop %v1315
    %v1338 = vmul.f32 1.0, %v1337
    %v1339 = vrcp.pop %v1316
    %v1340 = vmul.f32 1.0, %v1339
    %v1341 = vrcp.pop %v1317
    %v1342 = vmul.f32 1.0, %v1341
    %v1343 = vrcp.pop %v1318
    %v1344 = vmul.f32 1.0, %v1343
    %v1345 = vrcp.pop %v1319
    %v1346 = vmul.f32 1.0, %v1345
    %v1347 = vrcp.pop %v1320
    %v1348 = vmul.f32 1.0, %v1347
    %v1349 = vrcp.pop %v1321
    %v1350 = vmul.f32 1.0, %v1349
    %v1351 = vrcp.pop %v1322
    %v1352 = vmul.f32 1.0, %v1351
    %v1353 = vmul.f32 %v1248, %v1324
    %v1354 = vmul.f32 %v1249, %v1326
    %v1355 = vmul.f32 %v1250, %v1328
    %v1356 = vmul.f32 %v1251, %v1330
    %v1357 = vmul.f32 %v1252, %v1332
    %v1358 = vmul.f32 %v1253, %v1334
    %v1359 = vmul.f32 %v1254, %v1336
    %v1360 = vmul.f32 %v1255, %v1338
    %v1361 = vmul.f32 %v1256, %v1340
    %v1362 = vmul.f32 %v1257, %v1342
    %v1363 = vmul.f32 %v1258, %v1344
    %v1364 = vmul.f32 %v1259, %v1346
    %v1365 = vmul.f32 %v1260, %v1348
    %v1366 = vmul.f32 %v1261, %v1350
    %v1367 = vmul.f32 %v1262, %v1352
    %1368 = vst.msk [vmem:[#allocation3 + $0x4] sm:$0xff] %vm1098, %v1353
    %1369 = vst.msk [vmem:[#allocation3 + $0xc] sm:$0xff] %vm1098, %v1354
    %1370 = vst.msk [vmem:[#allocation3 + $0x14] sm:$0xff] %vm1098, %v1355
    %1371 = vst.msk [vmem:[#allocation3 + $0x1c] sm:$0xff] %vm1098, %v1356
    %1372 = vst.msk [vmem:[#allocation3 + $0x24] sm:$0xff] %vm1098, %v1357
    %1373 = vst.msk [vmem:[#allocation3 + $0x2c] sm:$0xff] %vm1098, %v1358
    %1374 = vst.msk [vmem:[#allocation3 + $0x34] sm:$0xff] %vm1098, %v1359
    %1375 = vst.msk [vmem:[#allocation3 + $0x3c] sm:$0xf] %vm428, %v1360
    %vm1376 = vcmask 261124
    %1377 = vst.msk [vmem:[#allocation3 + $0x40] sm:$0xf0] %vm1376, %v1360
    %1378 = vst.msk [vmem:[#allocation3 + $0x48] sm:$0xff] %vm1098, %v1361
    %1379 = vst.msk [vmem:[#allocation3 + $0x50] sm:$0xff] %vm1098, %v1362
    %1380 = vst.msk [vmem:[#allocation3 + $0x58] sm:$0xff] %vm1098, %v1363
    %1381 = vst.msk [vmem:[#allocation3 + $0x60] sm:$0xff] %vm1098, %v1364
    %1382 = vst.msk [vmem:[#allocation3 + $0x68] sm:$0xff] %vm1098, %v1365
    %1383 = vst.msk [vmem:[#allocation3 + $0x70] sm:$0xff] %vm1098, %v1366
    %1384 = vst.msk [vmem:[#allocation3 + $0x78] sm:$0xff] %vm1098, %v1367
    %v1385 = vld [vmem:[#allocation3] sm:$0xff]
    %v1386 = vld [vmem:[#allocation3 + $0x8] sm:$0xff]
    %v1387 = vld [vmem:[#allocation3 + $0x10] sm:$0xff]
    %v1388 = vld [vmem:[#allocation3 + $0x18] sm:$0xff]
    %v1389 = vld [vmem:[#allocation3 + $0x20] sm:$0xff]
    %v1390 = vld [vmem:[#allocation3 + $0x28] sm:$0xff]
    %v1391 = vld [vmem:[#allocation3 + $0x30] sm:$0xff]
    %v1392 = vld [vmem:[#allocation3 + $0x38] sm:$0xf]
    %v1393 = vld [vmem:[#allocation3 + $0x1] sm:$0xff]
    %v1394 = vld [vmem:[#allocation3 + $0x9] sm:$0xff]
    %v1395 = vld [vmem:[#allocation3 + $0x11] sm:$0xff]
    %v1396 = vld [vmem:[#allocation3 + $0x19] sm:$0xff]
    %v1397 = vld [vmem:[#allocation3 + $0x21] sm:$0xff]
    %v1398 = vld [vmem:[#allocation3 + $0x29] sm:$0xff]
    %v1399 = vld [vmem:[#allocation3 + $0x31] sm:$0xff]
    %v1400 = vld [vmem:[#allocation3 + $0x39] sm:$0xf]
    %v1401 = vld [vmem:[#allocation3 + $0x2] sm:$0xff]
    %v1402 = vld [vmem:[#allocation3 + $0xa] sm:$0xff]
    %v1403 = vld [vmem:[#allocation3 + $0x12] sm:$0xff]
    %v1404 = vld [vmem:[#allocation3 + $0x1a] sm:$0xff]
    %v1405 = vld [vmem:[#allocation3 + $0x22] sm:$0xff]
    %v1406 = vld [vmem:[#allocation3 + $0x2a] sm:$0xff]
    %v1407 = vld [vmem:[#allocation3 + $0x32] sm:$0xff]
    %v1408 = vld [vmem:[#allocation3 + $0x3a] sm:$0xf]
    %v1409 = vld [vmem:[#allocation3 + $0x3] sm:$0xff]
    %v1410 = vld [vmem:[#allocation3 + $0xb] sm:$0xff]
    %v1411 = vld [vmem:[#allocation3 + $0x13] sm:$0xff]
    %v1412 = vld [vmem:[#allocation3 + $0x1b] sm:$0xff]
    %v1413 = vld [vmem:[#allocation3 + $0x23] sm:$0xff]
    %v1414 = vld [vmem:[#allocation3 + $0x2b] sm:$0xff]
    %v1415 = vld [vmem:[#allocation3 + $0x33] sm:$0xff]
    %v1416 = vld [vmem:[#allocation3 + $0x3b] sm:$0xf]
    %v1417 = vld [vmem:[#allocation3 + $0x4] sm:$0xff]
    %v1418 = vld [vmem:[#allocation3 + $0xc] sm:$0xff]
    %v1419 = vld [vmem:[#allocation3 + $0x14] sm:$0xff]
    %v1420 = vld [vmem:[#allocation3 + $0x1c] sm:$0xff]
    %v1421 = vld [vmem:[#allocation3 + $0x24] sm:$0xff]
    %v1422 = vld [vmem:[#allocation3 + $0x2c] sm:$0xff]
    %v1423 = vld [vmem:[#allocation3 + $0x34] sm:$0xff]
    %v1424 = vld [vmem:[#allocation3 + $0x3c] sm:$0xf]
    %1433 = vrot.lane.b32.xlu0 %v1393, 32
    %v1434 = vpop.permute.xlu0 %1433
    %1435 = vrot.lane.b32.xlu0 %v1394, 32
    %v1436 = vpop.permute.xlu0 %1435
    %1437 = vrot.lane.b32.xlu0 %v1395, 32
    %v1438 = vpop.permute.xlu0 %1437
    %1439 = vrot.lane.b32.xlu0 %v1396, 32
    %v1440 = vpop.permute.xlu0 %1439
    %1441 = vrot.lane.b32.xlu0 %v1397, 32
    %v1442 = vpop.permute.xlu0 %1441
    %1443 = vrot.lane.b32.xlu0 %v1398, 32
    %v1444 = vpop.permute.xlu0 %1443
    %1445 = vrot.lane.b32.xlu0 %v1399, 32
    %v1446 = vpop.permute.xlu0 %1445
    %1447 = vrot.lane.b32.xlu0 %v1400, 32
    %v1448 = vpop.permute.xlu0 %1447
    %1465 = vrot.lane.b32.xlu0 %v1401, 64
    %v1466 = vpop.permute.xlu0 %1465
    %1467 = vrot.lane.b32.xlu0 %v1402, 64
    %v1468 = vpop.permute.xlu0 %1467
    %1469 = vrot.lane.b32.xlu0 %v1403, 64
    %v1470 = vpop.permute.xlu0 %1469
    %1471 = vrot.lane.b32.xlu0 %v1404, 64
    %v1472 = vpop.permute.xlu0 %1471
    %1473 = vrot.lane.b32.xlu0 %v1405, 64
    %v1474 = vpop.permute.xlu0 %1473
    %1475 = vrot.lane.b32.xlu0 %v1406, 64
    %v1476 = vpop.permute.xlu0 %1475
    %1477 = vrot.lane.b32.xlu0 %v1407, 64
    %v1478 = vpop.permute.xlu0 %1477
    %1479 = vrot.lane.b32.xlu0 %v1408, 64
    %v1480 = vpop.permute.xlu0 %1479
    %1497 = vrot.lane.b32.xlu0 %v1409, 96
    %v1498 = vpop.permute.xlu0 %1497
    %1499 = vrot.lane.b32.xlu0 %v1410, 96
    %v1500 = vpop.permute.xlu0 %1499
    %1501 = vrot.lane.b32.xlu0 %v1411, 96
    %v1502 = vpop.permute.xlu0 %1501
    %1503 = vrot.lane.b32.xlu0 %v1412, 96
    %v1504 = vpop.permute.xlu0 %1503
    %1505 = vrot.lane.b32.xlu0 %v1413, 96
    %v1506 = vpop.permute.xlu0 %1505
    %1507 = vrot.lane.b32.xlu0 %v1414, 96
    %v1508 = vpop.permute.xlu0 %1507
    %1509 = vrot.lane.b32.xlu0 %v1415, 96
    %v1510 = vpop.permute.xlu0 %1509
    %1511 = vrot.lane.b32.xlu0 %v1416, 96
    %v1512 = vpop.permute.xlu0 %1511
    %v1521 = vsel %vm1098, %v1385, %v1434
    %v1522 = vsel %vm1098, %v1386, %v1436
    %v1523 = vsel %vm1098, %v1387, %v1438
    %v1524 = vsel %vm1098, %v1388, %v1440
    %v1525 = vsel %vm1098, %v1389, %v1442
    %v1526 = vsel %vm1098, %v1390, %v1444
    %v1527 = vsel %vm1098, %v1391, %v1446
    %v1528 = vsel %vm1098, %v1392, %v1448
    %vm1529 = vcmask 523264
    %v1530 = vsel %vm1529, %v1521, %v1466
    %v1531 = vsel %vm1529, %v1522, %v1468
    %v1532 = vsel %vm1529, %v1523, %v1470
    %v1533 = vsel %vm1529, %v1524, %v1472
    %v1534 = vsel %vm1529, %v1525, %v1474
    %v1535 = vsel %vm1529, %v1526, %v1476
    %v1536 = vsel %vm1529, %v1527, %v1478
    %v1537 = vsel %vm1529, %v1528, %v1480
    %vm1538 = vcmask 785408
    %v1539 = vsel %vm1538, %v1530, %v1498
    %v1540 = vsel %vm1538, %v1531, %v1500
    %v1541 = vsel %vm1538, %v1532, %v1502
    %v1542 = vsel %vm1538, %v1533, %v1504
    %v1543 = vsel %vm1538, %v1534, %v1506
    %v1544 = vsel %vm1538, %v1535, %v1508
    %v1545 = vsel %vm1538, %v1536, %v1510
    %v1546 = vsel %vm1538, %v1537, %v1512
    %1547 = vst [vmem:[#allocation2] sm:$0xff] %v1539
    %1548 = vst.msk [vmem:[#allocation2 + $0x8] sm:$0xff] %vm1098, %v1417
    %1549 = vst [vmem:[#allocation2 + $0x10] sm:$0xff] %v1540
    %1550 = vst.msk [vmem:[#allocation2 + $0x18] sm:$0xff] %vm1098, %v1418
    %1551 = vst [vmem:[#allocation2 + $0x20] sm:$0xff] %v1541
    %1552 = vst.msk [vmem:[#allocation2 + $0x28] sm:$0xff] %vm1098, %v1419
    %1553 = vst [vmem:[#allocation2 + $0x30] sm:$0xff] %v1542
    %1554 = vst.msk [vmem:[#allocation2 + $0x38] sm:$0xff] %vm1098, %v1420
    %1555 = vst [vmem:[#allocation2 + $0x40] sm:$0xff] %v1543
    %1556 = vst.msk [vmem:[#allocation2 + $0x48] sm:$0xff] %vm1098, %v1421
    %1557 = vst [vmem:[#allocation2 + $0x50] sm:$0xff] %v1544
    %1558 = vst.msk [vmem:[#allocation2 + $0x58] sm:$0xff] %vm1098, %v1422
    %1559 = vst [vmem:[#allocation2 + $0x60] sm:$0xff] %v1545
    %1560 = vst.msk [vmem:[#allocation2 + $0x68] sm:$0xff] %vm1098, %v1423
    %1561 = vst [vmem:[#allocation2 + $0x70] sm:$0xf] %v1546
    %1562 = vst.msk [vmem:[#allocation2 + $0x78] sm:$0xf] %vm428, %v1424
    %v1563 = vld [vmem:[#allocation3 + $0x40] sm:$0xff]
    %v1564 = vld [vmem:[#allocation3 + $0x48] sm:$0xff]
    %v1565 = vld [vmem:[#allocation3 + $0x50] sm:$0xff]
    %v1566 = vld [vmem:[#allocation3 + $0x58] sm:$0xff]
    %v1567 = vld [vmem:[#allocation3 + $0x60] sm:$0xff]
    %v1568 = vld [vmem:[#allocation3 + $0x68] sm:$0xff]
    %v1569 = vld [vmem:[#allocation3 + $0x70] sm:$0xff]
    %v1570 = vld [vmem:[#allocation3 + $0x78] sm:$0xf]
    %v1571 = vld [vmem:[#allocation3 + $0x41] sm:$0xff]
    %v1572 = vld [vmem:[#allocation3 + $0x49] sm:$0xff]
    %v1573 = vld [vmem:[#allocation3 + $0x51] sm:$0xff]
    %v1574 = vld [vmem:[#allocation3 + $0x59] sm:$0xff]
    %v1575 = vld [vmem:[#allocation3 + $0x61] sm:$0xff]
    %v1576 = vld [vmem:[#allocation3 + $0x69] sm:$0xff]
    %v1577 = vld [vmem:[#allocation3 + $0x71] sm:$0xff]
    %v1578 = vld [vmem:[#allocation3 + $0x79] sm:$0xf]
    %v1579 = vld [vmem:[#allocation3 + $0x42] sm:$0xff]
    %v1580 = vld [vmem:[#allocation3 + $0x4a] sm:$0xff]
    %v1581 = vld [vmem:[#allocation3 + $0x52] sm:$0xff]
    %v1582 = vld [vmem:[#allocation3 + $0x5a] sm:$0xff]
    %v1583 = vld [vmem:[#allocation3 + $0x62] sm:$0xff]
    %v1584 = vld [vmem:[#allocation3 + $0x6a] sm:$0xff]
    %v1585 = vld [vmem:[#allocation3 + $0x72] sm:$0xff]
    %v1586 = vld [vmem:[#allocation3 + $0x7a] sm:$0xf]
    %v1587 = vld [vmem:[#allocation3 + $0x43] sm:$0xff]
    %v1588 = vld [vmem:[#allocation3 + $0x4b] sm:$0xff]
    %v1589 = vld [vmem:[#allocation3 + $0x53] sm:$0xff]
    %v1590 = vld [vmem:[#allocation3 + $0x5b] sm:$0xff]
    %v1591 = vld [vmem:[#allocation3 + $0x63] sm:$0xff]
    %v1592 = vld [vmem:[#allocation3 + $0x6b] sm:$0xff]
    %v1593 = vld [vmem:[#allocation3 + $0x73] sm:$0xff]
    %v1594 = vld [vmem:[#allocation3 + $0x7b] sm:$0xf]
    %v1595 = vld [vmem:[#allocation3 + $0x44] sm:$0xff]
    %v1596 = vld [vmem:[#allocation3 + $0x4c] sm:$0xff]
    %v1597 = vld [vmem:[#allocation3 + $0x54] sm:$0xff]
    %v1598 = vld [vmem:[#allocation3 + $0x5c] sm:$0xff]
    %v1599 = vld [vmem:[#allocation3 + $0x64] sm:$0xff]
    %v1600 = vld [vmem:[#allocation3 + $0x6c] sm:$0xff]
    %v1601 = vld [vmem:[#allocation3 + $0x74] sm:$0xff]
    %v1602 = vld [vmem:[#allocation3 + $0x7c] sm:$0xf]
    %1611 = vrot.lane.b32.xlu0 %v1571, 32
    %v1612 = vpop.permute.xlu0 %1611
    %1613 = vrot.lane.b32.xlu0 %v1572, 32
    %v1614 = vpop.permute.xlu0 %1613
    %1615 = vrot.lane.b32.xlu0 %v1573, 32
    %v1616 = vpop.permute.xlu0 %1615
    %1617 = vrot.lane.b32.xlu0 %v1574, 32
    %v1618 = vpop.permute.xlu0 %1617
    %1619 = vrot.lane.b32.xlu0 %v1575, 32
    %v1620 = vpop.permute.xlu0 %1619
    %1621 = vrot.lane.b32.xlu0 %v1576, 32
    %v1622 = vpop.permute.xlu0 %1621
    %1623 = vrot.lane.b32.xlu0 %v1577, 32
    %v1624 = vpop.permute.xlu0 %1623
    %1625 = vrot.lane.b32.xlu0 %v1578, 32
    %v1626 = vpop.permute.xlu0 %1625
    %1643 = vrot.lane.b32.xlu0 %v1579, 64
    %v1644 = vpop.permute.xlu0 %1643
    %1645 = vrot.lane.b32.xlu0 %v1580, 64
    %v1646 = vpop.permute.xlu0 %1645
    %1647 = vrot.lane.b32.xlu0 %v1581, 64
    %v1648 = vpop.permute.xlu0 %1647
    %1649 = vrot.lane.b32.xlu0 %v1582, 64
    %v1650 = vpop.permute.xlu0 %1649
    %1651 = vrot.lane.b32.xlu0 %v1583, 64
    %v1652 = vpop.permute.xlu0 %1651
    %1653 = vrot.lane.b32.xlu0 %v1584, 64
    %v1654 = vpop.permute.xlu0 %1653
    %1655 = vrot.lane.b32.xlu0 %v1585, 64
    %v1656 = vpop.permute.xlu0 %1655
    %1657 = vrot.lane.b32.xlu0 %v1586, 64
    %v1658 = vpop.permute.xlu0 %1657
    %1675 = vrot.lane.b32.xlu0 %v1587, 96
    %v1676 = vpop.permute.xlu0 %1675
    %1677 = vrot.lane.b32.xlu0 %v1588, 96
    %v1678 = vpop.permute.xlu0 %1677
    %1679 = vrot.lane.b32.xlu0 %v1589, 96
    %v1680 = vpop.permute.xlu0 %1679
    %1681 = vrot.lane.b32.xlu0 %v1590, 96
    %v1682 = vpop.permute.xlu0 %1681
    %1683 = vrot.lane.b32.xlu0 %v1591, 96
    %v1684 = vpop.permute.xlu0 %1683
    %1685 = vrot.lane.b32.xlu0 %v1592, 96
    %v1686 = vpop.permute.xlu0 %1685
    %1687 = vrot.lane.b32.xlu0 %v1593, 96
    %v1688 = vpop.permute.xlu0 %1687
    %1689 = vrot.lane.b32.xlu0 %v1594, 96
    %v1690 = vpop.permute.xlu0 %1689
    %v1699 = vsel %vm1098, %v1563, %v1612
    %v1700 = vsel %vm1098, %v1564, %v1614
    %v1701 = vsel %vm1098, %v1565, %v1616
    %v1702 = vsel %vm1098, %v1566, %v1618
    %v1703 = vsel %vm1098, %v1567, %v1620
    %v1704 = vsel %vm1098, %v1568, %v1622
    %v1705 = vsel %vm1098, %v1569, %v1624
    %v1706 = vsel %vm1098, %v1570, %v1626
    %v1707 = vsel %vm1529, %v1699, %v1644
    %v1708 = vsel %vm1529, %v1700, %v1646
    %v1709 = vsel %vm1529, %v1701, %v1648
    %v1710 = vsel %vm1529, %v1702, %v1650
    %v1711 = vsel %vm1529, %v1703, %v1652
    %v1712 = vsel %vm1529, %v1704, %v1654
    %v1713 = vsel %vm1529, %v1705, %v1656
    %v1714 = vsel %vm1529, %v1706, %v1658
    %v1715 = vsel %vm1538, %v1707, %v1676
    %v1716 = vsel %vm1538, %v1708, %v1678
    %v1717 = vsel %vm1538, %v1709, %v1680
    %v1718 = vsel %vm1538, %v1710, %v1682
    %v1719 = vsel %vm1538, %v1711, %v1684
    %v1720 = vsel %vm1538, %v1712, %v1686
    %v1721 = vsel %vm1538, %v1713, %v1688
    %v1722 = vsel %vm1538, %v1714, %v1690
    %v1739 = vrot.slane %v1715, 4
    %v1740 = vrot.slane %v1595, 4
    %v1741 = vrot.slane %v1716, 4
    %v1742 = vsel %vm853, %v1739, %v1741
    %v1743 = vrot.slane %v1596, 4
    %v1744 = vsel %vm853, %v1740, %v1743
    %v1745 = vrot.slane %v1717, 4
    %v1746 = vsel %vm853, %v1741, %v1745
    %v1747 = vrot.slane %v1597, 4
    %v1748 = vsel %vm853, %v1743, %v1747
    %v1749 = vrot.slane %v1718, 4
    %v1750 = vsel %vm853, %v1745, %v1749
    %v1751 = vrot.slane %v1598, 4
    %v1752 = vsel %vm853, %v1747, %v1751
    %v1753 = vrot.slane %v1719, 4
    %v1754 = vsel %vm853, %v1749, %v1753
    %v1755 = vrot.slane %v1599, 4
    %v1756 = vsel %vm853, %v1751, %v1755
    %v1757 = vrot.slane %v1720, 4
    %v1758 = vsel %vm853, %v1753, %v1757
    %v1759 = vrot.slane %v1600, 4
    %v1760 = vsel %vm853, %v1755, %v1759
    %v1761 = vrot.slane %v1721, 4
    %v1762 = vsel %vm853, %v1757, %v1761
    %v1763 = vrot.slane %v1601, 4
    %v1764 = vsel %vm853, %v1759, %v1763
    %v1765 = vrot.slane %v1722, 4
    %v1766 = vsel %vm853, %v1761, %v1765
    %v1767 = vrot.slane %v1602, 4
    %v1768 = vsel %vm853, %v1763, %v1767
    %1785 = vst [vmem:[#allocation2 + $0x70] sm:$0xf0] %v1739
    %1786 = vst.msk [vmem:[#allocation2 + $0x78] sm:$0xf0] %vm1376, %v1740
    %1787 = vst [vmem:[#allocation2 + $0x80] sm:$0xff] %v1742
    %1788 = vst.msk [vmem:[#allocation2 + $0x88] sm:$0xff] %vm1098, %v1744
    %1789 = vst [vmem:[#allocation2 + $0x90] sm:$0xff] %v1746
    %1790 = vst.msk [vmem:[#allocation2 + $0x98] sm:$0xff] %vm1098, %v1748
    %1791 = vst [vmem:[#allocation2 + $0xa0] sm:$0xff] %v1750
    %1792 = vst.msk [vmem:[#allocation2 + $0xa8] sm:$0xff] %vm1098, %v1752
    %1793 = vst [vmem:[#allocation2 + $0xb0] sm:$0xff] %v1754
    %1794 = vst.msk [vmem:[#allocation2 + $0xb8] sm:$0xff] %vm1098, %v1756
    %1795 = vst [vmem:[#allocation2 + $0xc0] sm:$0xff] %v1758
    %1796 = vst.msk [vmem:[#allocation2 + $0xc8] sm:$0xff] %vm1098, %v1760
    %1797 = vst [vmem:[#allocation2 + $0xd0] sm:$0xff] %v1762
    %1798 = vst.msk [vmem:[#allocation2 + $0xd8] sm:$0xff] %vm1098, %v1764
    %1799 = vst [vmem:[#allocation2 + $0xe0] sm:$0xff] %v1766
    %1800 = vst.msk [vmem:[#allocation2 + $0xe8] sm:$0xff] %vm1098, %v1768
    %v1801 = vld [vmem:[#allocation2] sm:$0xff]
    %v1802 = vld [vmem:[#allocation2 + $0x8] sm:$0xff]
    %v1803 = vld [vmem:[#allocation2 + $0x10] sm:$0xff]
    %v1804 = vld [vmem:[#allocation2 + $0x18] sm:$0xff]
    %v1805 = vld [vmem:[#allocation2 + $0x20] sm:$0xff]
    %v1806 = vld [vmem:[#allocation2 + $0x28] sm:$0xff]
    %v1807 = vld [vmem:[#allocation2 + $0x30] sm:$0xff]
    %v1808 = vld [vmem:[#allocation2 + $0x38] sm:$0xff]
    %v1809 = vld [vmem:[#allocation2 + $0x40] sm:$0xff]
    %v1810 = vld [vmem:[#allocation2 + $0x48] sm:$0xff]
    %v1811 = vld [vmem:[#allocation2 + $0x50] sm:$0xff]
    %v1812 = vld [vmem:[#allocation2 + $0x58] sm:$0xff]
    %v1813 = vld [vmem:[#allocation2 + $0x60] sm:$0xff]
    %v1814 = vld [vmem:[#allocation2 + $0x68] sm:$0xff]
    %v1815 = vld [vmem:[#allocation2 + $0x70] sm:$0xff]
    %v1816 = vld [vmem:[#allocation2 + $0x78] sm:$0xff]
    %v1817 = vld [vmem:[#allocation2 + $0x80] sm:$0xff]
    %v1818 = vld [vmem:[#allocation2 + $0x88] sm:$0xff]
    %v1819 = vld [vmem:[#allocation2 + $0x90] sm:$0xff]
    %v1820 = vld [vmem:[#allocation2 + $0x98] sm:$0xff]
    %v1821 = vld [vmem:[#allocation2 + $0xa0] sm:$0xff]
    %v1822 = vld [vmem:[#allocation2 + $0xa8] sm:$0xff]
    %v1823 = vld [vmem:[#allocation2 + $0xb0] sm:$0xff]
    %v1824 = vld [vmem:[#allocation2 + $0xb8] sm:$0xff]
    %v1825 = vld [vmem:[#allocation2 + $0xc0] sm:$0xff]
    %v1826 = vld [vmem:[#allocation2 + $0xc8] sm:$0xff]
    %v1827 = vld [vmem:[#allocation2 + $0xd0] sm:$0xff]
    %v1828 = vld [vmem:[#allocation2 + $0xd8] sm:$0xff]
    %v1829 = vld [vmem:[#allocation2 + $0xe0] sm:$0xff]
    %v1830 = vld [vmem:[#allocation2 + $0xe8] sm:$0xff]
    %v1831 = vld [vmem:[%s11] sm:$0xff]
    %v1832 = vld [vmem:[%s11 + $0x8] sm:$0xff]
    %v1833 = vld [vmem:[%s11 + $0x10] sm:$0xff]
    %v1834 = vld [vmem:[%s11 + $0x18] sm:$0xff]
    %v1835 = vld [vmem:[%s11 + $0x20] sm:$0xff]
    %v1836 = vld [vmem:[%s11 + $0x28] sm:$0xff]
    %v1837 = vld [vmem:[%s11 + $0x30] sm:$0xff]
    %v1838 = vld [vmem:[%s11 + $0x38] sm:$0xff]
    %v1839 = vld [vmem:[%s11 + $0x40] sm:$0xff]
    %v1840 = vld [vmem:[%s11 + $0x48] sm:$0xff]
    %v1841 = vld [vmem:[%s11 + $0x50] sm:$0xff]
    %v1842 = vld [vmem:[%s11 + $0x58] sm:$0xff]
    %v1843 = vld [vmem:[%s11 + $0x60] sm:$0xff]
    %v1844 = vld [vmem:[%s11 + $0x68] sm:$0xff]
    %v1845 = vld [vmem:[%s11 + $0x70] sm:$0xff]
    %v1846 = vld [vmem:[%s11 + $0x78] sm:$0xff]
    %v1847 = vld [vmem:[%s11 + $0x80] sm:$0xff]
    %v1848 = vld [vmem:[%s11 + $0x88] sm:$0xff]
    %v1849 = vld [vmem:[%s11 + $0x90] sm:$0xff]
    %v1850 = vld [vmem:[%s11 + $0x98] sm:$0xff]
    %v1851 = vld [vmem:[#allocation15] sm:$0x1]
    %v1853 = vlaneseq
    %v1854 = vshrl.u32 %v1853, 7
    %v1855 = vsub.s32 0, %v1854
    %v1856 = vrot.slane %v1851, %v1855
    %v1859 = vsel %vm1098, %v1802, 0
    %v1862 = vsel %vm1098, %v1804, 0
    %v1865 = vsel %vm1098, %v1806, 0
    %v1868 = vsel %vm1098, %v1808, 0
    %v1871 = vsel %vm1098, %v1810, 0
    %v1874 = vsel %vm1098, %v1812, 0
    %v1877 = vsel %vm1098, %v1814, 0
    %v1880 = vsel %vm1098, %v1816, 0
    %v1883 = vsel %vm1098, %v1818, 0
    %v1886 = vsel %vm1098, %v1820, 0
    %v1889 = vsel %vm1098, %v1822, 0
    %v1892 = vsel %vm1098, %v1824, 0
    %v1895 = vsel %vm1098, %v1826, 0
    %v1898 = vsel %vm1098, %v1828, 0
    %v1901 = vsel %vm1098, %v1830, 0
    %1903 = vmatprep.subr.mxu0 0.0
    %1904 = vmatpush1.msra.mxu0 %v1831
    %1905 = vmatprep.subr.mxu0 0.0
    %1906 = vmatpush1.msra.mxu0 %v1832
    %1907 = vmatprep.subr.mxu0 0.0
    %1908 = vmatpush1.msra.mxu0 %v1833
    %1909 = vmatprep.subr.mxu0 0.0
    %1910 = vmatpush1.msra.mxu0 %v1834
    %1911 = vmatprep.subr.mxu0 0.0
    %1912 = vmatpush1.msra.mxu0 %v1835
    %1913 = vmatprep.subr.mxu0 0.0
    %1914 = vmatpush1.msra.mxu0 %v1836
    %1915 = vmatprep.subr.mxu0 0.0
    %1916 = vmatpush1.msra.mxu0 %v1837
    %1917 = vmatprep.subr.mxu0 0.0
    %1918 = vmatpush1.msra.mxu0 %v1838
    %1919 = vmatprep.subr.mxu0 0.0
    %1920 = vmatpush1.msra.mxu0 %v1839
    %1921 = vmatprep.subr.mxu0 0.0
    %1922 = vmatpush1.msra.mxu0 %v1840
    %1923 = vmatprep.subr.mxu0 0.0
    %1924 = vmatpush1.msra.mxu0 %v1841
    %1925 = vmatprep.subr.mxu0 0.0
    %1926 = vmatpush1.msra.mxu0 %v1842
    %1927 = vmatprep.subr.mxu0 0.0
    %1928 = vmatpush1.msra.mxu0 %v1843
    %1929 = vmatprep.subr.mxu0 0.0
    %1930 = vmatpush1.msra.mxu0 %v1844
    %1931 = vmatprep.subr.mxu0 0.0
    %1932 = vmatpush1.msra.mxu0 %v1845
    %1933 = vmatprep.subr.mxu0 0.0
    %1934 = vmatpush1.msra.mxu0 %v1846
    %1935 = vmatprep.subr.mxu0 0.0
    %1936 = vmatpush1.msra.mxu0 %v1847
    %1937 = vmatprep.subr.mxu0 0.0
    %1938 = vmatpush1.msra.mxu0 %v1848
    %1939 = vmatprep.subr.mxu0 0.0
    %1940 = vmatpush1.msra.mxu0 %v1849
    %1941 = vmatprep.subr.mxu0 0.0
    %1942 = vmatpush1.msra.mxu0 %v1850
    %1943 = vmatprep.subr.mxu0 0.0
    %1944 = vmatpush1.msra.mxu0 0.0
    %1945 = vmatprep.subr.mxu0 0.0
    %1946 = vmatpush1.msra.mxu0 0.0
    %1947 = vmatprep.subr.mxu0 0.0
    %1948 = vmatpush1.msra.mxu0 0.0
    %1949 = vmatprep.subr.mxu0 0.0
    %1950 = vmatpush1.msra.mxu0 0.0
    %1951 = vmatprep.subr.mxu0 0.0
    %1952 = vmatpush1.msra.mxu0 0.0
    %1953 = vmatprep.subr.mxu0 0.0
    %1954 = vmatpush1.msra.mxu0 0.0
    %1955 = vmatprep.subr.mxu0 0.0
    %1956 = vmatpush1.msra.mxu0 0.0
    %1957 = vmatprep.subr.mxu0 0.0
    %1958 = vmatpush1.msra.mxu0 0.0
    %1959 = vmatprep.subr.mxu0 0.0
    %1960 = vmatpush1.msra.mxu0 0.0
    %1961 = vmatprep.subr.mxu0 0.0
    %1962 = vmatpush1.msra.mxu0 0.0
    %1963 = vmatprep.subr.mxu0 0.0
    %1964 = vmatpush1.msra.mxu0 0.0
    %1965 = vmatprep.subr.mxu0 0.0
    %1966 = vmatpush1.msra.mxu0 0.0
    %1967 = vmatprep.mubr.f32.mxu0 %v1859
    %1968 = vmatmul.mubr.f32.gmra.mrb[0].mxu0 %v1801
    %v1969 = vpop.f32.mrb[0].mxu0
    %v1970 = vadd.f32 %v1856, %v1969
    %v1971 = vpop.f32.mrb[0].mxu0
    %1972 = vmatprep.mubr.f32.mxu0 %v1862
    %1973 = vmatmul.mubr.f32.gmra.mrb[0].mxu0 %v1803
    %v1974 = vpop.f32.mrb[0].mxu0
    %v1975 = vadd.f32 %v1856, %v1974
    %v1976 = vpop.f32.mrb[0].mxu0
    %1977 = vmatprep.mubr.f32.mxu0 %v1865
    %1978 = vmatmul.mubr.f32.gmra.mrb[0].mxu0 %v1805
    %v1979 = vpop.f32.mrb[0].mxu0
    %v1980 = vadd.f32 %v1856, %v1979
    %v1981 = vpop.f32.mrb[0].mxu0
    %1982 = vmatprep.mubr.f32.mxu0 %v1868
    %1983 = vmatmul.mubr.f32.gmra.mrb[0].mxu0 %v1807
    %v1984 = vpop.f32.mrb[0].mxu0
    %v1985 = vadd.f32 %v1856, %v1984
    %v1986 = vpop.f32.mrb[0].mxu0
    %1987 = vmatprep.mubr.f32.mxu0 %v1871
    %1988 = vmatmul.mubr.f32.gmra.mrb[0].mxu0 %v1809
    %v1989 = vpop.f32.mrb[0].mxu0
    %v1990 = vadd.f32 %v1856, %v1989
    %v1991 = vpop.f32.mrb[0].mxu0
    %1992 = vmatprep.mubr.f32.mxu0 %v1874
    %1993 = vmatmul.mubr.f32.gmra.mrb[0].mxu0 %v1811
    %v1994 = vpop.f32.mrb[0].mxu0
    %v1995 = vadd.f32 %v1856, %v1994
    %v1996 = vpop.f32.mrb[0].mxu0
    %1997 = vmatprep.mubr.f32.mxu0 %v1877
    %1998 = vmatmul.mubr.f32.gmra.mrb[0].mxu0 %v1813
    %v1999 = vpop.f32.mrb[0].mxu0
    %v2000 = vadd.f32 %v1856, %v1999
    %v2001 = vpop.f32.mrb[0].mxu0
    %2002 = vmatprep.mubr.f32.mxu0 %v1880
    %2003 = vmatmul.mubr.f32.gmra.mrb[0].mxu0 %v1815
    %v2004 = vpop.f32.mrb[0].mxu0
    %v2005 = vadd.f32 %v1856, %v2004
    %v2006 = vpop.f32.mrb[0].mxu0
    %2007 = vmatprep.mubr.f32.mxu0 %v1883
    %2008 = vmatmul.mubr.f32.gmra.mrb[0].mxu0 %v1817
    %v2009 = vpop.f32.mrb[0].mxu0
    %v2010 = vadd.f32 %v1856, %v2009
    %v2011 = vpop.f32.mrb[0].mxu0
    %2012 = vmatprep.mubr.f32.mxu0 %v1886
    %2013 = vmatmul.mubr.f32.gmra.mrb[0].mxu0 %v1819
    %v2014 = vpop.f32.mrb[0].mxu0
    %v2015 = vadd.f32 %v1856, %v2014
    %v2016 = vpop.f32.mrb[0].mxu0
    %2017 = vmatprep.mubr.f32.mxu0 %v1889
    %2018 = vmatmul.mubr.f32.gmra.mrb[0].mxu0 %v1821
    %v2019 = vpop.f32.mrb[0].mxu0
    %v2020 = vadd.f32 %v1856, %v2019
    %v2021 = vpop.f32.mrb[0].mxu0
    %2022 = vmatprep.mubr.f32.mxu0 %v1892
    %2023 = vmatmul.mubr.f32.gmra.mrb[0].mxu0 %v1823
    %v2024 = vpop.f32.mrb[0].mxu0
    %v2025 = vadd.f32 %v1856, %v2024
    %v2026 = vpop.f32.mrb[0].mxu0
    %2027 = vmatprep.mubr.f32.mxu0 %v1895
    %2028 = vmatmul.mubr.f32.gmra.mrb[0].mxu0 %v1825
    %v2029 = vpop.f32.mrb[0].mxu0
    %v2030 = vadd.f32 %v1856, %v2029
    %v2031 = vpop.f32.mrb[0].mxu0
    %2032 = vmatprep.mubr.f32.mxu0 %v1898
    %2033 = vmatmul.mubr.f32.gmra.mrb[0].mxu0 %v1827
    %v2034 = vpop.f32.mrb[0].mxu0
    %v2035 = vadd.f32 %v1856, %v2034
    %v2036 = vpop.f32.mrb[0].mxu0
    %2037 = vmatprep.mubr.f32.mxu0 %v1901
    %2038 = vmatmul.mubr.f32.gmra.mrb[0].mxu0 %v1829
    %v2039 = vpop.f32.mrb[0].mxu0
    %v2040 = vadd.f32 %v1856, %v2039
    %v2041 = vpop.f32.mrb[0].mxu0
    %2042 = vdwg.mxu0
    %v2043 = vsel %vm1098, %v1970, 0.0
    %v2044 = vsel %vm1098, %v1975, 0.0
    %v2045 = vadd.f32 %v2043, %v2044
    %v2046 = vsel %vm1098, %v1980, 0.0
    %v2047 = vadd.f32 %v2045, %v2046
    %v2048 = vsel %vm1098, %v1985, 0.0
    %v2049 = vadd.f32 %v2047, %v2048
    %v2050 = vsel %vm1098, %v1990, 0.0
    %v2051 = vadd.f32 %v2049, %v2050
    %v2052 = vsel %vm1098, %v1995, 0.0
    %v2053 = vadd.f32 %v2051, %v2052
    %v2054 = vsel %vm1098, %v2000, 0.0
    %v2055 = vadd.f32 %v2053, %v2054
    %v2056 = vsel %vm1098, %v2005, 0.0
    %v2057 = vadd.f32 %v2055, %v2056
    %v2058 = vsel %vm1098, %v2010, 0.0
    %v2059 = vadd.f32 %v2057, %v2058
    %v2060 = vsel %vm1098, %v2015, 0.0
    %v2061 = vadd.f32 %v2059, %v2060
    %v2062 = vsel %vm1098, %v2020, 0.0
    %v2063 = vadd.f32 %v2061, %v2062
    %v2064 = vsel %vm1098, %v2025, 0.0
    %v2065 = vadd.f32 %v2063, %v2064
    %v2066 = vsel %vm1098, %v2030, 0.0
    %v2067 = vadd.f32 %v2065, %v2066
    %v2068 = vsel %vm1098, %v2035, 0.0
    %v2069 = vadd.f32 %v2067, %v2068
    %v2070 = vsel %vm1098, %v2040, 0.0
    %v2071 = vadd.f32 %v2069, %v2070
    %v2072 = vrot.slane %v2071, 4
    %v2073 = vadd.f32 %v2071, %v2072
    %v2074 = vrot.slane %v2073, 2
    %v2075 = vadd.f32 %v2073, %v2074
    %v2076 = vrot.slane %v2075, 1
    %v2077 = vadd.f32 %v2075, %v2076
    %v2078 = vmul.f32 %v2077, %v1134
    %v2079 = vsub.f32 %v1970, %v2078
    %v2080 = vsub.f32 %v1975, %v2078
    %v2081 = vsub.f32 %v1980, %v2078
    %v2082 = vsub.f32 %v1985, %v2078
    %v2083 = vsub.f32 %v1990, %v2078
    %v2084 = vsub.f32 %v1995, %v2078
    %v2085 = vsub.f32 %v2000, %v2078
    %v2086 = vsub.f32 %v2005, %v2078
    %v2087 = vsub.f32 %v2010, %v2078
    %v2088 = vsub.f32 %v2015, %v2078
    %v2089 = vsub.f32 %v2020, %v2078
    %v2090 = vsub.f32 %v2025, %v2078
    %v2091 = vsub.f32 %v2030, %v2078
    %v2092 = vsub.f32 %v2035, %v2078
    %v2093 = vsub.f32 %v2040, %v2078
    %v2094 = vmul.f32 %v2079, %v2079
    %v2095 = vmul.f32 %v2080, %v2080
    %v2096 = vmul.f32 %v2081, %v2081
    %v2097 = vmul.f32 %v2082, %v2082
    %v2098 = vmul.f32 %v2083, %v2083
    %v2099 = vmul.f32 %v2084, %v2084
    %v2100 = vmul.f32 %v2085, %v2085
    %v2101 = vmul.f32 %v2086, %v2086
    %v2102 = vmul.f32 %v2087, %v2087
    %v2103 = vmul.f32 %v2088, %v2088
    %v2104 = vmul.f32 %v2089, %v2089
    %v2105 = vmul.f32 %v2090, %v2090
    %v2106 = vmul.f32 %v2091, %v2091
    %v2107 = vmul.f32 %v2092, %v2092
    %v2108 = vmul.f32 %v2093, %v2093
    %v2109 = vsel %vm1098, %v2094, 0.0
    %v2110 = vsel %vm1098, %v2095, 0.0
    %v2111 = vadd.f32 %v2109, %v2110
    %v2112 = vsel %vm1098, %v2096, 0.0
    %v2113 = vadd.f32 %v2111, %v2112
    %v2114 = vsel %vm1098, %v2097, 0.0
    %v2115 = vadd.f32 %v2113, %v2114
    %v2116 = vsel %vm1098, %v2098, 0.0
    %v2117 = vadd.f32 %v2115, %v2116
    %v2118 = vsel %vm1098, %v2099, 0.0
    %v2119 = vadd.f32 %v2117, %v2118
    %v2120 = vsel %vm1098, %v2100, 0.0
    %v2121 = vadd.f32 %v2119, %v2120
    %v2122 = vsel %vm1098, %v2101, 0.0
    %v2123 = vadd.f32 %v2121, %v2122
    %v2124 = vsel %vm1098, %v2102, 0.0
    %v2125 = vadd.f32 %v2123, %v2124
    %v2126 = vsel %vm1098, %v2103, 0.0
    %v2127 = vadd.f32 %v2125, %v2126
    %v2128 = vsel %vm1098, %v2104, 0.0
    %v2129 = vadd.f32 %v2127, %v2128
    %v2130 = vsel %vm1098, %v2105, 0.0
    %v2131 = vadd.f32 %v2129, %v2130
    %v2132 = vsel %vm1098, %v2106, 0.0
    %v2133 = vadd.f32 %v2131, %v2132
    %v2134 = vsel %vm1098, %v2107, 0.0
    %v2135 = vadd.f32 %v2133, %v2134
    %v2136 = vsel %vm1098, %v2108, 0.0
    %v2137 = vadd.f32 %v2135, %v2136
    %v2138 = vrot.slane %v2137, 4
    %v2139 = vadd.f32 %v2137, %v2138
    %v2140 = vrot.slane %v2139, 2
    %v2141 = vadd.f32 %v2139, %v2140
    %v2142 = vrot.slane %v2141, 1
    %v2143 = vadd.f32 %v2141, %v2142
    %v2144 = vmul.f32 %v2143, %v1134
    %v2145 = vadd.f32 %v2144, 1e-05
    %v2146 = vrsqrt.pop %v2145
    %v2147 = vmul.f32 %v2079, %v2146
    %v2148 = vmul.f32 %v2080, %v2146
    %v2149 = vmul.f32 %v2081, %v2146
    %v2150 = vmul.f32 %v2082, %v2146
    %v2151 = vmul.f32 %v2083, %v2146
    %v2152 = vmul.f32 %v2084, %v2146
    %v2153 = vmul.f32 %v2085, %v2146
    %v2154 = vmul.f32 %v2086, %v2146
    %v2155 = vmul.f32 %v2087, %v2146
    %v2156 = vmul.f32 %v2088, %v2146
    %v2157 = vmul.f32 %v2089, %v2146
    %v2158 = vmul.f32 %v2090, %v2146
    %v2159 = vmul.f32 %v2091, %v2146
    %v2160 = vmul.f32 %v2092, %v2146
    %v2161 = vmul.f32 %v2093, %v2146
    %v2162 = vld [vmem:[#allocation17] sm:$0x1]
    %v2164 = vlaneseq
    %v2165 = vshrl.u32 %v2164, 7
    %v2166 = vsub.s32 0, %v2165
    %v2167 = vrot.slane %v2162, %v2166
    %v2169 = vmul.f32 %v2147, %v2167
    %v2170 = vmul.f32 %v2148, %v2167
    %v2171 = vmul.f32 %v2149, %v2167
    %v2172 = vmul.f32 %v2150, %v2167
    %v2173 = vmul.f32 %v2151, %v2167
    %v2174 = vmul.f32 %v2152, %v2167
    %v2175 = vmul.f32 %v2153, %v2167
    %v2176 = vmul.f32 %v2154, %v2167
    %v2177 = vmul.f32 %v2155, %v2167
    %v2178 = vmul.f32 %v2156, %v2167
    %v2179 = vmul.f32 %v2157, %v2167
    %v2180 = vmul.f32 %v2158, %v2167
    %v2181 = vmul.f32 %v2159, %v2167
    %v2182 = vmul.f32 %v2160, %v2167
    %v2183 = vmul.f32 %v2161, %v2167
    %v2184 = vld [vmem:[#allocation18] sm:$0x1]
    %v2186 = vlaneseq
    %v2187 = vshrl.u32 %v2186, 7
    %v2188 = vsub.s32 0, %v2187
    %v2189 = vrot.slane %v2184, %v2188
    %v2191 = vadd.f32 %v2169, %v2189
    %v2192 = vadd.f32 %v2170, %v2189
    %v2193 = vadd.f32 %v2171, %v2189
    %v2194 = vadd.f32 %v2172, %v2189
    %v2195 = vadd.f32 %v2173, %v2189
    %v2196 = vadd.f32 %v2174, %v2189
    %v2197 = vadd.f32 %v2175, %v2189
    %v2198 = vadd.f32 %v2176, %v2189
    %v2199 = vadd.f32 %v2177, %v2189
    %v2200 = vadd.f32 %v2178, %v2189
    %v2201 = vadd.f32 %v2179, %v2189
    %v2202 = vadd.f32 %v2180, %v2189
    %v2203 = vadd.f32 %v2181, %v2189
    %v2204 = vadd.f32 %v2182, %v2189
    %v2205 = vadd.f32 %v2183, %v2189
    %v2206 = vxor.u32 %v2191, 2147483648
    %v2207 = vxor.u32 %v2192, 2147483648
    %v2208 = vxor.u32 %v2193, 2147483648
    %v2209 = vxor.u32 %v2194, 2147483648
    %v2210 = vxor.u32 %v2195, 2147483648
    %v2211 = vxor.u32 %v2196, 2147483648
    %v2212 = vxor.u32 %v2197, 2147483648
    %v2213 = vxor.u32 %v2198, 2147483648
    %v2214 = vxor.u32 %v2199, 2147483648
    %v2215 = vxor.u32 %v2200, 2147483648
    %v2216 = vxor.u32 %v2201, 2147483648
    %v2217 = vxor.u32 %v2202, 2147483648
    %v2218 = vxor.u32 %v2203, 2147483648
    %v2219 = vxor.u32 %v2204, 2147483648
    %v2220 = vxor.u32 %v2205, 2147483648
    %v2221 = vmul.f32 %v2206, 1.442695
    %v2222 = vpow.pop %v2221
    %v2223 = vmul.f32 %v2207, 1.442695
    %v2224 = vpow.pop %v2223
    %v2225 = vmul.f32 %v2208, 1.442695
    %v2226 = vpow.pop %v2225
    %v2227 = vmul.f32 %v2209, 1.442695
    %v2228 = vpow.pop %v2227
    %v2229 = vmul.f32 %v2210, 1.442695
    %v2230 = vpow.pop %v2229
    %v2231 = vmul.f32 %v2211, 1.442695
    %v2232 = vpow.pop %v2231
    %v2233 = vmul.f32 %v2212, 1.442695
    %v2234 = vpow.pop %v2233
    %v2235 = vmul.f32 %v2213, 1.442695
    %v2236 = vpow.pop %v2235
    %v2237 = vmul.f32 %v2214, 1.442695
    %v2238 = vpow.pop %v2237
    %v2239 = vmul.f32 %v2215, 1.442695
    %v2240 = vpow.pop %v2239
    %v2241 = vmul.f32 %v2216, 1.442695
    %v2242 = vpow.pop %v2241
    %v2243 = vmul.f32 %v2217, 1.442695
    %v2244 = vpow.pop %v2243
    %v2245 = vmul.f32 %v2218, 1.442695
    %v2246 = vpow.pop %v2245
    %v2247 = vmul.f32 %v2219, 1.442695
    %v2248 = vpow.pop %v2247
    %v2249 = vmul.f32 %v2220, 1.442695
    %v2250 = vpow.pop %v2249
    %v2251 = vadd.f32 %v2222, 1.0
    %v2252 = vadd.f32 %v2224, 1.0
    %v2253 = vadd.f32 %v2226, 1.0
    %v2254 = vadd.f32 %v2228, 1.0
    %v2255 = vadd.f32 %v2230, 1.0
    %v2256 = vadd.f32 %v2232, 1.0
    %v2257 = vadd.f32 %v2234, 1.0
    %v2258 = vadd.f32 %v2236, 1.0
    %v2259 = vadd.f32 %v2238, 1.0
    %v2260 = vadd.f32 %v2240, 1.0
    %v2261 = vadd.f32 %v2242, 1.0
    %v2262 = vadd.f32 %v2244, 1.0
    %v2263 = vadd.f32 %v2246, 1.0
    %v2264 = vadd.f32 %v2248, 1.0
    %v2265 = vadd.f32 %v2250, 1.0
    %v2266 = vrcp.pop %v2251
    %v2267 = vmul.f32 1.0, %v2266
    %v2268 = vrcp.pop %v2252
    %v2269 = vmul.f32 1.0, %v2268
    %v2270 = vrcp.pop %v2253
    %v2271 = vmul.f32 1.0, %v2270
    %v2272 = vrcp.pop %v2254
    %v2273 = vmul.f32 1.0, %v2272
    %v2274 = vrcp.pop %v2255
    %v2275 = vmul.f32 1.0, %v2274
    %v2276 = vrcp.pop %v2256
    %v2277 = vmul.f32 1.0, %v2276
    %v2278 = vrcp.pop %v2257
    %v2279 = vmul.f32 1.0, %v2278
    %v2280 = vrcp.pop %v2258
    %v2281 = vmul.f32 1.0, %v2280
    %v2282 = vrcp.pop %v2259
    %v2283 = vmul.f32 1.0, %v2282
    %v2284 = vrcp.pop %v2260
    %v2285 = vmul.f32 1.0, %v2284
    %v2286 = vrcp.pop %v2261
    %v2287 = vmul.f32 1.0, %v2286
    %v2288 = vrcp.pop %v2262
    %v2289 = vmul.f32 1.0, %v2288
    %v2290 = vrcp.pop %v2263
    %v2291 = vmul.f32 1.0, %v2290
    %v2292 = vrcp.pop %v2264
    %v2293 = vmul.f32 1.0, %v2292
    %v2294 = vrcp.pop %v2265
    %v2295 = vmul.f32 1.0, %v2294
    %v2296 = vmul.f32 %v2191, %v2267
    %v2297 = vmul.f32 %v2192, %v2269
    %v2298 = vmul.f32 %v2193, %v2271
    %v2299 = vmul.f32 %v2194, %v2273
    %v2300 = vmul.f32 %v2195, %v2275
    %v2301 = vmul.f32 %v2196, %v2277
    %v2302 = vmul.f32 %v2197, %v2279
    %v2303 = vmul.f32 %v2198, %v2281
    %v2304 = vmul.f32 %v2199, %v2283
    %v2305 = vmul.f32 %v2200, %v2285
    %v2306 = vmul.f32 %v2201, %v2287
    %v2307 = vmul.f32 %v2202, %v2289
    %v2308 = vmul.f32 %v2203, %v2291
    %v2309 = vmul.f32 %v2204, %v2293
    %v2310 = vmul.f32 %v2205, %v2295
    %2311 = vst.msk [vmem:[#allocation3 + $0x4] sm:$0xff] %vm1098, %v2296
    %2312 = vst.msk [vmem:[#allocation3 + $0xc] sm:$0xff] %vm1098, %v2297
    %2313 = vst.msk [vmem:[#allocation3 + $0x14] sm:$0xff] %vm1098, %v2298
    %2314 = vst.msk [vmem:[#allocation3 + $0x1c] sm:$0xff] %vm1098, %v2299
    %2315 = vst.msk [vmem:[#allocation3 + $0x24] sm:$0xff] %vm1098, %v2300
    %2316 = vst.msk [vmem:[#allocation3 + $0x2c] sm:$0xff] %vm1098, %v2301
    %2317 = vst.msk [vmem:[#allocation3 + $0x34] sm:$0xff] %vm1098, %v2302
    %2318 = vst.msk [vmem:[#allocation3 + $0x3c] sm:$0xf] %vm428, %v2303
    %2319 = vst.msk [vmem:[#allocation3 + $0x40] sm:$0xf0] %vm1376, %v2303
    %2320 = vst.msk [vmem:[#allocation3 + $0x48] sm:$0xff] %vm1098, %v2304
    %2321 = vst.msk [vmem:[#allocation3 + $0x50] sm:$0xff] %vm1098, %v2305
    %2322 = vst.msk [vmem:[#allocation3 + $0x58] sm:$0xff] %vm1098, %v2306
    %2323 = vst.msk [vmem:[#allocation3 + $0x60] sm:$0xff] %vm1098, %v2307
    %2324 = vst.msk [vmem:[#allocation3 + $0x68] sm:$0xff] %vm1098, %v2308
    %2325 = vst.msk [vmem:[#allocation3 + $0x70] sm:$0xff] %vm1098, %v2309
    %2326 = vst.msk [vmem:[#allocation3 + $0x78] sm:$0xff] %vm1098, %v2310
    %v2327 = vld [vmem:[#allocation3] sm:$0xff]
    %v2328 = vld [vmem:[#allocation3 + $0x8] sm:$0xff]
    %v2329 = vld [vmem:[#allocation3 + $0x10] sm:$0xff]
    %v2330 = vld [vmem:[#allocation3 + $0x18] sm:$0xff]
    %v2331 = vld [vmem:[#allocation3 + $0x20] sm:$0xff]
    %v2332 = vld [vmem:[#allocation3 + $0x28] sm:$0xff]
    %v2333 = vld [vmem:[#allocation3 + $0x30] sm:$0xff]
    %v2334 = vld [vmem:[#allocation3 + $0x38] sm:$0xf]
    %v2335 = vld [vmem:[#allocation3 + $0x1] sm:$0xff]
    %v2336 = vld [vmem:[#allocation3 + $0x9] sm:$0xff]
    %v2337 = vld [vmem:[#allocation3 + $0x11] sm:$0xff]
    %v2338 = vld [vmem:[#allocation3 + $0x19] sm:$0xff]
    %v2339 = vld [vmem:[#allocation3 + $0x21] sm:$0xff]
    %v2340 = vld [vmem:[#allocation3 + $0x29] sm:$0xff]
    %v2341 = vld [vmem:[#allocation3 + $0x31] sm:$0xff]
    %v2342 = vld [vmem:[#allocation3 + $0x39] sm:$0xf]
    %v2343 = vld [vmem:[#allocation3 + $0x2] sm:$0xff]
    %v2344 = vld [vmem:[#allocation3 + $0xa] sm:$0xff]
    %v2345 = vld [vmem:[#allocation3 + $0x12] sm:$0xff]
    %v2346 = vld [vmem:[#allocation3 + $0x1a] sm:$0xff]
    %v2347 = vld [vmem:[#allocation3 + $0x22] sm:$0xff]
    %v2348 = vld [vmem:[#allocation3 + $0x2a] sm:$0xff]
    %v2349 = vld [vmem:[#allocation3 + $0x32] sm:$0xff]
    %v2350 = vld [vmem:[#allocation3 + $0x3a] sm:$0xf]
    %v2351 = vld [vmem:[#allocation3 + $0x3] sm:$0xff]
    %v2352 = vld [vmem:[#allocation3 + $0xb] sm:$0xff]
    %v2353 = vld [vmem:[#allocation3 + $0x13] sm:$0xff]
    %v2354 = vld [vmem:[#allocation3 + $0x1b] sm:$0xff]
    %v2355 = vld [vmem:[#allocation3 + $0x23] sm:$0xff]
    %v2356 = vld [vmem:[#allocation3 + $0x2b] sm:$0xff]
    %v2357 = vld [vmem:[#allocation3 + $0x33] sm:$0xff]
    %v2358 = vld [vmem:[#allocation3 + $0x3b] sm:$0xf]
    %v2359 = vld [vmem:[#allocation3 + $0x4] sm:$0xff]
    %v2360 = vld [vmem:[#allocation3 + $0xc] sm:$0xff]
    %v2361 = vld [vmem:[#allocation3 + $0x14] sm:$0xff]
    %v2362 = vld [vmem:[#allocation3 + $0x1c] sm:$0xff]
    %v2363 = vld [vmem:[#allocation3 + $0x24] sm:$0xff]
    %v2364 = vld [vmem:[#allocation3 + $0x2c] sm:$0xff]
    %v2365 = vld [vmem:[#allocation3 + $0x34] sm:$0xff]
    %v2366 = vld [vmem:[#allocation3 + $0x3c] sm:$0xf]
    %2375 = vrot.lane.b32.xlu0 %v2335, 32
    %v2376 = vpop.permute.xlu0 %2375
    %2377 = vrot.lane.b32.xlu0 %v2336, 32
    %v2378 = vpop.permute.xlu0 %2377
    %2379 = vrot.lane.b32.xlu0 %v2337, 32
    %v2380 = vpop.permute.xlu0 %2379
    %2381 = vrot.lane.b32.xlu0 %v2338, 32
    %v2382 = vpop.permute.xlu0 %2381
    %2383 = vrot.lane.b32.xlu0 %v2339, 32
    %v2384 = vpop.permute.xlu0 %2383
    %2385 = vrot.lane.b32.xlu0 %v2340, 32
    %v2386 = vpop.permute.xlu0 %2385
    %2387 = vrot.lane.b32.xlu0 %v2341, 32
    %v2388 = vpop.permute.xlu0 %2387
    %2389 = vrot.lane.b32.xlu0 %v2342, 32
    %v2390 = vpop.permute.xlu0 %2389
    %2407 = vrot.lane.b32.xlu0 %v2343, 64
    %v2408 = vpop.permute.xlu0 %2407
    %2409 = vrot.lane.b32.xlu0 %v2344, 64
    %v2410 = vpop.permute.xlu0 %2409
    %2411 = vrot.lane.b32.xlu0 %v2345, 64
    %v2412 = vpop.permute.xlu0 %2411
    %2413 = vrot.lane.b32.xlu0 %v2346, 64
    %v2414 = vpop.permute.xlu0 %2413
    %2415 = vrot.lane.b32.xlu0 %v2347, 64
    %v2416 = vpop.permute.xlu0 %2415
    %2417 = vrot.lane.b32.xlu0 %v2348, 64
    %v2418 = vpop.permute.xlu0 %2417
    %2419 = vrot.lane.b32.xlu0 %v2349, 64
    %v2420 = vpop.permute.xlu0 %2419
    %2421 = vrot.lane.b32.xlu0 %v2350, 64
    %v2422 = vpop.permute.xlu0 %2421
    %2439 = vrot.lane.b32.xlu0 %v2351, 96
    %v2440 = vpop.permute.xlu0 %2439
    %2441 = vrot.lane.b32.xlu0 %v2352, 96
    %v2442 = vpop.permute.xlu0 %2441
    %2443 = vrot.lane.b32.xlu0 %v2353, 96
    %v2444 = vpop.permute.xlu0 %2443
    %2445 = vrot.lane.b32.xlu0 %v2354, 96
    %v2446 = vpop.permute.xlu0 %2445
    %2447 = vrot.lane.b32.xlu0 %v2355, 96
    %v2448 = vpop.permute.xlu0 %2447
    %2449 = vrot.lane.b32.xlu0 %v2356, 96
    %v2450 = vpop.permute.xlu0 %2449
    %2451 = vrot.lane.b32.xlu0 %v2357, 96
    %v2452 = vpop.permute.xlu0 %2451
    %2453 = vrot.lane.b32.xlu0 %v2358, 96
    %v2454 = vpop.permute.xlu0 %2453
    %v2463 = vsel %vm1098, %v2327, %v2376
    %v2464 = vsel %vm1098, %v2328, %v2378
    %v2465 = vsel %vm1098, %v2329, %v2380
    %v2466 = vsel %vm1098, %v2330, %v2382
    %v2467 = vsel %vm1098, %v2331, %v2384
    %v2468 = vsel %vm1098, %v2332, %v2386
    %v2469 = vsel %vm1098, %v2333, %v2388
    %v2470 = vsel %vm1098, %v2334, %v2390
    %v2471 = vsel %vm1529, %v2463, %v2408
    %v2472 = vsel %vm1529, %v2464, %v2410
    %v2473 = vsel %vm1529, %v2465, %v2412
    %v2474 = vsel %vm1529, %v2466, %v2414
    %v2475 = vsel %vm1529, %v2467, %v2416
    %v2476 = vsel %vm1529, %v2468, %v2418
    %v2477 = vsel %vm1529, %v2469, %v2420
    %v2478 = vsel %vm1529, %v2470, %v2422
    %v2479 = vsel %vm1538, %v2471, %v2440
    %v2480 = vsel %vm1538, %v2472, %v2442
    %v2481 = vsel %vm1538, %v2473, %v2444
    %v2482 = vsel %vm1538, %v2474, %v2446
    %v2483 = vsel %vm1538, %v2475, %v2448
    %v2484 = vsel %vm1538, %v2476, %v2450
    %v2485 = vsel %vm1538, %v2477, %v2452
    %v2486 = vsel %vm1538, %v2478, %v2454
    %2487 = vst [vmem:[#allocation2] sm:$0xff] %v2479
    %2488 = vst.msk [vmem:[#allocation2 + $0x8] sm:$0xff] %vm1098, %v2359
    %2489 = vst [vmem:[#allocation2 + $0x10] sm:$0xff] %v2480
    %2490 = vst.msk [vmem:[#allocation2 + $0x18] sm:$0xff] %vm1098, %v2360
    %2491 = vst [vmem:[#allocation2 + $0x20] sm:$0xff] %v2481
    %2492 = vst.msk [vmem:[#allocation2 + $0x28] sm:$0xff] %vm1098, %v2361
    %2493 = vst [vmem:[#allocation2 + $0x30] sm:$0xff] %v2482
    %2494 = vst.msk [vmem:[#allocation2 + $0x38] sm:$0xff] %vm1098, %v2362
    %2495 = vst [vmem:[#allocation2 + $0x40] sm:$0xff] %v2483
    %2496 = vst.msk [vmem:[#allocation2 + $0x48] sm:$0xff] %vm1098, %v2363
    %2497 = vst [vmem:[#allocation2 + $0x50] sm:$0xff] %v2484
    %2498 = vst.msk [vmem:[#allocation2 + $0x58] sm:$0xff] %vm1098, %v2364
    %2499 = vst [vmem:[#allocation2 + $0x60] sm:$0xff] %v2485
    %2500 = vst.msk [vmem:[#allocation2 + $0x68] sm:$0xff] %vm1098, %v2365
    %2501 = vst [vmem:[#allocation2 + $0x70] sm:$0xf] %v2486
    %2502 = vst.msk [vmem:[#allocation2 + $0x78] sm:$0xf] %vm428, %v2366
    %v2503 = vld [vmem:[#allocation3 + $0x40] sm:$0xff]
    %v2504 = vld [vmem:[#allocation3 + $0x48] sm:$0xff]
    %v2505 = vld [vmem:[#allocation3 + $0x50] sm:$0xff]
    %v2506 = vld [vmem:[#allocation3 + $0x58] sm:$0xff]
    %v2507 = vld [vmem:[#allocation3 + $0x60] sm:$0xff]
    %v2508 = vld [vmem:[#allocation3 + $0x68] sm:$0xff]
    %v2509 = vld [vmem:[#allocation3 + $0x70] sm:$0xff]
    %v2510 = vld [vmem:[#allocation3 + $0x78] sm:$0xf]
    %v2511 = vld [vmem:[#allocation3 + $0x41] sm:$0xff]
    %v2512 = vld [vmem:[#allocation3 + $0x49] sm:$0xff]
    %v2513 = vld [vmem:[#allocation3 + $0x51] sm:$0xff]
    %v2514 = vld [vmem:[#allocation3 + $0x59] sm:$0xff]
    %v2515 = vld [vmem:[#allocation3 + $0x61] sm:$0xff]
    %v2516 = vld [vmem:[#allocation3 + $0x69] sm:$0xff]
    %v2517 = vld [vmem:[#allocation3 + $0x71] sm:$0xff]
    %v2518 = vld [vmem:[#allocation3 + $0x79] sm:$0xf]
    %v2519 = vld [vmem:[#allocation3 + $0x42] sm:$0xff]
    %v2520 = vld [vmem:[#allocation3 + $0x4a] sm:$0xff]
    %v2521 = vld [vmem:[#allocation3 + $0x52] sm:$0xff]
    %v2522 = vld [vmem:[#allocation3 + $0x5a] sm:$0xff]
    %v2523 = vld [vmem:[#allocation3 + $0x62] sm:$0xff]
    %v2524 = vld [vmem:[#allocation3 + $0x6a] sm:$0xff]
    %v2525 = vld [vmem:[#allocation3 + $0x72] sm:$0xff]
    %v2526 = vld [vmem:[#allocation3 + $0x7a] sm:$0xf]
    %v2527 = vld [vmem:[#allocation3 + $0x43] sm:$0xff]
    %v2528 = vld [vmem:[#allocation3 + $0x4b] sm:$0xff]
    %v2529 = vld [vmem:[#allocation3 + $0x53] sm:$0xff]
    %v2530 = vld [vmem:[#allocation3 + $0x5b] sm:$0xff]
    %v2531 = vld [vmem:[#allocation3 + $0x63] sm:$0xff]
    %v2532 = vld [vmem:[#allocation3 + $0x6b] sm:$0xff]
    %v2533 = vld [vmem:[#allocation3 + $0x73] sm:$0xff]
    %v2534 = vld [vmem:[#allocation3 + $0x7b] sm:$0xf]
    %v2535 = vld [vmem:[#allocation3 + $0x44] sm:$0xff]
    %v2536 = vld [vmem:[#allocation3 + $0x4c] sm:$0xff]
    %v2537 = vld [vmem:[#allocation3 + $0x54] sm:$0xff]
    %v2538 = vld [vmem:[#allocation3 + $0x5c] sm:$0xff]
    %v2539 = vld [vmem:[#allocation3 + $0x64] sm:$0xff]
    %v2540 = vld [vmem:[#allocation3 + $0x6c] sm:$0xff]
    %v2541 = vld [vmem:[#allocation3 + $0x74] sm:$0xff]
    %v2542 = vld [vmem:[#allocation3 + $0x7c] sm:$0xf]
    %2551 = vrot.lane.b32.xlu0 %v2511, 32
    %v2552 = vpop.permute.xlu0 %2551
    %2553 = vrot.lane.b32.xlu0 %v2512, 32
    %v2554 = vpop.permute.xlu0 %2553
    %2555 = vrot.lane.b32.xlu0 %v2513, 32
    %v2556 = vpop.permute.xlu0 %2555
    %2557 = vrot.lane.b32.xlu0 %v2514, 32
    %v2558 = vpop.permute.xlu0 %2557
    %2559 = vrot.lane.b32.xlu0 %v2515, 32
    %v2560 = vpop.permute.xlu0 %2559
    %2561 = vrot.lane.b32.xlu0 %v2516, 32
    %v2562 = vpop.permute.xlu0 %2561
    %2563 = vrot.lane.b32.xlu0 %v2517, 32
    %v2564 = vpop.permute.xlu0 %2563
    %2565 = vrot.lane.b32.xlu0 %v2518, 32
    %v2566 = vpop.permute.xlu0 %2565
    %2583 = vrot.lane.b32.xlu0 %v2519, 64
    %v2584 = vpop.permute.xlu0 %2583
    %2585 = vrot.lane.b32.xlu0 %v2520, 64
    %v2586 = vpop.permute.xlu0 %2585
    %2587 = vrot.lane.b32.xlu0 %v2521, 64
    %v2588 = vpop.permute.xlu0 %2587
    %2589 = vrot.lane.b32.xlu0 %v2522, 64
    %v2590 = vpop.permute.xlu0 %2589
    %2591 = vrot.lane.b32.xlu0 %v2523, 64
    %v2592 = vpop.permute.xlu0 %2591
    %2593 = vrot.lane.b32.xlu0 %v2524, 64
    %v2594 = vpop.permute.xlu0 %2593
    %2595 = vrot.lane.b32.xlu0 %v2525, 64
    %v2596 = vpop.permute.xlu0 %2595
    %2597 = vrot.lane.b32.xlu0 %v2526, 64
    %v2598 = vpop.permute.xlu0 %2597
    %2615 = vrot.lane.b32.xlu0 %v2527, 96
    %v2616 = vpop.permute.xlu0 %2615
    %2617 = vrot.lane.b32.xlu0 %v2528, 96
    %v2618 = vpop.permute.xlu0 %2617
    %2619 = vrot.lane.b32.xlu0 %v2529, 96
    %v2620 = vpop.permute.xlu0 %2619
    %2621 = vrot.lane.b32.xlu0 %v2530, 96
    %v2622 = vpop.permute.xlu0 %2621
    %2623 = vrot.lane.b32.xlu0 %v2531, 96
    %v2624 = vpop.permute.xlu0 %2623
    %2625 = vrot.lane.b32.xlu0 %v2532, 96
    %v2626 = vpop.permute.xlu0 %2625
    %2627 = vrot.lane.b32.xlu0 %v2533, 96
    %v2628 = vpop.permute.xlu0 %2627
    %2629 = vrot.lane.b32.xlu0 %v2534, 96
    %v2630 = vpop.permute.xlu0 %2629
    %v2639 = vsel %vm1098, %v2503, %v2552
    %v2640 = vsel %vm1098, %v2504, %v2554
    %v2641 = vsel %vm1098, %v2505, %v2556
    %v2642 = vsel %vm1098, %v2506, %v2558
    %v2643 = vsel %vm1098, %v2507, %v2560
    %v2644 = vsel %vm1098, %v2508, %v2562
    %v2645 = vsel %vm1098, %v2509, %v2564
    %v2646 = vsel %vm1098, %v2510, %v2566
    %v2647 = vsel %vm1529, %v2639, %v2584
    %v2648 = vsel %vm1529, %v2640, %v2586
    %v2649 = vsel %vm1529, %v2641, %v2588
    %v2650 = vsel %vm1529, %v2642, %v2590
    %v2651 = vsel %vm1529, %v2643, %v2592
    %v2652 = vsel %vm1529, %v2644, %v2594
    %v2653 = vsel %vm1529, %v2645, %v2596
    %v2654 = vsel %vm1529, %v2646, %v2598
    %v2655 = vsel %vm1538, %v2647, %v2616
    %v2656 = vsel %vm1538, %v2648, %v2618
    %v2657 = vsel %vm1538, %v2649, %v2620
    %v2658 = vsel %vm1538, %v2650, %v2622
    %v2659 = vsel %vm1538, %v2651, %v2624
    %v2660 = vsel %vm1538, %v2652, %v2626
    %v2661 = vsel %vm1538, %v2653, %v2628
    %v2662 = vsel %vm1538, %v2654, %v2630
    %v2679 = vrot.slane %v2655, 4
    %v2680 = vrot.slane %v2535, 4
    %v2681 = vrot.slane %v2656, 4
    %v2682 = vsel %vm853, %v2679, %v2681
    %v2683 = vrot.slane %v2536, 4
    %v2684 = vsel %vm853, %v2680, %v2683
    %v2685 = vrot.slane %v2657, 4
    %v2686 = vsel %vm853, %v2681, %v2685
    %v2687 = vrot.slane %v2537, 4
    %v2688 = vsel %vm853, %v2683, %v2687
    %v2689 = vrot.slane %v2658, 4
    %v2690 = vsel %vm853, %v2685, %v2689
    %v2691 = vrot.slane %v2538, 4
    %v2692 = vsel %vm853, %v2687, %v2691
    %v2693 = vrot.slane %v2659, 4
    %v2694 = vsel %vm853, %v2689, %v2693
    %v2695 = vrot.slane %v2539, 4
    %v2696 = vsel %vm853, %v2691, %v2695
    %v2697 = vrot.slane %v2660, 4
    %v2698 = vsel %vm853, %v2693, %v2697
    %v2699 = vrot.slane %v2540, 4
    %v2700 = vsel %vm853, %v2695, %v2699
    %v2701 = vrot.slane %v2661, 4
    %v2702 = vsel %vm853, %v2697, %v2701
    %v2703 = vrot.slane %v2541, 4
    %v2704 = vsel %vm853, %v2699, %v2703
    %v2705 = vrot.slane %v2662, 4
    %v2706 = vsel %vm853, %v2701, %v2705
    %v2707 = vrot.slane %v2542, 4
    %v2708 = vsel %vm853, %v2703, %v2707
    %2725 = vst [vmem:[#allocation2 + $0x70] sm:$0xf0] %v2679
    %2726 = vst.msk [vmem:[#allocation2 + $0x78] sm:$0xf0] %vm1376, %v2680
    %2727 = vst [vmem:[#allocation2 + $0x80] sm:$0xff] %v2682
    %2728 = vst.msk [vmem:[#allocation2 + $0x88] sm:$0xff] %vm1098, %v2684
    %2729 = vst [vmem:[#allocation2 + $0x90] sm:$0xff] %v2686
    %2730 = vst.msk [vmem:[#allocation2 + $0x98] sm:$0xff] %vm1098, %v2688
    %2731 = vst [vmem:[#allocation2 + $0xa0] sm:$0xff] %v2690
    %2732 = vst.msk [vmem:[#allocation2 + $0xa8] sm:$0xff] %vm1098, %v2692
    %2733 = vst [vmem:[#allocation2 + $0xb0] sm:$0xff] %v2694
    %2734 = vst.msk [vmem:[#allocation2 + $0xb8] sm:$0xff] %vm1098, %v2696
    %2735 = vst [vmem:[#allocation2 + $0xc0] sm:$0xff] %v2698
    %2736 = vst.msk [vmem:[#allocation2 + $0xc8] sm:$0xff] %vm1098, %v2700
    %2737 = vst [vmem:[#allocation2 + $0xd0] sm:$0xff] %v2702
    %2738 = vst.msk [vmem:[#allocation2 + $0xd8] sm:$0xff] %vm1098, %v2704
    %2739 = vst [vmem:[#allocation2 + $0xe0] sm:$0xff] %v2706
    %2740 = vst.msk [vmem:[#allocation2 + $0xe8] sm:$0xff] %vm1098, %v2708
    %v2741 = vld [vmem:[#allocation2] sm:$0xff]
    %v2742 = vld [vmem:[#allocation2 + $0x8] sm:$0xff]
    %v2743 = vld [vmem:[#allocation2 + $0x10] sm:$0xff]
    %v2744 = vld [vmem:[#allocation2 + $0x18] sm:$0xff]
    %v2745 = vld [vmem:[#allocation2 + $0x20] sm:$0xff]
    %v2746 = vld [vmem:[#allocation2 + $0x28] sm:$0xff]
    %v2747 = vld [vmem:[#allocation2 + $0x30] sm:$0xff]
    %v2748 = vld [vmem:[#allocation2 + $0x38] sm:$0xff]
    %v2749 = vld [vmem:[#allocation2 + $0x40] sm:$0xff]
    %v2750 = vld [vmem:[#allocation2 + $0x48] sm:$0xff]
    %v2751 = vld [vmem:[#allocation2 + $0x50] sm:$0xff]
    %v2752 = vld [vmem:[#allocation2 + $0x58] sm:$0xff]
    %v2753 = vld [vmem:[#allocation2 + $0x60] sm:$0xff]
    %v2754 = vld [vmem:[#allocation2 + $0x68] sm:$0xff]
    %v2755 = vld [vmem:[#allocation2 + $0x70] sm:$0xff]
    %v2756 = vld [vmem:[#allocation2 + $0x78] sm:$0xff]
    %v2757 = vld [vmem:[#allocation2 + $0x80] sm:$0xff]
    %v2758 = vld [vmem:[#allocation2 + $0x88] sm:$0xff]
    %v2759 = vld [vmem:[#allocation2 + $0x90] sm:$0xff]
    %v2760 = vld [vmem:[#allocation2 + $0x98] sm:$0xff]
    %v2761 = vld [vmem:[#allocation2 + $0xa0] sm:$0xff]
    %v2762 = vld [vmem:[#allocation2 + $0xa8] sm:$0xff]
    %v2763 = vld [vmem:[#allocation2 + $0xb0] sm:$0xff]
    %v2764 = vld [vmem:[#allocation2 + $0xb8] sm:$0xff]
    %v2765 = vld [vmem:[#allocation2 + $0xc0] sm:$0xff]
    %v2766 = vld [vmem:[#allocation2 + $0xc8] sm:$0xff]
    %v2767 = vld [vmem:[#allocation2 + $0xd0] sm:$0xff]
    %v2768 = vld [vmem:[#allocation2 + $0xd8] sm:$0xff]
    %v2769 = vld [vmem:[#allocation2 + $0xe0] sm:$0xff]
    %v2770 = vld [vmem:[#allocation2 + $0xe8] sm:$0xff]
    %v2771 = vld [vmem:[%s19] sm:$0xff]
    %v2772 = vld [vmem:[%s19 + $0x8] sm:$0xff]
    %v2773 = vld [vmem:[%s19 + $0x10] sm:$0xff]
    %v2774 = vld [vmem:[%s19 + $0x18] sm:$0xff]
    %v2775 = vld [vmem:[%s19 + $0x20] sm:$0xff]
    %v2776 = vld [vmem:[%s19 + $0x28] sm:$0xff]
    %v2777 = vld [vmem:[%s19 + $0x30] sm:$0xff]
    %v2778 = vld [vmem:[%s19 + $0x38] sm:$0xff]
    %v2779 = vld [vmem:[%s19 + $0x40] sm:$0xff]
    %v2780 = vld [vmem:[%s19 + $0x48] sm:$0xff]
    %v2781 = vld [vmem:[%s19 + $0x50] sm:$0xff]
    %v2782 = vld [vmem:[%s19 + $0x58] sm:$0xff]
    %v2783 = vld [vmem:[%s19 + $0x60] sm:$0xff]
    %v2784 = vld [vmem:[%s19 + $0x68] sm:$0xff]
    %v2785 = vld [vmem:[%s19 + $0x70] sm:$0xff]
    %v2786 = vld [vmem:[%s19 + $0x78] sm:$0xff]
    %v2787 = vld [vmem:[%s19 + $0x80] sm:$0xff]
    %v2788 = vld [vmem:[%s19 + $0x88] sm:$0xff]
    %v2789 = vld [vmem:[%s19 + $0x90] sm:$0xff]
    %v2790 = vld [vmem:[%s19 + $0x98] sm:$0xff]
    %v2791 = vld [vmem:[#allocation20] sm:$0x1]
    %v2793 = vlaneseq
    %v2794 = vshrl.u32 %v2793, 7
    %v2795 = vsub.s32 0, %v2794
    %v2796 = vrot.slane %v2791, %v2795
    %v2799 = vsel %vm1098, %v2742, 0
    %v2802 = vsel %vm1098, %v2744, 0
    %v2805 = vsel %vm1098, %v2746, 0
    %v2808 = vsel %vm1098, %v2748, 0
    %v2811 = vsel %vm1098, %v2750, 0
    %v2814 = vsel %vm1098, %v2752, 0
    %v2817 = vsel %vm1098, %v2754, 0
    %v2820 = vsel %vm1098, %v2756, 0
    %v2823 = vsel %vm1098, %v2758, 0
    %v2826 = vsel %vm1098, %v2760, 0
    %v2829 = vsel %vm1098, %v2762, 0
    %v2832 = vsel %vm1098, %v2764, 0
    %v2835 = vsel %vm1098, %v2766, 0
    %v2838 = vsel %vm1098, %v2768, 0
    %v2841 = vsel %vm1098, %v2770, 0
    %2843 = vmatprep.subr.mxu0 0.0
    %2844 = vmatpush1.msra.mxu0 %v2771
    %2845 = vmatprep.subr.mxu0 0.0
    %2846 = vmatpush1.msra.mxu0 %v2772
    %2847 = vmatprep.subr.mxu0 0.0
    %2848 = vmatpush1.msra.mxu0 %v2773
    %2849 = vmatprep.subr.mxu0 0.0
    %2850 = vmatpush1.msra.mxu0 %v2774
    %2851 = vmatprep.subr.mxu0 0.0
    %2852 = vmatpush1.msra.mxu0 %v2775
    %2853 = vmatprep.subr.mxu0 0.0
    %2854 = vmatpush1.msra.mxu0 %v2776
    %2855 = vmatprep.subr.mxu0 0.0
    %2856 = vmatpush1.msra.mxu0 %v2777
    %2857 = vmatprep.subr.mxu0 0.0
    %2858 = vmatpush1.msra.mxu0 %v2778
    %2859 = vmatprep.subr.mxu0 0.0
    %2860 = vmatpush1.msra.mxu0 %v2779
    %2861 = vmatprep.subr.mxu0 0.0
    %2862 = vmatpush1.msra.mxu0 %v2780
    %2863 = vmatprep.subr.mxu0 0.0
    %2864 = vmatpush1.msra.mxu0 %v2781
    %2865 = vmatprep.subr.mxu0 0.0
    %2866 = vmatpush1.msra.mxu0 %v2782
    %2867 = vmatprep.subr.mxu0 0.0
    %2868 = vmatpush1.msra.mxu0 %v2783
    %2869 = vmatprep.subr.mxu0 0.0
    %2870 = vmatpush1.msra.mxu0 %v2784
    %2871 = vmatprep.subr.mxu0 0.0
    %2872 = vmatpush1.msra.mxu0 %v2785
    %2873 = vmatprep.subr.mxu0 0.0
    %2874 = vmatpush1.msra.mxu0 %v2786
    %2875 = vmatprep.subr.mxu0 0.0
    %2876 = vmatpush1.msra.mxu0 %v2787
    %2877 = vmatprep.subr.mxu0 0.0
    %2878 = vmatpush1.msra.mxu0 %v2788
    %2879 = vmatprep.subr.mxu0 0.0
    %2880 = vmatpush1.msra.mxu0 %v2789
    %2881 = vmatprep.subr.mxu0 0.0
    %2882 = vmatpush1.msra.mxu0 %v2790
    %2883 = vmatprep.subr.mxu0 0.0
    %2884 = vmatpush1.msra.mxu0 0.0
    %2885 = vmatprep.subr.mxu0 0.0
    %2886 = vmatpush1.msra.mxu0 0.0
    %2887 = vmatprep.subr.mxu0 0.0
    %2888 = vmatpush1.msra.mxu0 0.0
    %2889 = vmatprep.subr.mxu0 0.0
    %2890 = vmatpush1.msra.mxu0 0.0
    %2891 = vmatprep.subr.mxu0 0.0
    %2892 = vmatpush1.msra.mxu0 0.0
    %2893 = vmatprep.subr.mxu0 0.0
    %2894 = vmatpush1.msra.mxu0 0.0
    %2895 = vmatprep.subr.mxu0 0.0
    %2896 = vmatpush1.msra.mxu0 0.0
    %2897 = vmatprep.subr.mxu0 0.0
    %2898 = vmatpush1.msra.mxu0 0.0
    %2899 = vmatprep.subr.mxu0 0.0
    %2900 = vmatpush1.msra.mxu0 0.0
    %2901 = vmatprep.subr.mxu0 0.0
    %2902 = vmatpush1.msra.mxu0 0.0
    %2903 = vmatprep.subr.mxu0 0.0
    %2904 = vmatpush1.msra.mxu0 0.0
    %2905 = vmatprep.subr.mxu0 0.0
    %2906 = vmatpush1.msra.mxu0 0.0
    %2907 = vmatprep.mubr.f32.mxu0 %v2799
    %2908 = vmatmul.mubr.f32.gmra.mrb[0].mxu0 %v2741
    %v2909 = vpop.f32.mrb[0].mxu0
    %v2910 = vadd.f32 %v2796, %v2909
    %v2911 = vpop.f32.mrb[0].mxu0
    %2912 = vmatprep.mubr.f32.mxu0 %v2802
    %2913 = vmatmul.mubr.f32.gmra.mrb[0].mxu0 %v2743
    %v2914 = vpop.f32.mrb[0].mxu0
    %v2915 = vadd.f32 %v2796, %v2914
    %v2916 = vpop.f32.mrb[0].mxu0
    %2917 = vmatprep.mubr.f32.mxu0 %v2805
    %2918 = vmatmul.mubr.f32.gmra.mrb[0].mxu0 %v2745
    %v2919 = vpop.f32.mrb[0].mxu0
    %v2920 = vadd.f32 %v2796, %v2919
    %v2921 = vpop.f32.mrb[0].mxu0
    %2922 = vmatprep.mubr.f32.mxu0 %v2808
    %2923 = vmatmul.mubr.f32.gmra.mrb[0].mxu0 %v2747
    %v2924 = vpop.f32.mrb[0].mxu0
    %v2925 = vadd.f32 %v2796, %v2924
    %v2926 = vpop.f32.mrb[0].mxu0
    %2927 = vmatprep.mubr.f32.mxu0 %v2811
    %2928 = vmatmul.mubr.f32.gmra.mrb[0].mxu0 %v2749
    %v2929 = vpop.f32.mrb[0].mxu0
    %v2930 = vadd.f32 %v2796, %v2929
    %v2931 = vpop.f32.mrb[0].mxu0
    %2932 = vmatprep.mubr.f32.mxu0 %v2814
    %2933 = vmatmul.mubr.f32.gmra.mrb[0].mxu0 %v2751
    %v2934 = vpop.f32.mrb[0].mxu0
    %v2935 = vadd.f32 %v2796, %v2934
    %v2936 = vpop.f32.mrb[0].mxu0
    %2937 = vmatprep.mubr.f32.mxu0 %v2817
    %2938 = vmatmul.mubr.f32.gmra.mrb[0].mxu0 %v2753
    %v2939 = vpop.f32.mrb[0].mxu0
    %v2940 = vadd.f32 %v2796, %v2939
    %v2941 = vpop.f32.mrb[0].mxu0
    %2942 = vmatprep.mubr.f32.mxu0 %v2820
    %2943 = vmatmul.mubr.f32.gmra.mrb[0].mxu0 %v2755
    %v2944 = vpop.f32.mrb[0].mxu0
    %v2945 = vadd.f32 %v2796, %v2944
    %v2946 = vpop.f32.mrb[0].mxu0
    %2947 = vmatprep.mubr.f32.mxu0 %v2823
    %2948 = vmatmul.mubr.f32.gmra.mrb[0].mxu0 %v2757
    %v2949 = vpop.f32.mrb[0].mxu0
    %v2950 = vadd.f32 %v2796, %v2949
    %v2951 = vpop.f32.mrb[0].mxu0
    %2952 = vmatprep.mubr.f32.mxu0 %v2826
    %2953 = vmatmul.mubr.f32.gmra.mrb[0].mxu0 %v2759
    %v2954 = vpop.f32.mrb[0].mxu0
    %v2955 = vadd.f32 %v2796, %v2954
    %v2956 = vpop.f32.mrb[0].mxu0
    %2957 = vmatprep.mubr.f32.mxu0 %v2829
    %2958 = vmatmul.mubr.f32.gmra.mrb[0].mxu0 %v2761
    %v2959 = vpop.f32.mrb[0].mxu0
    %v2960 = vadd.f32 %v2796, %v2959
    %v2961 = vpop.f32.mrb[0].mxu0
    %2962 = vmatprep.mubr.f32.mxu0 %v2832
    %2963 = vmatmul.mubr.f32.gmra.mrb[0].mxu0 %v2763
    %v2964 = vpop.f32.mrb[0].mxu0
    %v2965 = vadd.f32 %v2796, %v2964
    %v2966 = vpop.f32.mrb[0].mxu0
    %2967 = vmatprep.mubr.f32.mxu0 %v2835
    %2968 = vmatmul.mubr.f32.gmra.mrb[0].mxu0 %v2765
    %v2969 = vpop.f32.mrb[0].mxu0
    %v2970 = vadd.f32 %v2796, %v2969
    %v2971 = vpop.f32.mrb[0].mxu0
    %2972 = vmatprep.mubr.f32.mxu0 %v2838
    %2973 = vmatmul.mubr.f32.gmra.mrb[0].mxu0 %v2767
    %v2974 = vpop.f32.mrb[0].mxu0
    %v2975 = vadd.f32 %v2796, %v2974
    %v2976 = vpop.f32.mrb[0].mxu0
    %2977 = vmatprep.mubr.f32.mxu0 %v2841
    %2978 = vmatmul.mubr.f32.gmra.mrb[0].mxu0 %v2769
    %v2979 = vpop.f32.mrb[0].mxu0
    %v2980 = vadd.f32 %v2796, %v2979
    %v2981 = vpop.f32.mrb[0].mxu0
    %2982 = vdwg.mxu0
    %v2983 = vadd.f32 %v1025, %v2910
    %v2984 = vadd.f32 %v1030, %v2915
    %v2985 = vadd.f32 %v1035, %v2920
    %v2986 = vadd.f32 %v1040, %v2925
    %v2987 = vadd.f32 %v1045, %v2930
    %v2988 = vadd.f32 %v1050, %v2935
    %v2989 = vadd.f32 %v1055, %v2940
    %v2990 = vadd.f32 %v1060, %v2945
    %v2991 = vadd.f32 %v1065, %v2950
    %v2992 = vadd.f32 %v1070, %v2955
    %v2993 = vadd.f32 %v1075, %v2960
    %v2994 = vadd.f32 %v1080, %v2965
    %v2995 = vadd.f32 %v1085, %v2970
    %v2996 = vadd.f32 %v1090, %v2975
    %v2997 = vadd.f32 %v1095, %v2980
    %v2998 = vsel %vm1098, %v2983, 0.0
    %v2999 = vsel %vm1098, %v2984, 0.0
    %v3000 = vadd.f32 %v2998, %v2999
    %v3001 = vsel %vm1098, %v2985, 0.0
    %v3002 = vadd.f32 %v3000, %v3001
    %v3003 = vsel %vm1098, %v2986, 0.0
    %v3004 = vadd.f32 %v3002, %v3003
    %v3005 = vsel %vm1098, %v2987, 0.0
    %v3006 = vadd.f32 %v3004, %v3005
    %v3007 = vsel %vm1098, %v2988, 0.0
    %v3008 = vadd.f32 %v3006, %v3007
    %v3009 = vsel %vm1098, %v2989, 0.0
    %v3010 = vadd.f32 %v3008, %v3009
    %v3011 = vsel %vm1098, %v2990, 0.0
    %v3012 = vadd.f32 %v3010, %v3011
    %v3013 = vsel %vm1098, %v2991, 0.0
    %v3014 = vadd.f32 %v3012, %v3013
    %v3015 = vsel %vm1098, %v2992, 0.0
    %v3016 = vadd.f32 %v3014, %v3015
    %v3017 = vsel %vm1098, %v2993, 0.0
    %v3018 = vadd.f32 %v3016, %v3017
    %v3019 = vsel %vm1098, %v2994, 0.0
    %v3020 = vadd.f32 %v3018, %v3019
    %v3021 = vsel %vm1098, %v2995, 0.0
    %v3022 = vadd.f32 %v3020, %v3021
    %v3023 = vsel %vm1098, %v2996, 0.0
    %v3024 = vadd.f32 %v3022, %v3023
    %v3025 = vsel %vm1098, %v2997, 0.0
    %v3026 = vadd.f32 %v3024, %v3025
    %v3027 = vrot.slane %v3026, 4
    %v3028 = vadd.f32 %v3026, %v3027
    %v3029 = vrot.slane %v3028, 2
    %v3030 = vadd.f32 %v3028, %v3029
    %v3031 = vrot.slane %v3030, 1
    %v3032 = vadd.f32 %v3030, %v3031
    %v3033 = vmul.f32 %v3032, %v1134
    %v3034 = vsub.f32 %v2983, %v3033
    %v3035 = vsub.f32 %v2984, %v3033
    %v3036 = vsub.f32 %v2985, %v3033
    %v3037 = vsub.f32 %v2986, %v3033
    %v3038 = vsub.f32 %v2987, %v3033
    %v3039 = vsub.f32 %v2988, %v3033
    %v3040 = vsub.f32 %v2989, %v3033
    %v3041 = vsub.f32 %v2990, %v3033
    %v3042 = vsub.f32 %v2991, %v3033
    %v3043 = vsub.f32 %v2992, %v3033
    %v3044 = vsub.f32 %v2993, %v3033
    %v3045 = vsub.f32 %v2994, %v3033
    %v3046 = vsub.f32 %v2995, %v3033
    %v3047 = vsub.f32 %v2996, %v3033
    %v3048 = vsub.f32 %v2997, %v3033
    %v3049 = vmul.f32 %v3034, %v3034
    %v3050 = vmul.f32 %v3035, %v3035
    %v3051 = vmul.f32 %v3036, %v3036
    %v3052 = vmul.f32 %v3037, %v3037
    %v3053 = vmul.f32 %v3038, %v3038
    %v3054 = vmul.f32 %v3039, %v3039
    %v3055 = vmul.f32 %v3040, %v3040
    %v3056 = vmul.f32 %v3041, %v3041
    %v3057 = vmul.f32 %v3042, %v3042
    %v3058 = vmul.f32 %v3043, %v3043
    %v3059 = vmul.f32 %v3044, %v3044
    %v3060 = vmul.f32 %v3045, %v3045
    %v3061 = vmul.f32 %v3046, %v3046
    %v3062 = vmul.f32 %v3047, %v3047
    %v3063 = vmul.f32 %v3048, %v3048
    %v3064 = vsel %vm1098, %v3049, 0.0
    %v3065 = vsel %vm1098, %v3050, 0.0
    %v3066 = vadd.f32 %v3064, %v3065
    %v3067 = vsel %vm1098, %v3051, 0.0
    %v3068 = vadd.f32 %v3066, %v3067
    %v3069 = vsel %vm1098, %v3052, 0.0
    %v3070 = vadd.f32 %v3068, %v3069
    %v3071 = vsel %vm1098, %v3053, 0.0
    %v3072 = vadd.f32 %v3070, %v3071
    %v3073 = vsel %vm1098, %v3054, 0.0
    %v3074 = vadd.f32 %v3072, %v3073
    %v3075 = vsel %vm1098, %v3055, 0.0
    %v3076 = vadd.f32 %v3074, %v3075
    %v3077 = vsel %vm1098, %v3056, 0.0
    %v3078 = vadd.f32 %v3076, %v3077
    %v3079 = vsel %vm1098, %v3057, 0.0
    %v3080 = vadd.f32 %v3078, %v3079
    %v3081 = vsel %vm1098, %v3058, 0.0
    %v3082 = vadd.f32 %v3080, %v3081
    %v3083 = vsel %vm1098, %v3059, 0.0
    %v3084 = vadd.f32 %v3082, %v3083
    %v3085 = vsel %vm1098, %v3060, 0.0
    %v3086 = vadd.f32 %v3084, %v3085
    %v3087 = vsel %vm1098, %v3061, 0.0
    %v3088 = vadd.f32 %v3086, %v3087
    %v3089 = vsel %vm1098, %v3062, 0.0
    %v3090 = vadd.f32 %v3088, %v3089
    %v3091 = vsel %vm1098, %v3063, 0.0
    %v3092 = vadd.f32 %v3090, %v3091
    %v3093 = vrot.slane %v3092, 4
    %v3094 = vadd.f32 %v3092, %v3093
    %v3095 = vrot.slane %v3094, 2
    %v3096 = vadd.f32 %v3094, %v3095
    %v3097 = vrot.slane %v3096, 1
    %v3098 = vadd.f32 %v3096, %v3097
    %v3099 = vmul.f32 %v3098, %v1134
    %v3100 = vadd.f32 %v3099, 1e-05
    %v3101 = vrsqrt.pop %v3100
    %v3102 = vmul.f32 %v3034, %v3101
    %v3103 = vmul.f32 %v3035, %v3101
    %v3104 = vmul.f32 %v3036, %v3101
    %v3105 = vmul.f32 %v3037, %v3101
    %v3106 = vmul.f32 %v3038, %v3101
    %v3107 = vmul.f32 %v3039, %v3101
    %v3108 = vmul.f32 %v3040, %v3101
    %v3109 = vmul.f32 %v3041, %v3101
    %v3110 = vmul.f32 %v3042, %v3101
    %v3111 = vmul.f32 %v3043, %v3101
    %v3112 = vmul.f32 %v3044, %v3101
    %v3113 = vmul.f32 %v3045, %v3101
    %v3114 = vmul.f32 %v3046, %v3101
    %v3115 = vmul.f32 %v3047, %v3101
    %v3116 = vmul.f32 %v3048, %v3101
    %v3117 = vld [vmem:[#allocation21] sm:$0x1]
    %v3119 = vlaneseq
    %v3120 = vshrl.u32 %v3119, 7
    %v3121 = vsub.s32 0, %v3120
    %v3122 = vrot.slane %v3117, %v3121
    %v3124 = vmul.f32 %v3102, %v3122
    %v3125 = vmul.f32 %v3103, %v3122
    %v3126 = vmul.f32 %v3104, %v3122
    %v3127 = vmul.f32 %v3105, %v3122
    %v3128 = vmul.f32 %v3106, %v3122
    %v3129 = vmul.f32 %v3107, %v3122
    %v3130 = vmul.f32 %v3108, %v3122
    %v3131 = vmul.f32 %v3109, %v3122
    %v3132 = vmul.f32 %v3110, %v3122
    %v3133 = vmul.f32 %v3111, %v3122
    %v3134 = vmul.f32 %v3112, %v3122
    %v3135 = vmul.f32 %v3113, %v3122
    %v3136 = vmul.f32 %v3114, %v3122
    %v3137 = vmul.f32 %v3115, %v3122
    %v3138 = vmul.f32 %v3116, %v3122
    %v3139 = vld [vmem:[#allocation23] sm:$0x1]
    %v3141 = vlaneseq
    %v3142 = vshrl.u32 %v3141, 7
    %v3143 = vsub.s32 0, %v3142
    %v3144 = vrot.slane %v3139, %v3143
    %v3146 = vadd.f32 %v3124, %v3144
    %v3147 = vadd.f32 %v3125, %v3144
    %v3148 = vadd.f32 %v3126, %v3144
    %v3149 = vadd.f32 %v3127, %v3144
    %v3150 = vadd.f32 %v3128, %v3144
    %v3151 = vadd.f32 %v3129, %v3144
    %v3152 = vadd.f32 %v3130, %v3144
    %v3153 = vadd.f32 %v3131, %v3144
    %v3154 = vadd.f32 %v3132, %v3144
    %v3155 = vadd.f32 %v3133, %v3144
    %v3156 = vadd.f32 %v3134, %v3144
    %v3157 = vadd.f32 %v3135, %v3144
    %v3158 = vadd.f32 %v3136, %v3144
    %v3159 = vadd.f32 %v3137, %v3144
    %v3160 = vadd.f32 %v3138, %v3144
    %v3161 = vxor.u32 %v3146, 2147483648
    %v3162 = vxor.u32 %v3147, 2147483648
    %v3163 = vxor.u32 %v3148, 2147483648
    %v3164 = vxor.u32 %v3149, 2147483648
    %v3165 = vxor.u32 %v3150, 2147483648
    %v3166 = vxor.u32 %v3151, 2147483648
    %v3167 = vxor.u32 %v3152, 2147483648
    %v3168 = vxor.u32 %v3153, 2147483648
    %v3169 = vxor.u32 %v3154, 2147483648
    %v3170 = vxor.u32 %v3155, 2147483648
    %v3171 = vxor.u32 %v3156, 2147483648
    %v3172 = vxor.u32 %v3157, 2147483648
    %v3173 = vxor.u32 %v3158, 2147483648
    %v3174 = vxor.u32 %v3159, 2147483648
    %v3175 = vxor.u32 %v3160, 2147483648
    %v3176 = vmul.f32 %v3161, 1.442695
    %v3177 = vpow.pop %v3176
    %v3178 = vmul.f32 %v3162, 1.442695
    %v3179 = vpow.pop %v3178
    %v3180 = vmul.f32 %v3163, 1.442695
    %v3181 = vpow.pop %v3180
    %v3182 = vmul.f32 %v3164, 1.442695
    %v3183 = vpow.pop %v3182
    %v3184 = vmul.f32 %v3165, 1.442695
    %v3185 = vpow.pop %v3184
    %v3186 = vmul.f32 %v3166, 1.442695
    %v3187 = vpow.pop %v3186
    %v3188 = vmul.f32 %v3167, 1.442695
    %v3189 = vpow.pop %v3188
    %v3190 = vmul.f32 %v3168, 1.442695
    %v3191 = vpow.pop %v3190
    %v3192 = vmul.f32 %v3169, 1.442695
    %v3193 = vpow.pop %v3192
    %v3194 = vmul.f32 %v3170, 1.442695
    %v3195 = vpow.pop %v3194
    %v3196 = vmul.f32 %v3171, 1.442695
    %v3197 = vpow.pop %v3196
    %v3198 = vmul.f32 %v3172, 1.442695
    %v3199 = vpow.pop %v3198
    %v3200 = vmul.f32 %v3173, 1.442695
    %v3201 = vpow.pop %v3200
    %v3202 = vmul.f32 %v3174, 1.442695
    %v3203 = vpow.pop %v3202
    %v3204 = vmul.f32 %v3175, 1.442695
    %v3205 = vpow.pop %v3204
    %v3206 = vadd.f32 %v3177, 1.0
    %v3207 = vadd.f32 %v3179, 1.0
    %v3208 = vadd.f32 %v3181, 1.0
    %v3209 = vadd.f32 %v3183, 1.0
    %v3210 = vadd.f32 %v3185, 1.0
    %v3211 = vadd.f32 %v3187, 1.0
    %v3212 = vadd.f32 %v3189, 1.0
    %v3213 = vadd.f32 %v3191, 1.0
    %v3214 = vadd.f32 %v3193, 1.0
    %v3215 = vadd.f32 %v3195, 1.0
    %v3216 = vadd.f32 %v3197, 1.0
    %v3217 = vadd.f32 %v3199, 1.0
    %v3218 = vadd.f32 %v3201, 1.0
    %v3219 = vadd.f32 %v3203, 1.0
    %v3220 = vadd.f32 %v3205, 1.0
    %v3221 = vrcp.pop %v3206
    %v3222 = vmul.f32 1.0, %v3221
    %v3223 = vrcp.pop %v3207
    %v3224 = vmul.f32 1.0, %v3223
    %v3225 = vrcp.pop %v3208
    %v3226 = vmul.f32 1.0, %v3225
    %v3227 = vrcp.pop %v3209
    %v3228 = vmul.f32 1.0, %v3227
    %v3229 = vrcp.pop %v3210
    %v3230 = vmul.f32 1.0, %v3229
    %v3231 = vrcp.pop %v3211
    %v3232 = vmul.f32 1.0, %v3231
    %v3233 = vrcp.pop %v3212
    %v3234 = vmul.f32 1.0, %v3233
    %v3235 = vrcp.pop %v3213
    %v3236 = vmul.f32 1.0, %v3235
    %v3237 = vrcp.pop %v3214
    %v3238 = vmul.f32 1.0, %v3237
    %v3239 = vrcp.pop %v3215
    %v3240 = vmul.f32 1.0, %v3239
    %v3241 = vrcp.pop %v3216
    %v3242 = vmul.f32 1.0, %v3241
    %v3243 = vrcp.pop %v3217
    %v3244 = vmul.f32 1.0, %v3243
    %v3245 = vrcp.pop %v3218
    %v3246 = vmul.f32 1.0, %v3245
    %v3247 = vrcp.pop %v3219
    %v3248 = vmul.f32 1.0, %v3247
    %v3249 = vrcp.pop %v3220
    %v3250 = vmul.f32 1.0, %v3249
    %v3251 = vmul.f32 %v3146, %v3222
    %v3252 = vmul.f32 %v3147, %v3224
    %v3253 = vmul.f32 %v3148, %v3226
    %v3254 = vmul.f32 %v3149, %v3228
    %v3255 = vmul.f32 %v3150, %v3230
    %v3256 = vmul.f32 %v3151, %v3232
    %v3257 = vmul.f32 %v3152, %v3234
    %v3258 = vmul.f32 %v3153, %v3236
    %v3259 = vmul.f32 %v3154, %v3238
    %v3260 = vmul.f32 %v3155, %v3240
    %v3261 = vmul.f32 %v3156, %v3242
    %v3262 = vmul.f32 %v3157, %v3244
    %v3263 = vmul.f32 %v3158, %v3246
    %v3264 = vmul.f32 %v3159, %v3248
    %v3265 = vmul.f32 %v3160, %v3250
    %3266 = vst.msk [vmem:[#allocation3 + $0x4] sm:$0xff] %vm1098, %v3251
    %3267 = vst.msk [vmem:[#allocation3 + $0xc] sm:$0xff] %vm1098, %v3252
    %3268 = vst.msk [vmem:[#allocation3 + $0x14] sm:$0xff] %vm1098, %v3253
    %3269 = vst.msk [vmem:[#allocation3 + $0x1c] sm:$0xff] %vm1098, %v3254
    %3270 = vst.msk [vmem:[#allocation3 + $0x24] sm:$0xff] %vm1098, %v3255
    %3271 = vst.msk [vmem:[#allocation3 + $0x2c] sm:$0xff] %vm1098, %v3256
    %3272 = vst.msk [vmem:[#allocation3 + $0x34] sm:$0xff] %vm1098, %v3257
    %3273 = vst.msk [vmem:[#allocation3 + $0x3c] sm:$0xf] %vm428, %v3258
    %3274 = vst.msk [vmem:[#allocation3 + $0x40] sm:$0xf0] %vm1376, %v3258
    %3275 = vst.msk [vmem:[#allocation3 + $0x48] sm:$0xff] %vm1098, %v3259
    %3276 = vst.msk [vmem:[#allocation3 + $0x50] sm:$0xff] %vm1098, %v3260
    %3277 = vst.msk [vmem:[#allocation3 + $0x58] sm:$0xff] %vm1098, %v3261
    %3278 = vst.msk [vmem:[#allocation3 + $0x60] sm:$0xff] %vm1098, %v3262
    %3279 = vst.msk [vmem:[#allocation3 + $0x68] sm:$0xff] %vm1098, %v3263
    %3280 = vst.msk [vmem:[#allocation3 + $0x70] sm:$0xff] %vm1098, %v3264
    %3281 = vst.msk [vmem:[#allocation3 + $0x78] sm:$0xff] %vm1098, %v3265
    %v3282 = vld [vmem:[#allocation3] ss:$2 sm:$0xff]
    %s3283 = scalar_lea.vmem [#allocation3], 16
    %v3284 = vld [vmem:[%s3283] ss:$2 sm:$0xff]
    %s3285 = scalar_lea.vmem [#allocation3], 32
    %v3286 = vld [vmem:[%s3285] ss:$2 sm:$0xff]
    %s3287 = scalar_lea.vmem [#allocation3], 48
    %v3288 = vld [vmem:[%s3287] ss:$2 sm:$0xff]
    %s3289 = scalar_lea.vmem [#allocation3], 64
    %v3290 = vld [vmem:[%s3289] ss:$2 sm:$0xff]
    %s3291 = scalar_lea.vmem [#allocation3], 80
    %v3292 = vld [vmem:[%s3291] ss:$2 sm:$0xff]
    %s3293 = scalar_lea.vmem [#allocation3], 96
    %v3294 = vld [vmem:[%s3293] ss:$2 sm:$0xff]
    %s3295 = scalar_lea.vmem [#allocation3], 112
    %v3296 = vld [vmem:[%s3295] ss:$2 sm:$0xff]
    %s3297 = scalar_lea.vmem [#allocation3], 1
    %v3298 = vld [vmem:[%s3297] ss:$2 sm:$0xff]
    %s3299 = scalar_lea.vmem [#allocation3], 17
    %v3300 = vld [vmem:[%s3299] ss:$2 sm:$0xff]
    %s3301 = scalar_lea.vmem [#allocation3], 33
    %v3302 = vld [vmem:[%s3301] ss:$2 sm:$0xff]
    %s3303 = scalar_lea.vmem [#allocation3], 49
    %v3304 = vld [vmem:[%s3303] ss:$2 sm:$0xff]
    %s3305 = scalar_lea.vmem [#allocation3], 65
    %v3306 = vld [vmem:[%s3305] ss:$2 sm:$0xff]
    %s3307 = scalar_lea.vmem [#allocation3], 81
    %v3308 = vld [vmem:[%s3307] ss:$2 sm:$0xff]
    %s3309 = scalar_lea.vmem [#allocation3], 97
    %v3310 = vld [vmem:[%s3309] ss:$2 sm:$0xff]
    %s3311 = scalar_lea.vmem [#allocation3], 113
    %v3312 = vld [vmem:[%s3311] ss:$2 sm:$0xff]
    %v3313 = vmax.f32 %v3282, %v3298
    %v3314 = vmax.f32 %v3284, %v3300
    %v3315 = vmax.f32 %v3286, %v3302
    %v3316 = vmax.f32 %v3288, %v3304
    %v3317 = vmax.f32 %v3290, %v3306
    %v3318 = vmax.f32 %v3292, %v3308
    %v3319 = vmax.f32 %v3294, %v3310
    %v3320 = vmax.f32 %v3296, %v3312
    %vm3321 = vcmask 125952
    %3322 = vst.msk [vmem:[#allocation5] sm:$0xf] %vm3321, 0.0
    %3323 = vst.msk [vmem:[#allocation5 + $0x20] sm:$0xf] %vm3321, 0.0
    %vm3328 = vcmask 1046528
    %v3329 = vrot.slane %v3313, 1
    %v3330 = vrot.slane %v3314, 1
    %v3331 = vsel %vm3328, %v3329, %v3330
    %v3332 = vrot.slane %v3315, 1
    %v3333 = vsel %vm3328, %v3330, %v3332
    %v3334 = vrot.slane %v3316, 1
    %v3335 = vsel %vm3328, %v3332, %v3334
    %3336 = vrot.lane.b32.xlu0 %v3331, 32
    %v3337 = vpop.permute.xlu0 %3336
    %3338 = vrot.lane.b32.xlu0 %v3333, 32
    %v3339 = vpop.permute.xlu0 %3338
    %3340 = vrot.lane.b32.xlu0 %v3335, 32
    %v3341 = vpop.permute.xlu0 %3340
    %3342 = vrot.lane.b32.xlu0 %v3334, 32
    %v3343 = vpop.permute.xlu0 %3342
    %vm3348 = vcmask 1045504
    %v3349 = vrot.slane %v3313, 2
    %v3350 = vrot.slane %v3314, 2
    %v3351 = vsel %vm3348, %v3349, %v3350
    %v3352 = vrot.slane %v3315, 2
    %v3353 = vsel %vm3348, %v3350, %v3352
    %v3354 = vrot.slane %v3316, 2
    %v3355 = vsel %vm3348, %v3352, %v3354
    %3356 = vrot.lane.b32.xlu0 %v3351, 64
    %v3357 = vpop.permute.xlu0 %3356
    %3358 = vrot.lane.b32.xlu0 %v3353, 64
    %v3359 = vpop.permute.xlu0 %3358
    %3360 = vrot.lane.b32.xlu0 %v3355, 64
    %v3361 = vpop.permute.xlu0 %3360
    %3362 = vrot.lane.b32.xlu0 %v3354, 64
    %v3363 = vpop.permute.xlu0 %3362
    %v3368 = vrot.slane %v3313, 3
    %v3369 = vrot.slane %v3314, 3
    %v3370 = vsel %vm954, %v3368, %v3369
    %v3371 = vrot.slane %v3315, 3
    %v3372 = vsel %vm954, %v3369, %v3371
    %v3373 = vrot.slane %v3316, 3
    %v3374 = vsel %vm954, %v3371, %v3373
    %3375 = vrot.lane.b32.xlu0 %v3370, 96
    %v3376 = vpop.permute.xlu0 %3375
    %3377 = vrot.lane.b32.xlu0 %v3372, 96
    %v3378 = vpop.permute.xlu0 %3377
    %3379 = vrot.lane.b32.xlu0 %v3374, 96
    %v3380 = vpop.permute.xlu0 %3379
    %3381 = vrot.lane.b32.xlu0 %v3373, 96
    %v3382 = vpop.permute.xlu0 %3381
    %v3387 = vrot.slane %v3313, 4
    %v3388 = vrot.slane %v3314, 4
    %v3389 = vsel %vm853, %v3387, %v3388
    %v3390 = vrot.slane %v3315, 4
    %v3391 = vsel %vm853, %v3388, %v3390
    %v3392 = vrot.slane %v3316, 4
    %v3393 = vsel %vm853, %v3390, %v3392
    %v3398 = vsel %vm1098, %v3313, %v3337
    %v3399 = vsel %vm1098, %v3314, %v3339
    %v3400 = vsel %vm1098, %v3315, %v3341
    %v3401 = vsel %vm1098, %v3316, %v3343
    %v3402 = vsel %vm1529, %v3398, %v3357
    %v3403 = vsel %vm1529, %v3399, %v3359
    %v3404 = vsel %vm1529, %v3400, %v3361
    %v3405 = vsel %vm1529, %v3401, %v3363
    %v3406 = vsel %vm1538, %v3402, %v3376
    %v3407 = vsel %vm1538, %v3403, %v3378
    %v3408 = vsel %vm1538, %v3404, %v3380
    %v3409 = vsel %vm1538, %v3405, %v3382
    %3410 = vst [vmem:[#allocation4] sm:$0xff] %v3406
    %3411 = vst.msk [vmem:[#allocation4 + $0x8] sm:$0xff] %vm1098, %v3389
    %3412 = vst [vmem:[#allocation4 + $0x10] sm:$0xff] %v3407
    %3413 = vst.msk [vmem:[#allocation4 + $0x18] sm:$0xff] %vm1098, %v3391
    %3414 = vst [vmem:[#allocation4 + $0x20] sm:$0xff] %v3408
    %3415 = vst.msk [vmem:[#allocation4 + $0x28] sm:$0xff] %vm1098, %v3393
    %3416 = vst [vmem:[#allocation4 + $0x30] sm:$0xf] %v3409
    %3417 = vst.msk [vmem:[#allocation4 + $0x38] sm:$0xf] %vm428, %v3392
    %v3422 = vrot.slane %v3317, 1
    %v3423 = vrot.slane %v3318, 1
    %v3424 = vsel %vm3328, %v3422, %v3423
    %v3425 = vrot.slane %v3319, 1
    %v3426 = vsel %vm3328, %v3423, %v3425
    %v3427 = vrot.slane %v3320, 1
    %v3428 = vsel %vm3328, %v3425, %v3427
    %3429 = vrot.lane.b32.xlu0 %v3424, 32
    %v3430 = vpop.permute.xlu0 %3429
    %3431 = vrot.lane.b32.xlu0 %v3426, 32
    %v3432 = vpop.permute.xlu0 %3431
    %3433 = vrot.lane.b32.xlu0 %v3428, 32
    %v3434 = vpop.permute.xlu0 %3433
    %3435 = vrot.lane.b32.xlu0 %v3427, 32
    %v3436 = vpop.permute.xlu0 %3435
    %v3441 = vrot.slane %v3317, 2
    %v3442 = vrot.slane %v3318, 2
    %v3443 = vsel %vm3348, %v3441, %v3442
    %v3444 = vrot.slane %v3319, 2
    %v3445 = vsel %vm3348, %v3442, %v3444
    %v3446 = vrot.slane %v3320, 2
    %v3447 = vsel %vm3348, %v3444, %v3446
    %3448 = vrot.lane.b32.xlu0 %v3443, 64
    %v3449 = vpop.permute.xlu0 %3448
    %3450 = vrot.lane.b32.xlu0 %v3445, 64
    %v3451 = vpop.permute.xlu0 %3450
    %3452 = vrot.lane.b32.xlu0 %v3447, 64
    %v3453 = vpop.permute.xlu0 %3452
    %3454 = vrot.lane.b32.xlu0 %v3446, 64
    %v3455 = vpop.permute.xlu0 %3454
    %v3460 = vrot.slane %v3317, 3
    %v3461 = vrot.slane %v3318, 3
    %v3462 = vsel %vm954, %v3460, %v3461
    %v3463 = vrot.slane %v3319, 3
    %v3464 = vsel %vm954, %v3461, %v3463
    %v3465 = vrot.slane %v3320, 3
    %v3466 = vsel %vm954, %v3463, %v3465
    %3467 = vrot.lane.b32.xlu0 %v3462, 96
    %v3468 = vpop.permute.xlu0 %3467
    %3469 = vrot.lane.b32.xlu0 %v3464, 96
    %v3470 = vpop.permute.xlu0 %3469
    %3471 = vrot.lane.b32.xlu0 %v3466, 96
    %v3472 = vpop.permute.xlu0 %3471
    %3473 = vrot.lane.b32.xlu0 %v3465, 96
    %v3474 = vpop.permute.xlu0 %3473
    %v3479 = vrot.slane %v3317, 4
    %v3480 = vrot.slane %v3318, 4
    %v3481 = vsel %vm853, %v3479, %v3480
    %v3482 = vrot.slane %v3319, 4
    %v3483 = vsel %vm853, %v3480, %v3482
    %v3484 = vrot.slane %v3320, 4
    %v3485 = vsel %vm853, %v3482, %v3484
    %v3486 = vsel %vm1098, %v3317, %v3430
    %v3487 = vsel %vm1098, %v3318, %v3432
    %v3488 = vsel %vm1098, %v3319, %v3434
    %v3489 = vsel %vm1098, %v3320, %v3436
    %v3490 = vsel %vm1529, %v3486, %v3449
    %v3491 = vsel %vm1529, %v3487, %v3451
    %v3492 = vsel %vm1529, %v3488, %v3453
    %v3493 = vsel %vm1529, %v3489, %v3455
    %v3494 = vsel %vm1538, %v3490, %v3468
    %v3495 = vsel %vm1538, %v3491, %v3470
    %v3496 = vsel %vm1538, %v3492, %v3472
    %v3497 = vsel %vm1538, %v3493, %v3474
    %v3502 = vrot.slane %v3494, 4
    %v3503 = vrot.slane %v3481, 4
    %v3504 = vrot.slane %v3495, 4
    %v3505 = vsel %vm853, %v3502, %v3504
    %v3506 = vrot.slane %v3483, 4
    %v3507 = vsel %vm853, %v3503, %v3506
    %v3508 = vrot.slane %v3496, 4
    %v3509 = vsel %vm853, %v3504, %v3508
    %v3510 = vrot.slane %v3485, 4
    %v3511 = vsel %vm853, %v3506, %v3510
    %v3512 = vrot.slane %v3497, 4
    %v3513 = vsel %vm853, %v3508, %v3512
    %v3514 = vrot.slane %v3484, 4
    %v3515 = vsel %vm853, %v3510, %v3514
    %3524 = vst [vmem:[#allocation4 + $0x30] sm:$0xf0] %v3502
    %3525 = vst.msk [vmem:[#allocation4 + $0x38] sm:$0xf0] %vm1376, %v3503
    %3526 = vst [vmem:[#allocation4 + $0x40] sm:$0xff] %v3505
    %3527 = vst.msk [vmem:[#allocation4 + $0x48] sm:$0xff] %vm1098, %v3507
    %3528 = vst [vmem:[#allocation4 + $0x50] sm:$0xff] %v3509
    %3529 = vst.msk [vmem:[#allocation4 + $0x58] sm:$0xff] %vm1098, %v3511
    %3530 = vst [vmem:[#allocation4 + $0x60] sm:$0xff] %v3513
    %3531 = vst.msk [vmem:[#allocation4 + $0x68] sm:$0xff] %vm1098, %v3515
    %v3532 = vld [vmem:[#allocation4] sm:$0xff]
    %v3533 = vld [vmem:[#allocation4 + $0x8] sm:$0xff]
    %v3534 = vld [vmem:[#allocation4 + $0x10] sm:$0xff]
    %v3535 = vld [vmem:[#allocation4 + $0x18] sm:$0xff]
    %v3536 = vld [vmem:[#allocation4 + $0x20] sm:$0xff]
    %v3537 = vld [vmem:[#allocation4 + $0x28] sm:$0xff]
    %v3538 = vld [vmem:[#allocation4 + $0x30] sm:$0xff]
    %v3539 = vld [vmem:[#allocation4 + $0x38] sm:$0xff]
    %v3540 = vld [vmem:[#allocation4 + $0x40] sm:$0xff]
    %v3541 = vld [vmem:[#allocation4 + $0x48] sm:$0xff]
    %v3542 = vld [vmem:[#allocation4 + $0x50] sm:$0xff]
    %v3543 = vld [vmem:[#allocation4 + $0x58] sm:$0xff]
    %v3544 = vld [vmem:[#allocation4 + $0x60] sm:$0xff]
    %v3545 = vld [vmem:[#allocation4 + $0x68] sm:$0xff]
    %v3546 = vld [vmem:[%s27] sm:$0xff]
    %v3547 = vld [vmem:[%s27 + $0x8] sm:$0xff]
    %v3548 = vld [vmem:[%s27 + $0x10] sm:$0xff]
    %v3549 = vld [vmem:[%s27 + $0x18] sm:$0xff]
    %v3550 = vld [vmem:[%s27 + $0x20] sm:$0xff]
    %v3551 = vld [vmem:[%s27 + $0x28] sm:$0xff]
    %v3552 = vld [vmem:[%s27 + $0x30] sm:$0xff]
    %v3553 = vld [vmem:[%s27 + $0x38] sm:$0xff]
    %v3554 = vld [vmem:[%s27 + $0x40] sm:$0xff]
    %v3555 = vld [vmem:[%s27 + $0x48] sm:$0xff]
    %v3556 = vld [vmem:[%s27 + $0x50] sm:$0xff]
    %v3557 = vld [vmem:[%s27 + $0x58] sm:$0xff]
    %v3558 = vld [vmem:[%s27 + $0x60] sm:$0xff]
    %v3559 = vld [vmem:[%s27 + $0x68] sm:$0xff]
    %v3560 = vld [vmem:[%s27 + $0x70] sm:$0xff]
    %v3561 = vld [vmem:[%s27 + $0x78] sm:$0xff]
    %v3562 = vld [vmem:[%s27 + $0x80] sm:$0xff]
    %v3563 = vld [vmem:[%s27 + $0x88] sm:$0xff]
    %v3564 = vld [vmem:[%s27 + $0x90] sm:$0xff]
    %v3565 = vld [vmem:[%s27 + $0x98] sm:$0xff]
    %v3566 = vld [vmem:[#allocation24] sm:$0x1]
    %v3568 = vlaneseq
    %v3569 = vshrl.u32 %v3568, 7
    %v3570 = vsub.s32 0, %v3569
    %v3571 = vrot.slane %v3566, %v3570
    %v3574 = vsel %vm1098, %v3533, 0
    %v3577 = vsel %vm1098, %v3535, 0
    %v3580 = vsel %vm1098, %v3537, 0
    %v3583 = vsel %vm1098, %v3539, 0
    %v3586 = vsel %vm1098, %v3541, 0
    %v3589 = vsel %vm1098, %v3543, 0
    %v3592 = vsel %vm1098, %v3545, 0
    %3594 = vmatprep.subr.mxu0 0.0
    %3595 = vmatpush1.msra.mxu0 %v3546
    %3596 = vmatprep.subr.mxu0 0.0
    %3597 = vmatpush1.msra.mxu0 %v3547
    %3598 = vmatprep.subr.mxu0 0.0
    %3599 = vmatpush1.msra.mxu0 %v3548
    %3600 = vmatprep.subr.mxu0 0.0
    %3601 = vmatpush1.msra.mxu0 %v3549
    %3602 = vmatprep.subr.mxu0 0.0
    %3603 = vmatpush1.msra.mxu0 %v3550
    %3604 = vmatprep.subr.mxu0 0.0
    %3605 = vmatpush1.msra.mxu0 %v3551
    %3606 = vmatprep.subr.mxu0 0.0
    %3607 = vmatpush1.msra.mxu0 %v3552
    %3608 = vmatprep.subr.mxu0 0.0
    %3609 = vmatpush1.msra.mxu0 %v3553
    %3610 = vmatprep.subr.mxu0 0.0
    %3611 = vmatpush1.msra.mxu0 %v3554
    %3612 = vmatprep.subr.mxu0 0.0
    %3613 = vmatpush1.msra.mxu0 %v3555
    %3614 = vmatprep.subr.mxu0 0.0
    %3615 = vmatpush1.msra.mxu0 %v3556
    %3616 = vmatprep.subr.mxu0 0.0
    %3617 = vmatpush1.msra.mxu0 %v3557
    %3618 = vmatprep.subr.mxu0 0.0
    %3619 = vmatpush1.msra.mxu0 %v3558
    %3620 = vmatprep.subr.mxu0 0.0
    %3621 = vmatpush1.msra.mxu0 %v3559
    %3622 = vmatprep.subr.mxu0 0.0
    %3623 = vmatpush1.msra.mxu0 %v3560
    %3624 = vmatprep.subr.mxu0 0.0
    %3625 = vmatpush1.msra.mxu0 %v3561
    %3626 = vmatprep.subr.mxu0 0.0
    %3627 = vmatpush1.msra.mxu0 %v3562
    %3628 = vmatprep.subr.mxu0 0.0
    %3629 = vmatpush1.msra.mxu0 %v3563
    %3630 = vmatprep.subr.mxu0 0.0
    %3631 = vmatpush1.msra.mxu0 %v3564
    %3632 = vmatprep.subr.mxu0 0.0
    %3633 = vmatpush1.msra.mxu0 %v3565
    %3634 = vmatprep.subr.mxu0 0.0
    %3635 = vmatpush1.msra.mxu0 0.0
    %3636 = vmatprep.subr.mxu0 0.0
    %3637 = vmatpush1.msra.mxu0 0.0
    %3638 = vmatprep.subr.mxu0 0.0
    %3639 = vmatpush1.msra.mxu0 0.0
    %3640 = vmatprep.subr.mxu0 0.0
    %3641 = vmatpush1.msra.mxu0 0.0
    %3642 = vmatprep.subr.mxu0 0.0
    %3643 = vmatpush1.msra.mxu0 0.0
    %3644 = vmatprep.subr.mxu0 0.0
    %3645 = vmatpush1.msra.mxu0 0.0
    %3646 = vmatprep.subr.mxu0 0.0
    %3647 = vmatpush1.msra.mxu0 0.0
    %3648 = vmatprep.subr.mxu0 0.0
    %3649 = vmatpush1.msra.mxu0 0.0
    %3650 = vmatprep.subr.mxu0 0.0
    %3651 = vmatpush1.msra.mxu0 0.0
    %3652 = vmatprep.subr.mxu0 0.0
    %3653 = vmatpush1.msra.mxu0 0.0
    %3654 = vmatprep.subr.mxu0 0.0
    %3655 = vmatpush1.msra.mxu0 0.0
    %3656 = vmatprep.subr.mxu0 0.0
    %3657 = vmatpush1.msra.mxu0 0.0
    %3658 = vmatprep.mubr.f32.mxu0 %v3574
    %3659 = vmatmul.mubr.f32.gmra.mrb[0].mxu0 %v3532
    %v3660 = vpop.f32.mrb[0].mxu0
    %v3661 = vadd.f32 %v3571, %v3660
    %v3662 = vpop.f32.mrb[0].mxu0
    %3663 = vmatprep.mubr.f32.mxu0 %v3577
    %3664 = vmatmul.mubr.f32.gmra.mrb[0].mxu0 %v3534
    %v3665 = vpop.f32.mrb[0].mxu0
    %v3666 = vadd.f32 %v3571, %v3665
    %v3667 = vpop.f32.mrb[0].mxu0
    %3668 = vmatprep.mubr.f32.mxu0 %v3580
    %3669 = vmatmul.mubr.f32.gmra.mrb[0].mxu0 %v3536
    %v3670 = vpop.f32.mrb[0].mxu0
    %v3671 = vadd.f32 %v3571, %v3670
    %v3672 = vpop.f32.mrb[0].mxu0
    %3673 = vmatprep.mubr.f32.mxu0 %v3583
    %3674 = vmatmul.mubr.f32.gmra.mrb[0].mxu0 %v3538
    %v3675 = vpop.f32.mrb[0].mxu0
    %v3676 = vadd.f32 %v3571, %v3675
    %v3677 = vpop.f32.mrb[0].mxu0
    %3678 = vmatprep.mubr.f32.mxu0 %v3586
    %3679 = vmatmul.mubr.f32.gmra.mrb[0].mxu0 %v3540
    %v3680 = vpop.f32.mrb[0].mxu0
    %v3681 = vadd.f32 %v3571, %v3680
    %v3682 = vpop.f32.mrb[0].mxu0
    %3683 = vmatprep.mubr.f32.mxu0 %v3589
    %3684 = vmatmul.mubr.f32.gmra.mrb[0].mxu0 %v3542
    %v3685 = vpop.f32.mrb[0].mxu0
    %v3686 = vadd.f32 %v3571, %v3685
    %v3687 = vpop.f32.mrb[0].mxu0
    %3688 = vmatprep.mubr.f32.mxu0 %v3592
    %3689 = vmatmul.mubr.f32.gmra.mrb[0].mxu0 %v3544
    %v3690 = vpop.f32.mrb[0].mxu0
    %v3691 = vadd.f32 %v3571, %v3690
    %v3692 = vpop.f32.mrb[0].mxu0
    %3693 = vdwg.mxu0
    %vm3694 = vcmask 130048
    %v3695 = vsel %vm3694, %v3661, 0.0
    %v3696 = vsel %vm3694, %v3666, 0.0
    %v3697 = vadd.f32 %v3695, %v3696
    %v3698 = vsel %vm3694, %v3671, 0.0
    %v3699 = vadd.f32 %v3697, %v3698
    %v3700 = vsel %vm3694, %v3676, 0.0
    %v3701 = vadd.f32 %v3699, %v3700
    %v3702 = vsel %vm3694, %v3681, 0.0
    %v3703 = vadd.f32 %v3701, %v3702
    %v3704 = vsel %vm3694, %v3686, 0.0
    %v3705 = vadd.f32 %v3703, %v3704
    %v3706 = vsel %vm3694, %v3691, 0.0
    %v3707 = vadd.f32 %v3705, %v3706
    %v3708 = vrot.slane %v3707, 4
    %v3709 = vadd.f32 %v3707, %v3708
    %v3710 = vrot.slane %v3709, 2
    %v3711 = vadd.f32 %v3709, %v3710
    %v3712 = vrot.slane %v3711, 1
    %v3713 = vadd.f32 %v3711, %v3712
    %v3714 = vrcp.pop 56.0
    %v3715 = vmul.f32 %v3713, %v3714
    %v3716 = vsub.f32 %v3661, %v3715
    %v3717 = vsub.f32 %v3666, %v3715
    %v3718 = vsub.f32 %v3671, %v3715
    %v3719 = vsub.f32 %v3676, %v3715
    %v3720 = vsub.f32 %v3681, %v3715
    %v3721 = vsub.f32 %v3686, %v3715
    %v3722 = vsub.f32 %v3691, %v3715
    %v3723 = vmul.f32 %v3716, %v3716
    %v3724 = vmul.f32 %v3717, %v3717
    %v3725 = vmul.f32 %v3718, %v3718
    %v3726 = vmul.f32 %v3719, %v3719
    %v3727 = vmul.f32 %v3720, %v3720
    %v3728 = vmul.f32 %v3721, %v3721
    %v3729 = vmul.f32 %v3722, %v3722
    %v3730 = vsel %vm3694, %v3723, 0.0
    %v3731 = vsel %vm3694, %v3724, 0.0
    %v3732 = vadd.f32 %v3730, %v3731
    %v3733 = vsel %vm3694, %v3725, 0.0
    %v3734 = vadd.f32 %v3732, %v3733
    %v3735 = vsel %vm3694, %v3726, 0.0
    %v3736 = vadd.f32 %v3734, %v3735
    %v3737 = vsel %vm3694, %v3727, 0.0
    %v3738 = vadd.f32 %v3736, %v3737
    %v3739 = vsel %vm3694, %v3728, 0.0
    %v3740 = vadd.f32 %v3738, %v3739
    %v3741 = vsel %vm3694, %v3729, 0.0
    %v3742 = vadd.f32 %v3740, %v3741
    %v3743 = vrot.slane %v3742, 4
    %v3744 = vadd.f32 %v3742, %v3743
    %v3745 = vrot.slane %v3744, 2
    %v3746 = vadd.f32 %v3744, %v3745
    %v3747 = vrot.slane %v3746, 1
    %v3748 = vadd.f32 %v3746, %v3747
    %v3749 = vmul.f32 %v3748, %v3714
    %v3750 = vadd.f32 %v3749, 1e-05
    %v3751 = vrsqrt.pop %v3750
    %v3752 = vmul.f32 %v3716, %v3751
    %v3753 = vmul.f32 %v3717, %v3751
    %v3754 = vmul.f32 %v3718, %v3751
    %v3755 = vmul.f32 %v3719, %v3751
    %v3756 = vmul.f32 %v3720, %v3751
    %v3757 = vmul.f32 %v3721, %v3751
    %v3758 = vmul.f32 %v3722, %v3751
    %v3759 = vld [vmem:[#allocation26] sm:$0x1]
    %v3761 = vlaneseq
    %v3762 = vshrl.u32 %v3761, 7
    %v3763 = vsub.s32 0, %v3762
    %v3764 = vrot.slane %v3759, %v3763
    %v3766 = vmul.f32 %v3752, %v3764
    %v3767 = vmul.f32 %v3753, %v3764
    %v3768 = vmul.f32 %v3754, %v3764
    %v3769 = vmul.f32 %v3755, %v3764
    %v3770 = vmul.f32 %v3756, %v3764
    %v3771 = vmul.f32 %v3757, %v3764
    %v3772 = vmul.f32 %v3758, %v3764
    %v3773 = vld [vmem:[#allocation27] sm:$0x1]
    %v3775 = vlaneseq
    %v3776 = vshrl.u32 %v3775, 7
    %v3777 = vsub.s32 0, %v3776
    %v3778 = vrot.slane %v3773, %v3777
    %v3780 = vadd.f32 %v3766, %v3778
    %v3781 = vadd.f32 %v3767, %v3778
    %v3782 = vadd.f32 %v3768, %v3778
    %v3783 = vadd.f32 %v3769, %v3778
    %v3784 = vadd.f32 %v3770, %v3778
    %v3785 = vadd.f32 %v3771, %v3778
    %v3786 = vadd.f32 %v3772, %v3778
    %v3787 = vxor.u32 %v3780, 2147483648
    %v3788 = vxor.u32 %v3781, 2147483648
    %v3789 = vxor.u32 %v3782, 2147483648
    %v3790 = vxor.u32 %v3783, 2147483648
    %v3791 = vxor.u32 %v3784, 2147483648
    %v3792 = vxor.u32 %v3785, 2147483648
    %v3793 = vxor.u32 %v3786, 2147483648
    %v3794 = vmul.f32 %v3787, 1.442695
    %v3795 = vpow.pop %v3794
    %v3796 = vmul.f32 %v3788, 1.442695
    %v3797 = vpow.pop %v3796
    %v3798 = vmul.f32 %v3789, 1.442695
    %v3799 = vpow.pop %v3798
    %v3800 = vmul.f32 %v3790, 1.442695
    %v3801 = vpow.pop %v3800
    %v3802 = vmul.f32 %v3791, 1.442695
    %v3803 = vpow.pop %v3802
    %v3804 = vmul.f32 %v3792, 1.442695
    %v3805 = vpow.pop %v3804
    %v3806 = vmul.f32 %v3793, 1.442695
    %v3807 = vpow.pop %v3806
    %v3808 = vadd.f32 %v3795, 1.0
    %v3809 = vadd.f32 %v3797, 1.0
    %v3810 = vadd.f32 %v3799, 1.0
    %v3811 = vadd.f32 %v3801, 1.0
    %v3812 = vadd.f32 %v3803, 1.0
    %v3813 = vadd.f32 %v3805, 1.0
    %v3814 = vadd.f32 %v3807, 1.0
    %v3815 = vrcp.pop %v3808
    %v3816 = vmul.f32 1.0, %v3815
    %v3817 = vrcp.pop %v3809
    %v3818 = vmul.f32 1.0, %v3817
    %v3819 = vrcp.pop %v3810
    %v3820 = vmul.f32 1.0, %v3819
    %v3821 = vrcp.pop %v3811
    %v3822 = vmul.f32 1.0, %v3821
    %v3823 = vrcp.pop %v3812
    %v3824 = vmul.f32 1.0, %v3823
    %v3825 = vrcp.pop %v3813
    %v3826 = vmul.f32 1.0, %v3825
    %v3827 = vrcp.pop %v3814
    %v3828 = vmul.f32 1.0, %v3827
    %v3829 = vmul.f32 %v3780, %v3816
    %v3830 = vmul.f32 %v3781, %v3818
    %v3831 = vmul.f32 %v3782, %v3820
    %v3832 = vmul.f32 %v3783, %v3822
    %v3833 = vmul.f32 %v3784, %v3824
    %v3834 = vmul.f32 %v3785, %v3826
    %v3835 = vmul.f32 %v3786, %v3828
    %3836 = vst.msk [vmem:[#allocation5 + $0x4] sm:$0xff] %vm3694, %v3829
    %3837 = vst.msk [vmem:[#allocation5 + $0xc] sm:$0xff] %vm3694, %v3830
    %3838 = vst.msk [vmem:[#allocation5 + $0x14] sm:$0xff] %vm3694, %v3831
    %3839 = vst.msk [vmem:[#allocation5 + $0x1c] sm:$0xf] %vm3321, %v3832
    %vm3840 = vcmask 130052
    %3841 = vst.msk [vmem:[#allocation5 + $0x20] sm:$0xf0] %vm3840, %v3832
    %3842 = vst.msk [vmem:[#allocation5 + $0x28] sm:$0xff] %vm3694, %v3833
    %3843 = vst.msk [vmem:[#allocation5 + $0x30] sm:$0xff] %vm3694, %v3834
    %3844 = vst.msk [vmem:[#allocation5 + $0x38] sm:$0xff] %vm3694, %v3835
    %v3845 = vld [vmem:[#allocation5] sm:$0xff]
    %v3846 = vld [vmem:[#allocation5 + $0x8] sm:$0xff]
    %v3847 = vld [vmem:[#allocation5 + $0x10] sm:$0xff]
    %v3848 = vld [vmem:[#allocation5 + $0x18] sm:$0xf]
    %v3849 = vld [vmem:[#allocation5 + $0x1] sm:$0xff]
    %v3850 = vld [vmem:[#allocation5 + $0x9] sm:$0xff]
    %v3851 = vld [vmem:[#allocation5 + $0x11] sm:$0xff]
    %v3852 = vld [vmem:[#allocation5 + $0x19] sm:$0xf]
    %v3853 = vld [vmem:[#allocation5 + $0x2] sm:$0xff]
    %v3854 = vld [vmem:[#allocation5 + $0xa] sm:$0xff]
    %v3855 = vld [vmem:[#allocation5 + $0x12] sm:$0xff]
    %v3856 = vld [vmem:[#allocation5 + $0x1a] sm:$0xf]
    %v3857 = vld [vmem:[#allocation5 + $0x3] sm:$0xff]
    %v3858 = vld [vmem:[#allocation5 + $0xb] sm:$0xff]
    %v3859 = vld [vmem:[#allocation5 + $0x13] sm:$0xff]
    %v3860 = vld [vmem:[#allocation5 + $0x1b] sm:$0xf]
    %v3861 = vld [vmem:[#allocation5 + $0x4] sm:$0xff]
    %v3862 = vld [vmem:[#allocation5 + $0xc] sm:$0xff]
    %v3863 = vld [vmem:[#allocation5 + $0x14] sm:$0xff]
    %v3864 = vld [vmem:[#allocation5 + $0x1c] sm:$0xf]
    %3869 = vrot.lane.b32.xlu0 %v3849, 16
    %v3870 = vpop.permute.xlu0 %3869
    %3871 = vrot.lane.b32.xlu0 %v3850, 16
    %v3872 = vpop.permute.xlu0 %3871
    %3873 = vrot.lane.b32.xlu0 %v3851, 16
    %v3874 = vpop.permute.xlu0 %3873
    %3875 = vrot.lane.b32.xlu0 %v3852, 16
    %v3876 = vpop.permute.xlu0 %3875
    %3885 = vrot.lane.b32.xlu0 %v3853, 32
    %v3886 = vpop.permute.xlu0 %3885
    %3887 = vrot.lane.b32.xlu0 %v3854, 32
    %v3888 = vpop.permute.xlu0 %3887
    %3889 = vrot.lane.b32.xlu0 %v3855, 32
    %v3890 = vpop.permute.xlu0 %3889
    %3891 = vrot.lane.b32.xlu0 %v3856, 32
    %v3892 = vpop.permute.xlu0 %3891
    %3901 = vrot.lane.b32.xlu0 %v3857, 48
    %v3902 = vpop.permute.xlu0 %3901
    %3903 = vrot.lane.b32.xlu0 %v3858, 48
    %v3904 = vpop.permute.xlu0 %3903
    %3905 = vrot.lane.b32.xlu0 %v3859, 48
    %v3906 = vpop.permute.xlu0 %3905
    %3907 = vrot.lane.b32.xlu0 %v3860, 48
    %v3908 = vpop.permute.xlu0 %3907
    %3917 = vrot.lane.b32.xlu0 %v3861, 64
    %v3918 = vpop.permute.xlu0 %3917
    %3919 = vrot.lane.b32.xlu0 %v3862, 64
    %v3920 = vpop.permute.xlu0 %3919
    %3921 = vrot.lane.b32.xlu0 %v3863, 64
    %v3922 = vpop.permute.xlu0 %3921
    %3923 = vrot.lane.b32.xlu0 %v3864, 64
    %v3924 = vpop.permute.xlu0 %3923
    %v3929 = vsel %vm3694, %v3845, %v3870
    %v3930 = vsel %vm3694, %v3846, %v3872
    %v3931 = vsel %vm3694, %v3847, %v3874
    %v3932 = vsel %vm3694, %v3848, %v3876
    %v3933 = vsel %vm1098, %v3929, %v3886
    %v3934 = vsel %vm1098, %v3930, %v3888
    %v3935 = vsel %vm1098, %v3931, %v3890
    %v3936 = vsel %vm1098, %v3932, %v3892
    %vm3937 = vcmask 392192
    %v3938 = vsel %vm3937, %v3933, %v3902
    %v3939 = vsel %vm3937, %v3934, %v3904
    %v3940 = vsel %vm3937, %v3935, %v3906
    %v3941 = vsel %vm3937, %v3936, %v3908
    %v3942 = vsel %vm1529, %v3938, %v3918
    %v3943 = vsel %vm1529, %v3939, %v3920
    %v3944 = vsel %vm1529, %v3940, %v3922
    %v3945 = vsel %vm1529, %v3941, %v3924
    %vm3946 = vcmask 654336
    %3947 = vst.msk [vmem:[#allocation4] sm:$0xff] %vm3946, %v3942
    %3948 = vst.msk [vmem:[#allocation4 + $0x10] sm:$0xff] %vm3946, %v3943
    %3949 = vst.msk [vmem:[#allocation4 + $0x20] sm:$0xff] %vm3946, %v3944
    %vm3950 = vcmask 650240
    %3951 = vst.msk [vmem:[#allocation4 + $0x30] sm:$0xf] %vm3950, %v3945
    %v3952 = vld [vmem:[#allocation5 + $0x20] sm:$0xff]
    %v3953 = vld [vmem:[#allocation5 + $0x28] sm:$0xff]
    %v3954 = vld [vmem:[#allocation5 + $0x30] sm:$0xff]
    %v3955 = vld [vmem:[#allocation5 + $0x38] sm:$0xf]
    %v3956 = vld [vmem:[#allocation5 + $0x21] sm:$0xff]
    %v3957 = vld [vmem:[#allocation5 + $0x29] sm:$0xff]
    %v3958 = vld [vmem:[#allocation5 + $0x31] sm:$0xff]
    %v3959 = vld [vmem:[#allocation5 + $0x39] sm:$0xf]
    %v3960 = vld [vmem:[#allocation5 + $0x22] sm:$0xff]
    %v3961 = vld [vmem:[#allocation5 + $0x2a] sm:$0xff]
    %v3962 = vld [vmem:[#allocation5 + $0x32] sm:$0xff]
    %v3963 = vld [vmem:[#allocation5 + $0x3a] sm:$0xf]
    %v3964 = vld [vmem:[#allocation5 + $0x23] sm:$0xff]
    %v3965 = vld [vmem:[#allocation5 + $0x2b] sm:$0xff]
    %v3966 = vld [vmem:[#allocation5 + $0x33] sm:$0xff]
    %v3967 = vld [vmem:[#allocation5 + $0x3b] sm:$0xf]
    %v3968 = vld [vmem:[#allocation5 + $0x24] sm:$0xff]
    %v3969 = vld [vmem:[#allocation5 + $0x2c] sm:$0xff]
    %v3970 = vld [vmem:[#allocation5 + $0x34] sm:$0xff]
    %v3971 = vld [vmem:[#allocation5 + $0x3c] sm:$0xf]
    %3976 = vrot.lane.b32.xlu0 %v3956, 16
    %v3977 = vpop.permute.xlu0 %3976
    %3978 = vrot.lane.b32.xlu0 %v3957, 16
    %v3979 = vpop.permute.xlu0 %3978
    %3980 = vrot.lane.b32.xlu0 %v3958, 16
    %v3981 = vpop.permute.xlu0 %3980
    %3982 = vrot.lane.b32.xlu0 %v3959, 16
    %v3983 = vpop.permute.xlu0 %3982
    %3992 = vrot.lane.b32.xlu0 %v3960, 32
    %v3993 = vpop.permute.xlu0 %3992
    %3994 = vrot.lane.b32.xlu0 %v3961, 32
    %v3995 = vpop.permute.xlu0 %3994
    %3996 = vrot.lane.b32.xlu0 %v3962, 32
    %v3997 = vpop.permute.xlu0 %3996
    %3998 = vrot.lane.b32.xlu0 %v3963, 32
    %v3999 = vpop.permute.xlu0 %3998
    %4008 = vrot.lane.b32.xlu0 %v3964, 48
    %v4009 = vpop.permute.xlu0 %4008
    %4010 = vrot.lane.b32.xlu0 %v3965, 48
    %v4011 = vpop.permute.xlu0 %4010
    %4012 = vrot.lane.b32.xlu0 %v3966, 48
    %v4013 = vpop.permute.xlu0 %4012
    %4014 = vrot.lane.b32.xlu0 %v3967, 48
    %v4015 = vpop.permute.xlu0 %4014
    %4024 = vrot.lane.b32.xlu0 %v3968, 64
    %v4025 = vpop.permute.xlu0 %4024
    %4026 = vrot.lane.b32.xlu0 %v3969, 64
    %v4027 = vpop.permute.xlu0 %4026
    %4028 = vrot.lane.b32.xlu0 %v3970, 64
    %v4029 = vpop.permute.xlu0 %4028
    %4030 = vrot.lane.b32.xlu0 %v3971, 64
    %v4031 = vpop.permute.xlu0 %4030
    %v4036 = vsel %vm3694, %v3952, %v3977
    %v4037 = vsel %vm3694, %v3953, %v3979
    %v4038 = vsel %vm3694, %v3954, %v3981
    %v4039 = vsel %vm3694, %v3955, %v3983
    %v4040 = vsel %vm1098, %v4036, %v3993
    %v4041 = vsel %vm1098, %v4037, %v3995
    %v4042 = vsel %vm1098, %v4038, %v3997
    %v4043 = vsel %vm1098, %v4039, %v3999
    %v4044 = vsel %vm3937, %v4040, %v4009
    %v4045 = vsel %vm3937, %v4041, %v4011
    %v4046 = vsel %vm3937, %v4042, %v4013
    %v4047 = vsel %vm3937, %v4043, %v4015
    %v4048 = vsel %vm1529, %v4044, %v4025
    %v4049 = vsel %vm1529, %v4045, %v4027
    %v4050 = vsel %vm1529, %v4046, %v4029
    %v4051 = vsel %vm1529, %v4047, %v4031
    %v4056 = vrot.slane %v4048, 4
    %v4057 = vrot.slane %v4049, 4
    %v4058 = vsel %vm853, %v4056, %v4057
    %v4059 = vrot.slane %v4050, 4
    %v4060 = vsel %vm853, %v4057, %v4059
    %v4061 = vrot.slane %v4051, 4
    %v4062 = vsel %vm853, %v4059, %v4061
    %vm4067 = vcmask 654340
    %4068 = vst.msk [vmem:[#allocation4 + $0x30] sm:$0xf0] %vm4067, %v4056
    %4069 = vst.msk [vmem:[#allocation4 + $0x40] sm:$0xff] %vm3946, %v4058
    %4070 = vst.msk [vmem:[#allocation4 + $0x50] sm:$0xff] %vm3946, %v4060
    %4071 = vst.msk [vmem:[#allocation4 + $0x60] sm:$0xff] %vm3946, %v4062
    %v4072 = vld [vmem:[#allocation4] sm:$0xff]
    %v4073 = vld [vmem:[#allocation4 + $0x10] sm:$0xff]
    %v4074 = vld [vmem:[#allocation4 + $0x20] sm:$0xff]
    %v4075 = vld [vmem:[#allocation4 + $0x30] sm:$0xff]
    %v4076 = vld [vmem:[#allocation4 + $0x40] sm:$0xff]
    %v4077 = vld [vmem:[#allocation4 + $0x50] sm:$0xff]
    %v4078 = vld [vmem:[#allocation4 + $0x60] sm:$0xff]
    %v4079 = vld [vmem:[%s35] sm:$0xff]
    %v4080 = vld [vmem:[%s35 + $0x8] sm:$0xff]
    %v4081 = vld [vmem:[%s35 + $0x10] sm:$0xff]
    %v4082 = vld [vmem:[%s35 + $0x18] sm:$0xff]
    %v4083 = vld [vmem:[%s35 + $0x20] sm:$0xff]
    %v4084 = vld [vmem:[%s35 + $0x28] sm:$0xff]
    %v4085 = vld [vmem:[%s35 + $0x30] sm:$0xff]
    %v4086 = vld [vmem:[%s35 + $0x38] sm:$0xff]
    %v4087 = vld [vmem:[%s35 + $0x40] sm:$0xff]
    %v4088 = vld [vmem:[%s35 + $0x48] sm:$0xff]
    %v4089 = vld [vmem:[#allocation29] sm:$0x1]
    %v4091 = vlaneseq
    %v4092 = vshrl.u32 %v4091, 7
    %v4093 = vsub.s32 0, %v4092
    %v4094 = vrot.slane %v4089, %v4093
    %v4097 = vsel %vm3946, %v4072, 0
    %v4100 = vsel %vm3946, %v4073, 0
    %v4103 = vsel %vm3946, %v4074, 0
    %v4106 = vsel %vm3946, %v4075, 0
    %v4109 = vsel %vm3946, %v4076, 0
    %v4112 = vsel %vm3946, %v4077, 0
    %v4115 = vsel %vm3946, %v4078, 0
    %4117 = vmatprep.subr.mxu0 0.0
    %4118 = vmatpush1.msra.mxu0 %v4079
    %4119 = vmatprep.subr.mxu0 0.0
    %4120 = vmatpush1.msra.mxu0 %v4080
    %4121 = vmatprep.subr.mxu0 0.0
    %4122 = vmatpush1.msra.mxu0 %v4081
    %4123 = vmatprep.subr.mxu0 0.0
    %4124 = vmatpush1.msra.mxu0 %v4082
    %4125 = vmatprep.subr.mxu0 0.0
    %4126 = vmatpush1.msra.mxu0 %v4083
    %4127 = vmatprep.subr.mxu0 0.0
    %4128 = vmatpush1.msra.mxu0 %v4084
    %4129 = vmatprep.subr.mxu0 0.0
    %4130 = vmatpush1.msra.mxu0 %v4085
    %4131 = vmatprep.subr.mxu0 0.0
    %4132 = vmatpush1.msra.mxu0 %v4086
    %4133 = vmatprep.subr.mxu0 0.0
    %4134 = vmatpush1.msra.mxu0 %v4087
    %4135 = vmatprep.subr.mxu0 0.0
    %4136 = vmatpush1.msra.mxu0 %v4088
    %4137 = vmatprep.subr.mxu0 0.0
    %4138 = vmatpush1.msra.mxu0 0.0
    %4139 = vmatprep.subr.mxu0 0.0
    %4140 = vmatpush1.msra.mxu0 0.0
    %4141 = vmatprep.subr.mxu0 0.0
    %4142 = vmatpush1.msra.mxu0 0.0
    %4143 = vmatprep.subr.mxu0 0.0
    %4144 = vmatpush1.msra.mxu0 0.0
    %4145 = vmatprep.subr.mxu0 0.0
    %4146 = vmatpush1.msra.mxu0 0.0
    %4147 = vmatprep.subr.mxu0 0.0
    %4148 = vmatpush1.msra.mxu0 0.0
    %4149 = vmatprep.subr.mxu0 0.0
    %4150 = vmatpush1.msra.mxu0 0.0
    %4151 = vmatprep.subr.mxu0 0.0
    %4152 = vmatpush1.msra.mxu0 0.0
    %4153 = vmatprep.subr.mxu0 0.0
    %4154 = vmatpush1.msra.mxu0 0.0
    %4155 = vmatprep.subr.mxu0 0.0
    %4156 = vmatpush1.msra.mxu0 0.0
    %4157 = vmatprep.subr.mxu0 0.0
    %4158 = vmatpush1.msra.mxu0 0.0
    %4159 = vmatprep.subr.mxu0 0.0
    %4160 = vmatpush1.msra.mxu0 0.0
    %4161 = vmatprep.subr.mxu0 0.0
    %4162 = vmatpush1.msra.mxu0 0.0
    %4163 = vmatprep.subr.mxu0 0.0
    %4164 = vmatpush1.msra.mxu0 0.0
    %4165 = vmatprep.subr.mxu0 0.0
    %4166 = vmatpush1.msra.mxu0 0.0
    %4167 = vmatprep.subr.mxu0 0.0
    %4168 = vmatpush1.msra.mxu0 0.0
    %4169 = vmatprep.subr.mxu0 0.0
    %4170 = vmatpush1.msra.mxu0 0.0
    %4171 = vmatprep.subr.mxu0 0.0
    %4172 = vmatpush1.msra.mxu0 0.0
    %4173 = vmatprep.subr.mxu0 0.0
    %4174 = vmatpush1.msra.mxu0 0.0
    %4175 = vmatprep.subr.mxu0 0.0
    %4176 = vmatpush1.msra.mxu0 0.0
    %4177 = vmatprep.subr.mxu0 0.0
    %4178 = vmatpush1.msra.mxu0 0.0
    %4179 = vmatprep.subr.mxu0 0.0
    %4180 = vmatpush1.msra.mxu0 0.0
    %4181 = vmatprep.mubr.f32.mxu0 0.0
    %4182 = vmatmul.mubr.f32.gmra.mrb[0].mxu0 %v4097
    %v4183 = vpop.f32.mrb[0].mxu0
    %v4184 = vadd.f32 %v4094, %v4183
    %v4185 = vpop.f32.mrb[0].mxu0
    %4186 = vmatprep.mubr.f32.mxu0 0.0
    %4187 = vmatmul.mubr.f32.gmra.mrb[0].mxu0 %v4100
    %v4188 = vpop.f32.mrb[0].mxu0
    %v4189 = vadd.f32 %v4094, %v4188
    %v4190 = vpop.f32.mrb[0].mxu0
    %4191 = vmatprep.mubr.f32.mxu0 0.0
    %4192 = vmatmul.mubr.f32.gmra.mrb[0].mxu0 %v4103
    %v4193 = vpop.f32.mrb[0].mxu0
    %v4194 = vadd.f32 %v4094, %v4193
    %v4195 = vpop.f32.mrb[0].mxu0
    %4196 = vmatprep.mubr.f32.mxu0 0.0
    %4197 = vmatmul.mubr.f32.gmra.mrb[0].mxu0 %v4106
    %v4198 = vpop.f32.mrb[0].mxu0
    %v4199 = vadd.f32 %v4094, %v4198
    %v4200 = vpop.f32.mrb[0].mxu0
    %4201 = vmatprep.mubr.f32.mxu0 0.0
    %4202 = vmatmul.mubr.f32.gmra.mrb[0].mxu0 %v4109
    %v4203 = vpop.f32.mrb[0].mxu0
    %v4204 = vadd.f32 %v4094, %v4203
    %v4205 = vpop.f32.mrb[0].mxu0
    %4206 = vmatprep.mubr.f32.mxu0 0.0
    %4207 = vmatmul.mubr.f32.gmra.mrb[0].mxu0 %v4112
    %v4208 = vpop.f32.mrb[0].mxu0
    %v4209 = vadd.f32 %v4094, %v4208
    %v4210 = vpop.f32.mrb[0].mxu0
    %4211 = vmatprep.mubr.f32.mxu0 0.0
    %4212 = vmatmul.mubr.f32.gmra.mrb[0].mxu0 %v4115
    %v4213 = vpop.f32.mrb[0].mxu0
    %v4214 = vadd.f32 %v4094, %v4213
    %v4215 = vpop.f32.mrb[0].mxu0
    %4216 = vdwg.mxu0
    %v4217 = vsel %vm3694, %v4184, 0.0
    %v4218 = vsel %vm3694, %v4189, 0.0
    %v4219 = vadd.f32 %v4217, %v4218
    %v4220 = vsel %vm3694, %v4194, 0.0
    %v4221 = vadd.f32 %v4219, %v4220
    %v4222 = vsel %vm3694, %v4199, 0.0
    %v4223 = vadd.f32 %v4221, %v4222
    %v4224 = vsel %vm3694, %v4204, 0.0
    %v4225 = vadd.f32 %v4223, %v4224
    %v4226 = vsel %vm3694, %v4209, 0.0
    %v4227 = vadd.f32 %v4225, %v4226
    %v4228 = vsel %vm3694, %v4214, 0.0
    %v4229 = vadd.f32 %v4227, %v4228
    %v4230 = vrot.slane %v4229, 4
    %v4231 = vadd.f32 %v4229, %v4230
    %v4232 = vrot.slane %v4231, 2
    %v4233 = vadd.f32 %v4231, %v4232
    %v4234 = vrot.slane %v4233, 1
    %v4235 = vadd.f32 %v4233, %v4234
    %v4236 = vmul.f32 %v4235, %v3714
    %v4237 = vsub.f32 %v4184, %v4236
    %v4238 = vsub.f32 %v4189, %v4236
    %v4239 = vsub.f32 %v4194, %v4236
    %v4240 = vsub.f32 %v4199, %v4236
    %v4241 = vsub.f32 %v4204, %v4236
    %v4242 = vsub.f32 %v4209, %v4236
    %v4243 = vsub.f32 %v4214, %v4236
    %v4244 = vmul.f32 %v4237, %v4237
    %v4245 = vmul.f32 %v4238, %v4238
    %v4246 = vmul.f32 %v4239, %v4239
    %v4247 = vmul.f32 %v4240, %v4240
    %v4248 = vmul.f32 %v4241, %v4241
    %v4249 = vmul.f32 %v4242, %v4242
    %v4250 = vmul.f32 %v4243, %v4243
    %v4251 = vsel %vm3694, %v4244, 0.0
    %v4252 = vsel %vm3694, %v4245, 0.0
    %v4253 = vadd.f32 %v4251, %v4252
    %v4254 = vsel %vm3694, %v4246, 0.0
    %v4255 = vadd.f32 %v4253, %v4254
    %v4256 = vsel %vm3694, %v4247, 0.0
    %v4257 = vadd.f32 %v4255, %v4256
    %v4258 = vsel %vm3694, %v4248, 0.0
    %v4259 = vadd.f32 %v4257, %v4258
    %v4260 = vsel %vm3694, %v4249, 0.0
    %v4261 = vadd.f32 %v4259, %v4260
    %v4262 = vsel %vm3694, %v4250, 0.0
    %v4263 = vadd.f32 %v4261, %v4262
    %v4264 = vrot.slane %v4263, 4
    %v4265 = vadd.f32 %v4263, %v4264
    %v4266 = vrot.slane %v4265, 2
    %v4267 = vadd.f32 %v4265, %v4266
    %v4268 = vrot.slane %v4267, 1
    %v4269 = vadd.f32 %v4267, %v4268
    %v4270 = vmul.f32 %v4269, %v3714
    %v4271 = vadd.f32 %v4270, 1e-05
    %v4272 = vrsqrt.pop %v4271
    %v4273 = vmul.f32 %v4237, %v4272
    %v4274 = vmul.f32 %v4238, %v4272
    %v4275 = vmul.f32 %v4239, %v4272
    %v4276 = vmul.f32 %v4240, %v4272
    %v4277 = vmul.f32 %v4241, %v4272
    %v4278 = vmul.f32 %v4242, %v4272
    %v4279 = vmul.f32 %v4243, %v4272
    %v4280 = vld [vmem:[#allocation30] sm:$0x1]
    %v4282 = vlaneseq
    %v4283 = vshrl.u32 %v4282, 7
    %v4284 = vsub.s32 0, %v4283
    %v4285 = vrot.slane %v4280, %v4284
    %v4287 = vmul.f32 %v4273, %v4285
    %v4288 = vmul.f32 %v4274, %v4285
    %v4289 = vmul.f32 %v4275, %v4285
    %v4290 = vmul.f32 %v4276, %v4285
    %v4291 = vmul.f32 %v4277, %v4285
    %v4292 = vmul.f32 %v4278, %v4285
    %v4293 = vmul.f32 %v4279, %v4285
    %v4294 = vld [vmem:[#allocation32] sm:$0x1]
    %v4296 = vlaneseq
    %v4297 = vshrl.u32 %v4296, 7
    %v4298 = vsub.s32 0, %v4297
    %v4299 = vrot.slane %v4294, %v4298
    %v4301 = vadd.f32 %v4287, %v4299
    %v4302 = vadd.f32 %v4288, %v4299
    %v4303 = vadd.f32 %v4289, %v4299
    %v4304 = vadd.f32 %v4290, %v4299
    %v4305 = vadd.f32 %v4291, %v4299
    %v4306 = vadd.f32 %v4292, %v4299
    %v4307 = vadd.f32 %v4293, %v4299
    %v4308 = vxor.u32 %v4301, 2147483648
    %v4309 = vxor.u32 %v4302, 2147483648
    %v4310 = vxor.u32 %v4303, 2147483648
    %v4311 = vxor.u32 %v4304, 2147483648
    %v4312 = vxor.u32 %v4305, 2147483648
    %v4313 = vxor.u32 %v4306, 2147483648
    %v4314 = vxor.u32 %v4307, 2147483648
    %v4315 = vmul.f32 %v4308, 1.442695
    %v4316 = vpow.pop %v4315
    %v4317 = vmul.f32 %v4309, 1.442695
    %v4318 = vpow.pop %v4317
    %v4319 = vmul.f32 %v4310, 1.442695
    %v4320 = vpow.pop %v4319
    %v4321 = vmul.f32 %v4311, 1.442695
    %v4322 = vpow.pop %v4321
    %v4323 = vmul.f32 %v4312, 1.442695
    %v4324 = vpow.pop %v4323
    %v4325 = vmul.f32 %v4313, 1.442695
    %v4326 = vpow.pop %v4325
    %v4327 = vmul.f32 %v4314, 1.442695
    %v4328 = vpow.pop %v4327
    %v4329 = vadd.f32 %v4316, 1.0
    %v4330 = vadd.f32 %v4318, 1.0
    %v4331 = vadd.f32 %v4320, 1.0
    %v4332 = vadd.f32 %v4322, 1.0
    %v4333 = vadd.f32 %v4324, 1.0
    %v4334 = vadd.f32 %v4326, 1.0
    %v4335 = vadd.f32 %v4328, 1.0
    %v4336 = vrcp.pop %v4329
    %v4337 = vmul.f32 1.0, %v4336
    %v4338 = vrcp.pop %v4330
    %v4339 = vmul.f32 1.0, %v4338
    %v4340 = vrcp.pop %v4331
    %v4341 = vmul.f32 1.0, %v4340
    %v4342 = vrcp.pop %v4332
    %v4343 = vmul.f32 1.0, %v4342
    %v4344 = vrcp.pop %v4333
    %v4345 = vmul.f32 1.0, %v4344
    %v4346 = vrcp.pop %v4334
    %v4347 = vmul.f32 1.0, %v4346
    %v4348 = vrcp.pop %v4335
    %v4349 = vmul.f32 1.0, %v4348
    %v4350 = vmul.f32 %v4301, %v4337
    %v4351 = vmul.f32 %v4302, %v4339
    %v4352 = vmul.f32 %v4303, %v4341
    %v4353 = vmul.f32 %v4304, %v4343
    %v4354 = vmul.f32 %v4305, %v4345
    %v4355 = vmul.f32 %v4306, %v4347
    %v4356 = vmul.f32 %v4307, %v4349
    %4357 = vst.msk [vmem:[#allocation5 + $0x4] sm:$0xff] %vm3694, %v4350
    %4358 = vst.msk [vmem:[#allocation5 + $0xc] sm:$0xff] %vm3694, %v4351
    %4359 = vst.msk [vmem:[#allocation5 + $0x14] sm:$0xff] %vm3694, %v4352
    %4360 = vst.msk [vmem:[#allocation5 + $0x1c] sm:$0xf] %vm3321, %v4353
    %4361 = vst.msk [vmem:[#allocation5 + $0x20] sm:$0xf0] %vm3840, %v4353
    %4362 = vst.msk [vmem:[#allocation5 + $0x28] sm:$0xff] %vm3694, %v4354
    %4363 = vst.msk [vmem:[#allocation5 + $0x30] sm:$0xff] %vm3694, %v4355
    %4364 = vst.msk [vmem:[#allocation5 + $0x38] sm:$0xff] %vm3694, %v4356
    %v4365 = vld [vmem:[#allocation5] sm:$0xff]
    %v4366 = vld [vmem:[#allocation5 + $0x8] sm:$0xff]
    %v4367 = vld [vmem:[#allocation5 + $0x10] sm:$0xff]
    %v4368 = vld [vmem:[#allocation5 + $0x18] sm:$0xf]
    %v4369 = vld [vmem:[#allocation5 + $0x1] sm:$0xff]
    %v4370 = vld [vmem:[#allocation5 + $0x9] sm:$0xff]
    %v4371 = vld [vmem:[#allocation5 + $0x11] sm:$0xff]
    %v4372 = vld [vmem:[#allocation5 + $0x19] sm:$0xf]
    %v4373 = vld [vmem:[#allocation5 + $0x2] sm:$0xff]
    %v4374 = vld [vmem:[#allocation5 + $0xa] sm:$0xff]
    %v4375 = vld [vmem:[#allocation5 + $0x12] sm:$0xff]
    %v4376 = vld [vmem:[#allocation5 + $0x1a] sm:$0xf]
    %v4377 = vld [vmem:[#allocation5 + $0x3] sm:$0xff]
    %v4378 = vld [vmem:[#allocation5 + $0xb] sm:$0xff]
    %v4379 = vld [vmem:[#allocation5 + $0x13] sm:$0xff]
    %v4380 = vld [vmem:[#allocation5 + $0x1b] sm:$0xf]
    %v4381 = vld [vmem:[#allocation5 + $0x4] sm:$0xff]
    %v4382 = vld [vmem:[#allocation5 + $0xc] sm:$0xff]
    %v4383 = vld [vmem:[#allocation5 + $0x14] sm:$0xff]
    %v4384 = vld [vmem:[#allocation5 + $0x1c] sm:$0xf]
    %4389 = vrot.lane.b32.xlu0 %v4369, 16
    %v4390 = vpop.permute.xlu0 %4389
    %4391 = vrot.lane.b32.xlu0 %v4370, 16
    %v4392 = vpop.permute.xlu0 %4391
    %4393 = vrot.lane.b32.xlu0 %v4371, 16
    %v4394 = vpop.permute.xlu0 %4393
    %4395 = vrot.lane.b32.xlu0 %v4372, 16
    %v4396 = vpop.permute.xlu0 %4395
    %4405 = vrot.lane.b32.xlu0 %v4373, 32
    %v4406 = vpop.permute.xlu0 %4405
    %4407 = vrot.lane.b32.xlu0 %v4374, 32
    %v4408 = vpop.permute.xlu0 %4407
    %4409 = vrot.lane.b32.xlu0 %v4375, 32
    %v4410 = vpop.permute.xlu0 %4409
    %4411 = vrot.lane.b32.xlu0 %v4376, 32
    %v4412 = vpop.permute.xlu0 %4411
    %4421 = vrot.lane.b32.xlu0 %v4377, 48
    %v4422 = vpop.permute.xlu0 %4421
    %4423 = vrot.lane.b32.xlu0 %v4378, 48
    %v4424 = vpop.permute.xlu0 %4423
    %4425 = vrot.lane.b32.xlu0 %v4379, 48
    %v4426 = vpop.permute.xlu0 %4425
    %4427 = vrot.lane.b32.xlu0 %v4380, 48
    %v4428 = vpop.permute.xlu0 %4427
    %4437 = vrot.lane.b32.xlu0 %v4381, 64
    %v4438 = vpop.permute.xlu0 %4437
    %4439 = vrot.lane.b32.xlu0 %v4382, 64
    %v4440 = vpop.permute.xlu0 %4439
    %4441 = vrot.lane.b32.xlu0 %v4383, 64
    %v4442 = vpop.permute.xlu0 %4441
    %4443 = vrot.lane.b32.xlu0 %v4384, 64
    %v4444 = vpop.permute.xlu0 %4443
    %v4449 = vsel %vm3694, %v4365, %v4390
    %v4450 = vsel %vm3694, %v4366, %v4392
    %v4451 = vsel %vm3694, %v4367, %v4394
    %v4452 = vsel %vm3694, %v4368, %v4396
    %v4453 = vsel %vm1098, %v4449, %v4406
    %v4454 = vsel %vm1098, %v4450, %v4408
    %v4455 = vsel %vm1098, %v4451, %v4410
    %v4456 = vsel %vm1098, %v4452, %v4412
    %v4457 = vsel %vm3937, %v4453, %v4422
    %v4458 = vsel %vm3937, %v4454, %v4424
    %v4459 = vsel %vm3937, %v4455, %v4426
    %v4460 = vsel %vm3937, %v4456, %v4428
    %v4461 = vsel %vm1529, %v4457, %v4438
    %v4462 = vsel %vm1529, %v4458, %v4440
    %v4463 = vsel %vm1529, %v4459, %v4442
    %v4464 = vsel %vm1529, %v4460, %v4444
    %4465 = vst.msk [vmem:[#allocation4] sm:$0xff] %vm3946, %v4461
    %4466 = vst.msk [vmem:[#allocation4 + $0x10] sm:$0xff] %vm3946, %v4462
    %4467 = vst.msk [vmem:[#allocation4 + $0x20] sm:$0xff] %vm3946, %v4463
    %4468 = vst.msk [vmem:[#allocation4 + $0x30] sm:$0xf] %vm3950, %v4464
    %v4469 = vld [vmem:[#allocation5 + $0x20] sm:$0xff]
    %v4470 = vld [vmem:[#allocation5 + $0x28] sm:$0xff]
    %v4471 = vld [vmem:[#allocation5 + $0x30] sm:$0xff]
    %v4472 = vld [vmem:[#allocation5 + $0x38] sm:$0xf]
    %v4473 = vld [vmem:[#allocation5 + $0x21] sm:$0xff]
    %v4474 = vld [vmem:[#allocation5 + $0x29] sm:$0xff]
    %v4475 = vld [vmem:[#allocation5 + $0x31] sm:$0xff]
    %v4476 = vld [vmem:[#allocation5 + $0x39] sm:$0xf]
    %v4477 = vld [vmem:[#allocation5 + $0x22] sm:$0xff]
    %v4478 = vld [vmem:[#allocation5 + $0x2a] sm:$0xff]
    %v4479 = vld [vmem:[#allocation5 + $0x32] sm:$0xff]
    %v4480 = vld [vmem:[#allocation5 + $0x3a] sm:$0xf]
    %v4481 = vld [vmem:[#allocation5 + $0x23] sm:$0xff]
    %v4482 = vld [vmem:[#allocation5 + $0x2b] sm:$0xff]
    %v4483 = vld [vmem:[#allocation5 + $0x33] sm:$0xff]
    %v4484 = vld [vmem:[#allocation5 + $0x3b] sm:$0xf]
    %v4485 = vld [vmem:[#allocation5 + $0x24] sm:$0xff]
    %v4486 = vld [vmem:[#allocation5 + $0x2c] sm:$0xff]
    %v4487 = vld [vmem:[#allocation5 + $0x34] sm:$0xff]
    %v4488 = vld [vmem:[#allocation5 + $0x3c] sm:$0xf]
    %4493 = vrot.lane.b32.xlu0 %v4473, 16
    %v4494 = vpop.permute.xlu0 %4493
    %4495 = vrot.lane.b32.xlu0 %v4474, 16
    %v4496 = vpop.permute.xlu0 %4495
    %4497 = vrot.lane.b32.xlu0 %v4475, 16
    %v4498 = vpop.permute.xlu0 %4497
    %4499 = vrot.lane.b32.xlu0 %v4476, 16
    %v4500 = vpop.permute.xlu0 %4499
    %4509 = vrot.lane.b32.xlu0 %v4477, 32
    %v4510 = vpop.permute.xlu0 %4509
    %4511 = vrot.lane.b32.xlu0 %v4478, 32
    %v4512 = vpop.permute.xlu0 %4511
    %4513 = vrot.lane.b32.xlu0 %v4479, 32
    %v4514 = vpop.permute.xlu0 %4513
    %4515 = vrot.lane.b32.xlu0 %v4480, 32
    %v4516 = vpop.permute.xlu0 %4515
    %4525 = vrot.lane.b32.xlu0 %v4481, 48
    %v4526 = vpop.permute.xlu0 %4525
    %4527 = vrot.lane.b32.xlu0 %v4482, 48
    %v4528 = vpop.permute.xlu0 %4527
    %4529 = vrot.lane.b32.xlu0 %v4483, 48
    %v4530 = vpop.permute.xlu0 %4529
    %4531 = vrot.lane.b32.xlu0 %v4484, 48
    %v4532 = vpop.permute.xlu0 %4531
    %4541 = vrot.lane.b32.xlu0 %v4485, 64
    %v4542 = vpop.permute.xlu0 %4541
    %4543 = vrot.lane.b32.xlu0 %v4486, 64
    %v4544 = vpop.permute.xlu0 %4543
    %4545 = vrot.lane.b32.xlu0 %v4487, 64
    %v4546 = vpop.permute.xlu0 %4545
    %4547 = vrot.lane.b32.xlu0 %v4488, 64
    %v4548 = vpop.permute.xlu0 %4547
    %v4553 = vsel %vm3694, %v4469, %v4494
    %v4554 = vsel %vm3694, %v4470, %v4496
    %v4555 = vsel %vm3694, %v4471, %v4498
    %v4556 = vsel %vm3694, %v4472, %v4500
    %v4557 = vsel %vm1098, %v4553, %v4510
    %v4558 = vsel %vm1098, %v4554, %v4512
    %v4559 = vsel %vm1098, %v4555, %v4514
    %v4560 = vsel %vm1098, %v4556, %v4516
    %v4561 = vsel %vm3937, %v4557, %v4526
    %v4562 = vsel %vm3937, %v4558, %v4528
    %v4563 = vsel %vm3937, %v4559, %v4530
    %v4564 = vsel %vm3937, %v4560, %v4532
    %v4565 = vsel %vm1529, %v4561, %v4542
    %v4566 = vsel %vm1529, %v4562, %v4544
    %v4567 = vsel %vm1529, %v4563, %v4546
    %v4568 = vsel %vm1529, %v4564, %v4548
    %v4573 = vrot.slane %v4565, 4
    %v4574 = vrot.slane %v4566, 4
    %v4575 = vsel %vm853, %v4573, %v4574
    %v4576 = vrot.slane %v4567, 4
    %v4577 = vsel %vm853, %v4574, %v4576
    %v4578 = vrot.slane %v4568, 4
    %v4579 = vsel %vm853, %v4576, %v4578
    %4584 = vst.msk [vmem:[#allocation4 + $0x30] sm:$0xf0] %vm4067, %v4573
    %4585 = vst.msk [vmem:[#allocation4 + $0x40] sm:$0xff] %vm3946, %v4575
    %4586 = vst.msk [vmem:[#allocation4 + $0x50] sm:$0xff] %vm3946, %v4577
    %4587 = vst.msk [vmem:[#allocation4 + $0x60] sm:$0xff] %vm3946, %v4579
    %v4588 = vld [vmem:[#allocation4] sm:$0xff]
    %v4589 = vld [vmem:[#allocation4 + $0x10] sm:$0xff]
    %v4590 = vld [vmem:[#allocation4 + $0x20] sm:$0xff]
    %v4591 = vld [vmem:[#allocation4 + $0x30] sm:$0xff]
    %v4592 = vld [vmem:[#allocation4 + $0x40] sm:$0xff]
    %v4593 = vld [vmem:[#allocation4 + $0x50] sm:$0xff]
    %v4594 = vld [vmem:[#allocation4 + $0x60] sm:$0xff]
    %v4595 = vld [vmem:[%s43] sm:$0xff]
    %v4596 = vld [vmem:[%s43 + $0x8] sm:$0xff]
    %v4597 = vld [vmem:[%s43 + $0x10] sm:$0xff]
    %v4598 = vld [vmem:[%s43 + $0x18] sm:$0xff]
    %v4599 = vld [vmem:[%s43 + $0x20] sm:$0xff]
    %v4600 = vld [vmem:[%s43 + $0x28] sm:$0xff]
    %v4601 = vld [vmem:[%s43 + $0x30] sm:$0xff]
    %v4602 = vld [vmem:[%s43 + $0x38] sm:$0xff]
    %v4603 = vld [vmem:[%s43 + $0x40] sm:$0xff]
    %v4604 = vld [vmem:[%s43 + $0x48] sm:$0xff]
    %v4605 = vld [vmem:[#allocation33] sm:$0x1]
    %v4607 = vlaneseq
    %v4608 = vshrl.u32 %v4607, 7
    %v4609 = vsub.s32 0, %v4608
    %v4610 = vrot.slane %v4605, %v4609
    %v4613 = vsel %vm3946, %v4588, 0
    %v4616 = vsel %vm3946, %v4589, 0
    %v4619 = vsel %vm3946, %v4590, 0
    %v4622 = vsel %vm3946, %v4591, 0
    %v4625 = vsel %vm3946, %v4592, 0
    %v4628 = vsel %vm3946, %v4593, 0
    %v4631 = vsel %vm3946, %v4594, 0
    %4633 = vmatprep.subr.mxu0 0.0
    %4634 = vmatpush1.msra.mxu0 %v4595
    %4635 = vmatprep.subr.mxu0 0.0
    %4636 = vmatpush1.msra.mxu0 %v4596
    %4637 = vmatprep.subr.mxu0 0.0
    %4638 = vmatpush1.msra.mxu0 %v4597
    %4639 = vmatprep.subr.mxu0 0.0
    %4640 = vmatpush1.msra.mxu0 %v4598
    %4641 = vmatprep.subr.mxu0 0.0
    %4642 = vmatpush1.msra.mxu0 %v4599
    %4643 = vmatprep.subr.mxu0 0.0
    %4644 = vmatpush1.msra.mxu0 %v4600
    %4645 = vmatprep.subr.mxu0 0.0
    %4646 = vmatpush1.msra.mxu0 %v4601
    %4647 = vmatprep.subr.mxu0 0.0
    %4648 = vmatpush1.msra.mxu0 %v4602
    %4649 = vmatprep.subr.mxu0 0.0
    %4650 = vmatpush1.msra.mxu0 %v4603
    %4651 = vmatprep.subr.mxu0 0.0
    %4652 = vmatpush1.msra.mxu0 %v4604
    %4653 = vmatprep.subr.mxu0 0.0
    %4654 = vmatpush1.msra.mxu0 0.0
    %4655 = vmatprep.subr.mxu0 0.0
    %4656 = vmatpush1.msra.mxu0 0.0
    %4657 = vmatprep.subr.mxu0 0.0
    %4658 = vmatpush1.msra.mxu0 0.0
    %4659 = vmatprep.subr.mxu0 0.0
    %4660 = vmatpush1.msra.mxu0 0.0
    %4661 = vmatprep.subr.mxu0 0.0
    %4662 = vmatpush1.msra.mxu0 0.0
    %4663 = vmatprep.subr.mxu0 0.0
    %4664 = vmatpush1.msra.mxu0 0.0
    %4665 = vmatprep.subr.mxu0 0.0
    %4666 = vmatpush1.msra.mxu0 0.0
    %4667 = vmatprep.subr.mxu0 0.0
    %4668 = vmatpush1.msra.mxu0 0.0
    %4669 = vmatprep.subr.mxu0 0.0
    %4670 = vmatpush1.msra.mxu0 0.0
    %4671 = vmatprep.subr.mxu0 0.0
    %4672 = vmatpush1.msra.mxu0 0.0
    %4673 = vmatprep.subr.mxu0 0.0
    %4674 = vmatpush1.msra.mxu0 0.0
    %4675 = vmatprep.subr.mxu0 0.0
    %4676 = vmatpush1.msra.mxu0 0.0
    %4677 = vmatprep.subr.mxu0 0.0
    %4678 = vmatpush1.msra.mxu0 0.0
    %4679 = vmatprep.subr.mxu0 0.0
    %4680 = vmatpush1.msra.mxu0 0.0
    %4681 = vmatprep.subr.mxu0 0.0
    %4682 = vmatpush1.msra.mxu0 0.0
    %4683 = vmatprep.subr.mxu0 0.0
    %4684 = vmatpush1.msra.mxu0 0.0
    %4685 = vmatprep.subr.mxu0 0.0
    %4686 = vmatpush1.msra.mxu0 0.0
    %4687 = vmatprep.subr.mxu0 0.0
    %4688 = vmatpush1.msra.mxu0 0.0
    %4689 = vmatprep.subr.mxu0 0.0
    %4690 = vmatpush1.msra.mxu0 0.0
    %4691 = vmatprep.subr.mxu0 0.0
    %4692 = vmatpush1.msra.mxu0 0.0
    %4693 = vmatprep.subr.mxu0 0.0
    %4694 = vmatpush1.msra.mxu0 0.0
    %4695 = vmatprep.subr.mxu0 0.0
    %4696 = vmatpush1.msra.mxu0 0.0
    %4697 = vmatprep.mubr.f32.mxu0 0.0
    %4698 = vmatmul.mubr.f32.gmra.mrb[0].mxu0 %v4613
    %v4699 = vpop.f32.mrb[0].mxu0
    %v4700 = vadd.f32 %v4610, %v4699
    %v4701 = vpop.f32.mrb[0].mxu0
    %4702 = vmatprep.mubr.f32.mxu0 0.0
    %4703 = vmatmul.mubr.f32.gmra.mrb[0].mxu0 %v4616
    %v4704 = vpop.f32.mrb[0].mxu0
    %v4705 = vadd.f32 %v4610, %v4704
    %v4706 = vpop.f32.mrb[0].mxu0
    %4707 = vmatprep.mubr.f32.mxu0 0.0
    %4708 = vmatmul.mubr.f32.gmra.mrb[0].mxu0 %v4619
    %v4709 = vpop.f32.mrb[0].mxu0
    %v4710 = vadd.f32 %v4610, %v4709
    %v4711 = vpop.f32.mrb[0].mxu0
    %4712 = vmatprep.mubr.f32.mxu0 0.0
    %4713 = vmatmul.mubr.f32.gmra.mrb[0].mxu0 %v4622
    %v4714 = vpop.f32.mrb[0].mxu0
    %v4715 = vadd.f32 %v4610, %v4714
    %v4716 = vpop.f32.mrb[0].mxu0
    %4717 = vmatprep.mubr.f32.mxu0 0.0
    %4718 = vmatmul.mubr.f32.gmra.mrb[0].mxu0 %v4625
    %v4719 = vpop.f32.mrb[0].mxu0
    %v4720 = vadd.f32 %v4610, %v4719
    %v4721 = vpop.f32.mrb[0].mxu0
    %4722 = vmatprep.mubr.f32.mxu0 0.0
    %4723 = vmatmul.mubr.f32.gmra.mrb[0].mxu0 %v4628
    %v4724 = vpop.f32.mrb[0].mxu0
    %v4725 = vadd.f32 %v4610, %v4724
    %v4726 = vpop.f32.mrb[0].mxu0
    %4727 = vmatprep.mubr.f32.mxu0 0.0
    %4728 = vmatmul.mubr.f32.gmra.mrb[0].mxu0 %v4631
    %v4729 = vpop.f32.mrb[0].mxu0
    %v4730 = vadd.f32 %v4610, %v4729
    %v4731 = vpop.f32.mrb[0].mxu0
    %4732 = vdwg.mxu0
    %v4733 = vadd.f32 %v3661, %v4700
    %v4734 = vadd.f32 %v3666, %v4705
    %v4735 = vadd.f32 %v3671, %v4710
    %v4736 = vadd.f32 %v3676, %v4715
    %v4737 = vadd.f32 %v3681, %v4720
    %v4738 = vadd.f32 %v3686, %v4725
    %v4739 = vadd.f32 %v3691, %v4730
    %v4740 = vsel %vm3694, %v4733, 0.0
    %v4741 = vsel %vm3694, %v4734, 0.0
    %v4742 = vadd.f32 %v4740, %v4741
    %v4743 = vsel %vm3694, %v4735, 0.0
    %v4744 = vadd.f32 %v4742, %v4743
    %v4745 = vsel %vm3694, %v4736, 0.0
    %v4746 = vadd.f32 %v4744, %v4745
    %v4747 = vsel %vm3694, %v4737, 0.0
    %v4748 = vadd.f32 %v4746, %v4747
    %v4749 = vsel %vm3694, %v4738, 0.0
    %v4750 = vadd.f32 %v4748, %v4749
    %v4751 = vsel %vm3694, %v4739, 0.0
    %v4752 = vadd.f32 %v4750, %v4751
    %v4753 = vrot.slane %v4752, 4
    %v4754 = vadd.f32 %v4752, %v4753
    %v4755 = vrot.slane %v4754, 2
    %v4756 = vadd.f32 %v4754, %v4755
    %v4757 = vrot.slane %v4756, 1
    %v4758 = vadd.f32 %v4756, %v4757
    %v4759 = vmul.f32 %v4758, %v3714
    %v4760 = vsub.f32 %v4733, %v4759
    %v4761 = vsub.f32 %v4734, %v4759
    %v4762 = vsub.f32 %v4735, %v4759
    %v4763 = vsub.f32 %v4736, %v4759
    %v4764 = vsub.f32 %v4737, %v4759
    %v4765 = vsub.f32 %v4738, %v4759
    %v4766 = vsub.f32 %v4739, %v4759
    %v4767 = vmul.f32 %v4760, %v4760
    %v4768 = vmul.f32 %v4761, %v4761
    %v4769 = vmul.f32 %v4762, %v4762
    %v4770 = vmul.f32 %v4763, %v4763
    %v4771 = vmul.f32 %v4764, %v4764
    %v4772 = vmul.f32 %v4765, %v4765
    %v4773 = vmul.f32 %v4766, %v4766
    %v4774 = vsel %vm3694, %v4767, 0.0
    %v4775 = vsel %vm3694, %v4768, 0.0
    %v4776 = vadd.f32 %v4774, %v4775
    %v4777 = vsel %vm3694, %v4769, 0.0
    %v4778 = vadd.f32 %v4776, %v4777
    %v4779 = vsel %vm3694, %v4770, 0.0
    %v4780 = vadd.f32 %v4778, %v4779
    %v4781 = vsel %vm3694, %v4771, 0.0
    %v4782 = vadd.f32 %v4780, %v4781
    %v4783 = vsel %vm3694, %v4772, 0.0
    %v4784 = vadd.f32 %v4782, %v4783
    %v4785 = vsel %vm3694, %v4773, 0.0
    %v4786 = vadd.f32 %v4784, %v4785
    %v4787 = vrot.slane %v4786, 4
    %v4788 = vadd.f32 %v4786, %v4787
    %v4789 = vrot.slane %v4788, 2
    %v4790 = vadd.f32 %v4788, %v4789
    %v4791 = vrot.slane %v4790, 1
    %v4792 = vadd.f32 %v4790, %v4791
    %v4793 = vmul.f32 %v4792, %v3714
    %v4794 = vadd.f32 %v4793, 1e-05
    %v4795 = vrsqrt.pop %v4794
    %v4796 = vmul.f32 %v4760, %v4795
    %v4797 = vmul.f32 %v4761, %v4795
    %v4798 = vmul.f32 %v4762, %v4795
    %v4799 = vmul.f32 %v4763, %v4795
    %v4800 = vmul.f32 %v4764, %v4795
    %v4801 = vmul.f32 %v4765, %v4795
    %v4802 = vmul.f32 %v4766, %v4795
    %v4803 = vld [vmem:[#allocation35] sm:$0x1]
    %v4805 = vlaneseq
    %v4806 = vshrl.u32 %v4805, 7
    %v4807 = vsub.s32 0, %v4806
    %v4808 = vrot.slane %v4803, %v4807
    %v4810 = vmul.f32 %v4796, %v4808
    %v4811 = vmul.f32 %v4797, %v4808
    %v4812 = vmul.f32 %v4798, %v4808
    %v4813 = vmul.f32 %v4799, %v4808
    %v4814 = vmul.f32 %v4800, %v4808
    %v4815 = vmul.f32 %v4801, %v4808
    %v4816 = vmul.f32 %v4802, %v4808
    %v4817 = vld [vmem:[#allocation36] sm:$0x1]
    %v4819 = vlaneseq
    %v4820 = vshrl.u32 %v4819, 7
    %v4821 = vsub.s32 0, %v4820
    %v4822 = vrot.slane %v4817, %v4821
    %v4824 = vadd.f32 %v4810, %v4822
    %v4825 = vadd.f32 %v4811, %v4822
    %v4826 = vadd.f32 %v4812, %v4822
    %v4827 = vadd.f32 %v4813, %v4822
    %v4828 = vadd.f32 %v4814, %v4822
    %v4829 = vadd.f32 %v4815, %v4822
    %v4830 = vadd.f32 %v4816, %v4822
    %v4831 = vxor.u32 %v4824, 2147483648
    %v4832 = vxor.u32 %v4825, 2147483648
    %v4833 = vxor.u32 %v4826, 2147483648
    %v4834 = vxor.u32 %v4827, 2147483648
    %v4835 = vxor.u32 %v4828, 2147483648
    %v4836 = vxor.u32 %v4829, 2147483648
    %v4837 = vxor.u32 %v4830, 2147483648
    %v4838 = vmul.f32 %v4831, 1.442695
    %v4839 = vpow.pop %v4838
    %v4840 = vmul.f32 %v4832, 1.442695
    %v4841 = vpow.pop %v4840
    %v4842 = vmul.f32 %v4833, 1.442695
    %v4843 = vpow.pop %v4842
    %v4844 = vmul.f32 %v4834, 1.442695
    %v4845 = vpow.pop %v4844
    %v4846 = vmul.f32 %v4835, 1.442695
    %v4847 = vpow.pop %v4846
    %v4848 = vmul.f32 %v4836, 1.442695
    %v4849 = vpow.pop %v4848
    %v4850 = vmul.f32 %v4837, 1.442695
    %v4851 = vpow.pop %v4850
    %v4852 = vadd.f32 %v4839, 1.0
    %v4853 = vadd.f32 %v4841, 1.0
    %v4854 = vadd.f32 %v4843, 1.0
    %v4855 = vadd.f32 %v4845, 1.0
    %v4856 = vadd.f32 %v4847, 1.0
    %v4857 = vadd.f32 %v4849, 1.0
    %v4858 = vadd.f32 %v4851, 1.0
    %v4859 = vrcp.pop %v4852
    %v4860 = vmul.f32 1.0, %v4859
    %v4861 = vrcp.pop %v4853
    %v4862 = vmul.f32 1.0, %v4861
    %v4863 = vrcp.pop %v4854
    %v4864 = vmul.f32 1.0, %v4863
    %v4865 = vrcp.pop %v4855
    %v4866 = vmul.f32 1.0, %v4865
    %v4867 = vrcp.pop %v4856
    %v4868 = vmul.f32 1.0, %v4867
    %v4869 = vrcp.pop %v4857
    %v4870 = vmul.f32 1.0, %v4869
    %v4871 = vrcp.pop %v4858
    %v4872 = vmul.f32 1.0, %v4871
    %v4873 = vmul.f32 %v4824, %v4860
    %v4874 = vmul.f32 %v4825, %v4862
    %v4875 = vmul.f32 %v4826, %v4864
    %v4876 = vmul.f32 %v4827, %v4866
    %v4877 = vmul.f32 %v4828, %v4868
    %v4878 = vmul.f32 %v4829, %v4870
    %v4879 = vmul.f32 %v4830, %v4872
    %4880 = vst.msk [vmem:[#allocation5 + $0x4] sm:$0xff] %vm3694, %v4873
    %4881 = vst.msk [vmem:[#allocation5 + $0xc] sm:$0xff] %vm3694, %v4874
    %4882 = vst.msk [vmem:[#allocation5 + $0x14] sm:$0xff] %vm3694, %v4875
    %4883 = vst.msk [vmem:[#allocation5 + $0x1c] sm:$0xf] %vm3321, %v4876
    %4884 = vst.msk [vmem:[#allocation5 + $0x20] sm:$0xf0] %vm3840, %v4876
    %4885 = vst.msk [vmem:[#allocation5 + $0x28] sm:$0xff] %vm3694, %v4877
    %4886 = vst.msk [vmem:[#allocation5 + $0x30] sm:$0xff] %vm3694, %v4878
    %4887 = vst.msk [vmem:[#allocation5 + $0x38] sm:$0xff] %vm3694, %v4879
    %v4888 = vld [vmem:[#allocation5] ss:$2 sm:$0xff]
    %s4889 = scalar_lea.vmem [#allocation5], 16
    %v4890 = vld [vmem:[%s4889] ss:$2 sm:$0xff]
    %s4891 = scalar_lea.vmem [#allocation5], 32
    %v4892 = vld [vmem:[%s4891] ss:$2 sm:$0xff]
    %s4893 = scalar_lea.vmem [#allocation5], 48
    %v4894 = vld [vmem:[%s4893] ss:$2 sm:$0xff]
    %s4895 = scalar_lea.vmem [#allocation5], 1
    %v4896 = vld [vmem:[%s4895] ss:$2 sm:$0xff]
    %s4897 = scalar_lea.vmem [#allocation5], 17
    %v4898 = vld [vmem:[%s4897] ss:$2 sm:$0xff]
    %s4899 = scalar_lea.vmem [#allocation5], 33
    %v4900 = vld [vmem:[%s4899] ss:$2 sm:$0xff]
    %s4901 = scalar_lea.vmem [#allocation5], 49
    %v4902 = vld [vmem:[%s4901] ss:$2 sm:$0xff]
    %v4903 = vmax.f32 %v4888, %v4896
    %v4904 = vmax.f32 %v4890, %v4898
    %v4905 = vmax.f32 %v4892, %v4900
    %v4906 = vmax.f32 %v4894, %v4902
    %vm4907 = vcmask 60416
    %4908 = vst.msk [vmem:[#allocation7] sm:$0xf] %vm4907, 0.0
    %4909 = vst.msk [vmem:[#allocation7 + $0x10] sm:$0xf] %vm4907, 0.0
    %v4912 = vrot.slane %v4903, 1
    %v4913 = vrot.slane %v4904, 1
    %v4914 = vsel %vm3328, %v4912, %v4913
    %4915 = vrot.lane.b32.xlu0 %v4914, 16
    %v4916 = vpop.permute.xlu0 %4915
    %4917 = vrot.lane.b32.xlu0 %v4913, 16
    %v4918 = vpop.permute.xlu0 %4917
    %v4921 = vrot.slane %v4903, 2
    %v4922 = vrot.slane %v4904, 2
    %v4923 = vsel %vm3348, %v4921, %v4922
    %4924 = vrot.lane.b32.xlu0 %v4923, 32
    %v4925 = vpop.permute.xlu0 %4924
    %4926 = vrot.lane.b32.xlu0 %v4922, 32
    %v4927 = vpop.permute.xlu0 %4926
    %v4930 = vrot.slane %v4903, 3
    %v4931 = vrot.slane %v4904, 3
    %v4932 = vsel %vm954, %v4930, %v4931
    %4933 = vrot.lane.b32.xlu0 %v4932, 48
    %v4934 = vpop.permute.xlu0 %4933
    %4935 = vrot.lane.b32.xlu0 %v4931, 48
    %v4936 = vpop.permute.xlu0 %4935
    %v4939 = vrot.slane %v4903, 4
    %v4940 = vrot.slane %v4904, 4
    %v4941 = vsel %vm853, %v4939, %v4940
    %4942 = vrot.lane.b32.xlu0 %v4941, 64
    %v4943 = vpop.permute.xlu0 %4942
    %4944 = vrot.lane.b32.xlu0 %v4940, 64
    %v4945 = vpop.permute.xlu0 %4944
    %v4948 = vsel %vm3694, %v4903, %v4916
    %v4949 = vsel %vm3694, %v4904, %v4918
    %v4950 = vsel %vm1098, %v4948, %v4925
    %v4951 = vsel %vm1098, %v4949, %v4927
    %v4952 = vsel %vm3937, %v4950, %v4934
    %v4953 = vsel %vm3937, %v4951, %v4936
    %v4954 = vsel %vm1529, %v4952, %v4943
    %v4955 = vsel %vm1529, %v4953, %v4945
    %4956 = vst.msk [vmem:[#allocation6] sm:$0xff] %vm3946, %v4954
    %4957 = vst.msk [vmem:[#allocation6 + $0x8] sm:$0xf] %vm3950, %v4955
    %v4960 = vrot.slane %v4905, 1
    %v4961 = vrot.slane %v4906, 1
    %v4962 = vsel %vm3328, %v4960, %v4961
    %4963 = vrot.lane.b32.xlu0 %v4962, 16
    %v4964 = vpop.permute.xlu0 %4963
    %4965 = vrot.lane.b32.xlu0 %v4961, 16
    %v4966 = vpop.permute.xlu0 %4965
    %v4969 = vrot.slane %v4905, 2
    %v4970 = vrot.slane %v4906, 2
    %v4971 = vsel %vm3348, %v4969, %v4970
    %4972 = vrot.lane.b32.xlu0 %v4971, 32
    %v4973 = vpop.permute.xlu0 %4972
    %4974 = vrot.lane.b32.xlu0 %v4970, 32
    %v4975 = vpop.permute.xlu0 %4974
    %v4978 = vrot.slane %v4905, 3
    %v4979 = vrot.slane %v4906, 3
    %v4980 = vsel %vm954, %v4978, %v4979
    %4981 = vrot.lane.b32.xlu0 %v4980, 48
    %v4982 = vpop.permute.xlu0 %4981
    %4983 = vrot.lane.b32.xlu0 %v4979, 48
    %v4984 = vpop.permute.xlu0 %4983
    %v4987 = vrot.slane %v4905, 4
    %v4988 = vrot.slane %v4906, 4
    %v4989 = vsel %vm853, %v4987, %v4988
    %4990 = vrot.lane.b32.xlu0 %v4989, 64
    %v4991 = vpop.permute.xlu0 %4990
    %4992 = vrot.lane.b32.xlu0 %v4988, 64
    %v4993 = vpop.permute.xlu0 %4992
    %v4996 = vsel %vm3694, %v4905, %v4964
    %v4997 = vsel %vm3694, %v4906, %v4966
    %v4998 = vsel %vm1098, %v4996, %v4973
    %v4999 = vsel %vm1098, %v4997, %v4975
    %v5000 = vsel %vm3937, %v4998, %v4982
    %v5001 = vsel %vm3937, %v4999, %v4984
    %v5002 = vsel %vm1529, %v5000, %v4991
    %v5003 = vsel %vm1529, %v5001, %v4993
    %5004 = vst.msk [vmem:[#allocation6 + $0xc] sm:$0xff] %vm3946, %v5002
    %5005 = vst.msk [vmem:[#allocation6 + $0x14] sm:$0xf] %vm3950, %v5003
    %v5006 = vld [vmem:[#allocation6] sm:$0xff]
    %v5007 = vld [vmem:[#allocation6 + $0x8] sm:$0xff]
    %v5008 = vld [vmem:[#allocation6 + $0x10] sm:$0xff]
    %v5009 = vld [vmem:[%s51] sm:$0xff]
    %v5010 = vld [vmem:[%s51 + $0x8] sm:$0xff]
    %v5011 = vld [vmem:[%s51 + $0x10] sm:$0xff]
    %v5012 = vld [vmem:[%s51 + $0x18] sm:$0xff]
    %v5013 = vld [vmem:[%s51 + $0x20] sm:$0xff]
    %v5014 = vld [vmem:[%s51 + $0x28] sm:$0xff]
    %v5015 = vld [vmem:[%s51 + $0x30] sm:$0xff]
    %v5016 = vld [vmem:[%s51 + $0x38] sm:$0xff]
    %v5017 = vld [vmem:[%s51 + $0x40] sm:$0xff]
    %v5018 = vld [vmem:[%s51 + $0x48] sm:$0xff]
    %v5019 = vld [vmem:[#allocation38] sm:$0x1]
    %v5021 = vlaneseq
    %v5022 = vshrl.u32 %v5021, 7
    %v5023 = vsub.s32 0, %v5022
    %v5024 = vrot.slane %v5019, %v5023
    %v5027 = vsel %vm3946, %v5006, 0
    %v5030 = vsel %vm3946, %v5007, 0
    %v5033 = vsel %vm3946, %v5008, 0
    %5035 = vmatprep.subr.mxu0 0.0
    %5036 = vmatpush1.msra.mxu0 %v5009
    %5037 = vmatprep.subr.mxu0 0.0
    %5038 = vmatpush1.msra.mxu0 %v5010
    %5039 = vmatprep.subr.mxu0 0.0
    %5040 = vmatpush1.msra.mxu0 %v5011
    %5041 = vmatprep.subr.mxu0 0.0
    %5042 = vmatpush1.msra.mxu0 %v5012
    %5043 = vmatprep.subr.mxu0 0.0
    %5044 = vmatpush1.msra.mxu0 %v5013
    %5045 = vmatprep.subr.mxu0 0.0
    %5046 = vmatpush1.msra.mxu0 %v5014
    %5047 = vmatprep.subr.mxu0 0.0
    %5048 = vmatpush1.msra.mxu0 %v5015
    %5049 = vmatprep.subr.mxu0 0.0
    %5050 = vmatpush1.msra.mxu0 %v5016
    %5051 = vmatprep.subr.mxu0 0.0
    %5052 = vmatpush1.msra.mxu0 %v5017
    %5053 = vmatprep.subr.mxu0 0.0
    %5054 = vmatpush1.msra.mxu0 %v5018
    %5055 = vmatprep.subr.mxu0 0.0
    %5056 = vmatpush1.msra.mxu0 0.0
    %5057 = vmatprep.subr.mxu0 0.0
    %5058 = vmatpush1.msra.mxu0 0.0
    %5059 = vmatprep.subr.mxu0 0.0
    %5060 = vmatpush1.msra.mxu0 0.0
    %5061 = vmatprep.subr.mxu0 0.0
    %5062 = vmatpush1.msra.mxu0 0.0
    %5063 = vmatprep.subr.mxu0 0.0
    %5064 = vmatpush1.msra.mxu0 0.0
    %5065 = vmatprep.subr.mxu0 0.0
    %5066 = vmatpush1.msra.mxu0 0.0
    %5067 = vmatprep.subr.mxu0 0.0
    %5068 = vmatpush1.msra.mxu0 0.0
    %5069 = vmatprep.subr.mxu0 0.0
    %5070 = vmatpush1.msra.mxu0 0.0
    %5071 = vmatprep.subr.mxu0 0.0
    %5072 = vmatpush1.msra.mxu0 0.0
    %5073 = vmatprep.subr.mxu0 0.0
    %5074 = vmatpush1.msra.mxu0 0.0
    %5075 = vmatprep.subr.mxu0 0.0
    %5076 = vmatpush1.msra.mxu0 0.0
    %5077 = vmatprep.subr.mxu0 0.0
    %5078 = vmatpush1.msra.mxu0 0.0
    %5079 = vmatprep.subr.mxu0 0.0
    %5080 = vmatpush1.msra.mxu0 0.0
    %5081 = vmatprep.subr.mxu0 0.0
    %5082 = vmatpush1.msra.mxu0 0.0
    %5083 = vmatprep.subr.mxu0 0.0
    %5084 = vmatpush1.msra.mxu0 0.0
    %5085 = vmatprep.subr.mxu0 0.0
    %5086 = vmatpush1.msra.mxu0 0.0
    %5087 = vmatprep.subr.mxu0 0.0
    %5088 = vmatpush1.msra.mxu0 0.0
    %5089 = vmatprep.subr.mxu0 0.0
    %5090 = vmatpush1.msra.mxu0 0.0
    %5091 = vmatprep.subr.mxu0 0.0
    %5092 = vmatpush1.msra.mxu0 0.0
    %5093 = vmatprep.subr.mxu0 0.0
    %5094 = vmatpush1.msra.mxu0 0.0
    %5095 = vmatprep.subr.mxu0 0.0
    %5096 = vmatpush1.msra.mxu0 0.0
    %5097 = vmatprep.subr.mxu0 0.0
    %5098 = vmatpush1.msra.mxu0 0.0
    %5099 = vmatprep.mubr.f32.mxu0 0.0
    %5100 = vmatmul.mubr.f32.gmra.mrb[0].mxu0 %v5027
    %v5101 = vpop.f32.mrb[0].mxu0
    %v5102 = vadd.f32 %v5024, %v5101
    %v5103 = vpop.f32.mrb[0].mxu0
    %5104 = vmatprep.mubr.f32.mxu0 0.0
    %5105 = vmatmul.mubr.f32.gmra.mrb[0].mxu0 %v5030
    %v5106 = vpop.f32.mrb[0].mxu0
    %v5107 = vadd.f32 %v5024, %v5106
    %v5108 = vpop.f32.mrb[0].mxu0
    %5109 = vmatprep.mubr.f32.mxu0 0.0
    %5110 = vmatmul.mubr.f32.gmra.mrb[0].mxu0 %v5033
    %v5111 = vpop.f32.mrb[0].mxu0
    %v5112 = vadd.f32 %v5024, %v5111
    %v5113 = vpop.f32.mrb[0].mxu0
    %5114 = vdwg.mxu0
    %vm5115 = vcmask 64512
    %v5116 = vsel %vm5115, %v5102, 0.0
    %v5117 = vsel %vm5115, %v5107, 0.0
    %v5118 = vadd.f32 %v5116, %v5117
    %v5119 = vsel %vm5115, %v5112, 0.0
    %v5120 = vadd.f32 %v5118, %v5119
    %v5121 = vrot.slane %v5120, 4
    %v5122 = vadd.f32 %v5120, %v5121
    %v5123 = vrot.slane %v5122, 2
    %v5124 = vadd.f32 %v5122, %v5123
    %v5125 = vrot.slane %v5124, 1
    %v5126 = vadd.f32 %v5124, %v5125
    %v5127 = vrcp.pop 24.0
    %v5128 = vmul.f32 %v5126, %v5127
    %v5129 = vsub.f32 %v5102, %v5128
    %v5130 = vsub.f32 %v5107, %v5128
    %v5131 = vsub.f32 %v5112, %v5128
    %v5132 = vmul.f32 %v5129, %v5129
    %v5133 = vmul.f32 %v5130, %v5130
    %v5134 = vmul.f32 %v5131, %v5131
    %v5135 = vsel %vm5115, %v5132, 0.0
    %v5136 = vsel %vm5115, %v5133, 0.0
    %v5137 = vadd.f32 %v5135, %v5136
    %v5138 = vsel %vm5115, %v5134, 0.0
    %v5139 = vadd.f32 %v5137, %v5138
    %v5140 = vrot.slane %v5139, 4
    %v5141 = vadd.f32 %v5139, %v5140
    %v5142 = vrot.slane %v5141, 2
    %v5143 = vadd.f32 %v5141, %v5142
    %v5144 = vrot.slane %v5143, 1
    %v5145 = vadd.f32 %v5143, %v5144
    %v5146 = vmul.f32 %v5145, %v5127
    %v5147 = vadd.f32 %v5146, 1e-05
    %v5148 = vrsqrt.pop %v5147
    %v5149 = vmul.f32 %v5129, %v5148
    %v5150 = vmul.f32 %v5130, %v5148
    %v5151 = vmul.f32 %v5131, %v5148
    %v5152 = vld [vmem:[%s55] sm:$0x1]
    %v5154 = vlaneseq
    %v5155 = vshrl.u32 %v5154, 7
    %v5156 = vsub.s32 0, %v5155
    %v5157 = vrot.slane %v5152, %v5156
    %v5159 = vmul.f32 %v5149, %v5157
    %v5160 = vmul.f32 %v5150, %v5157
    %v5161 = vmul.f32 %v5151, %v5157
    %v5162 = vld [vmem:[#allocation39] sm:$0x1]
    %v5164 = vlaneseq
    %v5165 = vshrl.u32 %v5164, 7
    %v5166 = vsub.s32 0, %v5165
    %v5167 = vrot.slane %v5162, %v5166
    %v5169 = vadd.f32 %v5159, %v5167
    %v5170 = vadd.f32 %v5160, %v5167
    %v5171 = vadd.f32 %v5161, %v5167
    %v5172 = vxor.u32 %v5169, 2147483648
    %v5173 = vxor.u32 %v5170, 2147483648
    %v5174 = vxor.u32 %v5171, 2147483648
    %v5175 = vmul.f32 %v5172, 1.442695
    %v5176 = vpow.pop %v5175
    %v5177 = vmul.f32 %v5173, 1.442695
    %v5178 = vpow.pop %v5177
    %v5179 = vmul.f32 %v5174, 1.442695
    %v5180 = vpow.pop %v5179
    %v5181 = vadd.f32 %v5176, 1.0
    %v5182 = vadd.f32 %v5178, 1.0
    %v5183 = vadd.f32 %v5180, 1.0
    %v5184 = vrcp.pop %v5181
    %v5185 = vmul.f32 1.0, %v5184
    %v5186 = vrcp.pop %v5182
    %v5187 = vmul.f32 1.0, %v5186
    %v5188 = vrcp.pop %v5183
    %v5189 = vmul.f32 1.0, %v5188
    %v5190 = vmul.f32 %v5169, %v5185
    %v5191 = vmul.f32 %v5170, %v5187
    %v5192 = vmul.f32 %v5171, %v5189
    %5193 = vst.msk [vmem:[#allocation7 + $0x4] sm:$0xff] %vm5115, %v5190
    %5194 = vst.msk [vmem:[#allocation7 + $0xc] sm:$0xf] %vm4907, %v5191
    %vm5195 = vcmask 64516
    %5196 = vst.msk [vmem:[#allocation7 + $0x10] sm:$0xf0] %vm5195, %v5191
    %5197 = vst.msk [vmem:[#allocation7 + $0x18] sm:$0xff] %vm5115, %v5192
    %v5198 = vld [vmem:[#allocation7] sm:$0xff]
    %v5199 = vld [vmem:[#allocation7 + $0x8] sm:$0xf]
    %v5200 = vld [vmem:[#allocation7 + $0x1] sm:$0xff]
    %v5201 = vld [vmem:[#allocation7 + $0x9] sm:$0xf]
    %v5202 = vld [vmem:[#allocation7 + $0x2] sm:$0xff]
    %v5203 = vld [vmem:[#allocation7 + $0xa] sm:$0xf]
    %v5204 = vld [vmem:[#allocation7 + $0x3] sm:$0xff]
    %v5205 = vld [vmem:[#allocation7 + $0xb] sm:$0xf]
    %v5206 = vld [vmem:[#allocation7 + $0x4] sm:$0xff]
    %v5207 = vld [vmem:[#allocation7 + $0xc] sm:$0xf]
    %5210 = vrot.lane.b32.xlu0 %v5200, 8
    %v5211 = vpop.permute.xlu0 %5210
    %5212 = vrot.lane.b32.xlu0 %v5201, 8
    %v5213 = vpop.permute.xlu0 %5212
    %5218 = vrot.lane.b32.xlu0 %v5202, 16
    %v5219 = vpop.permute.xlu0 %5218
    %5220 = vrot.lane.b32.xlu0 %v5203, 16
    %v5221 = vpop.permute.xlu0 %5220
    %5226 = vrot.lane.b32.xlu0 %v5204, 24
    %v5227 = vpop.permute.xlu0 %5226
    %5228 = vrot.lane.b32.xlu0 %v5205, 24
    %v5229 = vpop.permute.xlu0 %5228
    %5234 = vrot.lane.b32.xlu0 %v5206, 32
    %v5235 = vpop.permute.xlu0 %5234
    %5236 = vrot.lane.b32.xlu0 %v5207, 32
    %v5237 = vpop.permute.xlu0 %5236
    %v5240 = vsel %vm5115, %v5198, %v5211
    %v5241 = vsel %vm5115, %v5199, %v5213
    %v5242 = vsel %vm3694, %v5240, %v5219
    %v5243 = vsel %vm3694, %v5241, %v5221
    %vm5244 = vcmask 195584
    %v5245 = vsel %vm5244, %v5242, %v5227
    %v5246 = vsel %vm5244, %v5243, %v5229
    %v5247 = vsel %vm1098, %v5245, %v5235
    %v5248 = vsel %vm1098, %v5246, %v5237
    %vm5249 = vcmask 326656
    %5250 = vst.msk [vmem:[#allocation6] sm:$0xff] %vm5249, %v5247
    %vm5251 = vcmask 322560
    %5252 = vst.msk [vmem:[#allocation6 + $0x8] sm:$0xf] %vm5251, %v5248
    %v5253 = vld [vmem:[#allocation7 + $0x10] sm:$0xff]
    %v5254 = vld [vmem:[#allocation7 + $0x18] sm:$0xf]
    %v5255 = vld [vmem:[#allocation7 + $0x11] sm:$0xff]
    %v5256 = vld [vmem:[#allocation7 + $0x19] sm:$0xf]
    %v5257 = vld [vmem:[#allocation7 + $0x12] sm:$0xff]
    %v5258 = vld [vmem:[#allocation7 + $0x1a] sm:$0xf]
    %v5259 = vld [vmem:[#allocation7 + $0x13] sm:$0xff]
    %v5260 = vld [vmem:[#allocation7 + $0x1b] sm:$0xf]
    %v5261 = vld [vmem:[#allocation7 + $0x14] sm:$0xff]
    %v5262 = vld [vmem:[#allocation7 + $0x1c] sm:$0xf]
    %5265 = vrot.lane.b32.xlu0 %v5255, 8
    %v5266 = vpop.permute.xlu0 %5265
    %5267 = vrot.lane.b32.xlu0 %v5256, 8
    %v5268 = vpop.permute.xlu0 %5267
    %5273 = vrot.lane.b32.xlu0 %v5257, 16
    %v5274 = vpop.permute.xlu0 %5273
    %5275 = vrot.lane.b32.xlu0 %v5258, 16
    %v5276 = vpop.permute.xlu0 %5275
    %5281 = vrot.lane.b32.xlu0 %v5259, 24
    %v5282 = vpop.permute.xlu0 %5281
    %5283 = vrot.lane.b32.xlu0 %v5260, 24
    %v5284 = vpop.permute.xlu0 %5283
    %5289 = vrot.lane.b32.xlu0 %v5261, 32
    %v5290 = vpop.permute.xlu0 %5289
    %5291 = vrot.lane.b32.xlu0 %v5262, 32
    %v5292 = vpop.permute.xlu0 %5291
    %v5295 = vsel %vm5115, %v5253, %v5266
    %v5296 = vsel %vm5115, %v5254, %v5268
    %v5297 = vsel %vm3694, %v5295, %v5274
    %v5298 = vsel %vm3694, %v5296, %v5276
    %v5299 = vsel %vm5244, %v5297, %v5282
    %v5300 = vsel %vm5244, %v5298, %v5284
    %v5301 = vsel %vm1098, %v5299, %v5290
    %v5302 = vsel %vm1098, %v5300, %v5292
    %5303 = vst.msk [vmem:[#allocation6 + $0xc] sm:$0xff] %vm5249, %v5301
    %5304 = vst.msk [vmem:[#allocation6 + $0x14] sm:$0xf] %vm5251, %v5302
    %v5305 = vld [vmem:[#allocation6] sm:$0xff]
    %v5306 = vld [vmem:[#allocation6 + $0x8] sm:$0xff]
    %v5307 = vld [vmem:[#allocation6 + $0x10] sm:$0xff]
    %v5308 = vld [vmem:[%s59] sm:$0xff]
    %v5309 = vld [vmem:[%s59 + $0x8] sm:$0xff]
    %v5310 = vld [vmem:[%s59 + $0x10] sm:$0xff]
    %v5311 = vld [vmem:[%s59 + $0x18] sm:$0xff]
    %v5312 = vld [vmem:[%s59 + $0x20] sm:$0xff]
    %v5313 = vld [vmem:[#allocation41] sm:$0x1]
    %v5315 = vlaneseq
    %v5316 = vshrl.u32 %v5315, 7
    %v5317 = vsub.s32 0, %v5316
    %v5318 = vrot.slane %v5313, %v5317
    %v5321 = vsel %vm5249, %v5305, 0
    %v5324 = vsel %vm5249, %v5306, 0
    %v5327 = vsel %vm5249, %v5307, 0
    %5329 = vmatprep.subr.mxu0 0.0
    %5330 = vmatpush1.msra.mxu0 %v5308
    %5331 = vmatprep.subr.mxu0 0.0
    %5332 = vmatpush1.msra.mxu0 %v5309
    %5333 = vmatprep.subr.mxu0 0.0
    %5334 = vmatpush1.msra.mxu0 %v5310
    %5335 = vmatprep.subr.mxu0 0.0
    %5336 = vmatpush1.msra.mxu0 %v5311
    %5337 = vmatprep.subr.mxu0 0.0
    %5338 = vmatpush1.msra.mxu0 %v5312
    %5339 = vmatprep.subr.mxu0 0.0
    %5340 = vmatpush1.msra.mxu0 0.0
    %5341 = vmatprep.subr.mxu0 0.0
    %5342 = vmatpush1.msra.mxu0 0.0
    %5343 = vmatprep.subr.mxu0 0.0
    %5344 = vmatpush1.msra.mxu0 0.0
    %5345 = vmatprep.subr.mxu0 0.0
    %5346 = vmatpush1.msra.mxu0 0.0
    %5347 = vmatprep.subr.mxu0 0.0
    %5348 = vmatpush1.msra.mxu0 0.0
    %5349 = vmatprep.subr.mxu0 0.0
    %5350 = vmatpush1.msra.mxu0 0.0
    %5351 = vmatprep.subr.mxu0 0.0
    %5352 = vmatpush1.msra.mxu0 0.0
    %5353 = vmatprep.subr.mxu0 0.0
    %5354 = vmatpush1.msra.mxu0 0.0
    %5355 = vmatprep.subr.mxu0 0.0
    %5356 = vmatpush1.msra.mxu0 0.0
    %5357 = vmatprep.subr.mxu0 0.0
    %5358 = vmatpush1.msra.mxu0 0.0
    %5359 = vmatprep.subr.mxu0 0.0
    %5360 = vmatpush1.msra.mxu0 0.0
    %5361 = vmatprep.subr.mxu0 0.0
    %5362 = vmatpush1.msra.mxu0 0.0
    %5363 = vmatprep.subr.mxu0 0.0
    %5364 = vmatpush1.msra.mxu0 0.0
    %5365 = vmatprep.subr.mxu0 0.0
    %5366 = vmatpush1.msra.mxu0 0.0
    %5367 = vmatprep.subr.mxu0 0.0
    %5368 = vmatpush1.msra.mxu0 0.0
    %5369 = vmatprep.subr.mxu0 0.0
    %5370 = vmatpush1.msra.mxu0 0.0
    %5371 = vmatprep.subr.mxu0 0.0
    %5372 = vmatpush1.msra.mxu0 0.0
    %5373 = vmatprep.subr.mxu0 0.0
    %5374 = vmatpush1.msra.mxu0 0.0
    %5375 = vmatprep.subr.mxu0 0.0
    %5376 = vmatpush1.msra.mxu0 0.0
    %5377 = vmatprep.subr.mxu0 0.0
    %5378 = vmatpush1.msra.mxu0 0.0
    %5379 = vmatprep.subr.mxu0 0.0
    %5380 = vmatpush1.msra.mxu0 0.0
    %5381 = vmatprep.subr.mxu0 0.0
    %5382 = vmatpush1.msra.mxu0 0.0
    %5383 = vmatprep.subr.mxu0 0.0
    %5384 = vmatpush1.msra.mxu0 0.0
    %5385 = vmatprep.subr.mxu0 0.0
    %5386 = vmatpush1.msra.mxu0 0.0
    %5387 = vmatprep.subr.mxu0 0.0
    %5388 = vmatpush1.msra.mxu0 0.0
    %5389 = vmatprep.subr.mxu0 0.0
    %5390 = vmatpush1.msra.mxu0 0.0
    %5391 = vmatprep.subr.mxu0 0.0
    %5392 = vmatpush1.msra.mxu0 0.0
    %5393 = vmatprep.mubr.f32.mxu0 0.0
    %5394 = vmatmul.mubr.f32.gmra.mrb[0].mxu0 %v5321
    %v5395 = vpop.f32.mrb[0].mxu0
    %v5396 = vadd.f32 %v5318, %v5395
    %v5397 = vpop.f32.mrb[0].mxu0
    %5398 = vmatprep.mubr.f32.mxu0 0.0
    %5399 = vmatmul.mubr.f32.gmra.mrb[0].mxu0 %v5324
    %v5400 = vpop.f32.mrb[0].mxu0
    %v5401 = vadd.f32 %v5318, %v5400
    %v5402 = vpop.f32.mrb[0].mxu0
    %5403 = vmatprep.mubr.f32.mxu0 0.0
    %5404 = vmatmul.mubr.f32.gmra.mrb[0].mxu0 %v5327
    %v5405 = vpop.f32.mrb[0].mxu0
    %v5406 = vadd.f32 %v5318, %v5405
    %v5407 = vpop.f32.mrb[0].mxu0
    %5408 = vdwg.mxu0
    %v5409 = vsel %vm5115, %v5396, 0.0
    %v5410 = vsel %vm5115, %v5401, 0.0
    %v5411 = vadd.f32 %v5409, %v5410
    %v5412 = vsel %vm5115, %v5406, 0.0
    %v5413 = vadd.f32 %v5411, %v5412
    %v5414 = vrot.slane %v5413, 4
    %v5415 = vadd.f32 %v5413, %v5414
    %v5416 = vrot.slane %v5415, 2
    %v5417 = vadd.f32 %v5415, %v5416
    %v5418 = vrot.slane %v5417, 1
    %v5419 = vadd.f32 %v5417, %v5418
    %v5420 = vmul.f32 %v5419, %v5127
    %v5421 = vsub.f32 %v5396, %v5420
    %v5422 = vsub.f32 %v5401, %v5420
    %v5423 = vsub.f32 %v5406, %v5420
    %v5424 = vmul.f32 %v5421, %v5421
    %v5425 = vmul.f32 %v5422, %v5422
    %v5426 = vmul.f32 %v5423, %v5423
    %v5427 = vsel %vm5115, %v5424, 0.0
    %v5428 = vsel %vm5115, %v5425, 0.0
    %v5429 = vadd.f32 %v5427, %v5428
    %v5430 = vsel %vm5115, %v5426, 0.0
    %v5431 = vadd.f32 %v5429, %v5430
    %v5432 = vrot.slane %v5431, 4
    %v5433 = vadd.f32 %v5431, %v5432
    %v5434 = vrot.slane %v5433, 2
    %v5435 = vadd.f32 %v5433, %v5434
    %v5436 = vrot.slane %v5435, 1
    %v5437 = vadd.f32 %v5435, %v5436
    %v5438 = vmul.f32 %v5437, %v5127
    %v5439 = vadd.f32 %v5438, 1e-05
    %v5440 = vrsqrt.pop %v5439
    %v5441 = vmul.f32 %v5421, %v5440
    %v5442 = vmul.f32 %v5422, %v5440
    %v5443 = vmul.f32 %v5423, %v5440
    %v5444 = vld [vmem:[%s63] sm:$0x1]
    %v5446 = vlaneseq
    %v5447 = vshrl.u32 %v5446, 7
    %v5448 = vsub.s32 0, %v5447
    %v5449 = vrot.slane %v5444, %v5448
    %v5451 = vmul.f32 %v5441, %v5449
    %v5452 = vmul.f32 %v5442, %v5449
    %v5453 = vmul.f32 %v5443, %v5449
    %v5454 = vld [vmem:[#allocation42] sm:$0x1]
    %v5456 = vlaneseq
    %v5457 = vshrl.u32 %v5456, 7
    %v5458 = vsub.s32 0, %v5457
    %v5459 = vrot.slane %v5454, %v5458
    %v5461 = vadd.f32 %v5451, %v5459
    %v5462 = vadd.f32 %v5452, %v5459
    %v5463 = vadd.f32 %v5453, %v5459
    %v5464 = vxor.u32 %v5461, 2147483648
    %v5465 = vxor.u32 %v5462, 2147483648
    %v5466 = vxor.u32 %v5463, 2147483648
    %v5467 = vmul.f32 %v5464, 1.442695
    %v5468 = vpow.pop %v5467
    %v5469 = vmul.f32 %v5465, 1.442695
    %v5470 = vpow.pop %v5469
    %v5471 = vmul.f32 %v5466, 1.442695
    %v5472 = vpow.pop %v5471
    %v5473 = vadd.f32 %v5468, 1.0
    %v5474 = vadd.f32 %v5470, 1.0
    %v5475 = vadd.f32 %v5472, 1.0
    %v5476 = vrcp.pop %v5473
    %v5477 = vmul.f32 1.0, %v5476
    %v5478 = vrcp.pop %v5474
    %v5479 = vmul.f32 1.0, %v5478
    %v5480 = vrcp.pop %v5475
    %v5481 = vmul.f32 1.0, %v5480
    %v5482 = vmul.f32 %v5461, %v5477
    %v5483 = vmul.f32 %v5462, %v5479
    %v5484 = vmul.f32 %v5463, %v5481
    %5485 = vst.msk [vmem:[#allocation7 + $0x4] sm:$0xff] %vm5115, %v5482
    %5486 = vst.msk [vmem:[#allocation7 + $0xc] sm:$0xf] %vm4907, %v5483
    %5487 = vst.msk [vmem:[#allocation7 + $0x10] sm:$0xf0] %vm5195, %v5483
    %5488 = vst.msk [vmem:[#allocation7 + $0x18] sm:$0xff] %vm5115, %v5484
    %v5489 = vld [vmem:[#allocation7] sm:$0xff]
    %v5490 = vld [vmem:[#allocation7 + $0x8] sm:$0xf]
    %v5491 = vld [vmem:[#allocation7 + $0x1] sm:$0xff]
    %v5492 = vld [vmem:[#allocation7 + $0x9] sm:$0xf]
    %v5493 = vld [vmem:[#allocation7 + $0x2] sm:$0xff]
    %v5494 = vld [vmem:[#allocation7 + $0xa] sm:$0xf]
    %v5495 = vld [vmem:[#allocation7 + $0x3] sm:$0xff]
    %v5496 = vld [vmem:[#allocation7 + $0xb] sm:$0xf]
    %v5497 = vld [vmem:[#allocation7 + $0x4] sm:$0xff]
    %v5498 = vld [vmem:[#allocation7 + $0xc] sm:$0xf]
    %5501 = vrot.lane.b32.xlu0 %v5491, 8
    %v5502 = vpop.permute.xlu0 %5501
    %5503 = vrot.lane.b32.xlu0 %v5492, 8
    %v5504 = vpop.permute.xlu0 %5503
    %5509 = vrot.lane.b32.xlu0 %v5493, 16
    %v5510 = vpop.permute.xlu0 %5509
    %5511 = vrot.lane.b32.xlu0 %v5494, 16
    %v5512 = vpop.permute.xlu0 %5511
    %5517 = vrot.lane.b32.xlu0 %v5495, 24
    %v5518 = vpop.permute.xlu0 %5517
    %5519 = vrot.lane.b32.xlu0 %v5496, 24
    %v5520 = vpop.permute.xlu0 %5519
    %5525 = vrot.lane.b32.xlu0 %v5497, 32
    %v5526 = vpop.permute.xlu0 %5525
    %5527 = vrot.lane.b32.xlu0 %v5498, 32
    %v5528 = vpop.permute.xlu0 %5527
    %v5531 = vsel %vm5115, %v5489, %v5502
    %v5532 = vsel %vm5115, %v5490, %v5504
    %v5533 = vsel %vm3694, %v5531, %v5510
    %v5534 = vsel %vm3694, %v5532, %v5512
    %v5535 = vsel %vm5244, %v5533, %v5518
    %v5536 = vsel %vm5244, %v5534, %v5520
    %v5537 = vsel %vm1098, %v5535, %v5526
    %v5538 = vsel %vm1098, %v5536, %v5528
    %5539 = vst.msk [vmem:[#allocation6] sm:$0xff] %vm5249, %v5537
    %5540 = vst.msk [vmem:[#allocation6 + $0x8] sm:$0xf] %vm5251, %v5538
    %v5541 = vld [vmem:[#allocation7 + $0x10] sm:$0xff]
    %v5542 = vld [vmem:[#allocation7 + $0x18] sm:$0xf]
    %v5543 = vld [vmem:[#allocation7 + $0x11] sm:$0xff]
    %v5544 = vld [vmem:[#allocation7 + $0x19] sm:$0xf]
    %v5545 = vld [vmem:[#allocation7 + $0x12] sm:$0xff]
    %v5546 = vld [vmem:[#allocation7 + $0x1a] sm:$0xf]
    %v5547 = vld [vmem:[#allocation7 + $0x13] sm:$0xff]
    %v5548 = vld [vmem:[#allocation7 + $0x1b] sm:$0xf]
    %v5549 = vld [vmem:[#allocation7 + $0x14] sm:$0xff]
    %v5550 = vld [vmem:[#allocation7 + $0x1c] sm:$0xf]
    %5553 = vrot.lane.b32.xlu0 %v5543, 8
    %v5554 = vpop.permute.xlu0 %5553
    %5555 = vrot.lane.b32.xlu0 %v5544, 8
    %v5556 = vpop.permute.xlu0 %5555
    %5561 = vrot.lane.b32.xlu0 %v5545, 16
    %v5562 = vpop.permute.xlu0 %5561
    %5563 = vrot.lane.b32.xlu0 %v5546, 16
    %v5564 = vpop.permute.xlu0 %5563
    %5569 = vrot.lane.b32.xlu0 %v5547, 24
    %v5570 = vpop.permute.xlu0 %5569
    %5571 = vrot.lane.b32.xlu0 %v5548, 24
    %v5572 = vpop.permute.xlu0 %5571
    %5577 = vrot.lane.b32.xlu0 %v5549, 32
    %v5578 = vpop.permute.xlu0 %5577
    %5579 = vrot.lane.b32.xlu0 %v5550, 32
    %v5580 = vpop.permute.xlu0 %5579
    %v5583 = vsel %vm5115, %v5541, %v5554
    %v5584 = vsel %vm5115, %v5542, %v5556
    %v5585 = vsel %vm3694, %v5583, %v5562
    %v5586 = vsel %vm3694, %v5584, %v5564
    %v5587 = vsel %vm5244, %v5585, %v5570
    %v5588 = vsel %vm5244, %v5586, %v5572
    %v5589 = vsel %vm1098, %v5587, %v5578
    %v5590 = vsel %vm1098, %v5588, %v5580
    %5591 = vst.msk [vmem:[#allocation6 + $0xc] sm:$0xff] %vm5249, %v5589
    %5592 = vst.msk [vmem:[#allocation6 + $0x14] sm:$0xf] %vm5251, %v5590
    %v5593 = vld [vmem:[#allocation6] sm:$0xff]
    %v5594 = vld [vmem:[#allocation6 + $0x8] sm:$0xff]
    %v5595 = vld [vmem:[#allocation6 + $0x10] sm:$0xff]
    %v5596 = vld [vmem:[%s67] sm:$0xff]
    %v5597 = vld [vmem:[%s67 + $0x8] sm:$0xff]
    %v5598 = vld [vmem:[%s67 + $0x10] sm:$0xff]
    %v5599 = vld [vmem:[%s67 + $0x18] sm:$0xff]
    %v5600 = vld [vmem:[%s67 + $0x20] sm:$0xff]
    %v5601 = vld [vmem:[#allocation44] sm:$0x1]
    %v5603 = vlaneseq
    %v5604 = vshrl.u32 %v5603, 7
    %v5605 = vsub.s32 0, %v5604
    %v5606 = vrot.slane %v5601, %v5605
    %v5609 = vsel %vm5249, %v5593, 0
    %v5612 = vsel %vm5249, %v5594, 0
    %v5615 = vsel %vm5249, %v5595, 0
    %5617 = vmatprep.subr.mxu0 0.0
    %5618 = vmatpush1.msra.mxu0 %v5596
    %5619 = vmatprep.subr.mxu0 0.0
    %5620 = vmatpush1.msra.mxu0 %v5597
    %5621 = vmatprep.subr.mxu0 0.0
    %5622 = vmatpush1.msra.mxu0 %v5598
    %5623 = vmatprep.subr.mxu0 0.0
    %5624 = vmatpush1.msra.mxu0 %v5599
    %5625 = vmatprep.subr.mxu0 0.0
    %5626 = vmatpush1.msra.mxu0 %v5600
    %5627 = vmatprep.subr.mxu0 0.0
    %5628 = vmatpush1.msra.mxu0 0.0
    %5629 = vmatprep.subr.mxu0 0.0
    %5630 = vmatpush1.msra.mxu0 0.0
    %5631 = vmatprep.subr.mxu0 0.0
    %5632 = vmatpush1.msra.mxu0 0.0
    %5633 = vmatprep.subr.mxu0 0.0
    %5634 = vmatpush1.msra.mxu0 0.0
    %5635 = vmatprep.subr.mxu0 0.0
    %5636 = vmatpush1.msra.mxu0 0.0
    %5637 = vmatprep.subr.mxu0 0.0
    %5638 = vmatpush1.msra.mxu0 0.0
    %5639 = vmatprep.subr.mxu0 0.0
    %5640 = vmatpush1.msra.mxu0 0.0
    %5641 = vmatprep.subr.mxu0 0.0
    %5642 = vmatpush1.msra.mxu0 0.0
    %5643 = vmatprep.subr.mxu0 0.0
    %5644 = vmatpush1.msra.mxu0 0.0
    %5645 = vmatprep.subr.mxu0 0.0
    %5646 = vmatpush1.msra.mxu0 0.0
    %5647 = vmatprep.subr.mxu0 0.0
    %5648 = vmatpush1.msra.mxu0 0.0
    %5649 = vmatprep.subr.mxu0 0.0
    %5650 = vmatpush1.msra.mxu0 0.0
    %5651 = vmatprep.subr.mxu0 0.0
    %5652 = vmatpush1.msra.mxu0 0.0
    %5653 = vmatprep.subr.mxu0 0.0
    %5654 = vmatpush1.msra.mxu0 0.0
    %5655 = vmatprep.subr.mxu0 0.0
    %5656 = vmatpush1.msra.mxu0 0.0
    %5657 = vmatprep.subr.mxu0 0.0
    %5658 = vmatpush1.msra.mxu0 0.0
    %5659 = vmatprep.subr.mxu0 0.0
    %5660 = vmatpush1.msra.mxu0 0.0
    %5661 = vmatprep.subr.mxu0 0.0
    %5662 = vmatpush1.msra.mxu0 0.0
    %5663 = vmatprep.subr.mxu0 0.0
    %5664 = vmatpush1.msra.mxu0 0.0
    %5665 = vmatprep.subr.mxu0 0.0
    %5666 = vmatpush1.msra.mxu0 0.0
    %5667 = vmatprep.subr.mxu0 0.0
    %5668 = vmatpush1.msra.mxu0 0.0
    %5669 = vmatprep.subr.mxu0 0.0
    %5670 = vmatpush1.msra.mxu0 0.0
    %5671 = vmatprep.subr.mxu0 0.0
    %5672 = vmatpush1.msra.mxu0 0.0
    %5673 = vmatprep.subr.mxu0 0.0
    %5674 = vmatpush1.msra.mxu0 0.0
    %5675 = vmatprep.subr.mxu0 0.0
    %5676 = vmatpush1.msra.mxu0 0.0
    %5677 = vmatprep.subr.mxu0 0.0
    %5678 = vmatpush1.msra.mxu0 0.0
    %5679 = vmatprep.subr.mxu0 0.0
    %5680 = vmatpush1.msra.mxu0 0.0
    %5681 = vmatprep.mubr.f32.mxu0 0.0
    %5682 = vmatmul.mubr.f32.gmra.mrb[0].mxu0 %v5609
    %v5683 = vpop.f32.mrb[0].mxu0
    %v5684 = vadd.f32 %v5606, %v5683
    %v5685 = vpop.f32.mrb[0].mxu0
    %5686 = vmatprep.mubr.f32.mxu0 0.0
    %5687 = vmatmul.mubr.f32.gmra.mrb[0].mxu0 %v5612
    %v5688 = vpop.f32.mrb[0].mxu0
    %v5689 = vadd.f32 %v5606, %v5688
    %v5690 = vpop.f32.mrb[0].mxu0
    %5691 = vmatprep.mubr.f32.mxu0 0.0
    %5692 = vmatmul.mubr.f32.gmra.mrb[0].mxu0 %v5615
    %v5693 = vpop.f32.mrb[0].mxu0
    %v5694 = vadd.f32 %v5606, %v5693
    %v5695 = vpop.f32.mrb[0].mxu0
    %5696 = vdwg.mxu0
    %v5697 = vadd.f32 %v5102, %v5684
    %v5698 = vadd.f32 %v5107, %v5689
    %v5699 = vadd.f32 %v5112, %v5694
    %v5700 = vsel %vm5115, %v5697, 0.0
    %v5701 = vsel %vm5115, %v5698, 0.0
    %v5702 = vadd.f32 %v5700, %v5701
    %v5703 = vsel %vm5115, %v5699, 0.0
    %v5704 = vadd.f32 %v5702, %v5703
    %v5705 = vrot.slane %v5704, 4
    %v5706 = vadd.f32 %v5704, %v5705
    %v5707 = vrot.slane %v5706, 2
    %v5708 = vadd.f32 %v5706, %v5707
    %v5709 = vrot.slane %v5708, 1
    %v5710 = vadd.f32 %v5708, %v5709
    %v5711 = vmul.f32 %v5710, %v5127
    %v5712 = vsub.f32 %v5697, %v5711
    %v5713 = vsub.f32 %v5698, %v5711
    %v5714 = vsub.f32 %v5699, %v5711
    %v5715 = vmul.f32 %v5712, %v5712
    %v5716 = vmul.f32 %v5713, %v5713
    %v5717 = vmul.f32 %v5714, %v5714
    %v5718 = vsel %vm5115, %v5715, 0.0
    %v5719 = vsel %vm5115, %v5716, 0.0
    %v5720 = vadd.f32 %v5718, %v5719
    %v5721 = vsel %vm5115, %v5717, 0.0
    %v5722 = vadd.f32 %v5720, %v5721
    %v5723 = vrot.slane %v5722, 4
    %v5724 = vadd.f32 %v5722, %v5723
    %v5725 = vrot.slane %v5724, 2
    %v5726 = vadd.f32 %v5724, %v5725
    %v5727 = vrot.slane %v5726, 1
    %v5728 = vadd.f32 %v5726, %v5727
    %v5729 = vmul.f32 %v5728, %v5127
    %v5730 = vadd.f32 %v5729, 1e-05
    %v5731 = vrsqrt.pop %v5730
    %v5732 = vmul.f32 %v5712, %v5731
    %v5733 = vmul.f32 %v5713, %v5731
    %v5734 = vmul.f32 %v5714, %v5731
    %v5735 = vld [vmem:[%s71] sm:$0x1]
    %v5737 = vlaneseq
    %v5738 = vshrl.u32 %v5737, 7
    %v5739 = vsub.s32 0, %v5738
    %v5740 = vrot.slane %v5735, %v5739
    %v5742 = vmul.f32 %v5732, %v5740
    %v5743 = vmul.f32 %v5733, %v5740
    %v5744 = vmul.f32 %v5734, %v5740
    %v5745 = vld [vmem:[%s73] sm:$0x1]
    %v5747 = vlaneseq
    %v5748 = vshrl.u32 %v5747, 7
    %v5749 = vsub.s32 0, %v5748
    %v5750 = vrot.slane %v5745, %v5749
    %v5752 = vadd.f32 %v5742, %v5750
    %v5753 = vadd.f32 %v5743, %v5750
    %v5754 = vadd.f32 %v5744, %v5750
    %v5755 = vxor.u32 %v5752, 2147483648
    %v5756 = vxor.u32 %v5753, 2147483648
    %v5757 = vxor.u32 %v5754, 2147483648
    %v5758 = vmul.f32 %v5755, 1.442695
    %v5759 = vpow.pop %v5758
    %v5760 = vmul.f32 %v5756, 1.442695
    %v5761 = vpow.pop %v5760
    %v5762 = vmul.f32 %v5757, 1.442695
    %v5763 = vpow.pop %v5762
    %v5764 = vadd.f32 %v5759, 1.0
    %v5765 = vadd.f32 %v5761, 1.0
    %v5766 = vadd.f32 %v5763, 1.0
    %v5767 = vrcp.pop %v5764
    %v5768 = vmul.f32 1.0, %v5767
    %v5769 = vrcp.pop %v5765
    %v5770 = vmul.f32 1.0, %v5769
    %v5771 = vrcp.pop %v5766
    %v5772 = vmul.f32 1.0, %v5771
    %v5773 = vmul.f32 %v5752, %v5768
    %v5774 = vmul.f32 %v5753, %v5770
    %v5775 = vmul.f32 %v5754, %v5772
    %5776 = vst.msk [vmem:[#allocation7 + $0x4] sm:$0xff] %vm5115, %v5773
    %5777 = vst.msk [vmem:[#allocation7 + $0xc] sm:$0xf] %vm4907, %v5774
    %5778 = vst.msk [vmem:[#allocation7 + $0x10] sm:$0xf0] %vm5195, %v5774
    %5779 = vst.msk [vmem:[#allocation7 + $0x18] sm:$0xff] %vm5115, %v5775
    %v5780 = vld [vmem:[#allocation7] ss:$2 sm:$0xff]
    %s5781 = scalar_lea.vmem [#allocation7], 16
    %v5782 = vld [vmem:[%s5781] ss:$2 sm:$0xff]
    %s5783 = scalar_lea.vmem [#allocation7], 1
    %v5784 = vld [vmem:[%s5783] ss:$2 sm:$0xff]
    %s5785 = scalar_lea.vmem [#allocation7], 17
    %v5786 = vld [vmem:[%s5785] ss:$2 sm:$0xff]
    %v5787 = vmax.f32 %v5780, %v5784
    %v5788 = vmax.f32 %v5782, %v5786
    %v5789 = vsel %vm5115, %v5787, 0.0
    %v5790 = vrot.slane %v5789, 4
    %v5791 = vadd.f32 %v5789, %v5790
    %v5792 = vrot.slane %v5791, 2
    %v5793 = vadd.f32 %v5791, %v5792
    %v5794 = vrot.slane %v5793, 1
    %v5795 = vadd.f32 %v5793, %v5794
    %v5796 = vrcp.pop 8.0
    %v5797 = vmul.f32 %v5795, %v5796
    %vm5798 = vcmask 57344
    %5799 = vst.msk [vmem:[#allocation8] sm:$0x1] %vm5798, %v5797
    %v5800 = vsel %vm5115, %v5788, 0.0
    %v5801 = vrot.slane %v5800, 4
    %v5802 = vadd.f32 %v5800, %v5801
    %v5803 = vrot.slane %v5802, 2
    %v5804 = vadd.f32 %v5802, %v5803
    %v5805 = vrot.slane %v5804, 1
    %v5806 = vadd.f32 %v5804, %v5805
    %v5807 = vmul.f32 %v5806, %v5796
    %5808 = vst.msk [vmem:[#allocation8 + $0x1] sm:$0x1] %vm5798, %v5807
    %v5809 = vld [vmem:[#allocation8] sm:$0x3]
    %v5810 = vld [vmem:[%s75] sm:$0xff]
    %v5811 = vld [vmem:[%s77] sm:$0x1]
    %v5813 = vlaneseq
    %v5814 = vshrl.u32 %v5813, 7
    %v5815 = vsub.s32 0, %v5814
    %v5816 = vrot.slane %v5811, %v5815
    %v5819 = vsel %vm5115, %v5809, 0
    %5821 = vmatprep.subr.mxu0 0.0
    %5822 = vmatpush1.msra.mxu0 %v5810
    %5823 = vmatprep.subr.mxu0 0.0
    %5824 = vmatpush1.msra.mxu0 0.0
    %5825 = vmatprep.subr.mxu0 0.0
    %5826 = vmatpush1.msra.mxu0 0.0
    %5827 = vmatprep.subr.mxu0 0.0
    %5828 = vmatpush1.msra.mxu0 0.0
    %5829 = vmatprep.subr.mxu0 0.0
    %5830 = vmatpush1.msra.mxu0 0.0
    %5831 = vmatprep.subr.mxu0 0.0
    %5832 = vmatpush1.msra.mxu0 0.0
    %5833 = vmatprep.subr.mxu0 0.0
    %5834 = vmatpush1.msra.mxu0 0.0
    %5835 = vmatprep.subr.mxu0 0.0
    %5836 = vmatpush1.msra.mxu0 0.0
    %5837 = vmatprep.subr.mxu0 0.0
    %5838 = vmatpush1.msra.mxu0 0.0
    %5839 = vmatprep.subr.mxu0 0.0
    %5840 = vmatpush1.msra.mxu0 0.0
    %5841 = vmatprep.subr.mxu0 0.0
    %5842 = vmatpush1.msra.mxu0 0.0
    %5843 = vmatprep.subr.mxu0 0.0
    %5844 = vmatpush1.msra.mxu0 0.0
    %5845 = vmatprep.subr.mxu0 0.0
    %5846 = vmatpush1.msra.mxu0 0.0
    %5847 = vmatprep.subr.mxu0 0.0
    %5848 = vmatpush1.msra.mxu0 0.0
    %5849 = vmatprep.subr.mxu0 0.0
    %5850 = vmatpush1.msra.mxu0 0.0
    %5851 = vmatprep.subr.mxu0 0.0
    %5852 = vmatpush1.msra.mxu0 0.0
    %5853 = vmatprep.subr.mxu0 0.0
    %5854 = vmatpush1.msra.mxu0 0.0
    %5855 = vmatprep.subr.mxu0 0.0
    %5856 = vmatpush1.msra.mxu0 0.0
    %5857 = vmatprep.subr.mxu0 0.0
    %5858 = vmatpush1.msra.mxu0 0.0
    %5859 = vmatprep.subr.mxu0 0.0
    %5860 = vmatpush1.msra.mxu0 0.0
    %5861 = vmatprep.subr.mxu0 0.0
    %5862 = vmatpush1.msra.mxu0 0.0
    %5863 = vmatprep.subr.mxu0 0.0
    %5864 = vmatpush1.msra.mxu0 0.0
    %5865 = vmatprep.subr.mxu0 0.0
    %5866 = vmatpush1.msra.mxu0 0.0
    %5867 = vmatprep.subr.mxu0 0.0
    %5868 = vmatpush1.msra.mxu0 0.0
    %5869 = vmatprep.subr.mxu0 0.0
    %5870 = vmatpush1.msra.mxu0 0.0
    %5871 = vmatprep.subr.mxu0 0.0
    %5872 = vmatpush1.msra.mxu0 0.0
    %5873 = vmatprep.subr.mxu0 0.0
    %5874 = vmatpush1.msra.mxu0 0.0
    %5875 = vmatprep.subr.mxu0 0.0
    %5876 = vmatpush1.msra.mxu0 0.0
    %5877 = vmatprep.subr.mxu0 0.0
    %5878 = vmatpush1.msra.mxu0 0.0
    %5879 = vmatprep.subr.mxu0 0.0
    %5880 = vmatpush1.msra.mxu0 0.0
    %5881 = vmatprep.subr.mxu0 0.0
    %5882 = vmatpush1.msra.mxu0 0.0
    %5883 = vmatprep.subr.mxu0 0.0
    %5884 = vmatpush1.msra.mxu0 0.0
    %5885 = vmatprep.mubr.f32.mxu0 0.0
    %5886 = vmatmul.mubr.f32.gmra.mrb[0].mxu0 %v5819
    %v5887 = vpop.f32.mrb[0].mxu0
    %v5888 = vadd.f32 %v5816, %v5887
    %v5889 = vpop.f32.mrb[0].mxu0
    %5890 = vdwg.mxu0
    %v5891 = vxor.u32 %v5888, 2147483648
    %v5892 = vmul.f32 %v5891, 1.442695
    %v5893 = vpow.pop %v5892
    %v5894 = vadd.f32 %v5893, 1.0
    %v5895 = vrcp.pop %v5894
    %v5896 = vmul.f32 1.0, %v5895
    %v5897 = vmul.f32 %v5888, %v5896
    %vm5898 = vcmask 58368
    %5899 = vst.msk [vmem:[#allocation45] sm:$0x3] %vm5898, %v5897
    // Predicated region
    $region250: #{ecg_cnn_forward.1} parent=1 // pred_check
      _
    $region251: #{ecg_cnn_forward.1} parent=1 // pred_check_branch
      %5901 = sbr.rel (0) target = $region253
    $region252: #{ecg_cnn_forward.1} parent=1 // pred_region
      %s5903 = ssub.s32 32, 32
      %5904 = vsyncadd [#allocation11], %s5903
      %s5906 = sshll.u32 [#allocation45], 4
      %s5907 = int_to_ptr.vmem [resolvable:$true] %s5906
      %5909 = dma.vmem_to_hbm [thread:$0]  %s5907, 32, %s79, [#allocation11]
    $region253: #{ecg_cnn_forward.1} parent=1 // pred_fallthru
      _
    // Predicated region
    $region254: #{ecg_cnn_forward.1} parent=1 // pred_check
      _
    $region255: #{ecg_cnn_forward.1} parent=1 // pred_check_branch
      %5911 = sbr.rel (0) target = $region257
    $region256: #{ecg_cnn_forward.1} parent=1 // pred_region
      %5912 = dma.done [#allocation11], 32
    $region257: #{ecg_cnn_forward.1} parent=1 // pred_fallthru
      _
    %5913 = vsyncpa [#allocation10], 1
    %5914 = vsyncpa [#allocation13], 1
    %5915 = vsyncpa [#allocation16], 1
    %5916 = vsyncpa [#allocation19], 1
    %5917 = vsyncpa [#allocation22], 1
    %5918 = vsyncpa [#allocation25], 1
    %5919 = vsyncpa [#allocation28], 1
    %5920 = vsyncpa [#allocation31], 1
    %5921 = vsyncpa [#allocation34], 1
    %5922 = vsyncpa [#allocation37], 1
    %5923 = vsyncpa [#allocation40], 1
    %5924 = vsyncpa [#allocation43], 1
    %5925 = vsyncpa [#allocation11], 1

</llo_original>
